<compile_context>
chip_gen: v7x
topology: tpu7x:2x2x1
jax: 0.10.0
libtpu: 0.0.40
codegen_flags: <defaults>
</compile_context>

<pallas_src>
import numpy as np
import jax
import jax.numpy as jnp
from jax.experimental import pallas as pl
from jax.experimental.pallas import tpu as pltpu


_CONV_ORDER = ('conv1', 'conv2',
               'conv31', 'conv32', 'conv33', 'conv34',
               'conv41', 'conv42', 'conv43', 'conv44', 'conv45', 'conv46')


# ---------------------------------------------------------------------------
# Static layout helpers (pure Python / numpy)
# ---------------------------------------------------------------------------
def _margin(wp):
    """Front margin rows so the interior write offset (margin + wp) is a
    multiple of 8 sublanes (and >= 1 so every conv tap window is in bounds)."""
    m = (-wp) % 8
    return m if m > 0 else 8


def _h_eff(h, bt):
    """BT images stacked vertically (each with its own 1-row zero pad top and
    bottom) behave exactly like a single image of height BT*(h+2) - 2."""
    return bt * (h + 2) - 2


def _buf_rows(h_eff, w):
    wp = w + 2
    return _margin(wp) + (h_eff + 2) * wp + 1


def _valid_mask(h, w, bt):
    """(h_eff*(w+2), 1) f32 mask: 1 on real pixels of every stacked image,
    0 on pad columns and on inter-image pad rows."""
    he = _h_eff(h, bt)
    wp = w + 2
    r = np.arange(he * wp) // wp
    c = np.arange(he * wp) % wp
    rr = r % (h + 2)
    m = ((c >= 1) & (c <= w) & (rr < h)).astype(np.float32)
    return jnp.asarray(m[:, None])


# ---------------------------------------------------------------------------
# Fused kernel
# ---------------------------------------------------------------------------
def _make_kernel(H, W, BT):
    dims = [(H, W), (H // 2, W // 2), (H // 4, W // 4), (H // 8, W // 8)]
    he = [_h_eff(h, BT) for h, _ in dims]
    wp = [w + 2 for _, w in dims]
    m0 = [_margin(p) for p in wp]
    M = [he[k] * wp[k] for k in range(4)]          # rows of a conv-output slab
    lo = [m0[k] + wp[k] for k in range(4)]         # first interior buffer row

    def kernel(x_ref, mask2, mask3, hw1, hb1, hw2, hb2, *rest):
        conv = rest[:36]
        o_ref = rest[36]
        (st1, buf1, st2, pbuf2, buf2a, buf2b,
         st3, pbuf3, buf3a, buf3b, buf3c) = rest[37:48]

        (cw1, cs1, cb1, cw2, cs2, cb2,
         cw31, cs31, cb31, cw32, cs32, cb32,
         cw33, cs33, cb33, cw34, cs34, cb34,
         cw41, cs41, cb41, cw42, cs42, cb42,
         cw43, cs43, cb43, cw44, cs44, cb44,
         cw45, cs45, cb45, cw46, cs46, cb46) = conv

        def bn_relu(y, scale, bias):
            return jnp.maximum(y * scale[...] + bias[...], 0.0)

        def conv3x3(buf, stage, w9, scale, bias):
            # im2col: 9 shifted whole-image windows concatenated along lanes,
            # then ONE MXU dot with K = 9*Cin.
            p = wp[stage]
            cols = []
            for dh in range(3):
                for dw in range(3):
                    off = m0[stage] - 1 + dh * p + dw
                    cols.append(buf[off:off + M[stage], :])
            x = jnp.concatenate(cols, axis=-1)
            y = jnp.dot(x, w9[...], preferred_element_type=jnp.float32)
            return bn_relu(y, scale, bias)

        def conv1x1(x, w, scale, bias):
            y = jnp.dot(x, w[...], preferred_element_type=jnp.float32)
            return bn_relu(y, scale, bias)

        def store_masked(buf, stage, val, mask):
            # Single pass over the buffer per step: zero head, masked interior,
            # zero tail (no redundant full-buffer zero followed by a rewrite).
            cols = val.shape[-1]
            start = lo[stage]
            mrows = M[stage]
            nrows = buf.shape[0]
            buf[0:start, :] = jnp.zeros((start, cols), jnp.float32)
            buf[start:start + mrows, :] = jnp.where(mask[...] > 0.5, val, 0.0)
            buf[start + mrows:nrows, :] = jnp.zeros(
                (nrows - start - mrows, cols), jnp.float32)

        def maxpool_into(st, dst_buf, src_stage, dst_stage):
            # 2x2 / stride-2 maxpool: 4 strided sublane reads per output row
            # from the staging slab + VPU max, written into the next stage's
            # padded-flat buffer interior.  Pad rows / pad cols / margins of
            # the destination are re-zeroed per step (cheap; keeps grid steps
            # independent so "parallel" megacore sharding is safe).
            hs, ws = dims[src_stage]
            hd, wd = dims[dst_stage]
            ps, pd = wp[src_stage], wp[dst_stage]
            dst_buf[...] = jnp.zeros(dst_buf.shape, dst_buf.dtype)
            for i in range(BT):
                for ro in range(hd):
                    r0 = (i * (hs + 2) + 2 * ro) * ps
                    r1 = r0 + ps
                    p00 = st[pl.ds(r0 + 1, wd, 2), :]
                    p01 = st[pl.ds(r0 + 2, wd, 2), :]
                    p10 = st[pl.ds(r1 + 1, wd, 2), :]
                    p11 = st[pl.ds(r1 + 2, wd, 2), :]
                    pooled = jnp.maximum(jnp.maximum(p00, p01),
                                         jnp.maximum(p10, p11))
                    dst = m0[dst_stage] + (i * (hd + 2) + ro + 1) * pd + 1
                    dst_buf[dst:dst + wd, :] = pooled

        # ---- stage 0: conv1 on wrapper-built im2col input, then maxpool2 ----
        a1 = bn_relu(jnp.dot(x_ref[0], cw1[...],
                             preferred_element_type=jnp.float32), cs1, cb1)
        st1[...] = a1
        maxpool_into(st1, buf1, 0, 1)

        # ---- stage 1: conv2 + maxpool3 --------------------------------------
        a2 = conv3x3(buf1, 1, cw2, cs2, cb2)
        st2[...] = a2
        maxpool_into(st2, pbuf2, 1, 2)

        # ---- stage 2: conv31(1x1) conv32 conv33(1x1) conv34 + maxpool4 ------
        x2 = pbuf2[lo[2]:lo[2] + M[2], :]
        store_masked(buf2a, 2, conv1x1(x2, cw31, cs31, cb31), mask2)
        a32 = conv3x3(buf2a, 2, cw32, cs32, cb32)
        store_masked(buf2b, 2, conv1x1(a32, cw33, cs33, cb33), mask2)
        a34 = conv3x3(buf2b, 2, cw34, cs34, cb34)
        st3[...] = a34
        maxpool_into(st3, pbuf3, 2, 3)

        # ---- stage 3: conv41 .. conv46 ---------------------------------------
        x3 = pbuf3[lo[3]:lo[3] + M[3], :]
        store_masked(buf3a, 3, conv1x1(x3, cw41, cs41, cb41), mask3)
        a42 = conv3x3(buf3a, 3, cw42, cs42, cb42)
        store_masked(buf3b, 3, conv1x1(a42, cw43, cs43, cb43), mask3)
        a44 = conv3x3(buf3b, 3, cw44, cs44, cb44)
        store_masked(buf3c, 3, conv1x1(a44, cw45, cs45, cb45), mask3)
        a46 = conv3x3(buf3c, 3, cw46, cs46, cb46)

        # ---- head: per-image global avg pool + Linear(64->16) + ReLU + Linear
        h3, w3 = dims[3]
        p3 = wp[3]
        a46m = jnp.where(mask3[...] > 0.5, a46, 0.0)
        inv = 1.0 / float(h3 * w3)
        rows = []
        for i in range(BT):
            s = i * (h3 + 2) * p3
            rows.append(jnp.sum(a46m[s:s + h3 * p3, :], axis=0, keepdims=True))
        pooled = jnp.concatenate(rows, axis=0) * inv              # (BT, 64)
        hid = jnp.maximum(
            jnp.dot(pooled, hw1[...], preferred_element_type=jnp.float32)
            + hb1[...], 0.0)
        out = jnp.dot(hid, hw2[...], preferred_element_type=jnp.float32) + hb2[...]
        o_ref[0] = out.astype(o_ref.dtype)

    return kernel


# ---------------------------------------------------------------------------
# Wrapper
# ---------------------------------------------------------------------------
def bed_forward(params, x_nchw, images_per_step=None):
    """Eval-mode forward of BED_CLASSIFIER.  x_nchw: (B, Cin, H, W) f32."""
    x = jnp.transpose(x_nchw, (0, 2, 3, 1)).astype(jnp.float32)   # NHWC
    B, H, W, Cin = x.shape
    assert H % 8 == 0 and W % 8 == 0, "spatial dims must be divisible by 8"

    # Images per grid step (largest divisor of B that is <= 8).
    if images_per_step is None:
        BT = 1
        for c in range(1, min(B, 8) + 1):
            if B % c == 0:
                BT = c
    else:
        BT = int(images_per_step)
    assert B % BT == 0
    G = B // BT

    dims = [(H, W), (H // 2, W // 2), (H // 4, W // 4), (H // 8, W // 8)]
    he = [_h_eff(h, BT) for h, _ in dims]
    Ms = [he[k] * (dims[k][1] + 2) for k in range(4)]
    nb = [_buf_rows(he[k], dims[k][1]) for k in range(4)]
    M0 = Ms[0]
    wp0 = W + 2

    # Tall-stacked zero-padded input, im2col'd (9 taps along channels) in XLA
    # so the DMA'd block is lane-dense and conv1 is a single in-kernel dot.
    xp = jnp.pad(x, ((0, 0), (1, 1), (1, 1), (0, 0)))              # (B,H+2,W+2,C)
    xt = xp.reshape(G, BT * (H + 2), W + 2, Cin)
    xt = jnp.pad(xt, ((0, 0), (0, 0), (1, 1), (0, 0)))             # width W+4
    taps = []
    for dh in range(3):
        for dw in range(3):
            taps.append(xt[:, dh:dh + he[0], dw:dw + wp0, :])
    xi = jnp.concatenate(taps, axis=-1).reshape(G, M0, 9 * Cin)

    mask2 = _valid_mask(dims[2][0], dims[2][1], BT)
    mask3 = _valid_mask(dims[3][0], dims[3][1], BT)

    hw1, hb1, hw2, hb2 = params['head']
    flat_inputs = [xi, mask2, mask3, hw1, hb1, hw2, hb2]
    for name in _CONV_ORDER:
        flat_inputs.extend(params[name])

    def _const_spec(a):
        nd = a.ndim
        return pl.BlockSpec(a.shape, lambda g, _nd=nd: (0,) * _nd)

    in_specs = ([pl.BlockSpec((1, M0, 9 * Cin), lambda g: (g, 0, 0))]
                + [_const_spec(a) for a in flat_inputs[1:]])

    scratch_shapes = [
        pltpu.VMEM((Ms[0], 32), jnp.float32),   # st1  : conv1 output slab
        pltpu.VMEM((nb[1], 32), jnp.float32),   # buf1 : conv2 input buffer
        pltpu.VMEM((Ms[1], 16), jnp.float32),   # st2  : conv2 output slab
        pltpu.VMEM((nb[2], 16), jnp.float32),   # pbuf2: conv31 input buffer
        pltpu.VMEM((nb[2], 16), jnp.float32),   # buf2a: conv32 input buffer
        pltpu.VMEM((nb[2], 32), jnp.float32),   # buf2b: conv34 input buffer
        pltpu.VMEM((Ms[2], 64), jnp.float32),   # st3  : conv34 output slab
        pltpu.VMEM((nb[3], 64), jnp.float32),   # pbuf3: conv41 input buffer
        pltpu.VMEM((nb[3], 32), jnp.float32),   # buf3a: conv42 input buffer
        pltpu.VMEM((nb[3], 32), jnp.float32),   # buf3b: conv44 input buffer
        pltpu.VMEM((nb[3], 32), jnp.float32),   # buf3c: conv46 input buffer
    ]

    out = pl.pallas_call(
        _make_kernel(H, W, BT),
        out_shape=jax.ShapeDtypeStruct((G, BT, 2), jnp.float32),
        grid=(G,),
        in_specs=in_specs,
        out_specs=pl.BlockSpec((1, BT, 2), lambda g: (g, 0, 0)),
        scratch_shapes=scratch_shapes,
        compiler_params=pltpu.CompilerParams(
            dimension_semantics=("parallel",)),
    )(*flat_inputs)
    return out.reshape(B, 2)


# ---------------------------------------------------------------------------
# Pure-JAX reference (same folded parameters) for correctness checking
# ---------------------------------------------------------------------------
def bed_reference(params, x_nchw):
    x = jnp.transpose(x_nchw, (0, 2, 3, 1)).astype(jnp.float32)
    hi = jax.lax.Precision.HIGHEST

    def conv3(x, w9, scale, bias):
        cout = w9.shape[1]
        cin = w9.shape[0] // 9
        w = w9.reshape(3, 3, cin, cout)
        y = jax.lax.conv_general_dilated(
            x, w, window_strides=(1, 1), padding=((1, 1), (1, 1)),
            dimension_numbers=('NHWC', 'HWIO', 'NHWC'), precision=hi)
        return jnp.maximum(y * scale.reshape(1, 1, 1, -1)
                           + bias.reshape(1, 1, 1, -1), 0.0)

    def conv1(x, w, scale, bias):
        y = jnp.einsum('bhwi,io->bhwo', x, w, precision=hi)
        return jnp.maximum(y * scale.reshape(1, 1, 1, -1)
                           + bias.reshape(1, 1, 1, -1), 0.0)

    def pool(x):
        return jax.lax.reduce_window(x, -jnp.inf, jax.lax.max,
                                     (1, 2, 2, 1), (1, 2, 2, 1), 'VALID')

    x = pool(conv3(x, *params['conv1']))
    x = pool(conv3(x, *params['conv2']))
    x = conv3(conv1(x, *params['conv31']), *params['conv32'])
    x = pool(conv3(conv1(x, *params['conv33']), *params['conv34']))
    x = conv3(conv1(x, *params['conv41']), *params['conv42'])
    x = conv3(conv1(x, *params['conv43']), *params['conv44'])
    x = conv3(conv1(x, *params['conv45']), *params['conv46'])
    w1, b1, w2, b2 = params['head']
    p = jnp.mean(x, axis=(1, 2))
    h = jnp.maximum(jnp.dot(p, w1, precision=hi) + b1, 0.0)
    return jnp.dot(h, w2, precision=hi) + b2


# ---------------------------------------------------------------------------
# Deterministic synthetic parameter initialization (eval-mode BN folded)
# ---------------------------------------------------------------------------
_BN_EPS = 1e-5


def _fold_bn(key, cout):
    k1, k2, k3, k4 = jax.random.split(key, 4)
    gamma = jax.random.uniform(k1, (cout,), minval=0.5, maxval=1.5)
    beta = 0.1 * jax.random.normal(k2, (cout,))
    mean = 0.1 * jax.random.normal(k3, (cout,))
    var = jax.random.uniform(k4, (cout,), minval=0.5, maxval=1.5)
    scale = gamma / jnp.sqrt(var + _BN_EPS)
    bias = beta - mean * scale
    return (scale.reshape(1, cout).astype(jnp.float32),
            bias.reshape(1, cout).astype(jnp.float32))


def _conv3x3_params(key, cin, cout):
    kw, kb = jax.random.split(key)
    w = 0.1 * jax.random.normal(kw, (cout, cin, 3, 3))          # PyTorch layout
    w = jnp.transpose(w, (2, 3, 1, 0)).reshape(9 * cin, cout).astype(jnp.float32)
    scale, bias = _fold_bn(kb, cout)
    return (w, scale, bias)


def _conv1x1_params(key, cin, cout):
    kw, kb = jax.random.split(key)
    w = 0.1 * jax.random.normal(kw, (cout, cin, 1, 1))
    w = jnp.transpose(w, (2, 3, 1, 0)).reshape(cin, cout).astype(jnp.float32)
    scale, bias = _fold_bn(kb, cout)
    return (w, scale, bias)


def _head_params(key):
    # linear51: 64->16, linear52: 16->2 (module hardcodes out_features=2).
    k1, k2, k3, k4 = jax.random.split(key, 4)
    w1 = (jax.random.normal(k1, (64, 16)) * 0.125).astype(jnp.float32)
    b1 = (0.1 * jax.random.normal(k2, (1, 16))).astype(jnp.float32)
    w2 = (jax.random.normal(k3, (16, 2)) * 0.25).astype(jnp.float32)
    b2 = (0.1 * jax.random.normal(k4, (1, 2))).astype(jnp.float32)
    return (w1, b1, w2, b2)


def build_params(key, in_channels=3):
    ks = jax.random.split(key, 13)
    return {
        'conv1':  _conv3x3_params(ks[0], in_channels, 32),
        'conv2':  _conv3x3_params(ks[1], 32, 16),
        'conv31': _conv1x1_params(ks[2], 16, 16),
        'conv32': _conv3x3_params(ks[3], 16, 32),
        'conv33': _conv1x1_params(ks[4], 32, 32),
        'conv34': _conv3x3_params(ks[5], 32, 64),
        'conv41': _conv1x1_params(ks[6], 64, 32),
        'conv42': _conv3x3_params(ks[7], 32, 64),
        'conv43': _conv1x1_params(ks[8], 64, 32),
        'conv44': _conv3x3_params(ks[9], 32, 64),
        'conv45': _conv1x1_params(ks[10], 64, 32),
        'conv46': _conv3x3_params(ks[11], 32, 64),
        'head':   _head_params(ks[12]),
    }


if __name__ == "__main__":
    key = jax.random.PRNGKey(0)
    kx, kp = jax.random.split(key)
    # PyTorch-convention input: NCHW, batch=2, in_channels=3, 16x16 spatial.
    x = jax.random.normal(kx, (2, 3, 16, 16), jnp.float32)
    params = build_params(kp, in_channels=3)

    out = jax.block_until_ready(jax.jit(bed_forward)(params, x))
    assert out.shape == (2, 2) and out.dtype == jnp.float32

    # Correctness check against a pure-JAX (XLA) reference with the same
    # folded parameters.  All-f32 operands, so a tight relative tolerance is
    # used (catches any indexing / layout bug, not just gross errors).
    ref = jax.block_until_ready(jax.jit(bed_reference)(params, x))
    err = float(jnp.max(jnp.abs(out - ref)))
    scale = float(jnp.max(jnp.abs(ref))) + 1e-6
    assert err <= 1e-3 * scale, f"mismatch: max_err={err}, scale={scale}"

    print("KERNEL_OK")
</pallas_src>

<mosaic_0001>
module attributes {stable_mosaic.version = 11 : i64} {
  func.func @kernel(%arg0: i32, %arg1: memref<1x612x27xf32, #tpu.memory_space<vmem>>, %arg2: memref<60x1xf32, #tpu.memory_space<vmem>>, %arg3: memref<24x1xf32, #tpu.memory_space<vmem>>, %arg4: memref<64x16xf32, #tpu.memory_space<vmem>>, %arg5: memref<1x16xf32, #tpu.memory_space<vmem>>, %arg6: memref<16x2xf32, #tpu.memory_space<vmem>>, %arg7: memref<1x2xf32, #tpu.memory_space<vmem>>, %arg8: memref<27x32xf32, #tpu.memory_space<vmem>>, %arg9: memref<1x32xf32, #tpu.memory_space<vmem>>, %arg10: memref<1x32xf32, #tpu.memory_space<vmem>>, %arg11: memref<288x16xf32, #tpu.memory_space<vmem>>, %arg12: memref<1x16xf32, #tpu.memory_space<vmem>>, %arg13: memref<1x16xf32, #tpu.memory_space<vmem>>, %arg14: memref<16x16xf32, #tpu.memory_space<vmem>>, %arg15: memref<1x16xf32, #tpu.memory_space<vmem>>, %arg16: memref<1x16xf32, #tpu.memory_space<vmem>>, %arg17: memref<144x32xf32, #tpu.memory_space<vmem>>, %arg18: memref<1x32xf32, #tpu.memory_space<vmem>>, %arg19: memref<1x32xf32, #tpu.memory_space<vmem>>, %arg20: memref<32x32xf32, #tpu.memory_space<vmem>>, %arg21: memref<1x32xf32, #tpu.memory_space<vmem>>, %arg22: memref<1x32xf32, #tpu.memory_space<vmem>>, %arg23: memref<288x64xf32, #tpu.memory_space<vmem>>, %arg24: memref<1x64xf32, #tpu.memory_space<vmem>>, %arg25: memref<1x64xf32, #tpu.memory_space<vmem>>, %arg26: memref<64x32xf32, #tpu.memory_space<vmem>>, %arg27: memref<1x32xf32, #tpu.memory_space<vmem>>, %arg28: memref<1x32xf32, #tpu.memory_space<vmem>>, %arg29: memref<288x64xf32, #tpu.memory_space<vmem>>, %arg30: memref<1x64xf32, #tpu.memory_space<vmem>>, %arg31: memref<1x64xf32, #tpu.memory_space<vmem>>, %arg32: memref<64x32xf32, #tpu.memory_space<vmem>>, %arg33: memref<1x32xf32, #tpu.memory_space<vmem>>, %arg34: memref<1x32xf32, #tpu.memory_space<vmem>>, %arg35: memref<288x64xf32, #tpu.memory_space<vmem>>, %arg36: memref<1x64xf32, #tpu.memory_space<vmem>>, %arg37: memref<1x64xf32, #tpu.memory_space<vmem>>, %arg38: memref<64x32xf32, #tpu.memory_space<vmem>>, %arg39: memref<1x32xf32, #tpu.memory_space<vmem>>, %arg40: memref<1x32xf32, #tpu.memory_space<vmem>>, %arg41: memref<288x64xf32, #tpu.memory_space<vmem>>, %arg42: memref<1x64xf32, #tpu.memory_space<vmem>>, %arg43: memref<1x64xf32, #tpu.memory_space<vmem>>, %arg44: memref<1x2x2xf32, #tpu.memory_space<vmem>>, %arg45: memref<612x32xf32, #tpu.memory_space<vmem>>, %arg46: memref<207x32xf32, #tpu.memory_space<vmem>>, %arg47: memref<180x16xf32, #tpu.memory_space<vmem>>, %arg48: memref<75x16xf32, #tpu.memory_space<vmem>>, %arg49: memref<75x16xf32, #tpu.memory_space<vmem>>, %arg50: memref<75x32xf32, #tpu.memory_space<vmem>>, %arg51: memref<60x64xf32, #tpu.memory_space<vmem>>, %arg52: memref<37x64xf32, #tpu.memory_space<vmem>>, %arg53: memref<37x32xf32, #tpu.memory_space<vmem>>, %arg54: memref<37x32xf32, #tpu.memory_space<vmem>>, %arg55: memref<37x32xf32, #tpu.memory_space<vmem>>) attributes {dimension_semantics = [#tpu.dimension_semantics<parallel>], iteration_bounds = array<i64: 1>, scalar_prefetch = 0 : i64, scratch_operands = 11 : i64, tpu.core_type = #tpu.core_type<tc>, window_params = [{transform_indices = @transform_0, window_bounds = array<i64: 1, 612, 27>}, {pipeline_mode = #tpu.pipeline_mode<synchronous>, transform_indices = @transform_1, window_bounds = array<i64: 60, 1>}, {pipeline_mode = #tpu.pipeline_mode<synchronous>, transform_indices = @transform_2, window_bounds = array<i64: 24, 1>}, {pipeline_mode = #tpu.pipeline_mode<synchronous>, transform_indices = @transform_3, window_bounds = array<i64: 64, 16>}, {pipeline_mode = #tpu.pipeline_mode<synchronous>, transform_indices = @transform_4, window_bounds = array<i64: 1, 16>}, {pipeline_mode = #tpu.pipeline_mode<synchronous>, transform_indices = @transform_5, window_bounds = array<i64: 16, 2>}, {pipeline_mode = #tpu.pipeline_mode<synchronous>, transform_indices = @transform_6, window_bounds = array<i64: 1, 2>}, {pipeline_mode = #tpu.pipeline_mode<synchronous>, transform_indices = @transform_7, window_bounds = array<i64: 27, 32>}, {pipeline_mode = #tpu.pipeline_mode<synchronous>, transform_indices = @transform_8, window_bounds = array<i64: 1, 32>}, {pipeline_mode = #tpu.pipeline_mode<synchronous>, transform_indices = @transform_9, window_bounds = array<i64: 1, 32>}, {pipeline_mode = #tpu.pipeline_mode<synchronous>, transform_indices = @transform_10, window_bounds = array<i64: 288, 16>}, {pipeline_mode = #tpu.pipeline_mode<synchronous>, transform_indices = @transform_11, window_bounds = array<i64: 1, 16>}, {pipeline_mode = #tpu.pipeline_mode<synchronous>, transform_indices = @transform_12, window_bounds = array<i64: 1, 16>}, {pipeline_mode = #tpu.pipeline_mode<synchronous>, transform_indices = @transform_13, window_bounds = array<i64: 16, 16>}, {pipeline_mode = #tpu.pipeline_mode<synchronous>, transform_indices = @transform_14, window_bounds = array<i64: 1, 16>}, {pipeline_mode = #tpu.pipeline_mode<synchronous>, transform_indices = @transform_15, window_bounds = array<i64: 1, 16>}, {pipeline_mode = #tpu.pipeline_mode<synchronous>, transform_indices = @transform_16, window_bounds = array<i64: 144, 32>}, {pipeline_mode = #tpu.pipeline_mode<synchronous>, transform_indices = @transform_17, window_bounds = array<i64: 1, 32>}, {pipeline_mode = #tpu.pipeline_mode<synchronous>, transform_indices = @transform_18, window_bounds = array<i64: 1, 32>}, {pipeline_mode = #tpu.pipeline_mode<synchronous>, transform_indices = @transform_19, window_bounds = array<i64: 32, 32>}, {pipeline_mode = #tpu.pipeline_mode<synchronous>, transform_indices = @transform_20, window_bounds = array<i64: 1, 32>}, {pipeline_mode = #tpu.pipeline_mode<synchronous>, transform_indices = @transform_21, window_bounds = array<i64: 1, 32>}, {pipeline_mode = #tpu.pipeline_mode<synchronous>, transform_indices = @transform_22, window_bounds = array<i64: 288, 64>}, {pipeline_mode = #tpu.pipeline_mode<synchronous>, transform_indices = @transform_23, window_bounds = array<i64: 1, 64>}, {pipeline_mode = #tpu.pipeline_mode<synchronous>, transform_indices = @transform_24, window_bounds = array<i64: 1, 64>}, {pipeline_mode = #tpu.pipeline_mode<synchronous>, transform_indices = @transform_25, window_bounds = array<i64: 64, 32>}, {pipeline_mode = #tpu.pipeline_mode<synchronous>, transform_indices = @transform_26, window_bounds = array<i64: 1, 32>}, {pipeline_mode = #tpu.pipeline_mode<synchronous>, transform_indices = @transform_27, window_bounds = array<i64: 1, 32>}, {pipeline_mode = #tpu.pipeline_mode<synchronous>, transform_indices = @transform_28, window_bounds = array<i64: 288, 64>}, {pipeline_mode = #tpu.pipeline_mode<synchronous>, transform_indices = @transform_29, window_bounds = array<i64: 1, 64>}, {pipeline_mode = #tpu.pipeline_mode<synchronous>, transform_indices = @transform_30, window_bounds = array<i64: 1, 64>}, {pipeline_mode = #tpu.pipeline_mode<synchronous>, transform_indices = @transform_31, window_bounds = array<i64: 64, 32>}, {pipeline_mode = #tpu.pipeline_mode<synchronous>, transform_indices = @transform_32, window_bounds = array<i64: 1, 32>}, {pipeline_mode = #tpu.pipeline_mode<synchronous>, transform_indices = @transform_33, window_bounds = array<i64: 1, 32>}, {pipeline_mode = #tpu.pipeline_mode<synchronous>, transform_indices = @transform_34, window_bounds = array<i64: 288, 64>}, {pipeline_mode = #tpu.pipeline_mode<synchronous>, transform_indices = @transform_35, window_bounds = array<i64: 1, 64>}, {pipeline_mode = #tpu.pipeline_mode<synchronous>, transform_indices = @transform_36, window_bounds = array<i64: 1, 64>}, {pipeline_mode = #tpu.pipeline_mode<synchronous>, transform_indices = @transform_37, window_bounds = array<i64: 64, 32>}, {pipeline_mode = #tpu.pipeline_mode<synchronous>, transform_indices = @transform_38, window_bounds = array<i64: 1, 32>}, {pipeline_mode = #tpu.pipeline_mode<synchronous>, transform_indices = @transform_39, window_bounds = array<i64: 1, 32>}, {pipeline_mode = #tpu.pipeline_mode<synchronous>, transform_indices = @transform_40, window_bounds = array<i64: 288, 64>}, {pipeline_mode = #tpu.pipeline_mode<synchronous>, transform_indices = @transform_41, window_bounds = array<i64: 1, 64>}, {pipeline_mode = #tpu.pipeline_mode<synchronous>, transform_indices = @transform_42, window_bounds = array<i64: 1, 64>}, {transform_indices = @transform_43, window_bounds = array<i64: 1, 2, 2>}]} {
    %c0 = arith.constant 0 : index
    %c0_0 = arith.constant 0 : index
    %c0_1 = arith.constant 0 : index
    %0 = vector.load %arg1[%c0, %c0_0, %c0_1] : memref<1x612x27xf32, #tpu.memory_space<vmem>>, vector<1x612x27xf32>
    %1 = vector.shape_cast %0 : vector<1x612x27xf32> to vector<612x27xf32>
    %c0_2 = arith.constant 0 : index
    %c0_3 = arith.constant 0 : index
    %2 = vector.load %arg8[%c0_2, %c0_3] : memref<27x32xf32, #tpu.memory_space<vmem>>, vector<27x32xf32>
    %cst = arith.constant dense<0.000000e+00> : vector<612x32xf32>
    %3 = tpu.matmul %1, %2, %cst {dimension_numbers = #tpu.dot_dimension_numbers<[1], [0], [0], [1], [0, 0, 1, 1], [], []>} : vector<612x27xf32>, vector<27x32xf32>, vector<612x32xf32> -> vector<612x32xf32>
    %c0_4 = arith.constant 0 : index
    %c0_5 = arith.constant 0 : index
    %4 = vector.load %arg9[%c0_4, %c0_5] : memref<1x32xf32, #tpu.memory_space<vmem>>, vector<1x32xf32>
    %5 = vector.broadcast %4 : vector<1x32xf32> to vector<612x32xf32>
    %6 = arith.mulf %3, %5 : vector<612x32xf32>
    %c0_6 = arith.constant 0 : index
    %c0_7 = arith.constant 0 : index
    %7 = vector.load %arg10[%c0_6, %c0_7] : memref<1x32xf32, #tpu.memory_space<vmem>>, vector<1x32xf32>
    %8 = vector.broadcast %7 : vector<1x32xf32> to vector<612x32xf32>
    %9 = arith.addf %6, %8 : vector<612x32xf32>
    %cst_8 = arith.constant 0.000000e+00 : f32
    %10 = vector.broadcast %cst_8 : f32 to vector<612x32xf32>
    %11 = arith.maximumf %9, %10 : vector<612x32xf32>
    %c0_9 = arith.constant 0 : index
    %c0_10 = arith.constant 0 : index
    %12 = vector.load %arg45[%c0_9, %c0_10] : memref<612x32xf32, #tpu.memory_space<vmem>>, vector<612x32xf32>
    tpu.vector_store %arg45[%c0_9, %c0_10], %11 {strides = array<i32>} : memref<612x32xf32, #tpu.memory_space<vmem>>, vector<612x32xf32>,
    %cst_11 = arith.constant 0.000000e+00 : f32
    %13 = vector.broadcast %cst_11 : f32 to vector<207x32xf32>
    %c0_12 = arith.constant 0 : index
    %c0_13 = arith.constant 0 : index
    %14 = vector.load %arg46[%c0_12, %c0_13] : memref<207x32xf32, #tpu.memory_space<vmem>>, vector<207x32xf32>
    tpu.vector_store %arg46[%c0_12, %c0_13], %13 {strides = array<i32>} : memref<207x32xf32, #tpu.memory_space<vmem>>, vector<207x32xf32>,
    %c1 = arith.constant 1 : index
    %c0_14 = arith.constant 0 : index
    %15 = tpu.strided_load %arg45[%c1, %c0_14] {strides = array<i32: 2, 1>} : memref<612x32xf32, #tpu.memory_space<vmem>>, vector<8x32xf32>
    %c2 = arith.constant 2 : index
    %c0_15 = arith.constant 0 : index
    %16 = tpu.strided_load %arg45[%c2, %c0_15] {strides = array<i32: 2, 1>} : memref<612x32xf32, #tpu.memory_space<vmem>>, vector<8x32xf32>
    %c19 = arith.constant 19 : index
    %c0_16 = arith.constant 0 : index
    %17 = tpu.strided_load %arg45[%c19, %c0_16] {strides = array<i32: 2, 1>} : memref<612x32xf32, #tpu.memory_space<vmem>>, vector<8x32xf32>
    %c20 = arith.constant 20 : index
    %c0_17 = arith.constant 0 : index
    %18 = tpu.strided_load %arg45[%c20, %c0_17] {strides = array<i32: 2, 1>} : memref<612x32xf32, #tpu.memory_space<vmem>>, vector<8x32xf32>
    %19 = arith.maximumf %15, %16 : vector<8x32xf32>
    %20 = arith.maximumf %17, %18 : vector<8x32xf32>
    %21 = arith.maximumf %19, %20 : vector<8x32xf32>
    %c17 = arith.constant 17 : index
    %c0_18 = arith.constant 0 : index
    %22 = vector.load %arg46[%c17, %c0_18] : memref<207x32xf32, #tpu.memory_space<vmem>>, vector<8x32xf32>
    tpu.vector_store %arg46[%c17, %c0_18], %21 {strides = array<i32>} : memref<207x32xf32, #tpu.memory_space<vmem>>, vector<8x32xf32>,
    %c37 = arith.constant 37 : index
    %c0_19 = arith.constant 0 : index
    %23 = tpu.strided_load %arg45[%c37, %c0_19] {strides = array<i32: 2, 1>} : memref<612x32xf32, #tpu.memory_space<vmem>>, vector<8x32xf32>
    %c38 = arith.constant 38 : index
    %c0_20 = arith.constant 0 : index
    %24 = tpu.strided_load %arg45[%c38, %c0_20] {strides = array<i32: 2, 1>} : memref<612x32xf32, #tpu.memory_space<vmem>>, vector<8x32xf32>
    %c55 = arith.constant 55 : index
    %c0_21 = arith.constant 0 : index
    %25 = tpu.strided_load %arg45[%c55, %c0_21] {strides = array<i32: 2, 1>} : memref<612x32xf32, #tpu.memory_space<vmem>>, vector<8x32xf32>
    %c56 = arith.constant 56 : index
    %c0_22 = arith.constant 0 : index
    %26 = tpu.strided_load %arg45[%c56, %c0_22] {strides = array<i32: 2, 1>} : memref<612x32xf32, #tpu.memory_space<vmem>>, vector<8x32xf32>
    %27 = arith.maximumf %23, %24 : vector<8x32xf32>
    %28 = arith.maximumf %25, %26 : vector<8x32xf32>
    %29 = arith.maximumf %27, %28 : vector<8x32xf32>
    %c27 = arith.constant 27 : index
    %c0_23 = arith.constant 0 : index
    %30 = vector.load %arg46[%c27, %c0_23] : memref<207x32xf32, #tpu.memory_space<vmem>>, vector<8x32xf32>
    tpu.vector_store %arg46[%c27, %c0_23], %29 {strides = array<i32>} : memref<207x32xf32, #tpu.memory_space<vmem>>, vector<8x32xf32>,
    %c73 = arith.constant 73 : index
    %c0_24 = arith.constant 0 : index
    %31 = tpu.strided_load %arg45[%c73, %c0_24] {strides = array<i32: 2, 1>} : memref<612x32xf32, #tpu.memory_space<vmem>>, vector<8x32xf32>
    %c74 = arith.constant 74 : index
    %c0_25 = arith.constant 0 : index
    %32 = tpu.strided_load %arg45[%c74, %c0_25] {strides = array<i32: 2, 1>} : memref<612x32xf32, #tpu.memory_space<vmem>>, vector<8x32xf32>
    %c91 = arith.constant 91 : index
    %c0_26 = arith.constant 0 : index
    %33 = tpu.strided_load %arg45[%c91, %c0_26] {strides = array<i32: 2, 1>} : memref<612x32xf32, #tpu.memory_space<vmem>>, vector<8x32xf32>
    %c92 = arith.constant 92 : index
    %c0_27 = arith.constant 0 : index
    %34 = tpu.strided_load %arg45[%c92, %c0_27] {strides = array<i32: 2, 1>} : memref<612x32xf32, #tpu.memory_space<vmem>>, vector<8x32xf32>
    %35 = arith.maximumf %31, %32 : vector<8x32xf32>
    %36 = arith.maximumf %33, %34 : vector<8x32xf32>
    %37 = arith.maximumf %35, %36 : vector<8x32xf32>
    %c37_28 = arith.constant 37 : index
    %c0_29 = arith.constant 0 : index
    %38 = vector.load %arg46[%c37_28, %c0_29] : memref<207x32xf32, #tpu.memory_space<vmem>>, vector<8x32xf32>
    tpu.vector_store %arg46[%c37_28, %c0_29], %37 {strides = array<i32>} : memref<207x32xf32, #tpu.memory_space<vmem>>, vector<8x32xf32>,
    %c109 = arith.constant 109 : index
    %c0_30 = arith.constant 0 : index
    %39 = tpu.strided_load %arg45[%c109, %c0_30] {strides = array<i32: 2, 1>} : memref<612x32xf32, #tpu.memory_space<vmem>>, vector<8x32xf32>
    %c110 = arith.constant 110 : index
    %c0_31 = arith.constant 0 : index
    %40 = tpu.strided_load %arg45[%c110, %c0_31] {strides = array<i32: 2, 1>} : memref<612x32xf32, #tpu.memory_space<vmem>>, vector<8x32xf32>
    %c127 = arith.constant 127 : index
    %c0_32 = arith.constant 0 : index
    %41 = tpu.strided_load %arg45[%c127, %c0_32] {strides = array<i32: 2, 1>} : memref<612x32xf32, #tpu.memory_space<vmem>>, vector<8x32xf32>
    %c128 = arith.constant 128 : index
    %c0_33 = arith.constant 0 : index
    %42 = tpu.strided_load %arg45[%c128, %c0_33] {strides = array<i32: 2, 1>} : memref<612x32xf32, #tpu.memory_space<vmem>>, vector<8x32xf32>
    %43 = arith.maximumf %39, %40 : vector<8x32xf32>
    %44 = arith.maximumf %41, %42 : vector<8x32xf32>
    %45 = arith.maximumf %43, %44 : vector<8x32xf32>
    %c47 = arith.constant 47 : index
    %c0_34 = arith.constant 0 : index
    %46 = vector.load %arg46[%c47, %c0_34] : memref<207x32xf32, #tpu.memory_space<vmem>>, vector<8x32xf32>
    tpu.vector_store %arg46[%c47, %c0_34], %45 {strides = array<i32>} : memref<207x32xf32, #tpu.memory_space<vmem>>, vector<8x32xf32>,
    %c145 = arith.constant 145 : index
    %c0_35 = arith.constant 0 : index
    %47 = tpu.strided_load %arg45[%c145, %c0_35] {strides = array<i32: 2, 1>} : memref<612x32xf32, #tpu.memory_space<vmem>>, vector<8x32xf32>
    %c146 = arith.constant 146 : index
    %c0_36 = arith.constant 0 : index
    %48 = tpu.strided_load %arg45[%c146, %c0_36] {strides = array<i32: 2, 1>} : memref<612x32xf32, #tpu.memory_space<vmem>>, vector<8x32xf32>
    %c163 = arith.constant 163 : index
    %c0_37 = arith.constant 0 : index
    %49 = tpu.strided_load %arg45[%c163, %c0_37] {strides = array<i32: 2, 1>} : memref<612x32xf32, #tpu.memory_space<vmem>>, vector<8x32xf32>
    %c164 = arith.constant 164 : index
    %c0_38 = arith.constant 0 : index
    %50 = tpu.strided_load %arg45[%c164, %c0_38] {strides = array<i32: 2, 1>} : memref<612x32xf32, #tpu.memory_space<vmem>>, vector<8x32xf32>
    %51 = arith.maximumf %47, %48 : vector<8x32xf32>
    %52 = arith.maximumf %49, %50 : vector<8x32xf32>
    %53 = arith.maximumf %51, %52 : vector<8x32xf32>
    %c57 = arith.constant 57 : index
    %c0_39 = arith.constant 0 : index
    %54 = vector.load %arg46[%c57, %c0_39] : memref<207x32xf32, #tpu.memory_space<vmem>>, vector<8x32xf32>
    tpu.vector_store %arg46[%c57, %c0_39], %53 {strides = array<i32>} : memref<207x32xf32, #tpu.memory_space<vmem>>, vector<8x32xf32>,
    %c181 = arith.constant 181 : index
    %c0_40 = arith.constant 0 : index
    %55 = tpu.strided_load %arg45[%c181, %c0_40] {strides = array<i32: 2, 1>} : memref<612x32xf32, #tpu.memory_space<vmem>>, vector<8x32xf32>
    %c182 = arith.constant 182 : index
    %c0_41 = arith.constant 0 : index
    %56 = tpu.strided_load %arg45[%c182, %c0_41] {strides = array<i32: 2, 1>} : memref<612x32xf32, #tpu.memory_space<vmem>>, vector<8x32xf32>
    %c199 = arith.constant 199 : index
    %c0_42 = arith.constant 0 : index
    %57 = tpu.strided_load %arg45[%c199, %c0_42] {strides = array<i32: 2, 1>} : memref<612x32xf32, #tpu.memory_space<vmem>>, vector<8x32xf32>
    %c200 = arith.constant 200 : index
    %c0_43 = arith.constant 0 : index
    %58 = tpu.strided_load %arg45[%c200, %c0_43] {strides = array<i32: 2, 1>} : memref<612x32xf32, #tpu.memory_space<vmem>>, vector<8x32xf32>
    %59 = arith.maximumf %55, %56 : vector<8x32xf32>
    %60 = arith.maximumf %57, %58 : vector<8x32xf32>
    %61 = arith.maximumf %59, %60 : vector<8x32xf32>
    %c67 = arith.constant 67 : index
    %c0_44 = arith.constant 0 : index
    %62 = vector.load %arg46[%c67, %c0_44] : memref<207x32xf32, #tpu.memory_space<vmem>>, vector<8x32xf32>
    tpu.vector_store %arg46[%c67, %c0_44], %61 {strides = array<i32>} : memref<207x32xf32, #tpu.memory_space<vmem>>, vector<8x32xf32>,
    %c217 = arith.constant 217 : index
    %c0_45 = arith.constant 0 : index
    %63 = tpu.strided_load %arg45[%c217, %c0_45] {strides = array<i32: 2, 1>} : memref<612x32xf32, #tpu.memory_space<vmem>>, vector<8x32xf32>
    %c218 = arith.constant 218 : index
    %c0_46 = arith.constant 0 : index
    %64 = tpu.strided_load %arg45[%c218, %c0_46] {strides = array<i32: 2, 1>} : memref<612x32xf32, #tpu.memory_space<vmem>>, vector<8x32xf32>
    %c235 = arith.constant 235 : index
    %c0_47 = arith.constant 0 : index
    %65 = tpu.strided_load %arg45[%c235, %c0_47] {strides = array<i32: 2, 1>} : memref<612x32xf32, #tpu.memory_space<vmem>>, vector<8x32xf32>
    %c236 = arith.constant 236 : index
    %c0_48 = arith.constant 0 : index
    %66 = tpu.strided_load %arg45[%c236, %c0_48] {strides = array<i32: 2, 1>} : memref<612x32xf32, #tpu.memory_space<vmem>>, vector<8x32xf32>
    %67 = arith.maximumf %63, %64 : vector<8x32xf32>
    %68 = arith.maximumf %65, %66 : vector<8x32xf32>
    %69 = arith.maximumf %67, %68 : vector<8x32xf32>
    %c77 = arith.constant 77 : index
    %c0_49 = arith.constant 0 : index
    %70 = vector.load %arg46[%c77, %c0_49] : memref<207x32xf32, #tpu.memory_space<vmem>>, vector<8x32xf32>
    tpu.vector_store %arg46[%c77, %c0_49], %69 {strides = array<i32>} : memref<207x32xf32, #tpu.memory_space<vmem>>, vector<8x32xf32>,
    %c253 = arith.constant 253 : index
    %c0_50 = arith.constant 0 : index
    %71 = tpu.strided_load %arg45[%c253, %c0_50] {strides = array<i32: 2, 1>} : memref<612x32xf32, #tpu.memory_space<vmem>>, vector<8x32xf32>
    %c254 = arith.constant 254 : index
    %c0_51 = arith.constant 0 : index
    %72 = tpu.strided_load %arg45[%c254, %c0_51] {strides = array<i32: 2, 1>} : memref<612x32xf32, #tpu.memory_space<vmem>>, vector<8x32xf32>
    %c271 = arith.constant 271 : index
    %c0_52 = arith.constant 0 : index
    %73 = tpu.strided_load %arg45[%c271, %c0_52] {strides = array<i32: 2, 1>} : memref<612x32xf32, #tpu.memory_space<vmem>>, vector<8x32xf32>
    %c272 = arith.constant 272 : index
    %c0_53 = arith.constant 0 : index
    %74 = tpu.strided_load %arg45[%c272, %c0_53] {strides = array<i32: 2, 1>} : memref<612x32xf32, #tpu.memory_space<vmem>>, vector<8x32xf32>
    %75 = arith.maximumf %71, %72 : vector<8x32xf32>
    %76 = arith.maximumf %73, %74 : vector<8x32xf32>
    %77 = arith.maximumf %75, %76 : vector<8x32xf32>
    %c87 = arith.constant 87 : index
    %c0_54 = arith.constant 0 : index
    %78 = vector.load %arg46[%c87, %c0_54] : memref<207x32xf32, #tpu.memory_space<vmem>>, vector<8x32xf32>
    tpu.vector_store %arg46[%c87, %c0_54], %77 {strides = array<i32>} : memref<207x32xf32, #tpu.memory_space<vmem>>, vector<8x32xf32>,
    %c325 = arith.constant 325 : index
    %c0_55 = arith.constant 0 : index
    %79 = tpu.strided_load %arg45[%c325, %c0_55] {strides = array<i32: 2, 1>} : memref<612x32xf32, #tpu.memory_space<vmem>>, vector<8x32xf32>
    %c326 = arith.constant 326 : index
    %c0_56 = arith.constant 0 : index
    %80 = tpu.strided_load %arg45[%c326, %c0_56] {strides = array<i32: 2, 1>} : memref<612x32xf32, #tpu.memory_space<vmem>>, vector<8x32xf32>
    %c343 = arith.constant 343 : index
    %c0_57 = arith.constant 0 : index
    %81 = tpu.strided_load %arg45[%c343, %c0_57] {strides = array<i32: 2, 1>} : memref<612x32xf32, #tpu.memory_space<vmem>>, vector<8x32xf32>
    %c344 = arith.constant 344 : index
    %c0_58 = arith.constant 0 : index
    %82 = tpu.strided_load %arg45[%c344, %c0_58] {strides = array<i32: 2, 1>} : memref<612x32xf32, #tpu.memory_space<vmem>>, vector<8x32xf32>
    %83 = arith.maximumf %79, %80 : vector<8x32xf32>
    %84 = arith.maximumf %81, %82 : vector<8x32xf32>
    %85 = arith.maximumf %83, %84 : vector<8x32xf32>
    %c117 = arith.constant 117 : index
    %c0_59 = arith.constant 0 : index
    %86 = vector.load %arg46[%c117, %c0_59] : memref<207x32xf32, #tpu.memory_space<vmem>>, vector<8x32xf32>
    tpu.vector_store %arg46[%c117, %c0_59], %85 {strides = array<i32>} : memref<207x32xf32, #tpu.memory_space<vmem>>, vector<8x32xf32>,
    %c361 = arith.constant 361 : index
    %c0_60 = arith.constant 0 : index
    %87 = tpu.strided_load %arg45[%c361, %c0_60] {strides = array<i32: 2, 1>} : memref<612x32xf32, #tpu.memory_space<vmem>>, vector<8x32xf32>
    %c362 = arith.constant 362 : index
    %c0_61 = arith.constant 0 : index
    %88 = tpu.strided_load %arg45[%c362, %c0_61] {strides = array<i32: 2, 1>} : memref<612x32xf32, #tpu.memory_space<vmem>>, vector<8x32xf32>
    %c379 = arith.constant 379 : index
    %c0_62 = arith.constant 0 : index
    %89 = tpu.strided_load %arg45[%c379, %c0_62] {strides = array<i32: 2, 1>} : memref<612x32xf32, #tpu.memory_space<vmem>>, vector<8x32xf32>
    %c380 = arith.constant 380 : index
    %c0_63 = arith.constant 0 : index
    %90 = tpu.strided_load %arg45[%c380, %c0_63] {strides = array<i32: 2, 1>} : memref<612x32xf32, #tpu.memory_space<vmem>>, vector<8x32xf32>
    %91 = arith.maximumf %87, %88 : vector<8x32xf32>
    %92 = arith.maximumf %89, %90 : vector<8x32xf32>
    %93 = arith.maximumf %91, %92 : vector<8x32xf32>
    %c127_64 = arith.constant 127 : index
    %c0_65 = arith.constant 0 : index
    %94 = vector.load %arg46[%c127_64, %c0_65] : memref<207x32xf32, #tpu.memory_space<vmem>>, vector<8x32xf32>
    tpu.vector_store %arg46[%c127_64, %c0_65], %93 {strides = array<i32>} : memref<207x32xf32, #tpu.memory_space<vmem>>, vector<8x32xf32>,
    %c397 = arith.constant 397 : index
    %c0_66 = arith.constant 0 : index
    %95 = tpu.strided_load %arg45[%c397, %c0_66] {strides = array<i32: 2, 1>} : memref<612x32xf32, #tpu.memory_space<vmem>>, vector<8x32xf32>
    %c398 = arith.constant 398 : index
    %c0_67 = arith.constant 0 : index
    %96 = tpu.strided_load %arg45[%c398, %c0_67] {strides = array<i32: 2, 1>} : memref<612x32xf32, #tpu.memory_space<vmem>>, vector<8x32xf32>
    %c415 = arith.constant 415 : index
    %c0_68 = arith.constant 0 : index
    %97 = tpu.strided_load %arg45[%c415, %c0_68] {strides = array<i32: 2, 1>} : memref<612x32xf32, #tpu.memory_space<vmem>>, vector<8x32xf32>
    %c416 = arith.constant 416 : index
    %c0_69 = arith.constant 0 : index
    %98 = tpu.strided_load %arg45[%c416, %c0_69] {strides = array<i32: 2, 1>} : memref<612x32xf32, #tpu.memory_space<vmem>>, vector<8x32xf32>
    %99 = arith.maximumf %95, %96 : vector<8x32xf32>
    %100 = arith.maximumf %97, %98 : vector<8x32xf32>
    %101 = arith.maximumf %99, %100 : vector<8x32xf32>
    %c137 = arith.constant 137 : index
    %c0_70 = arith.constant 0 : index
    %102 = vector.load %arg46[%c137, %c0_70] : memref<207x32xf32, #tpu.memory_space<vmem>>, vector<8x32xf32>
    tpu.vector_store %arg46[%c137, %c0_70], %101 {strides = array<i32>} : memref<207x32xf32, #tpu.memory_space<vmem>>, vector<8x32xf32>,
    %c433 = arith.constant 433 : index
    %c0_71 = arith.constant 0 : index
    %103 = tpu.strided_load %arg45[%c433, %c0_71] {strides = array<i32: 2, 1>} : memref<612x32xf32, #tpu.memory_space<vmem>>, vector<8x32xf32>
    %c434 = arith.constant 434 : index
    %c0_72 = arith.constant 0 : index
    %104 = tpu.strided_load %arg45[%c434, %c0_72] {strides = array<i32: 2, 1>} : memref<612x32xf32, #tpu.memory_space<vmem>>, vector<8x32xf32>
    %c451 = arith.constant 451 : index
    %c0_73 = arith.constant 0 : index
    %105 = tpu.strided_load %arg45[%c451, %c0_73] {strides = array<i32: 2, 1>} : memref<612x32xf32, #tpu.memory_space<vmem>>, vector<8x32xf32>
    %c452 = arith.constant 452 : index
    %c0_74 = arith.constant 0 : index
    %106 = tpu.strided_load %arg45[%c452, %c0_74] {strides = array<i32: 2, 1>} : memref<612x32xf32, #tpu.memory_space<vmem>>, vector<8x32xf32>
    %107 = arith.maximumf %103, %104 : vector<8x32xf32>
    %108 = arith.maximumf %105, %106 : vector<8x32xf32>
    %109 = arith.maximumf %107, %108 : vector<8x32xf32>
    %c147 = arith.constant 147 : index
    %c0_75 = arith.constant 0 : index
    %110 = vector.load %arg46[%c147, %c0_75] : memref<207x32xf32, #tpu.memory_space<vmem>>, vector<8x32xf32>
    tpu.vector_store %arg46[%c147, %c0_75], %109 {strides = array<i32>} : memref<207x32xf32, #tpu.memory_space<vmem>>, vector<8x32xf32>,
    %c469 = arith.constant 469 : index
    %c0_76 = arith.constant 0 : index
    %111 = tpu.strided_load %arg45[%c469, %c0_76] {strides = array<i32: 2, 1>} : memref<612x32xf32, #tpu.memory_space<vmem>>, vector<8x32xf32>
    %c470 = arith.constant 470 : index
    %c0_77 = arith.constant 0 : index
    %112 = tpu.strided_load %arg45[%c470, %c0_77] {strides = array<i32: 2, 1>} : memref<612x32xf32, #tpu.memory_space<vmem>>, vector<8x32xf32>
    %c487 = arith.constant 487 : index
    %c0_78 = arith.constant 0 : index
    %113 = tpu.strided_load %arg45[%c487, %c0_78] {strides = array<i32: 2, 1>} : memref<612x32xf32, #tpu.memory_space<vmem>>, vector<8x32xf32>
    %c488 = arith.constant 488 : index
    %c0_79 = arith.constant 0 : index
    %114 = tpu.strided_load %arg45[%c488, %c0_79] {strides = array<i32: 2, 1>} : memref<612x32xf32, #tpu.memory_space<vmem>>, vector<8x32xf32>
    %115 = arith.maximumf %111, %112 : vector<8x32xf32>
    %116 = arith.maximumf %113, %114 : vector<8x32xf32>
    %117 = arith.maximumf %115, %116 : vector<8x32xf32>
    %c157 = arith.constant 157 : index
    %c0_80 = arith.constant 0 : index
    %118 = vector.load %arg46[%c157, %c0_80] : memref<207x32xf32, #tpu.memory_space<vmem>>, vector<8x32xf32>
    tpu.vector_store %arg46[%c157, %c0_80], %117 {strides = array<i32>} : memref<207x32xf32, #tpu.memory_space<vmem>>, vector<8x32xf32>,
    %c505 = arith.constant 505 : index
    %c0_81 = arith.constant 0 : index
    %119 = tpu.strided_load %arg45[%c505, %c0_81] {strides = array<i32: 2, 1>} : memref<612x32xf32, #tpu.memory_space<vmem>>, vector<8x32xf32>
    %c506 = arith.constant 506 : index
    %c0_82 = arith.constant 0 : index
    %120 = tpu.strided_load %arg45[%c506, %c0_82] {strides = array<i32: 2, 1>} : memref<612x32xf32, #tpu.memory_space<vmem>>, vector<8x32xf32>
    %c523 = arith.constant 523 : index
    %c0_83 = arith.constant 0 : index
    %121 = tpu.strided_load %arg45[%c523, %c0_83] {strides = array<i32: 2, 1>} : memref<612x32xf32, #tpu.memory_space<vmem>>, vector<8x32xf32>
    %c524 = arith.constant 524 : index
    %c0_84 = arith.constant 0 : index
    %122 = tpu.strided_load %arg45[%c524, %c0_84] {strides = array<i32: 2, 1>} : memref<612x32xf32, #tpu.memory_space<vmem>>, vector<8x32xf32>
    %123 = arith.maximumf %119, %120 : vector<8x32xf32>
    %124 = arith.maximumf %121, %122 : vector<8x32xf32>
    %125 = arith.maximumf %123, %124 : vector<8x32xf32>
    %c167 = arith.constant 167 : index
    %c0_85 = arith.constant 0 : index
    %126 = vector.load %arg46[%c167, %c0_85] : memref<207x32xf32, #tpu.memory_space<vmem>>, vector<8x32xf32>
    tpu.vector_store %arg46[%c167, %c0_85], %125 {strides = array<i32>} : memref<207x32xf32, #tpu.memory_space<vmem>>, vector<8x32xf32>,
    %c541 = arith.constant 541 : index
    %c0_86 = arith.constant 0 : index
    %127 = tpu.strided_load %arg45[%c541, %c0_86] {strides = array<i32: 2, 1>} : memref<612x32xf32, #tpu.memory_space<vmem>>, vector<8x32xf32>
    %c542 = arith.constant 542 : index
    %c0_87 = arith.constant 0 : index
    %128 = tpu.strided_load %arg45[%c542, %c0_87] {strides = array<i32: 2, 1>} : memref<612x32xf32, #tpu.memory_space<vmem>>, vector<8x32xf32>
    %c559 = arith.constant 559 : index
    %c0_88 = arith.constant 0 : index
    %129 = tpu.strided_load %arg45[%c559, %c0_88] {strides = array<i32: 2, 1>} : memref<612x32xf32, #tpu.memory_space<vmem>>, vector<8x32xf32>
    %c560 = arith.constant 560 : index
    %c0_89 = arith.constant 0 : index
    %130 = tpu.strided_load %arg45[%c560, %c0_89] {strides = array<i32: 2, 1>} : memref<612x32xf32, #tpu.memory_space<vmem>>, vector<8x32xf32>
    %131 = arith.maximumf %127, %128 : vector<8x32xf32>
    %132 = arith.maximumf %129, %130 : vector<8x32xf32>
    %133 = arith.maximumf %131, %132 : vector<8x32xf32>
    %c177 = arith.constant 177 : index
    %c0_90 = arith.constant 0 : index
    %134 = vector.load %arg46[%c177, %c0_90] : memref<207x32xf32, #tpu.memory_space<vmem>>, vector<8x32xf32>
    tpu.vector_store %arg46[%c177, %c0_90], %133 {strides = array<i32>} : memref<207x32xf32, #tpu.memory_space<vmem>>, vector<8x32xf32>,
    %c577 = arith.constant 577 : index
    %c0_91 = arith.constant 0 : index
    %135 = tpu.strided_load %arg45[%c577, %c0_91] {strides = array<i32: 2, 1>} : memref<612x32xf32, #tpu.memory_space<vmem>>, vector<8x32xf32>
    %c578 = arith.constant 578 : index
    %c0_92 = arith.constant 0 : index
    %136 = tpu.strided_load %arg45[%c578, %c0_92] {strides = array<i32: 2, 1>} : memref<612x32xf32, #tpu.memory_space<vmem>>, vector<8x32xf32>
    %c595 = arith.constant 595 : index
    %c0_93 = arith.constant 0 : index
    %137 = tpu.strided_load %arg45[%c595, %c0_93] {strides = array<i32: 2, 1>} : memref<612x32xf32, #tpu.memory_space<vmem>>, vector<8x32xf32>
    %c596 = arith.constant 596 : index
    %c0_94 = arith.constant 0 : index
    %138 = tpu.strided_load %arg45[%c596, %c0_94] {strides = array<i32: 2, 1>} : memref<612x32xf32, #tpu.memory_space<vmem>>, vector<8x32xf32>
    %139 = arith.maximumf %135, %136 : vector<8x32xf32>
    %140 = arith.maximumf %137, %138 : vector<8x32xf32>
    %141 = arith.maximumf %139, %140 : vector<8x32xf32>
    %c187 = arith.constant 187 : index
    %c0_95 = arith.constant 0 : index
    %142 = vector.load %arg46[%c187, %c0_95] : memref<207x32xf32, #tpu.memory_space<vmem>>, vector<8x32xf32>
    tpu.vector_store %arg46[%c187, %c0_95], %141 {strides = array<i32>} : memref<207x32xf32, #tpu.memory_space<vmem>>, vector<8x32xf32>,
    %c5 = arith.constant 5 : index
    %c0_96 = arith.constant 0 : index
    %143 = vector.load %arg46[%c5, %c0_96] : memref<207x32xf32, #tpu.memory_space<vmem>>, vector<180x32xf32>
    %c6 = arith.constant 6 : index
    %c0_97 = arith.constant 0 : index
    %144 = vector.load %arg46[%c6, %c0_97] : memref<207x32xf32, #tpu.memory_space<vmem>>, vector<180x32xf32>
    %c7 = arith.constant 7 : index
    %c0_98 = arith.constant 0 : index
    %145 = vector.load %arg46[%c7, %c0_98] : memref<207x32xf32, #tpu.memory_space<vmem>>, vector<180x32xf32>
    %c15 = arith.constant 15 : index
    %c0_99 = arith.constant 0 : index
    %146 = vector.load %arg46[%c15, %c0_99] : memref<207x32xf32, #tpu.memory_space<vmem>>, vector<180x32xf32>
    %c16 = arith.constant 16 : index
    %c0_100 = arith.constant 0 : index
    %147 = vector.load %arg46[%c16, %c0_100] : memref<207x32xf32, #tpu.memory_space<vmem>>, vector<180x32xf32>
    %c17_101 = arith.constant 17 : index
    %c0_102 = arith.constant 0 : index
    %148 = vector.load %arg46[%c17_101, %c0_102] : memref<207x32xf32, #tpu.memory_space<vmem>>, vector<180x32xf32>
    %c25 = arith.constant 25 : index
    %c0_103 = arith.constant 0 : index
    %149 = vector.load %arg46[%c25, %c0_103] : memref<207x32xf32, #tpu.memory_space<vmem>>, vector<180x32xf32>
    %c26 = arith.constant 26 : index
    %c0_104 = arith.constant 0 : index
    %150 = vector.load %arg46[%c26, %c0_104] : memref<207x32xf32, #tpu.memory_space<vmem>>, vector<180x32xf32>
    %c27_105 = arith.constant 27 : index
    %c0_106 = arith.constant 0 : index
    %151 = vector.load %arg46[%c27_105, %c0_106] : memref<207x32xf32, #tpu.memory_space<vmem>>, vector<180x32xf32>
    %152 = tpu.concatenate %143, %144, %145, %146, %147, %148, %149, %150, %151 in 1 : vector<180x32xf32>, vector<180x32xf32>, vector<180x32xf32>, vector<180x32xf32>, vector<180x32xf32>, vector<180x32xf32>, vector<180x32xf32>, vector<180x32xf32>, vector<180x32xf32> -> vector<180x288xf32>
    %c0_107 = arith.constant 0 : index
    %c0_108 = arith.constant 0 : index
    %153 = vector.load %arg11[%c0_107, %c0_108] : memref<288x16xf32, #tpu.memory_space<vmem>>, vector<288x16xf32>
    %cst_109 = arith.constant dense<0.000000e+00> : vector<180x16xf32>
    %154 = tpu.matmul %152, %153, %cst_109 {dimension_numbers = #tpu.dot_dimension_numbers<[1], [0], [0], [1], [0, 0, 1, 1], [], []>} : vector<180x288xf32>, vector<288x16xf32>, vector<180x16xf32> -> vector<180x16xf32>
    %c0_110 = arith.constant 0 : index
    %c0_111 = arith.constant 0 : index
    %155 = vector.load %arg12[%c0_110, %c0_111] : memref<1x16xf32, #tpu.memory_space<vmem>>, vector<1x16xf32>
    %156 = vector.broadcast %155 : vector<1x16xf32> to vector<180x16xf32>
    %157 = arith.mulf %154, %156 : vector<180x16xf32>
    %c0_112 = arith.constant 0 : index
    %c0_113 = arith.constant 0 : index
    %158 = vector.load %arg13[%c0_112, %c0_113] : memref<1x16xf32, #tpu.memory_space<vmem>>, vector<1x16xf32>
    %159 = vector.broadcast %158 : vector<1x16xf32> to vector<180x16xf32>
    %160 = arith.addf %157, %159 : vector<180x16xf32>
    %cst_114 = arith.constant 0.000000e+00 : f32
    %161 = vector.broadcast %cst_114 : f32 to vector<180x16xf32>
    %162 = arith.maximumf %160, %161 : vector<180x16xf32>
    %c0_115 = arith.constant 0 : index
    %c0_116 = arith.constant 0 : index
    %163 = vector.load %arg47[%c0_115, %c0_116] : memref<180x16xf32, #tpu.memory_space<vmem>>, vector<180x16xf32>
    tpu.vector_store %arg47[%c0_115, %c0_116], %162 {strides = array<i32>} : memref<180x16xf32, #tpu.memory_space<vmem>>, vector<180x16xf32>,
    %cst_117 = arith.constant 0.000000e+00 : f32
    %164 = vector.broadcast %cst_117 : f32 to vector<75x16xf32>
    %c0_118 = arith.constant 0 : index
    %c0_119 = arith.constant 0 : index
    %165 = vector.load %arg48[%c0_118, %c0_119] : memref<75x16xf32, #tpu.memory_space<vmem>>, vector<75x16xf32>
    tpu.vector_store %arg48[%c0_118, %c0_119], %164 {strides = array<i32>} : memref<75x16xf32, #tpu.memory_space<vmem>>, vector<75x16xf32>,
    %c1_120 = arith.constant 1 : index
    %c0_121 = arith.constant 0 : index
    %166 = tpu.strided_load %arg47[%c1_120, %c0_121] {strides = array<i32: 2, 1>} : memref<180x16xf32, #tpu.memory_space<vmem>>, vector<4x16xf32>
    %c2_122 = arith.constant 2 : index
    %c0_123 = arith.constant 0 : index
    %167 = tpu.strided_load %arg47[%c2_122, %c0_123] {strides = array<i32: 2, 1>} : memref<180x16xf32, #tpu.memory_space<vmem>>, vector<4x16xf32>
    %c11 = arith.constant 11 : index
    %c0_124 = arith.constant 0 : index
    %168 = tpu.strided_load %arg47[%c11, %c0_124] {strides = array<i32: 2, 1>} : memref<180x16xf32, #tpu.memory_space<vmem>>, vector<4x16xf32>
    %c12 = arith.constant 12 : index
    %c0_125 = arith.constant 0 : index
    %169 = tpu.strided_load %arg47[%c12, %c0_125] {strides = array<i32: 2, 1>} : memref<180x16xf32, #tpu.memory_space<vmem>>, vector<4x16xf32>
    %170 = arith.maximumf %166, %167 : vector<4x16xf32>
    %171 = arith.maximumf %168, %169 : vector<4x16xf32>
    %172 = arith.maximumf %170, %171 : vector<4x16xf32>
    %c9 = arith.constant 9 : index
    %c0_126 = arith.constant 0 : index
    %173 = vector.load %arg48[%c9, %c0_126] : memref<75x16xf32, #tpu.memory_space<vmem>>, vector<4x16xf32>
    tpu.vector_store %arg48[%c9, %c0_126], %172 {strides = array<i32>} : memref<75x16xf32, #tpu.memory_space<vmem>>, vector<4x16xf32>,
    %c21 = arith.constant 21 : index
    %c0_127 = arith.constant 0 : index
    %174 = tpu.strided_load %arg47[%c21, %c0_127] {strides = array<i32: 2, 1>} : memref<180x16xf32, #tpu.memory_space<vmem>>, vector<4x16xf32>
    %c22 = arith.constant 22 : index
    %c0_128 = arith.constant 0 : index
    %175 = tpu.strided_load %arg47[%c22, %c0_128] {strides = array<i32: 2, 1>} : memref<180x16xf32, #tpu.memory_space<vmem>>, vector<4x16xf32>
    %c31 = arith.constant 31 : index
    %c0_129 = arith.constant 0 : index
    %176 = tpu.strided_load %arg47[%c31, %c0_129] {strides = array<i32: 2, 1>} : memref<180x16xf32, #tpu.memory_space<vmem>>, vector<4x16xf32>
    %c32 = arith.constant 32 : index
    %c0_130 = arith.constant 0 : index
    %177 = tpu.strided_load %arg47[%c32, %c0_130] {strides = array<i32: 2, 1>} : memref<180x16xf32, #tpu.memory_space<vmem>>, vector<4x16xf32>
    %178 = arith.maximumf %174, %175 : vector<4x16xf32>
    %179 = arith.maximumf %176, %177 : vector<4x16xf32>
    %180 = arith.maximumf %178, %179 : vector<4x16xf32>
    %c15_131 = arith.constant 15 : index
    %c0_132 = arith.constant 0 : index
    %181 = vector.load %arg48[%c15_131, %c0_132] : memref<75x16xf32, #tpu.memory_space<vmem>>, vector<4x16xf32>
    tpu.vector_store %arg48[%c15_131, %c0_132], %180 {strides = array<i32>} : memref<75x16xf32, #tpu.memory_space<vmem>>, vector<4x16xf32>,
    %c41 = arith.constant 41 : index
    %c0_133 = arith.constant 0 : index
    %182 = tpu.strided_load %arg47[%c41, %c0_133] {strides = array<i32: 2, 1>} : memref<180x16xf32, #tpu.memory_space<vmem>>, vector<4x16xf32>
    %c42 = arith.constant 42 : index
    %c0_134 = arith.constant 0 : index
    %183 = tpu.strided_load %arg47[%c42, %c0_134] {strides = array<i32: 2, 1>} : memref<180x16xf32, #tpu.memory_space<vmem>>, vector<4x16xf32>
    %c51 = arith.constant 51 : index
    %c0_135 = arith.constant 0 : index
    %184 = tpu.strided_load %arg47[%c51, %c0_135] {strides = array<i32: 2, 1>} : memref<180x16xf32, #tpu.memory_space<vmem>>, vector<4x16xf32>
    %c52 = arith.constant 52 : index
    %c0_136 = arith.constant 0 : index
    %185 = tpu.strided_load %arg47[%c52, %c0_136] {strides = array<i32: 2, 1>} : memref<180x16xf32, #tpu.memory_space<vmem>>, vector<4x16xf32>
    %186 = arith.maximumf %182, %183 : vector<4x16xf32>
    %187 = arith.maximumf %184, %185 : vector<4x16xf32>
    %188 = arith.maximumf %186, %187 : vector<4x16xf32>
    %c21_137 = arith.constant 21 : index
    %c0_138 = arith.constant 0 : index
    %189 = vector.load %arg48[%c21_137, %c0_138] : memref<75x16xf32, #tpu.memory_space<vmem>>, vector<4x16xf32>
    tpu.vector_store %arg48[%c21_137, %c0_138], %188 {strides = array<i32>} : memref<75x16xf32, #tpu.memory_space<vmem>>, vector<4x16xf32>,
    %c61 = arith.constant 61 : index
    %c0_139 = arith.constant 0 : index
    %190 = tpu.strided_load %arg47[%c61, %c0_139] {strides = array<i32: 2, 1>} : memref<180x16xf32, #tpu.memory_space<vmem>>, vector<4x16xf32>
    %c62 = arith.constant 62 : index
    %c0_140 = arith.constant 0 : index
    %191 = tpu.strided_load %arg47[%c62, %c0_140] {strides = array<i32: 2, 1>} : memref<180x16xf32, #tpu.memory_space<vmem>>, vector<4x16xf32>
    %c71 = arith.constant 71 : index
    %c0_141 = arith.constant 0 : index
    %192 = tpu.strided_load %arg47[%c71, %c0_141] {strides = array<i32: 2, 1>} : memref<180x16xf32, #tpu.memory_space<vmem>>, vector<4x16xf32>
    %c72 = arith.constant 72 : index
    %c0_142 = arith.constant 0 : index
    %193 = tpu.strided_load %arg47[%c72, %c0_142] {strides = array<i32: 2, 1>} : memref<180x16xf32, #tpu.memory_space<vmem>>, vector<4x16xf32>
    %194 = arith.maximumf %190, %191 : vector<4x16xf32>
    %195 = arith.maximumf %192, %193 : vector<4x16xf32>
    %196 = arith.maximumf %194, %195 : vector<4x16xf32>
    %c27_143 = arith.constant 27 : index
    %c0_144 = arith.constant 0 : index
    %197 = vector.load %arg48[%c27_143, %c0_144] : memref<75x16xf32, #tpu.memory_space<vmem>>, vector<4x16xf32>
    tpu.vector_store %arg48[%c27_143, %c0_144], %196 {strides = array<i32>} : memref<75x16xf32, #tpu.memory_space<vmem>>, vector<4x16xf32>,
    %c101 = arith.constant 101 : index
    %c0_145 = arith.constant 0 : index
    %198 = tpu.strided_load %arg47[%c101, %c0_145] {strides = array<i32: 2, 1>} : memref<180x16xf32, #tpu.memory_space<vmem>>, vector<4x16xf32>
    %c102 = arith.constant 102 : index
    %c0_146 = arith.constant 0 : index
    %199 = tpu.strided_load %arg47[%c102, %c0_146] {strides = array<i32: 2, 1>} : memref<180x16xf32, #tpu.memory_space<vmem>>, vector<4x16xf32>
    %c111 = arith.constant 111 : index
    %c0_147 = arith.constant 0 : index
    %200 = tpu.strided_load %arg47[%c111, %c0_147] {strides = array<i32: 2, 1>} : memref<180x16xf32, #tpu.memory_space<vmem>>, vector<4x16xf32>
    %c112 = arith.constant 112 : index
    %c0_148 = arith.constant 0 : index
    %201 = tpu.strided_load %arg47[%c112, %c0_148] {strides = array<i32: 2, 1>} : memref<180x16xf32, #tpu.memory_space<vmem>>, vector<4x16xf32>
    %202 = arith.maximumf %198, %199 : vector<4x16xf32>
    %203 = arith.maximumf %200, %201 : vector<4x16xf32>
    %204 = arith.maximumf %202, %203 : vector<4x16xf32>
    %c45 = arith.constant 45 : index
    %c0_149 = arith.constant 0 : index
    %205 = vector.load %arg48[%c45, %c0_149] : memref<75x16xf32, #tpu.memory_space<vmem>>, vector<4x16xf32>
    tpu.vector_store %arg48[%c45, %c0_149], %204 {strides = array<i32>} : memref<75x16xf32, #tpu.memory_space<vmem>>, vector<4x16xf32>,
    %c121 = arith.constant 121 : index
    %c0_150 = arith.constant 0 : index
    %206 = tpu.strided_load %arg47[%c121, %c0_150] {strides = array<i32: 2, 1>} : memref<180x16xf32, #tpu.memory_space<vmem>>, vector<4x16xf32>
    %c122 = arith.constant 122 : index
    %c0_151 = arith.constant 0 : index
    %207 = tpu.strided_load %arg47[%c122, %c0_151] {strides = array<i32: 2, 1>} : memref<180x16xf32, #tpu.memory_space<vmem>>, vector<4x16xf32>
    %c131 = arith.constant 131 : index
    %c0_152 = arith.constant 0 : index
    %208 = tpu.strided_load %arg47[%c131, %c0_152] {strides = array<i32: 2, 1>} : memref<180x16xf32, #tpu.memory_space<vmem>>, vector<4x16xf32>
    %c132 = arith.constant 132 : index
    %c0_153 = arith.constant 0 : index
    %209 = tpu.strided_load %arg47[%c132, %c0_153] {strides = array<i32: 2, 1>} : memref<180x16xf32, #tpu.memory_space<vmem>>, vector<4x16xf32>
    %210 = arith.maximumf %206, %207 : vector<4x16xf32>
    %211 = arith.maximumf %208, %209 : vector<4x16xf32>
    %212 = arith.maximumf %210, %211 : vector<4x16xf32>
    %c51_154 = arith.constant 51 : index
    %c0_155 = arith.constant 0 : index
    %213 = vector.load %arg48[%c51_154, %c0_155] : memref<75x16xf32, #tpu.memory_space<vmem>>, vector<4x16xf32>
    tpu.vector_store %arg48[%c51_154, %c0_155], %212 {strides = array<i32>} : memref<75x16xf32, #tpu.memory_space<vmem>>, vector<4x16xf32>,
    %c141 = arith.constant 141 : index
    %c0_156 = arith.constant 0 : index
    %214 = tpu.strided_load %arg47[%c141, %c0_156] {strides = array<i32: 2, 1>} : memref<180x16xf32, #tpu.memory_space<vmem>>, vector<4x16xf32>
    %c142 = arith.constant 142 : index
    %c0_157 = arith.constant 0 : index
    %215 = tpu.strided_load %arg47[%c142, %c0_157] {strides = array<i32: 2, 1>} : memref<180x16xf32, #tpu.memory_space<vmem>>, vector<4x16xf32>
    %c151 = arith.constant 151 : index
    %c0_158 = arith.constant 0 : index
    %216 = tpu.strided_load %arg47[%c151, %c0_158] {strides = array<i32: 2, 1>} : memref<180x16xf32, #tpu.memory_space<vmem>>, vector<4x16xf32>
    %c152 = arith.constant 152 : index
    %c0_159 = arith.constant 0 : index
    %217 = tpu.strided_load %arg47[%c152, %c0_159] {strides = array<i32: 2, 1>} : memref<180x16xf32, #tpu.memory_space<vmem>>, vector<4x16xf32>
    %218 = arith.maximumf %214, %215 : vector<4x16xf32>
    %219 = arith.maximumf %216, %217 : vector<4x16xf32>
    %220 = arith.maximumf %218, %219 : vector<4x16xf32>
    %c57_160 = arith.constant 57 : index
    %c0_161 = arith.constant 0 : index
    %221 = vector.load %arg48[%c57_160, %c0_161] : memref<75x16xf32, #tpu.memory_space<vmem>>, vector<4x16xf32>
    tpu.vector_store %arg48[%c57_160, %c0_161], %220 {strides = array<i32>} : memref<75x16xf32, #tpu.memory_space<vmem>>, vector<4x16xf32>,
    %c161 = arith.constant 161 : index
    %c0_162 = arith.constant 0 : index
    %222 = tpu.strided_load %arg47[%c161, %c0_162] {strides = array<i32: 2, 1>} : memref<180x16xf32, #tpu.memory_space<vmem>>, vector<4x16xf32>
    %c162 = arith.constant 162 : index
    %c0_163 = arith.constant 0 : index
    %223 = tpu.strided_load %arg47[%c162, %c0_163] {strides = array<i32: 2, 1>} : memref<180x16xf32, #tpu.memory_space<vmem>>, vector<4x16xf32>
    %c171 = arith.constant 171 : index
    %c0_164 = arith.constant 0 : index
    %224 = tpu.strided_load %arg47[%c171, %c0_164] {strides = array<i32: 2, 1>} : memref<180x16xf32, #tpu.memory_space<vmem>>, vector<4x16xf32>
    %c172 = arith.constant 172 : index
    %c0_165 = arith.constant 0 : index
    %225 = tpu.strided_load %arg47[%c172, %c0_165] {strides = array<i32: 2, 1>} : memref<180x16xf32, #tpu.memory_space<vmem>>, vector<4x16xf32>
    %226 = arith.maximumf %222, %223 : vector<4x16xf32>
    %227 = arith.maximumf %224, %225 : vector<4x16xf32>
    %228 = arith.maximumf %226, %227 : vector<4x16xf32>
    %c63 = arith.constant 63 : index
    %c0_166 = arith.constant 0 : index
    %229 = vector.load %arg48[%c63, %c0_166] : memref<75x16xf32, #tpu.memory_space<vmem>>, vector<4x16xf32>
    tpu.vector_store %arg48[%c63, %c0_166], %228 {strides = array<i32>} : memref<75x16xf32, #tpu.memory_space<vmem>>, vector<4x16xf32>,
    %c8 = arith.constant 8 : index
    %c0_167 = arith.constant 0 : index
    %230 = vector.load %arg48[%c8, %c0_167] : memref<75x16xf32, #tpu.memory_space<vmem>>, vector<60x16xf32>
    %c0_168 = arith.constant 0 : index
    %c0_169 = arith.constant 0 : index
    %231 = vector.load %arg14[%c0_168, %c0_169] : memref<16x16xf32, #tpu.memory_space<vmem>>, vector<16x16xf32>
    %cst_170 = arith.constant dense<0.000000e+00> : vector<60x16xf32>
    %232 = tpu.matmul %230, %231, %cst_170 {dimension_numbers = #tpu.dot_dimension_numbers<[1], [0], [0], [1], [0, 0, 1, 1], [], []>} : vector<60x16xf32>, vector<16x16xf32>, vector<60x16xf32> -> vector<60x16xf32>
    %c0_171 = arith.constant 0 : index
    %c0_172 = arith.constant 0 : index
    %233 = vector.load %arg15[%c0_171, %c0_172] : memref<1x16xf32, #tpu.memory_space<vmem>>, vector<1x16xf32>
    %234 = vector.broadcast %233 : vector<1x16xf32> to vector<60x16xf32>
    %235 = arith.mulf %232, %234 : vector<60x16xf32>
    %c0_173 = arith.constant 0 : index
    %c0_174 = arith.constant 0 : index
    %236 = vector.load %arg16[%c0_173, %c0_174] : memref<1x16xf32, #tpu.memory_space<vmem>>, vector<1x16xf32>
    %237 = vector.broadcast %236 : vector<1x16xf32> to vector<60x16xf32>
    %238 = arith.addf %235, %237 : vector<60x16xf32>
    %cst_175 = arith.constant 0.000000e+00 : f32
    %239 = vector.broadcast %cst_175 : f32 to vector<60x16xf32>
    %240 = arith.maximumf %238, %239 : vector<60x16xf32>
    %cst_176 = arith.constant 0.000000e+00 : f32
    %241 = vector.broadcast %cst_176 : f32 to vector<8x16xf32>
    %c0_177 = arith.constant 0 : index
    %c0_178 = arith.constant 0 : index
    %242 = vector.load %arg49[%c0_177, %c0_178] : memref<75x16xf32, #tpu.memory_space<vmem>>, vector<8x16xf32>
    tpu.vector_store %arg49[%c0_177, %c0_178], %241 {strides = array<i32>} : memref<75x16xf32, #tpu.memory_space<vmem>>, vector<8x16xf32>,
    %c0_179 = arith.constant 0 : index
    %c0_180 = arith.constant 0 : index
    %243 = vector.load %arg2[%c0_179, %c0_180] : memref<60x1xf32, #tpu.memory_space<vmem>>, vector<60x1xf32>
    %cst_181 = arith.constant 5.000000e-01 : f32
    %244 = vector.broadcast %cst_181 : f32 to vector<60x1xf32>
    %245 = arith.cmpf ogt, %243, %244 : vector<60x1xf32>
    %cst_182 = arith.constant 0.000000e+00 : f32
    %246 = vector.shape_cast %245 : vector<60x1xi1> to vector<60x1xi1>
    %247 = vector.broadcast %246 : vector<60x1xi1> to vector<60x16xi1>
    %248 = vector.broadcast %cst_182 : f32 to vector<60x16xf32>
    %249 = arith.select %247, %240, %248 : vector<60x16xi1>, vector<60x16xf32>
    %c8_183 = arith.constant 8 : index
    %c0_184 = arith.constant 0 : index
    %250 = vector.load %arg49[%c8_183, %c0_184] : memref<75x16xf32, #tpu.memory_space<vmem>>, vector<60x16xf32>
    tpu.vector_store %arg49[%c8_183, %c0_184], %249 {strides = array<i32>} : memref<75x16xf32, #tpu.memory_space<vmem>>, vector<60x16xf32>,
    %cst_185 = arith.constant 0.000000e+00 : f32
    %251 = vector.broadcast %cst_185 : f32 to vector<7x16xf32>
    %c68 = arith.constant 68 : index
    %c0_186 = arith.constant 0 : index
    %252 = vector.load %arg49[%c68, %c0_186] : memref<75x16xf32, #tpu.memory_space<vmem>>, vector<7x16xf32>
    tpu.vector_store %arg49[%c68, %c0_186], %251 {strides = array<i32>} : memref<75x16xf32, #tpu.memory_space<vmem>>, vector<7x16xf32>,
    %c1_187 = arith.constant 1 : index
    %c0_188 = arith.constant 0 : index
    %253 = vector.load %arg49[%c1_187, %c0_188] : memref<75x16xf32, #tpu.memory_space<vmem>>, vector<60x16xf32>
    %c2_189 = arith.constant 2 : index
    %c0_190 = arith.constant 0 : index
    %254 = vector.load %arg49[%c2_189, %c0_190] : memref<75x16xf32, #tpu.memory_space<vmem>>, vector<60x16xf32>
    %c3 = arith.constant 3 : index
    %c0_191 = arith.constant 0 : index
    %255 = vector.load %arg49[%c3, %c0_191] : memref<75x16xf32, #tpu.memory_space<vmem>>, vector<60x16xf32>
    %c7_192 = arith.constant 7 : index
    %c0_193 = arith.constant 0 : index
    %256 = vector.load %arg49[%c7_192, %c0_193] : memref<75x16xf32, #tpu.memory_space<vmem>>, vector<60x16xf32>
    %c8_194 = arith.constant 8 : index
    %c0_195 = arith.constant 0 : index
    %257 = vector.load %arg49[%c8_194, %c0_195] : memref<75x16xf32, #tpu.memory_space<vmem>>, vector<60x16xf32>
    %c9_196 = arith.constant 9 : index
    %c0_197 = arith.constant 0 : index
    %258 = vector.load %arg49[%c9_196, %c0_197] : memref<75x16xf32, #tpu.memory_space<vmem>>, vector<60x16xf32>
    %c13 = arith.constant 13 : index
    %c0_198 = arith.constant 0 : index
    %259 = vector.load %arg49[%c13, %c0_198] : memref<75x16xf32, #tpu.memory_space<vmem>>, vector<60x16xf32>
    %c14 = arith.constant 14 : index
    %c0_199 = arith.constant 0 : index
    %260 = vector.load %arg49[%c14, %c0_199] : memref<75x16xf32, #tpu.memory_space<vmem>>, vector<60x16xf32>
    %c15_200 = arith.constant 15 : index
    %c0_201 = arith.constant 0 : index
    %261 = vector.load %arg49[%c15_200, %c0_201] : memref<75x16xf32, #tpu.memory_space<vmem>>, vector<60x16xf32>
    %262 = tpu.concatenate %253, %254, %255, %256, %257, %258, %259, %260, %261 in 1 : vector<60x16xf32>, vector<60x16xf32>, vector<60x16xf32>, vector<60x16xf32>, vector<60x16xf32>, vector<60x16xf32>, vector<60x16xf32>, vector<60x16xf32>, vector<60x16xf32> -> vector<60x144xf32>
    %c0_202 = arith.constant 0 : index
    %c0_203 = arith.constant 0 : index
    %263 = vector.load %arg17[%c0_202, %c0_203] : memref<144x32xf32, #tpu.memory_space<vmem>>, vector<144x32xf32>
    %cst_204 = arith.constant dense<0.000000e+00> : vector<60x32xf32>
    %264 = tpu.matmul %262, %263, %cst_204 {dimension_numbers = #tpu.dot_dimension_numbers<[1], [0], [0], [1], [0, 0, 1, 1], [], []>} : vector<60x144xf32>, vector<144x32xf32>, vector<60x32xf32> -> vector<60x32xf32>
    %c0_205 = arith.constant 0 : index
    %c0_206 = arith.constant 0 : index
    %265 = vector.load %arg18[%c0_205, %c0_206] : memref<1x32xf32, #tpu.memory_space<vmem>>, vector<1x32xf32>
    %266 = vector.broadcast %265 : vector<1x32xf32> to vector<60x32xf32>
    %267 = arith.mulf %264, %266 : vector<60x32xf32>
    %c0_207 = arith.constant 0 : index
    %c0_208 = arith.constant 0 : index
    %268 = vector.load %arg19[%c0_207, %c0_208] : memref<1x32xf32, #tpu.memory_space<vmem>>, vector<1x32xf32>
    %269 = vector.broadcast %268 : vector<1x32xf32> to vector<60x32xf32>
    %270 = arith.addf %267, %269 : vector<60x32xf32>
    %cst_209 = arith.constant 0.000000e+00 : f32
    %271 = vector.broadcast %cst_209 : f32 to vector<60x32xf32>
    %272 = arith.maximumf %270, %271 : vector<60x32xf32>
    %c0_210 = arith.constant 0 : index
    %c0_211 = arith.constant 0 : index
    %273 = vector.load %arg20[%c0_210, %c0_211] : memref<32x32xf32, #tpu.memory_space<vmem>>, vector<32x32xf32>
    %cst_212 = arith.constant dense<0.000000e+00> : vector<60x32xf32>
    %274 = tpu.matmul %272, %273, %cst_212 {dimension_numbers = #tpu.dot_dimension_numbers<[1], [0], [0], [1], [0, 0, 1, 1], [], []>} : vector<60x32xf32>, vector<32x32xf32>, vector<60x32xf32> -> vector<60x32xf32>
    %c0_213 = arith.constant 0 : index
    %c0_214 = arith.constant 0 : index
    %275 = vector.load %arg21[%c0_213, %c0_214] : memref<1x32xf32, #tpu.memory_space<vmem>>, vector<1x32xf32>
    %276 = vector.broadcast %275 : vector<1x32xf32> to vector<60x32xf32>
    %277 = arith.mulf %274, %276 : vector<60x32xf32>
    %c0_215 = arith.constant 0 : index
    %c0_216 = arith.constant 0 : index
    %278 = vector.load %arg22[%c0_215, %c0_216] : memref<1x32xf32, #tpu.memory_space<vmem>>, vector<1x32xf32>
    %279 = vector.broadcast %278 : vector<1x32xf32> to vector<60x32xf32>
    %280 = arith.addf %277, %279 : vector<60x32xf32>
    %cst_217 = arith.constant 0.000000e+00 : f32
    %281 = vector.broadcast %cst_217 : f32 to vector<60x32xf32>
    %282 = arith.maximumf %280, %281 : vector<60x32xf32>
    %cst_218 = arith.constant 0.000000e+00 : f32
    %283 = vector.broadcast %cst_218 : f32 to vector<8x32xf32>
    %c0_219 = arith.constant 0 : index
    %c0_220 = arith.constant 0 : index
    %284 = vector.load %arg50[%c0_219, %c0_220] : memref<75x32xf32, #tpu.memory_space<vmem>>, vector<8x32xf32>
    tpu.vector_store %arg50[%c0_219, %c0_220], %283 {strides = array<i32>} : memref<75x32xf32, #tpu.memory_space<vmem>>, vector<8x32xf32>,
    %c0_221 = arith.constant 0 : index
    %c0_222 = arith.constant 0 : index
    %285 = vector.load %arg2[%c0_221, %c0_222] : memref<60x1xf32, #tpu.memory_space<vmem>>, vector<60x1xf32>
    %cst_223 = arith.constant 5.000000e-01 : f32
    %286 = vector.broadcast %cst_223 : f32 to vector<60x1xf32>
    %287 = arith.cmpf ogt, %285, %286 : vector<60x1xf32>
    %cst_224 = arith.constant 0.000000e+00 : f32
    %288 = vector.shape_cast %287 : vector<60x1xi1> to vector<60x1xi1>
    %289 = vector.broadcast %288 : vector<60x1xi1> to vector<60x32xi1>
    %290 = vector.broadcast %cst_224 : f32 to vector<60x32xf32>
    %291 = arith.select %289, %282, %290 : vector<60x32xi1>, vector<60x32xf32>
    %c8_225 = arith.constant 8 : index
    %c0_226 = arith.constant 0 : index
    %292 = vector.load %arg50[%c8_225, %c0_226] : memref<75x32xf32, #tpu.memory_space<vmem>>, vector<60x32xf32>
    tpu.vector_store %arg50[%c8_225, %c0_226], %291 {strides = array<i32>} : memref<75x32xf32, #tpu.memory_space<vmem>>, vector<60x32xf32>,
    %cst_227 = arith.constant 0.000000e+00 : f32
    %293 = vector.broadcast %cst_227 : f32 to vector<7x32xf32>
    %c68_228 = arith.constant 68 : index
    %c0_229 = arith.constant 0 : index
    %294 = vector.load %arg50[%c68_228, %c0_229] : memref<75x32xf32, #tpu.memory_space<vmem>>, vector<7x32xf32>
    tpu.vector_store %arg50[%c68_228, %c0_229], %293 {strides = array<i32>} : memref<75x32xf32, #tpu.memory_space<vmem>>, vector<7x32xf32>,
    %c1_230 = arith.constant 1 : index
    %c0_231 = arith.constant 0 : index
    %295 = vector.load %arg50[%c1_230, %c0_231] : memref<75x32xf32, #tpu.memory_space<vmem>>, vector<60x32xf32>
    %c2_232 = arith.constant 2 : index
    %c0_233 = arith.constant 0 : index
    %296 = vector.load %arg50[%c2_232, %c0_233] : memref<75x32xf32, #tpu.memory_space<vmem>>, vector<60x32xf32>
    %c3_234 = arith.constant 3 : index
    %c0_235 = arith.constant 0 : index
    %297 = vector.load %arg50[%c3_234, %c0_235] : memref<75x32xf32, #tpu.memory_space<vmem>>, vector<60x32xf32>
    %c7_236 = arith.constant 7 : index
    %c0_237 = arith.constant 0 : index
    %298 = vector.load %arg50[%c7_236, %c0_237] : memref<75x32xf32, #tpu.memory_space<vmem>>, vector<60x32xf32>
    %c8_238 = arith.constant 8 : index
    %c0_239 = arith.constant 0 : index
    %299 = vector.load %arg50[%c8_238, %c0_239] : memref<75x32xf32, #tpu.memory_space<vmem>>, vector<60x32xf32>
    %c9_240 = arith.constant 9 : index
    %c0_241 = arith.constant 0 : index
    %300 = vector.load %arg50[%c9_240, %c0_241] : memref<75x32xf32, #tpu.memory_space<vmem>>, vector<60x32xf32>
    %c13_242 = arith.constant 13 : index
    %c0_243 = arith.constant 0 : index
    %301 = vector.load %arg50[%c13_242, %c0_243] : memref<75x32xf32, #tpu.memory_space<vmem>>, vector<60x32xf32>
    %c14_244 = arith.constant 14 : index
    %c0_245 = arith.constant 0 : index
    %302 = vector.load %arg50[%c14_244, %c0_245] : memref<75x32xf32, #tpu.memory_space<vmem>>, vector<60x32xf32>
    %c15_246 = arith.constant 15 : index
    %c0_247 = arith.constant 0 : index
    %303 = vector.load %arg50[%c15_246, %c0_247] : memref<75x32xf32, #tpu.memory_space<vmem>>, vector<60x32xf32>
    %304 = tpu.concatenate %295, %296, %297, %298, %299, %300, %301, %302, %303 in 1 : vector<60x32xf32>, vector<60x32xf32>, vector<60x32xf32>, vector<60x32xf32>, vector<60x32xf32>, vector<60x32xf32>, vector<60x32xf32>, vector<60x32xf32>, vector<60x32xf32> -> vector<60x288xf32>
    %c0_248 = arith.constant 0 : index
    %c0_249 = arith.constant 0 : index
    %305 = vector.load %arg23[%c0_248, %c0_249] : memref<288x64xf32, #tpu.memory_space<vmem>>, vector<288x64xf32>
    %cst_250 = arith.constant dense<0.000000e+00> : vector<60x64xf32>
    %306 = tpu.matmul %304, %305, %cst_250 {dimension_numbers = #tpu.dot_dimension_numbers<[1], [0], [0], [1], [0, 0, 1, 1], [], []>} : vector<60x288xf32>, vector<288x64xf32>, vector<60x64xf32> -> vector<60x64xf32>
    %c0_251 = arith.constant 0 : index
    %c0_252 = arith.constant 0 : index
    %307 = vector.load %arg24[%c0_251, %c0_252] : memref<1x64xf32, #tpu.memory_space<vmem>>, vector<1x64xf32>
    %308 = vector.broadcast %307 : vector<1x64xf32> to vector<60x64xf32>
    %309 = arith.mulf %306, %308 : vector<60x64xf32>
    %c0_253 = arith.constant 0 : index
    %c0_254 = arith.constant 0 : index
    %310 = vector.load %arg25[%c0_253, %c0_254] : memref<1x64xf32, #tpu.memory_space<vmem>>, vector<1x64xf32>
    %311 = vector.broadcast %310 : vector<1x64xf32> to vector<60x64xf32>
    %312 = arith.addf %309, %311 : vector<60x64xf32>
    %cst_255 = arith.constant 0.000000e+00 : f32
    %313 = vector.broadcast %cst_255 : f32 to vector<60x64xf32>
    %314 = arith.maximumf %312, %313 : vector<60x64xf32>
    %c0_256 = arith.constant 0 : index
    %c0_257 = arith.constant 0 : index
    %315 = vector.load %arg51[%c0_256, %c0_257] : memref<60x64xf32, #tpu.memory_space<vmem>>, vector<60x64xf32>
    tpu.vector_store %arg51[%c0_256, %c0_257], %314 {strides = array<i32>} : memref<60x64xf32, #tpu.memory_space<vmem>>, vector<60x64xf32>,
    %cst_258 = arith.constant 0.000000e+00 : f32
    %316 = vector.broadcast %cst_258 : f32 to vector<37x64xf32>
    %c0_259 = arith.constant 0 : index
    %c0_260 = arith.constant 0 : index
    %317 = vector.load %arg52[%c0_259, %c0_260] : memref<37x64xf32, #tpu.memory_space<vmem>>, vector<37x64xf32>
    tpu.vector_store %arg52[%c0_259, %c0_260], %316 {strides = array<i32>} : memref<37x64xf32, #tpu.memory_space<vmem>>, vector<37x64xf32>,
    %c1_261 = arith.constant 1 : index
    %c0_262 = arith.constant 0 : index
    %318 = tpu.strided_load %arg51[%c1_261, %c0_262] {strides = array<i32: 2, 1>} : memref<60x64xf32, #tpu.memory_space<vmem>>, vector<2x64xf32>
    %c2_263 = arith.constant 2 : index
    %c0_264 = arith.constant 0 : index
    %319 = tpu.strided_load %arg51[%c2_263, %c0_264] {strides = array<i32: 2, 1>} : memref<60x64xf32, #tpu.memory_space<vmem>>, vector<2x64xf32>
    %c7_265 = arith.constant 7 : index
    %c0_266 = arith.constant 0 : index
    %320 = tpu.strided_load %arg51[%c7_265, %c0_266] {strides = array<i32: 2, 1>} : memref<60x64xf32, #tpu.memory_space<vmem>>, vector<2x64xf32>
    %c8_267 = arith.constant 8 : index
    %c0_268 = arith.constant 0 : index
    %321 = tpu.strided_load %arg51[%c8_267, %c0_268] {strides = array<i32: 2, 1>} : memref<60x64xf32, #tpu.memory_space<vmem>>, vector<2x64xf32>
    %322 = arith.maximumf %318, %319 : vector<2x64xf32>
    %323 = arith.maximumf %320, %321 : vector<2x64xf32>
    %324 = arith.maximumf %322, %323 : vector<2x64xf32>
    %c9_269 = arith.constant 9 : index
    %c0_270 = arith.constant 0 : index
    %325 = vector.load %arg52[%c9_269, %c0_270] : memref<37x64xf32, #tpu.memory_space<vmem>>, vector<2x64xf32>
    tpu.vector_store %arg52[%c9_269, %c0_270], %324 {strides = array<i32>} : memref<37x64xf32, #tpu.memory_space<vmem>>, vector<2x64xf32>,
    %c13_271 = arith.constant 13 : index
    %c0_272 = arith.constant 0 : index
    %326 = tpu.strided_load %arg51[%c13_271, %c0_272] {strides = array<i32: 2, 1>} : memref<60x64xf32, #tpu.memory_space<vmem>>, vector<2x64xf32>
    %c14_273 = arith.constant 14 : index
    %c0_274 = arith.constant 0 : index
    %327 = tpu.strided_load %arg51[%c14_273, %c0_274] {strides = array<i32: 2, 1>} : memref<60x64xf32, #tpu.memory_space<vmem>>, vector<2x64xf32>
    %c19_275 = arith.constant 19 : index
    %c0_276 = arith.constant 0 : index
    %328 = tpu.strided_load %arg51[%c19_275, %c0_276] {strides = array<i32: 2, 1>} : memref<60x64xf32, #tpu.memory_space<vmem>>, vector<2x64xf32>
    %c20_277 = arith.constant 20 : index
    %c0_278 = arith.constant 0 : index
    %329 = tpu.strided_load %arg51[%c20_277, %c0_278] {strides = array<i32: 2, 1>} : memref<60x64xf32, #tpu.memory_space<vmem>>, vector<2x64xf32>
    %330 = arith.maximumf %326, %327 : vector<2x64xf32>
    %331 = arith.maximumf %328, %329 : vector<2x64xf32>
    %332 = arith.maximumf %330, %331 : vector<2x64xf32>
    %c13_279 = arith.constant 13 : index
    %c0_280 = arith.constant 0 : index
    %333 = vector.load %arg52[%c13_279, %c0_280] : memref<37x64xf32, #tpu.memory_space<vmem>>, vector<2x64xf32>
    tpu.vector_store %arg52[%c13_279, %c0_280], %332 {strides = array<i32>} : memref<37x64xf32, #tpu.memory_space<vmem>>, vector<2x64xf32>,
    %c37_281 = arith.constant 37 : index
    %c0_282 = arith.constant 0 : index
    %334 = tpu.strided_load %arg51[%c37_281, %c0_282] {strides = array<i32: 2, 1>} : memref<60x64xf32, #tpu.memory_space<vmem>>, vector<2x64xf32>
    %c38_283 = arith.constant 38 : index
    %c0_284 = arith.constant 0 : index
    %335 = tpu.strided_load %arg51[%c38_283, %c0_284] {strides = array<i32: 2, 1>} : memref<60x64xf32, #tpu.memory_space<vmem>>, vector<2x64xf32>
    %c43 = arith.constant 43 : index
    %c0_285 = arith.constant 0 : index
    %336 = tpu.strided_load %arg51[%c43, %c0_285] {strides = array<i32: 2, 1>} : memref<60x64xf32, #tpu.memory_space<vmem>>, vector<2x64xf32>
    %c44 = arith.constant 44 : index
    %c0_286 = arith.constant 0 : index
    %337 = tpu.strided_load %arg51[%c44, %c0_286] {strides = array<i32: 2, 1>} : memref<60x64xf32, #tpu.memory_space<vmem>>, vector<2x64xf32>
    %338 = arith.maximumf %334, %335 : vector<2x64xf32>
    %339 = arith.maximumf %336, %337 : vector<2x64xf32>
    %340 = arith.maximumf %338, %339 : vector<2x64xf32>
    %c25_287 = arith.constant 25 : index
    %c0_288 = arith.constant 0 : index
    %341 = vector.load %arg52[%c25_287, %c0_288] : memref<37x64xf32, #tpu.memory_space<vmem>>, vector<2x64xf32>
    tpu.vector_store %arg52[%c25_287, %c0_288], %340 {strides = array<i32>} : memref<37x64xf32, #tpu.memory_space<vmem>>, vector<2x64xf32>,
    %c49 = arith.constant 49 : index
    %c0_289 = arith.constant 0 : index
    %342 = tpu.strided_load %arg51[%c49, %c0_289] {strides = array<i32: 2, 1>} : memref<60x64xf32, #tpu.memory_space<vmem>>, vector<2x64xf32>
    %c50 = arith.constant 50 : index
    %c0_290 = arith.constant 0 : index
    %343 = tpu.strided_load %arg51[%c50, %c0_290] {strides = array<i32: 2, 1>} : memref<60x64xf32, #tpu.memory_space<vmem>>, vector<2x64xf32>
    %c55_291 = arith.constant 55 : index
    %c0_292 = arith.constant 0 : index
    %344 = tpu.strided_load %arg51[%c55_291, %c0_292] {strides = array<i32: 2, 1>} : memref<60x64xf32, #tpu.memory_space<vmem>>, vector<2x64xf32>
    %c56_293 = arith.constant 56 : index
    %c0_294 = arith.constant 0 : index
    %345 = tpu.strided_load %arg51[%c56_293, %c0_294] {strides = array<i32: 2, 1>} : memref<60x64xf32, #tpu.memory_space<vmem>>, vector<2x64xf32>
    %346 = arith.maximumf %342, %343 : vector<2x64xf32>
    %347 = arith.maximumf %344, %345 : vector<2x64xf32>
    %348 = arith.maximumf %346, %347 : vector<2x64xf32>
    %c29 = arith.constant 29 : index
    %c0_295 = arith.constant 0 : index
    %349 = vector.load %arg52[%c29, %c0_295] : memref<37x64xf32, #tpu.memory_space<vmem>>, vector<2x64xf32>
    tpu.vector_store %arg52[%c29, %c0_295], %348 {strides = array<i32>} : memref<37x64xf32, #tpu.memory_space<vmem>>, vector<2x64xf32>,
    %c8_296 = arith.constant 8 : index
    %c0_297 = arith.constant 0 : index
    %350 = vector.load %arg52[%c8_296, %c0_297] : memref<37x64xf32, #tpu.memory_space<vmem>>, vector<24x64xf32>
    %c0_298 = arith.constant 0 : index
    %c0_299 = arith.constant 0 : index
    %351 = vector.load %arg26[%c0_298, %c0_299] : memref<64x32xf32, #tpu.memory_space<vmem>>, vector<64x32xf32>
    %cst_300 = arith.constant dense<0.000000e+00> : vector<24x32xf32>
    %352 = tpu.matmul %350, %351, %cst_300 {dimension_numbers = #tpu.dot_dimension_numbers<[1], [0], [0], [1], [0, 0, 1, 1], [], []>} : vector<24x64xf32>, vector<64x32xf32>, vector<24x32xf32> -> vector<24x32xf32>
    %c0_301 = arith.constant 0 : index
    %c0_302 = arith.constant 0 : index
    %353 = vector.load %arg27[%c0_301, %c0_302] : memref<1x32xf32, #tpu.memory_space<vmem>>, vector<1x32xf32>
    %354 = vector.broadcast %353 : vector<1x32xf32> to vector<24x32xf32>
    %355 = arith.mulf %352, %354 : vector<24x32xf32>
    %c0_303 = arith.constant 0 : index
    %c0_304 = arith.constant 0 : index
    %356 = vector.load %arg28[%c0_303, %c0_304] : memref<1x32xf32, #tpu.memory_space<vmem>>, vector<1x32xf32>
    %357 = vector.broadcast %356 : vector<1x32xf32> to vector<24x32xf32>
    %358 = arith.addf %355, %357 : vector<24x32xf32>
    %cst_305 = arith.constant 0.000000e+00 : f32
    %359 = vector.broadcast %cst_305 : f32 to vector<24x32xf32>
    %360 = arith.maximumf %358, %359 : vector<24x32xf32>
    %cst_306 = arith.constant 0.000000e+00 : f32
    %361 = vector.broadcast %cst_306 : f32 to vector<8x32xf32>
    %c0_307 = arith.constant 0 : index
    %c0_308 = arith.constant 0 : index
    %362 = vector.load %arg53[%c0_307, %c0_308] : memref<37x32xf32, #tpu.memory_space<vmem>>, vector<8x32xf32>
    tpu.vector_store %arg53[%c0_307, %c0_308], %361 {strides = array<i32>} : memref<37x32xf32, #tpu.memory_space<vmem>>, vector<8x32xf32>,
    %c0_309 = arith.constant 0 : index
    %c0_310 = arith.constant 0 : index
    %363 = vector.load %arg3[%c0_309, %c0_310] : memref<24x1xf32, #tpu.memory_space<vmem>>, vector<24x1xf32>
    %cst_311 = arith.constant 5.000000e-01 : f32
    %364 = vector.broadcast %cst_311 : f32 to vector<24x1xf32>
    %365 = arith.cmpf ogt, %363, %364 : vector<24x1xf32>
    %cst_312 = arith.constant 0.000000e+00 : f32
    %366 = vector.shape_cast %365 : vector<24x1xi1> to vector<24x1xi1>
    %367 = vector.broadcast %366 : vector<24x1xi1> to vector<24x32xi1>
    %368 = vector.broadcast %cst_312 : f32 to vector<24x32xf32>
    %369 = arith.select %367, %360, %368 : vector<24x32xi1>, vector<24x32xf32>
    %c8_313 = arith.constant 8 : index
    %c0_314 = arith.constant 0 : index
    %370 = vector.load %arg53[%c8_313, %c0_314] : memref<37x32xf32, #tpu.memory_space<vmem>>, vector<24x32xf32>
    tpu.vector_store %arg53[%c8_313, %c0_314], %369 {strides = array<i32>} : memref<37x32xf32, #tpu.memory_space<vmem>>, vector<24x32xf32>,
    %cst_315 = arith.constant 0.000000e+00 : f32
    %371 = vector.broadcast %cst_315 : f32 to vector<5x32xf32>
    %c32_316 = arith.constant 32 : index
    %c0_317 = arith.constant 0 : index
    %372 = vector.load %arg53[%c32_316, %c0_317] : memref<37x32xf32, #tpu.memory_space<vmem>>, vector<5x32xf32>
    tpu.vector_store %arg53[%c32_316, %c0_317], %371 {strides = array<i32>} : memref<37x32xf32, #tpu.memory_space<vmem>>, vector<5x32xf32>,
    %c3_318 = arith.constant 3 : index
    %c0_319 = arith.constant 0 : index
    %373 = vector.load %arg53[%c3_318, %c0_319] : memref<37x32xf32, #tpu.memory_space<vmem>>, vector<24x32xf32>
    %c4 = arith.constant 4 : index
    %c0_320 = arith.constant 0 : index
    %374 = vector.load %arg53[%c4, %c0_320] : memref<37x32xf32, #tpu.memory_space<vmem>>, vector<24x32xf32>
    %c5_321 = arith.constant 5 : index
    %c0_322 = arith.constant 0 : index
    %375 = vector.load %arg53[%c5_321, %c0_322] : memref<37x32xf32, #tpu.memory_space<vmem>>, vector<24x32xf32>
    %c7_323 = arith.constant 7 : index
    %c0_324 = arith.constant 0 : index
    %376 = vector.load %arg53[%c7_323, %c0_324] : memref<37x32xf32, #tpu.memory_space<vmem>>, vector<24x32xf32>
    %c8_325 = arith.constant 8 : index
    %c0_326 = arith.constant 0 : index
    %377 = vector.load %arg53[%c8_325, %c0_326] : memref<37x32xf32, #tpu.memory_space<vmem>>, vector<24x32xf32>
    %c9_327 = arith.constant 9 : index
    %c0_328 = arith.constant 0 : index
    %378 = vector.load %arg53[%c9_327, %c0_328] : memref<37x32xf32, #tpu.memory_space<vmem>>, vector<24x32xf32>
    %c11_329 = arith.constant 11 : index
    %c0_330 = arith.constant 0 : index
    %379 = vector.load %arg53[%c11_329, %c0_330] : memref<37x32xf32, #tpu.memory_space<vmem>>, vector<24x32xf32>
    %c12_331 = arith.constant 12 : index
    %c0_332 = arith.constant 0 : index
    %380 = vector.load %arg53[%c12_331, %c0_332] : memref<37x32xf32, #tpu.memory_space<vmem>>, vector<24x32xf32>
    %c13_333 = arith.constant 13 : index
    %c0_334 = arith.constant 0 : index
    %381 = vector.load %arg53[%c13_333, %c0_334] : memref<37x32xf32, #tpu.memory_space<vmem>>, vector<24x32xf32>
    %382 = tpu.concatenate %373, %374, %375, %376, %377, %378, %379, %380, %381 in 1 : vector<24x32xf32>, vector<24x32xf32>, vector<24x32xf32>, vector<24x32xf32>, vector<24x32xf32>, vector<24x32xf32>, vector<24x32xf32>, vector<24x32xf32>, vector<24x32xf32> -> vector<24x288xf32>
    %c0_335 = arith.constant 0 : index
    %c0_336 = arith.constant 0 : index
    %383 = vector.load %arg29[%c0_335, %c0_336] : memref<288x64xf32, #tpu.memory_space<vmem>>, vector<288x64xf32>
    %cst_337 = arith.constant dense<0.000000e+00> : vector<24x64xf32>
    %384 = tpu.matmul %382, %383, %cst_337 {dimension_numbers = #tpu.dot_dimension_numbers<[1], [0], [0], [1], [0, 0, 1, 1], [], []>} : vector<24x288xf32>, vector<288x64xf32>, vector<24x64xf32> -> vector<24x64xf32>
    %c0_338 = arith.constant 0 : index
    %c0_339 = arith.constant 0 : index
    %385 = vector.load %arg30[%c0_338, %c0_339] : memref<1x64xf32, #tpu.memory_space<vmem>>, vector<1x64xf32>
    %386 = vector.broadcast %385 : vector<1x64xf32> to vector<24x64xf32>
    %387 = arith.mulf %384, %386 : vector<24x64xf32>
    %c0_340 = arith.constant 0 : index
    %c0_341 = arith.constant 0 : index
    %388 = vector.load %arg31[%c0_340, %c0_341] : memref<1x64xf32, #tpu.memory_space<vmem>>, vector<1x64xf32>
    %389 = vector.broadcast %388 : vector<1x64xf32> to vector<24x64xf32>
    %390 = arith.addf %387, %389 : vector<24x64xf32>
    %cst_342 = arith.constant 0.000000e+00 : f32
    %391 = vector.broadcast %cst_342 : f32 to vector<24x64xf32>
    %392 = arith.maximumf %390, %391 : vector<24x64xf32>
    %c0_343 = arith.constant 0 : index
    %c0_344 = arith.constant 0 : index
    %393 = vector.load %arg32[%c0_343, %c0_344] : memref<64x32xf32, #tpu.memory_space<vmem>>, vector<64x32xf32>
    %cst_345 = arith.constant dense<0.000000e+00> : vector<24x32xf32>
    %394 = tpu.matmul %392, %393, %cst_345 {dimension_numbers = #tpu.dot_dimension_numbers<[1], [0], [0], [1], [0, 0, 1, 1], [], []>} : vector<24x64xf32>, vector<64x32xf32>, vector<24x32xf32> -> vector<24x32xf32>
    %c0_346 = arith.constant 0 : index
    %c0_347 = arith.constant 0 : index
    %395 = vector.load %arg33[%c0_346, %c0_347] : memref<1x32xf32, #tpu.memory_space<vmem>>, vector<1x32xf32>
    %396 = vector.broadcast %395 : vector<1x32xf32> to vector<24x32xf32>
    %397 = arith.mulf %394, %396 : vector<24x32xf32>
    %c0_348 = arith.constant 0 : index
    %c0_349 = arith.constant 0 : index
    %398 = vector.load %arg34[%c0_348, %c0_349] : memref<1x32xf32, #tpu.memory_space<vmem>>, vector<1x32xf32>
    %399 = vector.broadcast %398 : vector<1x32xf32> to vector<24x32xf32>
    %400 = arith.addf %397, %399 : vector<24x32xf32>
    %cst_350 = arith.constant 0.000000e+00 : f32
    %401 = vector.broadcast %cst_350 : f32 to vector<24x32xf32>
    %402 = arith.maximumf %400, %401 : vector<24x32xf32>
    %cst_351 = arith.constant 0.000000e+00 : f32
    %403 = vector.broadcast %cst_351 : f32 to vector<8x32xf32>
    %c0_352 = arith.constant 0 : index
    %c0_353 = arith.constant 0 : index
    %404 = vector.load %arg54[%c0_352, %c0_353] : memref<37x32xf32, #tpu.memory_space<vmem>>, vector<8x32xf32>
    tpu.vector_store %arg54[%c0_352, %c0_353], %403 {strides = array<i32>} : memref<37x32xf32, #tpu.memory_space<vmem>>, vector<8x32xf32>,
    %c0_354 = arith.constant 0 : index
    %c0_355 = arith.constant 0 : index
    %405 = vector.load %arg3[%c0_354, %c0_355] : memref<24x1xf32, #tpu.memory_space<vmem>>, vector<24x1xf32>
    %cst_356 = arith.constant 5.000000e-01 : f32
    %406 = vector.broadcast %cst_356 : f32 to vector<24x1xf32>
    %407 = arith.cmpf ogt, %405, %406 : vector<24x1xf32>
    %cst_357 = arith.constant 0.000000e+00 : f32
    %408 = vector.shape_cast %407 : vector<24x1xi1> to vector<24x1xi1>
    %409 = vector.broadcast %408 : vector<24x1xi1> to vector<24x32xi1>
    %410 = vector.broadcast %cst_357 : f32 to vector<24x32xf32>
    %411 = arith.select %409, %402, %410 : vector<24x32xi1>, vector<24x32xf32>
    %c8_358 = arith.constant 8 : index
    %c0_359 = arith.constant 0 : index
    %412 = vector.load %arg54[%c8_358, %c0_359] : memref<37x32xf32, #tpu.memory_space<vmem>>, vector<24x32xf32>
    tpu.vector_store %arg54[%c8_358, %c0_359], %411 {strides = array<i32>} : memref<37x32xf32, #tpu.memory_space<vmem>>, vector<24x32xf32>,
    %cst_360 = arith.constant 0.000000e+00 : f32
    %413 = vector.broadcast %cst_360 : f32 to vector<5x32xf32>
    %c32_361 = arith.constant 32 : index
    %c0_362 = arith.constant 0 : index
    %414 = vector.load %arg54[%c32_361, %c0_362] : memref<37x32xf32, #tpu.memory_space<vmem>>, vector<5x32xf32>
    tpu.vector_store %arg54[%c32_361, %c0_362], %413 {strides = array<i32>} : memref<37x32xf32, #tpu.memory_space<vmem>>, vector<5x32xf32>,
    %c3_363 = arith.constant 3 : index
    %c0_364 = arith.constant 0 : index
    %415 = vector.load %arg54[%c3_363, %c0_364] : memref<37x32xf32, #tpu.memory_space<vmem>>, vector<24x32xf32>
    %c4_365 = arith.constant 4 : index
    %c0_366 = arith.constant 0 : index
    %416 = vector.load %arg54[%c4_365, %c0_366] : memref<37x32xf32, #tpu.memory_space<vmem>>, vector<24x32xf32>
    %c5_367 = arith.constant 5 : index
    %c0_368 = arith.constant 0 : index
    %417 = vector.load %arg54[%c5_367, %c0_368] : memref<37x32xf32, #tpu.memory_space<vmem>>, vector<24x32xf32>
    %c7_369 = arith.constant 7 : index
    %c0_370 = arith.constant 0 : index
    %418 = vector.load %arg54[%c7_369, %c0_370] : memref<37x32xf32, #tpu.memory_space<vmem>>, vector<24x32xf32>
    %c8_371 = arith.constant 8 : index
    %c0_372 = arith.constant 0 : index
    %419 = vector.load %arg54[%c8_371, %c0_372] : memref<37x32xf32, #tpu.memory_space<vmem>>, vector<24x32xf32>
    %c9_373 = arith.constant 9 : index
    %c0_374 = arith.constant 0 : index
    %420 = vector.load %arg54[%c9_373, %c0_374] : memref<37x32xf32, #tpu.memory_space<vmem>>, vector<24x32xf32>
    %c11_375 = arith.constant 11 : index
    %c0_376 = arith.constant 0 : index
    %421 = vector.load %arg54[%c11_375, %c0_376] : memref<37x32xf32, #tpu.memory_space<vmem>>, vector<24x32xf32>
    %c12_377 = arith.constant 12 : index
    %c0_378 = arith.constant 0 : index
    %422 = vector.load %arg54[%c12_377, %c0_378] : memref<37x32xf32, #tpu.memory_space<vmem>>, vector<24x32xf32>
    %c13_379 = arith.constant 13 : index
    %c0_380 = arith.constant 0 : index
    %423 = vector.load %arg54[%c13_379, %c0_380] : memref<37x32xf32, #tpu.memory_space<vmem>>, vector<24x32xf32>
    %424 = tpu.concatenate %415, %416, %417, %418, %419, %420, %421, %422, %423 in 1 : vector<24x32xf32>, vector<24x32xf32>, vector<24x32xf32>, vector<24x32xf32>, vector<24x32xf32>, vector<24x32xf32>, vector<24x32xf32>, vector<24x32xf32>, vector<24x32xf32> -> vector<24x288xf32>
    %c0_381 = arith.constant 0 : index
    %c0_382 = arith.constant 0 : index
    %425 = vector.load %arg35[%c0_381, %c0_382] : memref<288x64xf32, #tpu.memory_space<vmem>>, vector<288x64xf32>
    %cst_383 = arith.constant dense<0.000000e+00> : vector<24x64xf32>
    %426 = tpu.matmul %424, %425, %cst_383 {dimension_numbers = #tpu.dot_dimension_numbers<[1], [0], [0], [1], [0, 0, 1, 1], [], []>} : vector<24x288xf32>, vector<288x64xf32>, vector<24x64xf32> -> vector<24x64xf32>
    %c0_384 = arith.constant 0 : index
    %c0_385 = arith.constant 0 : index
    %427 = vector.load %arg36[%c0_384, %c0_385] : memref<1x64xf32, #tpu.memory_space<vmem>>, vector<1x64xf32>
    %428 = vector.broadcast %427 : vector<1x64xf32> to vector<24x64xf32>
    %429 = arith.mulf %426, %428 : vector<24x64xf32>
    %c0_386 = arith.constant 0 : index
    %c0_387 = arith.constant 0 : index
    %430 = vector.load %arg37[%c0_386, %c0_387] : memref<1x64xf32, #tpu.memory_space<vmem>>, vector<1x64xf32>
    %431 = vector.broadcast %430 : vector<1x64xf32> to vector<24x64xf32>
    %432 = arith.addf %429, %431 : vector<24x64xf32>
    %cst_388 = arith.constant 0.000000e+00 : f32
    %433 = vector.broadcast %cst_388 : f32 to vector<24x64xf32>
    %434 = arith.maximumf %432, %433 : vector<24x64xf32>
    %c0_389 = arith.constant 0 : index
    %c0_390 = arith.constant 0 : index
    %435 = vector.load %arg38[%c0_389, %c0_390] : memref<64x32xf32, #tpu.memory_space<vmem>>, vector<64x32xf32>
    %cst_391 = arith.constant dense<0.000000e+00> : vector<24x32xf32>
    %436 = tpu.matmul %434, %435, %cst_391 {dimension_numbers = #tpu.dot_dimension_numbers<[1], [0], [0], [1], [0, 0, 1, 1], [], []>} : vector<24x64xf32>, vector<64x32xf32>, vector<24x32xf32> -> vector<24x32xf32>
    %c0_392 = arith.constant 0 : index
    %c0_393 = arith.constant 0 : index
    %437 = vector.load %arg39[%c0_392, %c0_393] : memref<1x32xf32, #tpu.memory_space<vmem>>, vector<1x32xf32>
    %438 = vector.broadcast %437 : vector<1x32xf32> to vector<24x32xf32>
    %439 = arith.mulf %436, %438 : vector<24x32xf32>
    %c0_394 = arith.constant 0 : index
    %c0_395 = arith.constant 0 : index
    %440 = vector.load %arg40[%c0_394, %c0_395] : memref<1x32xf32, #tpu.memory_space<vmem>>, vector<1x32xf32>
    %441 = vector.broadcast %440 : vector<1x32xf32> to vector<24x32xf32>
    %442 = arith.addf %439, %441 : vector<24x32xf32>
    %cst_396 = arith.constant 0.000000e+00 : f32
    %443 = vector.broadcast %cst_396 : f32 to vector<24x32xf32>
    %444 = arith.maximumf %442, %443 : vector<24x32xf32>
    %cst_397 = arith.constant 0.000000e+00 : f32
    %445 = vector.broadcast %cst_397 : f32 to vector<8x32xf32>
    %c0_398 = arith.constant 0 : index
    %c0_399 = arith.constant 0 : index
    %446 = vector.load %arg55[%c0_398, %c0_399] : memref<37x32xf32, #tpu.memory_space<vmem>>, vector<8x32xf32>
    tpu.vector_store %arg55[%c0_398, %c0_399], %445 {strides = array<i32>} : memref<37x32xf32, #tpu.memory_space<vmem>>, vector<8x32xf32>,
    %c0_400 = arith.constant 0 : index
    %c0_401 = arith.constant 0 : index
    %447 = vector.load %arg3[%c0_400, %c0_401] : memref<24x1xf32, #tpu.memory_space<vmem>>, vector<24x1xf32>
    %cst_402 = arith.constant 5.000000e-01 : f32
    %448 = vector.broadcast %cst_402 : f32 to vector<24x1xf32>
    %449 = arith.cmpf ogt, %447, %448 : vector<24x1xf32>
    %cst_403 = arith.constant 0.000000e+00 : f32
    %450 = vector.shape_cast %449 : vector<24x1xi1> to vector<24x1xi1>
    %451 = vector.broadcast %450 : vector<24x1xi1> to vector<24x32xi1>
    %452 = vector.broadcast %cst_403 : f32 to vector<24x32xf32>
    %453 = arith.select %451, %444, %452 : vector<24x32xi1>, vector<24x32xf32>
    %c8_404 = arith.constant 8 : index
    %c0_405 = arith.constant 0 : index
    %454 = vector.load %arg55[%c8_404, %c0_405] : memref<37x32xf32, #tpu.memory_space<vmem>>, vector<24x32xf32>
    tpu.vector_store %arg55[%c8_404, %c0_405], %453 {strides = array<i32>} : memref<37x32xf32, #tpu.memory_space<vmem>>, vector<24x32xf32>,
    %cst_406 = arith.constant 0.000000e+00 : f32
    %455 = vector.broadcast %cst_406 : f32 to vector<5x32xf32>
    %c32_407 = arith.constant 32 : index
    %c0_408 = arith.constant 0 : index
    %456 = vector.load %arg55[%c32_407, %c0_408] : memref<37x32xf32, #tpu.memory_space<vmem>>, vector<5x32xf32>
    tpu.vector_store %arg55[%c32_407, %c0_408], %455 {strides = array<i32>} : memref<37x32xf32, #tpu.memory_space<vmem>>, vector<5x32xf32>,
    %c3_409 = arith.constant 3 : index
    %c0_410 = arith.constant 0 : index
    %457 = vector.load %arg55[%c3_409, %c0_410] : memref<37x32xf32, #tpu.memory_space<vmem>>, vector<24x32xf32>
    %c4_411 = arith.constant 4 : index
    %c0_412 = arith.constant 0 : index
    %458 = vector.load %arg55[%c4_411, %c0_412] : memref<37x32xf32, #tpu.memory_space<vmem>>, vector<24x32xf32>
    %c5_413 = arith.constant 5 : index
    %c0_414 = arith.constant 0 : index
    %459 = vector.load %arg55[%c5_413, %c0_414] : memref<37x32xf32, #tpu.memory_space<vmem>>, vector<24x32xf32>
    %c7_415 = arith.constant 7 : index
    %c0_416 = arith.constant 0 : index
    %460 = vector.load %arg55[%c7_415, %c0_416] : memref<37x32xf32, #tpu.memory_space<vmem>>, vector<24x32xf32>
    %c8_417 = arith.constant 8 : index
    %c0_418 = arith.constant 0 : index
    %461 = vector.load %arg55[%c8_417, %c0_418] : memref<37x32xf32, #tpu.memory_space<vmem>>, vector<24x32xf32>
    %c9_419 = arith.constant 9 : index
    %c0_420 = arith.constant 0 : index
    %462 = vector.load %arg55[%c9_419, %c0_420] : memref<37x32xf32, #tpu.memory_space<vmem>>, vector<24x32xf32>
    %c11_421 = arith.constant 11 : index
    %c0_422 = arith.constant 0 : index
    %463 = vector.load %arg55[%c11_421, %c0_422] : memref<37x32xf32, #tpu.memory_space<vmem>>, vector<24x32xf32>
    %c12_423 = arith.constant 12 : index
    %c0_424 = arith.constant 0 : index
    %464 = vector.load %arg55[%c12_423, %c0_424] : memref<37x32xf32, #tpu.memory_space<vmem>>, vector<24x32xf32>
    %c13_425 = arith.constant 13 : index
    %c0_426 = arith.constant 0 : index
    %465 = vector.load %arg55[%c13_425, %c0_426] : memref<37x32xf32, #tpu.memory_space<vmem>>, vector<24x32xf32>
    %466 = tpu.concatenate %457, %458, %459, %460, %461, %462, %463, %464, %465 in 1 : vector<24x32xf32>, vector<24x32xf32>, vector<24x32xf32>, vector<24x32xf32>, vector<24x32xf32>, vector<24x32xf32>, vector<24x32xf32>, vector<24x32xf32>, vector<24x32xf32> -> vector<24x288xf32>
    %c0_427 = arith.constant 0 : index
    %c0_428 = arith.constant 0 : index
    %467 = vector.load %arg41[%c0_427, %c0_428] : memref<288x64xf32, #tpu.memory_space<vmem>>, vector<288x64xf32>
    %cst_429 = arith.constant dense<0.000000e+00> : vector<24x64xf32>
    %468 = tpu.matmul %466, %467, %cst_429 {dimension_numbers = #tpu.dot_dimension_numbers<[1], [0], [0], [1], [0, 0, 1, 1], [], []>} : vector<24x288xf32>, vector<288x64xf32>, vector<24x64xf32> -> vector<24x64xf32>
    %c0_430 = arith.constant 0 : index
    %c0_431 = arith.constant 0 : index
    %469 = vector.load %arg42[%c0_430, %c0_431] : memref<1x64xf32, #tpu.memory_space<vmem>>, vector<1x64xf32>
    %470 = vector.broadcast %469 : vector<1x64xf32> to vector<24x64xf32>
    %471 = arith.mulf %468, %470 : vector<24x64xf32>
    %c0_432 = arith.constant 0 : index
    %c0_433 = arith.constant 0 : index
    %472 = vector.load %arg43[%c0_432, %c0_433] : memref<1x64xf32, #tpu.memory_space<vmem>>, vector<1x64xf32>
    %473 = vector.broadcast %472 : vector<1x64xf32> to vector<24x64xf32>
    %474 = arith.addf %471, %473 : vector<24x64xf32>
    %cst_434 = arith.constant 0.000000e+00 : f32
    %475 = vector.broadcast %cst_434 : f32 to vector<24x64xf32>
    %476 = arith.maximumf %474, %475 : vector<24x64xf32>
    %c0_435 = arith.constant 0 : index
    %c0_436 = arith.constant 0 : index
    %477 = vector.load %arg3[%c0_435, %c0_436] : memref<24x1xf32, #tpu.memory_space<vmem>>, vector<24x1xf32>
    %cst_437 = arith.constant 5.000000e-01 : f32
    %478 = vector.broadcast %cst_437 : f32 to vector<24x1xf32>
    %479 = arith.cmpf ogt, %477, %478 : vector<24x1xf32>
    %cst_438 = arith.constant 0.000000e+00 : f32
    %480 = vector.shape_cast %479 : vector<24x1xi1> to vector<24x1xi1>
    %481 = vector.broadcast %480 : vector<24x1xi1> to vector<24x64xi1>
    %482 = vector.broadcast %cst_438 : f32 to vector<24x64xf32>
    %483 = arith.select %481, %476, %482 : vector<24x64xi1>, vector<24x64xf32>
    %484 = vector.extract_strided_slice %483 {offsets = [0, 0], sizes = [8, 64], strides = [1, 1]} : vector<24x64xf32> to vector<8x64xf32>
    %cst_439 = arith.constant dense<0.000000e+00> : vector<64xf32>
    %485 = vector.multi_reduction <add>, %484, %cst_439 [0] : vector<8x64xf32> to vector<64xf32>
    %486 = vector.shape_cast %485 : vector<64xf32> to vector<1x64xf32>
    %487 = vector.extract_strided_slice %483 {offsets = [16, 0], sizes = [8, 64], strides = [1, 1]} : vector<24x64xf32> to vector<8x64xf32>
    %cst_440 = arith.constant dense<0.000000e+00> : vector<64xf32>
    %488 = vector.multi_reduction <add>, %487, %cst_440 [0] : vector<8x64xf32> to vector<64xf32>
    %489 = vector.shape_cast %488 : vector<64xf32> to vector<1x64xf32>
    %490 = tpu.concatenate %486, %489 in 0 : vector<1x64xf32>, vector<1x64xf32> -> vector<2x64xf32>
    %cst_441 = arith.constant 2.500000e-01 : f32
    %491 = vector.broadcast %cst_441 : f32 to vector<2x64xf32>
    %492 = arith.mulf %490, %491 : vector<2x64xf32>
    %c0_442 = arith.constant 0 : index
    %c0_443 = arith.constant 0 : index
    %493 = vector.load %arg4[%c0_442, %c0_443] : memref<64x16xf32, #tpu.memory_space<vmem>>, vector<64x16xf32>
    %cst_444 = arith.constant dense<0.000000e+00> : vector<2x16xf32>
    %494 = tpu.matmul %492, %493, %cst_444 {dimension_numbers = #tpu.dot_dimension_numbers<[1], [0], [0], [1], [0, 0, 1, 1], [], []>} : vector<2x64xf32>, vector<64x16xf32>, vector<2x16xf32> -> vector<2x16xf32>
    %c0_445 = arith.constant 0 : index
    %c0_446 = arith.constant 0 : index
    %495 = vector.load %arg5[%c0_445, %c0_446] : memref<1x16xf32, #tpu.memory_space<vmem>>, vector<1x16xf32>
    %496 = vector.broadcast %495 : vector<1x16xf32> to vector<2x16xf32>
    %497 = arith.addf %494, %496 : vector<2x16xf32>
    %cst_447 = arith.constant 0.000000e+00 : f32
    %498 = vector.broadcast %cst_447 : f32 to vector<2x16xf32>
    %499 = arith.maximumf %497, %498 : vector<2x16xf32>
    %c0_448 = arith.constant 0 : index
    %c0_449 = arith.constant 0 : index
    %500 = vector.load %arg6[%c0_448, %c0_449] : memref<16x2xf32, #tpu.memory_space<vmem>>, vector<16x2xf32>
    %cst_450 = arith.constant dense<0.000000e+00> : vector<2x2xf32>
    %501 = tpu.matmul %499, %500, %cst_450 {dimension_numbers = #tpu.dot_dimension_numbers<[1], [0], [0], [1], [0, 0, 1, 1], [], []>} : vector<2x16xf32>, vector<16x2xf32>, vector<2x2xf32> -> vector<2x2xf32>
    %c0_451 = arith.constant 0 : index
    %c0_452 = arith.constant 0 : index
    %502 = vector.load %arg7[%c0_451, %c0_452] : memref<1x2xf32, #tpu.memory_space<vmem>>, vector<1x2xf32>
    %503 = vector.broadcast %502 : vector<1x2xf32> to vector<2x2xf32>
    %504 = arith.addf %501, %503 : vector<2x2xf32>
    %c0_453 = arith.constant 0 : index
    %c0_454 = arith.constant 0 : index
    %c0_455 = arith.constant 0 : index
    %505 = vector.load %arg44[%c0_453, %c0_454, %c0_455] : memref<1x2x2xf32, #tpu.memory_space<vmem>>, vector<1x2x2xf32>
    %506 = vector.shape_cast %505 : vector<1x2x2xf32> to vector<2x2xf32>
    %507 = vector.shape_cast %504 : vector<2x2xf32> to vector<1x2x2xf32>
    tpu.vector_store %arg44[%c0_453, %c0_454, %c0_455], %507 {strides = array<i32>} : memref<1x2x2xf32, #tpu.memory_space<vmem>>, vector<1x2x2xf32>,
    return
  }
  func.func @transform_0(%arg0: i32) -> (i32, i32, i32) {
    %c0_i32 = arith.constant 0 : i32
    %c0_i32_0 = arith.constant 0 : i32
    %c0_i32_1 = arith.constant 0 : i32
    return %arg0, %c0_i32, %c0_i32_0 : i32, i32, i32
  }
  func.func @transform_1(%arg0: i32) -> (i32, i32) {
    %c0_i32 = arith.constant 0 : i32
    %c0_i32_0 = arith.constant 0 : i32
    %c0_i32_1 = arith.constant 0 : i32
    return %c0_i32, %c0_i32_0 : i32, i32
  }
  func.func @transform_2(%arg0: i32) -> (i32, i32) {
    %c0_i32 = arith.constant 0 : i32
    %c0_i32_0 = arith.constant 0 : i32
    %c0_i32_1 = arith.constant 0 : i32
    return %c0_i32, %c0_i32_0 : i32, i32
  }
  func.func @transform_3(%arg0: i32) -> (i32, i32) {
    %c0_i32 = arith.constant 0 : i32
    %c0_i32_0 = arith.constant 0 : i32
    %c0_i32_1 = arith.constant 0 : i32
    return %c0_i32, %c0_i32_0 : i32, i32
  }
  func.func @transform_4(%arg0: i32) -> (i32, i32) {
    %c0_i32 = arith.constant 0 : i32
    %c0_i32_0 = arith.constant 0 : i32
    %c0_i32_1 = arith.constant 0 : i32
    return %c0_i32, %c0_i32_0 : i32, i32
  }
  func.func @transform_5(%arg0: i32) -> (i32, i32) {
    %c0_i32 = arith.constant 0 : i32
    %c0_i32_0 = arith.constant 0 : i32
    %c0_i32_1 = arith.constant 0 : i32
    return %c0_i32, %c0_i32_0 : i32, i32
  }
  func.func @transform_6(%arg0: i32) -> (i32, i32) {
    %c0_i32 = arith.constant 0 : i32
    %c0_i32_0 = arith.constant 0 : i32
    %c0_i32_1 = arith.constant 0 : i32
    return %c0_i32, %c0_i32_0 : i32, i32
  }
  func.func @transform_7(%arg0: i32) -> (i32, i32) {
    %c0_i32 = arith.constant 0 : i32
    %c0_i32_0 = arith.constant 0 : i32
    %c0_i32_1 = arith.constant 0 : i32
    return %c0_i32, %c0_i32_0 : i32, i32
  }
  func.func @transform_8(%arg0: i32) -> (i32, i32) {
    %c0_i32 = arith.constant 0 : i32
    %c0_i32_0 = arith.constant 0 : i32
    %c0_i32_1 = arith.constant 0 : i32
    return %c0_i32, %c0_i32_0 : i32, i32
  }
  func.func @transform_9(%arg0: i32) -> (i32, i32) {
    %c0_i32 = arith.constant 0 : i32
    %c0_i32_0 = arith.constant 0 : i32
    %c0_i32_1 = arith.constant 0 : i32
    return %c0_i32, %c0_i32_0 : i32, i32
  }
  func.func @transform_10(%arg0: i32) -> (i32, i32) {
    %c0_i32 = arith.constant 0 : i32
    %c0_i32_0 = arith.constant 0 : i32
    %c0_i32_1 = arith.constant 0 : i32
    return %c0_i32, %c0_i32_0 : i32, i32
  }
  func.func @transform_11(%arg0: i32) -> (i32, i32) {
    %c0_i32 = arith.constant 0 : i32
    %c0_i32_0 = arith.constant 0 : i32
    %c0_i32_1 = arith.constant 0 : i32
    return %c0_i32, %c0_i32_0 : i32, i32
  }
  func.func @transform_12(%arg0: i32) -> (i32, i32) {
    %c0_i32 = arith.constant 0 : i32
    %c0_i32_0 = arith.constant 0 : i32
    %c0_i32_1 = arith.constant 0 : i32
    return %c0_i32, %c0_i32_0 : i32, i32
  }
  func.func @transform_13(%arg0: i32) -> (i32, i32) {
    %c0_i32 = arith.constant 0 : i32
    %c0_i32_0 = arith.constant 0 : i32
    %c0_i32_1 = arith.constant 0 : i32
    return %c0_i32, %c0_i32_0 : i32, i32
  }
  func.func @transform_14(%arg0: i32) -> (i32, i32) {
    %c0_i32 = arith.constant 0 : i32
    %c0_i32_0 = arith.constant 0 : i32
    %c0_i32_1 = arith.constant 0 : i32
    return %c0_i32, %c0_i32_0 : i32, i32
  }
  func.func @transform_15(%arg0: i32) -> (i32, i32) {
    %c0_i32 = arith.constant 0 : i32
    %c0_i32_0 = arith.constant 0 : i32
    %c0_i32_1 = arith.constant 0 : i32
    return %c0_i32, %c0_i32_0 : i32, i32
  }
  func.func @transform_16(%arg0: i32) -> (i32, i32) {
    %c0_i32 = arith.constant 0 : i32
    %c0_i32_0 = arith.constant 0 : i32
    %c0_i32_1 = arith.constant 0 : i32
    return %c0_i32, %c0_i32_0 : i32, i32
  }
  func.func @transform_17(%arg0: i32) -> (i32, i32) {
    %c0_i32 = arith.constant 0 : i32
    %c0_i32_0 = arith.constant 0 : i32
    %c0_i32_1 = arith.constant 0 : i32
    return %c0_i32, %c0_i32_0 : i32, i32
  }
  func.func @transform_18(%arg0: i32) -> (i32, i32) {
    %c0_i32 = arith.constant 0 : i32
    %c0_i32_0 = arith.constant 0 : i32
    %c0_i32_1 = arith.constant 0 : i32
    return %c0_i32, %c0_i32_0 : i32, i32
  }
  func.func @transform_19(%arg0: i32) -> (i32, i32) {
    %c0_i32 = arith.constant 0 : i32
    %c0_i32_0 = arith.constant 0 : i32
    %c0_i32_1 = arith.constant 0 : i32
    return %c0_i32, %c0_i32_0 : i32, i32
  }
  func.func @transform_20(%arg0: i32) -> (i32, i32) {
    %c0_i32 = arith.constant 0 : i32
    %c0_i32_0 = arith.constant 0 : i32
    %c0_i32_1 = arith.constant 0 : i32
    return %c0_i32, %c0_i32_0 : i32, i32
  }
  func.func @transform_21(%arg0: i32) -> (i32, i32) {
    %c0_i32 = arith.constant 0 : i32
    %c0_i32_0 = arith.constant 0 : i32
    %c0_i32_1 = arith.constant 0 : i32
    return %c0_i32, %c0_i32_0 : i32, i32
  }
  func.func @transform_22(%arg0: i32) -> (i32, i32) {
    %c0_i32 = arith.constant 0 : i32
    %c0_i32_0 = arith.constant 0 : i32
    %c0_i32_1 = arith.constant 0 : i32
    return %c0_i32, %c0_i32_0 : i32, i32
  }
  func.func @transform_23(%arg0: i32) -> (i32, i32) {
    %c0_i32 = arith.constant 0 : i32
    %c0_i32_0 = arith.constant 0 : i32
    %c0_i32_1 = arith.constant 0 : i32
    return %c0_i32, %c0_i32_0 : i32, i32
  }
  func.func @transform_24(%arg0: i32) -> (i32, i32) {
    %c0_i32 = arith.constant 0 : i32
    %c0_i32_0 = arith.constant 0 : i32
    %c0_i32_1 = arith.constant 0 : i32
    return %c0_i32, %c0_i32_0 : i32, i32
  }
  func.func @transform_25(%arg0: i32) -> (i32, i32) {
    %c0_i32 = arith.constant 0 : i32
    %c0_i32_0 = arith.constant 0 : i32
    %c0_i32_1 = arith.constant 0 : i32
    return %c0_i32, %c0_i32_0 : i32, i32
  }
  func.func @transform_26(%arg0: i32) -> (i32, i32) {
    %c0_i32 = arith.constant 0 : i32
    %c0_i32_0 = arith.constant 0 : i32
    %c0_i32_1 = arith.constant 0 : i32
    return %c0_i32, %c0_i32_0 : i32, i32
  }
  func.func @transform_27(%arg0: i32) -> (i32, i32) {
    %c0_i32 = arith.constant 0 : i32
    %c0_i32_0 = arith.constant 0 : i32
    %c0_i32_1 = arith.constant 0 : i32
    return %c0_i32, %c0_i32_0 : i32, i32
  }
  func.func @transform_28(%arg0: i32) -> (i32, i32) {
    %c0_i32 = arith.constant 0 : i32
    %c0_i32_0 = arith.constant 0 : i32
    %c0_i32_1 = arith.constant 0 : i32
    return %c0_i32, %c0_i32_0 : i32, i32
  }
  func.func @transform_29(%arg0: i32) -> (i32, i32) {
    %c0_i32 = arith.constant 0 : i32
    %c0_i32_0 = arith.constant 0 : i32
    %c0_i32_1 = arith.constant 0 : i32
    return %c0_i32, %c0_i32_0 : i32, i32
  }
  func.func @transform_30(%arg0: i32) -> (i32, i32) {
    %c0_i32 = arith.constant 0 : i32
    %c0_i32_0 = arith.constant 0 : i32
    %c0_i32_1 = arith.constant 0 : i32
    return %c0_i32, %c0_i32_0 : i32, i32
  }
  func.func @transform_31(%arg0: i32) -> (i32, i32) {
    %c0_i32 = arith.constant 0 : i32
    %c0_i32_0 = arith.constant 0 : i32
    %c0_i32_1 = arith.constant 0 : i32
    return %c0_i32, %c0_i32_0 : i32, i32
  }
  func.func @transform_32(%arg0: i32) -> (i32, i32) {
    %c0_i32 = arith.constant 0 : i32
    %c0_i32_0 = arith.constant 0 : i32
    %c0_i32_1 = arith.constant 0 : i32
    return %c0_i32, %c0_i32_0 : i32, i32
  }
  func.func @transform_33(%arg0: i32) -> (i32, i32) {
    %c0_i32 = arith.constant 0 : i32
    %c0_i32_0 = arith.constant 0 : i32
    %c0_i32_1 = arith.constant 0 : i32
    return %c0_i32, %c0_i32_0 : i32, i32
  }
  func.func @transform_34(%arg0: i32) -> (i32, i32) {
    %c0_i32 = arith.constant 0 : i32
    %c0_i32_0 = arith.constant 0 : i32
    %c0_i32_1 = arith.constant 0 : i32
    return %c0_i32, %c0_i32_0 : i32, i32
  }
  func.func @transform_35(%arg0: i32) -> (i32, i32) {
    %c0_i32 = arith.constant 0 : i32
    %c0_i32_0 = arith.constant 0 : i32
    %c0_i32_1 = arith.constant 0 : i32
    return %c0_i32, %c0_i32_0 : i32, i32
  }
  func.func @transform_36(%arg0: i32) -> (i32, i32) {
    %c0_i32 = arith.constant 0 : i32
    %c0_i32_0 = arith.constant 0 : i32
    %c0_i32_1 = arith.constant 0 : i32
    return %c0_i32, %c0_i32_0 : i32, i32
  }
  func.func @transform_37(%arg0: i32) -> (i32, i32) {
    %c0_i32 = arith.constant 0 : i32
    %c0_i32_0 = arith.constant 0 : i32
    %c0_i32_1 = arith.constant 0 : i32
    return %c0_i32, %c0_i32_0 : i32, i32
  }
  func.func @transform_38(%arg0: i32) -> (i32, i32) {
    %c0_i32 = arith.constant 0 : i32
    %c0_i32_0 = arith.constant 0 : i32
    %c0_i32_1 = arith.constant 0 : i32
    return %c0_i32, %c0_i32_0 : i32, i32
  }
  func.func @transform_39(%arg0: i32) -> (i32, i32) {
    %c0_i32 = arith.constant 0 : i32
    %c0_i32_0 = arith.constant 0 : i32
    %c0_i32_1 = arith.constant 0 : i32
    return %c0_i32, %c0_i32_0 : i32, i32
  }
  func.func @transform_40(%arg0: i32) -> (i32, i32) {
    %c0_i32 = arith.constant 0 : i32
    %c0_i32_0 = arith.constant 0 : i32
    %c0_i32_1 = arith.constant 0 : i32
    return %c0_i32, %c0_i32_0 : i32, i32
  }
  func.func @transform_41(%arg0: i32) -> (i32, i32) {
    %c0_i32 = arith.constant 0 : i32
    %c0_i32_0 = arith.constant 0 : i32
    %c0_i32_1 = arith.constant 0 : i32
    return %c0_i32, %c0_i32_0 : i32, i32
  }
  func.func @transform_42(%arg0: i32) -> (i32, i32) {
    %c0_i32 = arith.constant 0 : i32
    %c0_i32_0 = arith.constant 0 : i32
    %c0_i32_1 = arith.constant 0 : i32
    return %c0_i32, %c0_i32_0 : i32, i32
  }
  func.func @transform_43(%arg0: i32) -> (i32, i32, i32) {
    %c0_i32 = arith.constant 0 : i32
    %c0_i32_0 = arith.constant 0 : i32
    %c0_i32_1 = arith.constant 0 : i32
    return %arg0, %c0_i32, %c0_i32_0 : i32, i32, i32
  }
}

</mosaic_0001>

<llo_original>
// kernel: bed_forward.1
$region0: #{bed_forward.1}
  #allocation0 [shape = 'u32[]', space=smem, size = 0x4, offset = 0x4, fixed_abs, tag = 'smem constant byte address 0x4 - core index']
  #allocation1 [shape = 'u32[144,128]{1,0:T(1,128)}', space=vmem, size = 0x12000, scoped, tag = 'internal scratch']
  #allocation2 [shape = 'f32[612,32]{1,0:T(8,128)}', space=vmem, size = 0x4d000, scoped, tag = 'scratch operand']
  #allocation3 [shape = 'f32[207,32]{1,0:T(8,128)}', space=vmem, size = 0x1a000, scoped, tag = 'scratch operand']
  #allocation4 [shape = 'f32[180,16]{1,0:T(8,128)}', space=vmem, size = 0x17000, scoped, tag = 'scratch operand']
  #allocation5 [shape = 'f32[75,16]{1,0:T(8,128)}', space=vmem, size = 0xa000, scoped, tag = 'scratch operand']
  #allocation6 [shape = 'f32[75,16]{1,0:T(8,128)}', space=vmem, size = 0xa000, scoped, tag = 'scratch operand']
  #allocation7 [shape = 'f32[75,32]{1,0:T(8,128)}', space=vmem, size = 0xa000, scoped, tag = 'scratch operand']
  #allocation8 [shape = 'f32[60,64]{1,0:T(8,128)}', space=vmem, size = 0x8000, scoped, tag = 'scratch operand']
  #allocation9 [shape = 'f32[37,64]{1,0:T(8,128)}', space=vmem, size = 0x5000, scoped, tag = 'scratch operand']
  #allocation10 [shape = 'f32[37,32]{1,0:T(8,128)}', space=vmem, size = 0x5000, scoped, tag = 'scratch operand']
  #allocation11 [shape = 'f32[37,32]{1,0:T(8,128)}', space=vmem, size = 0x5000, scoped, tag = 'scratch operand']
  #allocation12 [shape = 'f32[37,32]{1,0:T(8,128)}', space=vmem, size = 0x5000, scoped, tag = 'scratch operand']
  %s0 = inlined_call_operand.smem [shape: u32[44], index: -1, kind: input, shape index: {}]
  %s1 = sld [smem:[%s0]]
  %s2 = scalar_lea.smem %s0, 1
  %s3 = sld [smem:[%s2]]
  %s4 = scalar_lea.smem %s0, 2
  %s5 = sld [smem:[%s4]]
  %s6 = scalar_lea.smem %s0, 3
  %s7 = sld [smem:[%s6]]
  %s8 = scalar_lea.smem %s0, 4
  %s9 = sld [smem:[%s8]]
  %s10 = scalar_lea.smem %s0, 5
  %s11 = sld [smem:[%s10]]
  %s12 = scalar_lea.smem %s0, 6
  %s13 = sld [smem:[%s12]]
  %s14 = scalar_lea.smem %s0, 7
  %s15 = sld [smem:[%s14]]
  %s16 = scalar_lea.smem %s0, 8
  %s17 = sld [smem:[%s16]]
  %s18 = scalar_lea.smem %s0, 9
  %s19 = sld [smem:[%s18]]
  %s20 = scalar_lea.smem %s0, 10
  %s21 = sld [smem:[%s20]]
  %s22 = scalar_lea.smem %s0, 11
  %s23 = sld [smem:[%s22]]
  %s24 = scalar_lea.smem %s0, 12
  %s25 = sld [smem:[%s24]]
  %s26 = scalar_lea.smem %s0, 13
  %s27 = sld [smem:[%s26]]
  %s28 = scalar_lea.smem %s0, 14
  %s29 = sld [smem:[%s28]]
  %s30 = scalar_lea.smem %s0, 15
  %s31 = sld [smem:[%s30]]
  %s32 = scalar_lea.smem %s0, 16
  %s33 = sld [smem:[%s32]]
  %s34 = scalar_lea.smem %s0, 17
  %s35 = sld [smem:[%s34]]
  %s36 = scalar_lea.smem %s0, 18
  %s37 = sld [smem:[%s36]]
  %s38 = scalar_lea.smem %s0, 19
  %s39 = sld [smem:[%s38]]
  %s40 = scalar_lea.smem %s0, 20
  %s41 = sld [smem:[%s40]]
  %s42 = scalar_lea.smem %s0, 21
  %s43 = sld [smem:[%s42]]
  %s44 = scalar_lea.smem %s0, 22
  %s45 = sld [smem:[%s44]]
  %s46 = scalar_lea.smem %s0, 23
  %s47 = sld [smem:[%s46]]
  %s48 = scalar_lea.smem %s0, 24
  %s49 = sld [smem:[%s48]]
  %s50 = scalar_lea.smem %s0, 25
  %s51 = sld [smem:[%s50]]
  %s52 = scalar_lea.smem %s0, 26
  %s53 = sld [smem:[%s52]]
  %s54 = scalar_lea.smem %s0, 27
  %s55 = sld [smem:[%s54]]
  %s56 = scalar_lea.smem %s0, 28
  %s57 = sld [smem:[%s56]]
  %s58 = scalar_lea.smem %s0, 29
  %s59 = sld [smem:[%s58]]
  %s60 = scalar_lea.smem %s0, 30
  %s61 = sld [smem:[%s60]]
  %s62 = scalar_lea.smem %s0, 31
  %s63 = sld [smem:[%s62]]
  %s64 = scalar_lea.smem %s0, 32
  %s65 = sld [smem:[%s64]]
  %s66 = scalar_lea.smem %s0, 33
  %s67 = sld [smem:[%s66]]
  %s68 = scalar_lea.smem %s0, 34
  %s69 = sld [smem:[%s68]]
  %s70 = scalar_lea.smem %s0, 35
  %s71 = sld [smem:[%s70]]
  %s72 = scalar_lea.smem %s0, 36
  %s73 = sld [smem:[%s72]]
  %s74 = scalar_lea.smem %s0, 37
  %s75 = sld [smem:[%s74]]
  %s76 = scalar_lea.smem %s0, 38
  %s77 = sld [smem:[%s76]]
  %s78 = scalar_lea.smem %s0, 39
  %s79 = sld [smem:[%s78]]
  %s80 = scalar_lea.smem %s0, 40
  %s81 = sld [smem:[%s80]]
  %s82 = scalar_lea.smem %s0, 41
  %s83 = sld [smem:[%s82]]
  %s84 = scalar_lea.smem %s0, 42
  %s85 = sld [smem:[%s84]]
  %s86 = scalar_lea.smem %s0, 43
  %s87 = sld [smem:[%s86]]
  %s88 = sld [smem:[#allocation0]]
  $region182: #{bed_forward.1} parent=0
    _
  %s90 = ssub.s32 1, %s88
  %s91 = scalar_select 0, %s90, %s88
  $region1: #{bed_forward.1} parent=0
    #allocation13 [shape = 'u8[1024]{0}', space=vmem, size = 0x400, scoped, tag = 'output window, operand 0, single buffered']
    #allocation14 [shape = 's32[1]{0}', space=sflag, size = 0x4, scoped, tag = 'scoped memory for bed_forward.1']
    %92 = vsyncpa [#allocation14], 0
    // Predicated region
    $region2: #{bed_forward.1} parent=1 // pred_check
      _
    $region3: #{bed_forward.1} parent=1 // pred_check_branch
      %94 = sbr.rel (0) target = $region5
    $region4: #{bed_forward.1} parent=1 // pred_region
      _
    $region5: #{bed_forward.1} parent=1 // pred_fallthru
      _
    // Predicated region
    $region6: #{bed_forward.1} parent=1 // pred_check
      _
    $region7: #{bed_forward.1} parent=1 // pred_check_branch
      %96 = sbr.rel (0) target = $region9
    $region8: #{bed_forward.1} parent=1 // pred_region
      _
    $region9: #{bed_forward.1} parent=1 // pred_fallthru
      _
    // Predicated region
    $region10: #{bed_forward.1} parent=1 // pred_check
      _
    $region11: #{bed_forward.1} parent=1 // pred_check_branch
      %98 = sbr.rel (0) target = $region13
    $region12: #{bed_forward.1} parent=1 // pred_region
      _
    $region13: #{bed_forward.1} parent=1 // pred_fallthru
      _
    // Predicated region
    $region14: #{bed_forward.1} parent=1 // pred_check
      _
    $region15: #{bed_forward.1} parent=1 // pred_check_branch
      %100 = sbr.rel (0) target = $region17
    $region16: #{bed_forward.1} parent=1 // pred_region
      _
    $region17: #{bed_forward.1} parent=1 // pred_fallthru
      _
    // Predicated region
    $region18: #{bed_forward.1} parent=1 // pred_check
      _
    $region19: #{bed_forward.1} parent=1 // pred_check_branch
      %102 = sbr.rel (0) target = $region21
    $region20: #{bed_forward.1} parent=1 // pred_region
      _
    $region21: #{bed_forward.1} parent=1 // pred_fallthru
      _
    // Predicated region
    $region22: #{bed_forward.1} parent=1 // pred_check
      _
    $region23: #{bed_forward.1} parent=1 // pred_check_branch
      %104 = sbr.rel (0) target = $region25
    $region24: #{bed_forward.1} parent=1 // pred_region
      _
    $region25: #{bed_forward.1} parent=1 // pred_fallthru
      _
    // Predicated region
    $region26: #{bed_forward.1} parent=1 // pred_check
      _
    $region27: #{bed_forward.1} parent=1 // pred_check_branch
      %106 = sbr.rel (0) target = $region29
    $region28: #{bed_forward.1} parent=1 // pred_region
      _
    $region29: #{bed_forward.1} parent=1 // pred_fallthru
      _
    // Predicated region
    $region30: #{bed_forward.1} parent=1 // pred_check
      _
    $region31: #{bed_forward.1} parent=1 // pred_check_branch
      %108 = sbr.rel (0) target = $region33
    $region32: #{bed_forward.1} parent=1 // pred_region
      _
    $region33: #{bed_forward.1} parent=1 // pred_fallthru
      _
    // Predicated region
    $region34: #{bed_forward.1} parent=1 // pred_check
      _
    $region35: #{bed_forward.1} parent=1 // pred_check_branch
      %110 = sbr.rel (0) target = $region37
    $region36: #{bed_forward.1} parent=1 // pred_region
      _
    $region37: #{bed_forward.1} parent=1 // pred_fallthru
      _
    // Predicated region
    $region38: #{bed_forward.1} parent=1 // pred_check
      _
    $region39: #{bed_forward.1} parent=1 // pred_check_branch
      %112 = sbr.rel (0) target = $region41
    $region40: #{bed_forward.1} parent=1 // pred_region
      _
    $region41: #{bed_forward.1} parent=1 // pred_fallthru
      _
    // Predicated region
    $region42: #{bed_forward.1} parent=1 // pred_check
      _
    $region43: #{bed_forward.1} parent=1 // pred_check_branch
      %114 = sbr.rel (0) target = $region45
    $region44: #{bed_forward.1} parent=1 // pred_region
      _
    $region45: #{bed_forward.1} parent=1 // pred_fallthru
      _
    // Predicated region
    $region46: #{bed_forward.1} parent=1 // pred_check
      _
    $region47: #{bed_forward.1} parent=1 // pred_check_branch
      %116 = sbr.rel (0) target = $region49
    $region48: #{bed_forward.1} parent=1 // pred_region
      _
    $region49: #{bed_forward.1} parent=1 // pred_fallthru
      _
    // Predicated region
    $region50: #{bed_forward.1} parent=1 // pred_check
      _
    $region51: #{bed_forward.1} parent=1 // pred_check_branch
      %118 = sbr.rel (0) target = $region53
    $region52: #{bed_forward.1} parent=1 // pred_region
      _
    $region53: #{bed_forward.1} parent=1 // pred_fallthru
      _
    // Predicated region
    $region54: #{bed_forward.1} parent=1 // pred_check
      _
    $region55: #{bed_forward.1} parent=1 // pred_check_branch
      %120 = sbr.rel (0) target = $region57
    $region56: #{bed_forward.1} parent=1 // pred_region
      _
    $region57: #{bed_forward.1} parent=1 // pred_fallthru
      _
    // Predicated region
    $region58: #{bed_forward.1} parent=1 // pred_check
      _
    $region59: #{bed_forward.1} parent=1 // pred_check_branch
      %122 = sbr.rel (0) target = $region61
    $region60: #{bed_forward.1} parent=1 // pred_region
      _
    $region61: #{bed_forward.1} parent=1 // pred_fallthru
      _
    // Predicated region
    $region62: #{bed_forward.1} parent=1 // pred_check
      _
    $region63: #{bed_forward.1} parent=1 // pred_check_branch
      %124 = sbr.rel (0) target = $region65
    $region64: #{bed_forward.1} parent=1 // pred_region
      _
    $region65: #{bed_forward.1} parent=1 // pred_fallthru
      _
    // Predicated region
    $region66: #{bed_forward.1} parent=1 // pred_check
      _
    $region67: #{bed_forward.1} parent=1 // pred_check_branch
      %126 = sbr.rel (0) target = $region69
    $region68: #{bed_forward.1} parent=1 // pred_region
      _
    $region69: #{bed_forward.1} parent=1 // pred_fallthru
      _
    // Predicated region
    $region70: #{bed_forward.1} parent=1 // pred_check
      _
    $region71: #{bed_forward.1} parent=1 // pred_check_branch
      %128 = sbr.rel (0) target = $region73
    $region72: #{bed_forward.1} parent=1 // pred_region
      _
    $region73: #{bed_forward.1} parent=1 // pred_fallthru
      _
    // Predicated region
    $region74: #{bed_forward.1} parent=1 // pred_check
      _
    $region75: #{bed_forward.1} parent=1 // pred_check_branch
      %130 = sbr.rel (0) target = $region77
    $region76: #{bed_forward.1} parent=1 // pred_region
      _
    $region77: #{bed_forward.1} parent=1 // pred_fallthru
      _
    // Predicated region
    $region78: #{bed_forward.1} parent=1 // pred_check
      _
    $region79: #{bed_forward.1} parent=1 // pred_check_branch
      %132 = sbr.rel (0) target = $region81
    $region80: #{bed_forward.1} parent=1 // pred_region
      _
    $region81: #{bed_forward.1} parent=1 // pred_fallthru
      _
    // Predicated region
    $region82: #{bed_forward.1} parent=1 // pred_check
      _
    $region83: #{bed_forward.1} parent=1 // pred_check_branch
      %134 = sbr.rel (0) target = $region85
    $region84: #{bed_forward.1} parent=1 // pred_region
      _
    $region85: #{bed_forward.1} parent=1 // pred_fallthru
      _
    // Predicated region
    $region86: #{bed_forward.1} parent=1 // pred_check
      _
    $region87: #{bed_forward.1} parent=1 // pred_check_branch
      %136 = sbr.rel (0) target = $region89
    $region88: #{bed_forward.1} parent=1 // pred_region
      _
    $region89: #{bed_forward.1} parent=1 // pred_fallthru
      _
    // Predicated region
    $region90: #{bed_forward.1} parent=1 // pred_check
      _
    $region91: #{bed_forward.1} parent=1 // pred_check_branch
      %138 = sbr.rel (0) target = $region93
    $region92: #{bed_forward.1} parent=1 // pred_region
      _
    $region93: #{bed_forward.1} parent=1 // pred_fallthru
      _
    // Predicated region
    $region94: #{bed_forward.1} parent=1 // pred_check
      _
    $region95: #{bed_forward.1} parent=1 // pred_check_branch
      %140 = sbr.rel (0) target = $region97
    $region96: #{bed_forward.1} parent=1 // pred_region
      _
    $region97: #{bed_forward.1} parent=1 // pred_fallthru
      _
    // Predicated region
    $region98: #{bed_forward.1} parent=1 // pred_check
      _
    $region99: #{bed_forward.1} parent=1 // pred_check_branch
      %142 = sbr.rel (0) target = $region101
    $region100: #{bed_forward.1} parent=1 // pred_region
      _
    $region101: #{bed_forward.1} parent=1 // pred_fallthru
      _
    // Predicated region
    $region102: #{bed_forward.1} parent=1 // pred_check
      _
    $region103: #{bed_forward.1} parent=1 // pred_check_branch
      %144 = sbr.rel (0) target = $region105
    $region104: #{bed_forward.1} parent=1 // pred_region
      _
    $region105: #{bed_forward.1} parent=1 // pred_fallthru
      _
    // Predicated region
    $region106: #{bed_forward.1} parent=1 // pred_check
      _
    $region107: #{bed_forward.1} parent=1 // pred_check_branch
      %146 = sbr.rel (0) target = $region109
    $region108: #{bed_forward.1} parent=1 // pred_region
      _
    $region109: #{bed_forward.1} parent=1 // pred_fallthru
      _
    // Predicated region
    $region110: #{bed_forward.1} parent=1 // pred_check
      _
    $region111: #{bed_forward.1} parent=1 // pred_check_branch
      %148 = sbr.rel (0) target = $region113
    $region112: #{bed_forward.1} parent=1 // pred_region
      _
    $region113: #{bed_forward.1} parent=1 // pred_fallthru
      _
    // Predicated region
    $region114: #{bed_forward.1} parent=1 // pred_check
      _
    $region115: #{bed_forward.1} parent=1 // pred_check_branch
      %150 = sbr.rel (0) target = $region117
    $region116: #{bed_forward.1} parent=1 // pred_region
      _
    $region117: #{bed_forward.1} parent=1 // pred_fallthru
      _
    // Predicated region
    $region118: #{bed_forward.1} parent=1 // pred_check
      _
    $region119: #{bed_forward.1} parent=1 // pred_check_branch
      %152 = sbr.rel (0) target = $region121
    $region120: #{bed_forward.1} parent=1 // pred_region
      _
    $region121: #{bed_forward.1} parent=1 // pred_fallthru
      _
    // Predicated region
    $region122: #{bed_forward.1} parent=1 // pred_check
      _
    $region123: #{bed_forward.1} parent=1 // pred_check_branch
      %154 = sbr.rel (0) target = $region125
    $region124: #{bed_forward.1} parent=1 // pred_region
      _
    $region125: #{bed_forward.1} parent=1 // pred_fallthru
      _
    // Predicated region
    $region126: #{bed_forward.1} parent=1 // pred_check
      _
    $region127: #{bed_forward.1} parent=1 // pred_check_branch
      %156 = sbr.rel (0) target = $region129
    $region128: #{bed_forward.1} parent=1 // pred_region
      _
    $region129: #{bed_forward.1} parent=1 // pred_fallthru
      _
    // Predicated region
    $region130: #{bed_forward.1} parent=1 // pred_check
      _
    $region131: #{bed_forward.1} parent=1 // pred_check_branch
      %158 = sbr.rel (0) target = $region133
    $region132: #{bed_forward.1} parent=1 // pred_region
      _
    $region133: #{bed_forward.1} parent=1 // pred_fallthru
      _
    // Predicated region
    $region134: #{bed_forward.1} parent=1 // pred_check
      _
    $region135: #{bed_forward.1} parent=1 // pred_check_branch
      %160 = sbr.rel (0) target = $region137
    $region136: #{bed_forward.1} parent=1 // pred_region
      _
    $region137: #{bed_forward.1} parent=1 // pred_fallthru
      _
    // Predicated region
    $region138: #{bed_forward.1} parent=1 // pred_check
      _
    $region139: #{bed_forward.1} parent=1 // pred_check_branch
      %162 = sbr.rel (0) target = $region141
    $region140: #{bed_forward.1} parent=1 // pred_region
      _
    $region141: #{bed_forward.1} parent=1 // pred_fallthru
      _
    // Predicated region
    $region142: #{bed_forward.1} parent=1 // pred_check
      _
    $region143: #{bed_forward.1} parent=1 // pred_check_branch
      %164 = sbr.rel (0) target = $region145
    $region144: #{bed_forward.1} parent=1 // pred_region
      _
    $region145: #{bed_forward.1} parent=1 // pred_fallthru
      _
    // Predicated region
    $region146: #{bed_forward.1} parent=1 // pred_check
      _
    $region147: #{bed_forward.1} parent=1 // pred_check_branch
      %166 = sbr.rel (0) target = $region149
    $region148: #{bed_forward.1} parent=1 // pred_region
      _
    $region149: #{bed_forward.1} parent=1 // pred_fallthru
      _
    // Predicated region
    $region150: #{bed_forward.1} parent=1 // pred_check
      _
    $region151: #{bed_forward.1} parent=1 // pred_check_branch
      %168 = sbr.rel (0) target = $region153
    $region152: #{bed_forward.1} parent=1 // pred_region
      _
    $region153: #{bed_forward.1} parent=1 // pred_fallthru
      _
    // Predicated region
    $region154: #{bed_forward.1} parent=1 // pred_check
      _
    $region155: #{bed_forward.1} parent=1 // pred_check_branch
      %170 = sbr.rel (0) target = $region157
    $region156: #{bed_forward.1} parent=1 // pred_region
      _
    $region157: #{bed_forward.1} parent=1 // pred_fallthru
      _
    // Predicated region
    $region158: #{bed_forward.1} parent=1 // pred_check
      _
    $region159: #{bed_forward.1} parent=1 // pred_check_branch
      %172 = sbr.rel (0) target = $region161
    $region160: #{bed_forward.1} parent=1 // pred_region
      _
    $region161: #{bed_forward.1} parent=1 // pred_fallthru
      _
    // Predicated region
    $region162: #{bed_forward.1} parent=1 // pred_check
      _
    $region163: #{bed_forward.1} parent=1 // pred_check_branch
      %174 = sbr.rel (0) target = $region165
    $region164: #{bed_forward.1} parent=1 // pred_region
      _
    $region165: #{bed_forward.1} parent=1 // pred_fallthru
      _
    // Predicated region
    $region166: #{bed_forward.1} parent=1 // pred_check
      _
    $region167: #{bed_forward.1} parent=1 // pred_check_branch
      %176 = sbr.rel (0) target = $region169
    $region168: #{bed_forward.1} parent=1 // pred_region
      _
    $region169: #{bed_forward.1} parent=1 // pred_fallthru
      _
    // Predicated region
    $region170: #{bed_forward.1} parent=1 // pred_check
      _
    $region171: #{bed_forward.1} parent=1 // pred_check_branch
      %178 = sbr.rel (0) target = $region173
    $region172: #{bed_forward.1} parent=1 // pred_region
      _
    $region173: #{bed_forward.1} parent=1 // pred_fallthru
      _
    %v179 = vld [vmem:[%s1] sm:$0xff]
    %v180 = vld [vmem:[%s1 + $0x8] sm:$0xff]
    %v181 = vld [vmem:[%s1 + $0x10] sm:$0xff]
    %v182 = vld [vmem:[%s1 + $0x18] sm:$0xff]
    %v183 = vld [vmem:[%s1 + $0x20] sm:$0xff]
    %v184 = vld [vmem:[%s1 + $0x28] sm:$0xff]
    %v185 = vld [vmem:[%s1 + $0x30] sm:$0xff]
    %v186 = vld [vmem:[%s1 + $0x38] sm:$0xff]
    %v187 = vld [vmem:[%s1 + $0x40] sm:$0xff]
    %v188 = vld [vmem:[%s1 + $0x48] sm:$0xff]
    %v189 = vld [vmem:[%s1 + $0x50] sm:$0xff]
    %v190 = vld [vmem:[%s1 + $0x58] sm:$0xff]
    %v191 = vld [vmem:[%s1 + $0x60] sm:$0xff]
    %v192 = vld [vmem:[%s1 + $0x68] sm:$0xff]
    %v193 = vld [vmem:[%s1 + $0x70] sm:$0xff]
    %v194 = vld [vmem:[%s1 + $0x78] sm:$0xff]
    %v195 = vld [vmem:[%s1 + $0x80] sm:$0xff]
    %v196 = vld [vmem:[%s1 + $0x88] sm:$0xff]
    %v197 = vld [vmem:[%s1 + $0x90] sm:$0xff]
    %v198 = vld [vmem:[%s1 + $0x98] sm:$0xff]
    %v199 = vld [vmem:[%s1 + $0xa0] sm:$0xff]
    %v200 = vld [vmem:[%s1 + $0xa8] sm:$0xff]
    %v201 = vld [vmem:[%s1 + $0xb0] sm:$0xff]
    %v202 = vld [vmem:[%s1 + $0xb8] sm:$0xff]
    %v203 = vld [vmem:[%s1 + $0xc0] sm:$0xff]
    %v204 = vld [vmem:[%s1 + $0xc8] sm:$0xff]
    %v205 = vld [vmem:[%s1 + $0xd0] sm:$0xff]
    %v206 = vld [vmem:[%s1 + $0xd8] sm:$0xff]
    %v207 = vld [vmem:[%s1 + $0xe0] sm:$0xff]
    %v208 = vld [vmem:[%s1 + $0xe8] sm:$0xff]
    %v209 = vld [vmem:[%s1 + $0xf0] sm:$0xff]
    %v210 = vld [vmem:[%s1 + $0xf8] sm:$0xff]
    %v211 = vld [vmem:[%s1 + $0x100] sm:$0xff]
    %v212 = vld [vmem:[%s1 + $0x108] sm:$0xff]
    %v213 = vld [vmem:[%s1 + $0x110] sm:$0xff]
    %v214 = vld [vmem:[%s1 + $0x118] sm:$0xff]
    %v215 = vld [vmem:[%s1 + $0x120] sm:$0xff]
    %v216 = vld [vmem:[%s1 + $0x128] sm:$0xff]
    %v217 = vld [vmem:[%s1 + $0x130] sm:$0xff]
    %v218 = vld [vmem:[%s1 + $0x138] sm:$0xff]
    %v219 = vld [vmem:[%s1 + $0x140] sm:$0xff]
    %v220 = vld [vmem:[%s1 + $0x148] sm:$0xff]
    %v221 = vld [vmem:[%s1 + $0x150] sm:$0xff]
    %v222 = vld [vmem:[%s1 + $0x158] sm:$0xff]
    %v223 = vld [vmem:[%s1 + $0x160] sm:$0xff]
    %v224 = vld [vmem:[%s1 + $0x168] sm:$0xff]
    %v225 = vld [vmem:[%s1 + $0x170] sm:$0xff]
    %v226 = vld [vmem:[%s1 + $0x178] sm:$0xff]
    %v227 = vld [vmem:[%s1 + $0x180] sm:$0xff]
    %v228 = vld [vmem:[%s1 + $0x188] sm:$0xff]
    %v229 = vld [vmem:[%s1 + $0x190] sm:$0xff]
    %v230 = vld [vmem:[%s1 + $0x198] sm:$0xff]
    %v231 = vld [vmem:[%s1 + $0x1a0] sm:$0xff]
    %v232 = vld [vmem:[%s1 + $0x1a8] sm:$0xff]
    %v233 = vld [vmem:[%s1 + $0x1b0] sm:$0xff]
    %v234 = vld [vmem:[%s1 + $0x1b8] sm:$0xff]
    %v235 = vld [vmem:[%s1 + $0x1c0] sm:$0xff]
    %v236 = vld [vmem:[%s1 + $0x1c8] sm:$0xff]
    %v237 = vld [vmem:[%s1 + $0x1d0] sm:$0xff]
    %v238 = vld [vmem:[%s1 + $0x1d8] sm:$0xff]
    %v239 = vld [vmem:[%s1 + $0x1e0] sm:$0xff]
    %v240 = vld [vmem:[%s1 + $0x1e8] sm:$0xff]
    %v241 = vld [vmem:[%s1 + $0x1f0] sm:$0xff]
    %v242 = vld [vmem:[%s1 + $0x1f8] sm:$0xff]
    %v243 = vld [vmem:[%s1 + $0x200] sm:$0xff]
    %v244 = vld [vmem:[%s1 + $0x208] sm:$0xff]
    %v245 = vld [vmem:[%s1 + $0x210] sm:$0xff]
    %v246 = vld [vmem:[%s1 + $0x218] sm:$0xff]
    %v247 = vld [vmem:[%s1 + $0x220] sm:$0xff]
    %v248 = vld [vmem:[%s1 + $0x228] sm:$0xff]
    %v249 = vld [vmem:[%s1 + $0x230] sm:$0xff]
    %v250 = vld [vmem:[%s1 + $0x238] sm:$0xff]
    %v251 = vld [vmem:[%s1 + $0x240] sm:$0xff]
    %v252 = vld [vmem:[%s1 + $0x248] sm:$0xff]
    %v253 = vld [vmem:[%s1 + $0x250] sm:$0xff]
    %v254 = vld [vmem:[%s1 + $0x258] sm:$0xff]
    %v255 = vld [vmem:[%s1 + $0x260] sm:$0xf]
    %v256 = vld [vmem:[%s15] sm:$0xff]
    %v257 = vld [vmem:[%s15 + $0x8] sm:$0xff]
    %v258 = vld [vmem:[%s15 + $0x10] sm:$0xff]
    %v259 = vld [vmem:[%s15 + $0x18] sm:$0x7]
    %vm260 = vcmask 220160
    %v262 = vsel %vm260, %v179, 0
    %v265 = vsel %vm260, %v180, 0
    %v268 = vsel %vm260, %v181, 0
    %v271 = vsel %vm260, %v182, 0
    %v274 = vsel %vm260, %v183, 0
    %v277 = vsel %vm260, %v184, 0
    %v280 = vsel %vm260, %v185, 0
    %v283 = vsel %vm260, %v186, 0
    %v286 = vsel %vm260, %v187, 0
    %v289 = vsel %vm260, %v188, 0
    %v292 = vsel %vm260, %v189, 0
    %v295 = vsel %vm260, %v190, 0
    %v298 = vsel %vm260, %v191, 0
    %v301 = vsel %vm260, %v192, 0
    %v304 = vsel %vm260, %v193, 0
    %v307 = vsel %vm260, %v194, 0
    %v310 = vsel %vm260, %v195, 0
    %v313 = vsel %vm260, %v196, 0
    %v316 = vsel %vm260, %v197, 0
    %v319 = vsel %vm260, %v198, 0
    %v322 = vsel %vm260, %v199, 0
    %v325 = vsel %vm260, %v200, 0
    %v328 = vsel %vm260, %v201, 0
    %v331 = vsel %vm260, %v202, 0
    %v334 = vsel %vm260, %v203, 0
    %v337 = vsel %vm260, %v204, 0
    %v340 = vsel %vm260, %v205, 0
    %v343 = vsel %vm260, %v206, 0
    %v346 = vsel %vm260, %v207, 0
    %v349 = vsel %vm260, %v208, 0
    %v352 = vsel %vm260, %v209, 0
    %v355 = vsel %vm260, %v210, 0
    %v358 = vsel %vm260, %v211, 0
    %v361 = vsel %vm260, %v212, 0
    %v364 = vsel %vm260, %v213, 0
    %v367 = vsel %vm260, %v214, 0
    %v370 = vsel %vm260, %v215, 0
    %v373 = vsel %vm260, %v216, 0
    %v376 = vsel %vm260, %v217, 0
    %v379 = vsel %vm260, %v218, 0
    %v382 = vsel %vm260, %v219, 0
    %v385 = vsel %vm260, %v220, 0
    %v388 = vsel %vm260, %v221, 0
    %v391 = vsel %vm260, %v222, 0
    %v394 = vsel %vm260, %v223, 0
    %v397 = vsel %vm260, %v224, 0
    %v400 = vsel %vm260, %v225, 0
    %v403 = vsel %vm260, %v226, 0
    %v406 = vsel %vm260, %v227, 0
    %v409 = vsel %vm260, %v228, 0
    %v412 = vsel %vm260, %v229, 0
    %v415 = vsel %vm260, %v230, 0
    %v418 = vsel %vm260, %v231, 0
    %v421 = vsel %vm260, %v232, 0
    %v424 = vsel %vm260, %v233, 0
    %v427 = vsel %vm260, %v234, 0
    %v430 = vsel %vm260, %v235, 0
    %v433 = vsel %vm260, %v236, 0
    %v436 = vsel %vm260, %v237, 0
    %v439 = vsel %vm260, %v238, 0
    %v442 = vsel %vm260, %v239, 0
    %v445 = vsel %vm260, %v240, 0
    %v448 = vsel %vm260, %v241, 0
    %v451 = vsel %vm260, %v242, 0
    %v454 = vsel %vm260, %v243, 0
    %v457 = vsel %vm260, %v244, 0
    %v460 = vsel %vm260, %v245, 0
    %v463 = vsel %vm260, %v246, 0
    %v466 = vsel %vm260, %v247, 0
    %v469 = vsel %vm260, %v248, 0
    %v472 = vsel %vm260, %v249, 0
    %v475 = vsel %vm260, %v250, 0
    %v478 = vsel %vm260, %v251, 0
    %v481 = vsel %vm260, %v252, 0
    %v484 = vsel %vm260, %v253, 0
    %v487 = vsel %vm260, %v254, 0
    %v490 = vsel %vm260, %v255, 0
    %vm492 = vcmask 1042432
    %v494 = vsel %vm492, %v259, 0
    %496 = vmatprep.subr.mxu0 0.0
    %497 = vmatpush1.msra.mxu0 %v256
    %498 = vmatprep.subr.mxu0 0.0
    %499 = vmatpush1.msra.mxu0 %v257
    %500 = vmatprep.subr.mxu0 0.0
    %501 = vmatpush1.msra.mxu0 %v258
    %502 = vmatprep.subr.mxu0 0.0
    %503 = vmatpush1.msra.mxu0 %v494
    %504 = vmatprep.subr.mxu0 0.0
    %505 = vmatpush1.msra.mxu0 0.0
    %506 = vmatprep.subr.mxu0 0.0
    %507 = vmatpush1.msra.mxu0 0.0
    %508 = vmatprep.subr.mxu0 0.0
    %509 = vmatpush1.msra.mxu0 0.0
    %510 = vmatprep.subr.mxu0 0.0
    %511 = vmatpush1.msra.mxu0 0.0
    %512 = vmatprep.subr.mxu0 0.0
    %513 = vmatpush1.msra.mxu0 0.0
    %514 = vmatprep.subr.mxu0 0.0
    %515 = vmatpush1.msra.mxu0 0.0
    %516 = vmatprep.subr.mxu0 0.0
    %517 = vmatpush1.msra.mxu0 0.0
    %518 = vmatprep.subr.mxu0 0.0
    %519 = vmatpush1.msra.mxu0 0.0
    %520 = vmatprep.subr.mxu0 0.0
    %521 = vmatpush1.msra.mxu0 0.0
    %522 = vmatprep.subr.mxu0 0.0
    %523 = vmatpush1.msra.mxu0 0.0
    %524 = vmatprep.subr.mxu0 0.0
    %525 = vmatpush1.msra.mxu0 0.0
    %526 = vmatprep.subr.mxu0 0.0
    %527 = vmatpush1.msra.mxu0 0.0
    %528 = vmatprep.subr.mxu0 0.0
    %529 = vmatpush1.msra.mxu0 0.0
    %530 = vmatprep.subr.mxu0 0.0
    %531 = vmatpush1.msra.mxu0 0.0
    %532 = vmatprep.subr.mxu0 0.0
    %533 = vmatpush1.msra.mxu0 0.0
    %534 = vmatprep.subr.mxu0 0.0
    %535 = vmatpush1.msra.mxu0 0.0
    %536 = vmatprep.subr.mxu0 0.0
    %537 = vmatpush1.msra.mxu0 0.0
    %538 = vmatprep.subr.mxu0 0.0
    %539 = vmatpush1.msra.mxu0 0.0
    %540 = vmatprep.subr.mxu0 0.0
    %541 = vmatpush1.msra.mxu0 0.0
    %542 = vmatprep.subr.mxu0 0.0
    %543 = vmatpush1.msra.mxu0 0.0
    %544 = vmatprep.subr.mxu0 0.0
    %545 = vmatpush1.msra.mxu0 0.0
    %546 = vmatprep.subr.mxu0 0.0
    %547 = vmatpush1.msra.mxu0 0.0
    %548 = vmatprep.subr.mxu0 0.0
    %549 = vmatpush1.msra.mxu0 0.0
    %550 = vmatprep.subr.mxu0 0.0
    %551 = vmatpush1.msra.mxu0 0.0
    %552 = vmatprep.subr.mxu0 0.0
    %553 = vmatpush1.msra.mxu0 0.0
    %554 = vmatprep.subr.mxu0 0.0
    %555 = vmatpush1.msra.mxu0 0.0
    %556 = vmatprep.subr.mxu0 0.0
    %557 = vmatpush1.msra.mxu0 0.0
    %558 = vmatprep.subr.mxu0 0.0
    %559 = vmatpush1.msra.mxu0 0.0
    %560 = vmatprep.mubr.f32.mxu0 0.0
    %561 = vmatmul.mubr.f32.gmra.mrb[0].mxu0 %v262
    %v562 = vpop.f32.mrb[0].mxu0
    %v563 = vadd.f32 0.0, %v562
    %v564 = vpop.f32.mrb[0].mxu0
    %565 = vmatprep.mubr.f32.mxu0 0.0
    %566 = vmatmul.mubr.f32.gmra.mrb[0].mxu0 %v265
    %v567 = vpop.f32.mrb[0].mxu0
    %v568 = vadd.f32 0.0, %v567
    %v569 = vpop.f32.mrb[0].mxu0
    %570 = vmatprep.mubr.f32.mxu0 0.0
    %571 = vmatmul.mubr.f32.gmra.mrb[0].mxu0 %v268
    %v572 = vpop.f32.mrb[0].mxu0
    %v573 = vadd.f32 0.0, %v572
    %v574 = vpop.f32.mrb[0].mxu0
    %575 = vmatprep.mubr.f32.mxu0 0.0
    %576 = vmatmul.mubr.f32.gmra.mrb[0].mxu0 %v271
    %v577 = vpop.f32.mrb[0].mxu0
    %v578 = vadd.f32 0.0, %v577
    %v579 = vpop.f32.mrb[0].mxu0
    %580 = vmatprep.mubr.f32.mxu0 0.0
    %581 = vmatmul.mubr.f32.gmra.mrb[0].mxu0 %v274
    %v582 = vpop.f32.mrb[0].mxu0
    %v583 = vadd.f32 0.0, %v582
    %v584 = vpop.f32.mrb[0].mxu0
    %585 = vmatprep.mubr.f32.mxu0 0.0
    %586 = vmatmul.mubr.f32.gmra.mrb[0].mxu0 %v277
    %v587 = vpop.f32.mrb[0].mxu0
    %v588 = vadd.f32 0.0, %v587
    %v589 = vpop.f32.mrb[0].mxu0
    %590 = vmatprep.mubr.f32.mxu0 0.0
    %591 = vmatmul.mubr.f32.gmra.mrb[0].mxu0 %v280
    %v592 = vpop.f32.mrb[0].mxu0
    %v593 = vadd.f32 0.0, %v592
    %v594 = vpop.f32.mrb[0].mxu0
    %595 = vmatprep.mubr.f32.mxu0 0.0
    %596 = vmatmul.mubr.f32.gmra.mrb[0].mxu0 %v283
    %v597 = vpop.f32.mrb[0].mxu0
    %v598 = vadd.f32 0.0, %v597
    %v599 = vpop.f32.mrb[0].mxu0
    %600 = vmatprep.mubr.f32.mxu0 0.0
    %601 = vmatmul.mubr.f32.gmra.mrb[0].mxu0 %v286
    %v602 = vpop.f32.mrb[0].mxu0
    %v603 = vadd.f32 0.0, %v602
    %v604 = vpop.f32.mrb[0].mxu0
    %605 = vmatprep.mubr.f32.mxu0 0.0
    %606 = vmatmul.mubr.f32.gmra.mrb[0].mxu0 %v289
    %v607 = vpop.f32.mrb[0].mxu0
    %v608 = vadd.f32 0.0, %v607
    %v609 = vpop.f32.mrb[0].mxu0
    %610 = vmatprep.mubr.f32.mxu0 0.0
    %611 = vmatmul.mubr.f32.gmra.mrb[0].mxu0 %v292
    %v612 = vpop.f32.mrb[0].mxu0
    %v613 = vadd.f32 0.0, %v612
    %v614 = vpop.f32.mrb[0].mxu0
    %615 = vmatprep.mubr.f32.mxu0 0.0
    %616 = vmatmul.mubr.f32.gmra.mrb[0].mxu0 %v295
    %v617 = vpop.f32.mrb[0].mxu0
    %v618 = vadd.f32 0.0, %v617
    %v619 = vpop.f32.mrb[0].mxu0
    %620 = vmatprep.mubr.f32.mxu0 0.0
    %621 = vmatmul.mubr.f32.gmra.mrb[0].mxu0 %v298
    %v622 = vpop.f32.mrb[0].mxu0
    %v623 = vadd.f32 0.0, %v622
    %v624 = vpop.f32.mrb[0].mxu0
    %625 = vmatprep.mubr.f32.mxu0 0.0
    %626 = vmatmul.mubr.f32.gmra.mrb[0].mxu0 %v301
    %v627 = vpop.f32.mrb[0].mxu0
    %v628 = vadd.f32 0.0, %v627
    %v629 = vpop.f32.mrb[0].mxu0
    %630 = vmatprep.mubr.f32.mxu0 0.0
    %631 = vmatmul.mubr.f32.gmra.mrb[0].mxu0 %v304
    %v632 = vpop.f32.mrb[0].mxu0
    %v633 = vadd.f32 0.0, %v632
    %v634 = vpop.f32.mrb[0].mxu0
    %635 = vmatprep.mubr.f32.mxu0 0.0
    %636 = vmatmul.mubr.f32.gmra.mrb[0].mxu0 %v307
    %v637 = vpop.f32.mrb[0].mxu0
    %v638 = vadd.f32 0.0, %v637
    %v639 = vpop.f32.mrb[0].mxu0
    %640 = vmatprep.mubr.f32.mxu0 0.0
    %641 = vmatmul.mubr.f32.gmra.mrb[0].mxu0 %v310
    %v642 = vpop.f32.mrb[0].mxu0
    %v643 = vadd.f32 0.0, %v642
    %v644 = vpop.f32.mrb[0].mxu0
    %645 = vmatprep.mubr.f32.mxu0 0.0
    %646 = vmatmul.mubr.f32.gmra.mrb[0].mxu0 %v313
    %v647 = vpop.f32.mrb[0].mxu0
    %v648 = vadd.f32 0.0, %v647
    %v649 = vpop.f32.mrb[0].mxu0
    %650 = vmatprep.mubr.f32.mxu0 0.0
    %651 = vmatmul.mubr.f32.gmra.mrb[0].mxu0 %v316
    %v652 = vpop.f32.mrb[0].mxu0
    %v653 = vadd.f32 0.0, %v652
    %v654 = vpop.f32.mrb[0].mxu0
    %655 = vmatprep.mubr.f32.mxu0 0.0
    %656 = vmatmul.mubr.f32.gmra.mrb[0].mxu0 %v319
    %v657 = vpop.f32.mrb[0].mxu0
    %v658 = vadd.f32 0.0, %v657
    %v659 = vpop.f32.mrb[0].mxu0
    %660 = vmatprep.mubr.f32.mxu0 0.0
    %661 = vmatmul.mubr.f32.gmra.mrb[0].mxu0 %v322
    %v662 = vpop.f32.mrb[0].mxu0
    %v663 = vadd.f32 0.0, %v662
    %v664 = vpop.f32.mrb[0].mxu0
    %665 = vmatprep.mubr.f32.mxu0 0.0
    %666 = vmatmul.mubr.f32.gmra.mrb[0].mxu0 %v325
    %v667 = vpop.f32.mrb[0].mxu0
    %v668 = vadd.f32 0.0, %v667
    %v669 = vpop.f32.mrb[0].mxu0
    %670 = vmatprep.mubr.f32.mxu0 0.0
    %671 = vmatmul.mubr.f32.gmra.mrb[0].mxu0 %v328
    %v672 = vpop.f32.mrb[0].mxu0
    %v673 = vadd.f32 0.0, %v672
    %v674 = vpop.f32.mrb[0].mxu0
    %675 = vmatprep.mubr.f32.mxu0 0.0
    %676 = vmatmul.mubr.f32.gmra.mrb[0].mxu0 %v331
    %v677 = vpop.f32.mrb[0].mxu0
    %v678 = vadd.f32 0.0, %v677
    %v679 = vpop.f32.mrb[0].mxu0
    %680 = vmatprep.mubr.f32.mxu0 0.0
    %681 = vmatmul.mubr.f32.gmra.mrb[0].mxu0 %v334
    %v682 = vpop.f32.mrb[0].mxu0
    %v683 = vadd.f32 0.0, %v682
    %v684 = vpop.f32.mrb[0].mxu0
    %685 = vmatprep.mubr.f32.mxu0 0.0
    %686 = vmatmul.mubr.f32.gmra.mrb[0].mxu0 %v337
    %v687 = vpop.f32.mrb[0].mxu0
    %v688 = vadd.f32 0.0, %v687
    %v689 = vpop.f32.mrb[0].mxu0
    %690 = vmatprep.mubr.f32.mxu0 0.0
    %691 = vmatmul.mubr.f32.gmra.mrb[0].mxu0 %v340
    %v692 = vpop.f32.mrb[0].mxu0
    %v693 = vadd.f32 0.0, %v692
    %v694 = vpop.f32.mrb[0].mxu0
    %695 = vmatprep.mubr.f32.mxu0 0.0
    %696 = vmatmul.mubr.f32.gmra.mrb[0].mxu0 %v343
    %v697 = vpop.f32.mrb[0].mxu0
    %v698 = vadd.f32 0.0, %v697
    %v699 = vpop.f32.mrb[0].mxu0
    %700 = vmatprep.mubr.f32.mxu0 0.0
    %701 = vmatmul.mubr.f32.gmra.mrb[0].mxu0 %v346
    %v702 = vpop.f32.mrb[0].mxu0
    %v703 = vadd.f32 0.0, %v702
    %v704 = vpop.f32.mrb[0].mxu0
    %705 = vmatprep.mubr.f32.mxu0 0.0
    %706 = vmatmul.mubr.f32.gmra.mrb[0].mxu0 %v349
    %v707 = vpop.f32.mrb[0].mxu0
    %v708 = vadd.f32 0.0, %v707
    %v709 = vpop.f32.mrb[0].mxu0
    %710 = vmatprep.mubr.f32.mxu0 0.0
    %711 = vmatmul.mubr.f32.gmra.mrb[0].mxu0 %v352
    %v712 = vpop.f32.mrb[0].mxu0
    %v713 = vadd.f32 0.0, %v712
    %v714 = vpop.f32.mrb[0].mxu0
    %715 = vmatprep.mubr.f32.mxu0 0.0
    %716 = vmatmul.mubr.f32.gmra.mrb[0].mxu0 %v355
    %v717 = vpop.f32.mrb[0].mxu0
    %v718 = vadd.f32 0.0, %v717
    %v719 = vpop.f32.mrb[0].mxu0
    %720 = vmatprep.mubr.f32.mxu0 0.0
    %721 = vmatmul.mubr.f32.gmra.mrb[0].mxu0 %v358
    %v722 = vpop.f32.mrb[0].mxu0
    %v723 = vadd.f32 0.0, %v722
    %v724 = vpop.f32.mrb[0].mxu0
    %725 = vmatprep.mubr.f32.mxu0 0.0
    %726 = vmatmul.mubr.f32.gmra.mrb[0].mxu0 %v361
    %v727 = vpop.f32.mrb[0].mxu0
    %v728 = vadd.f32 0.0, %v727
    %v729 = vpop.f32.mrb[0].mxu0
    %730 = vmatprep.mubr.f32.mxu0 0.0
    %731 = vmatmul.mubr.f32.gmra.mrb[0].mxu0 %v364
    %v732 = vpop.f32.mrb[0].mxu0
    %v733 = vadd.f32 0.0, %v732
    %v734 = vpop.f32.mrb[0].mxu0
    %735 = vmatprep.mubr.f32.mxu0 0.0
    %736 = vmatmul.mubr.f32.gmra.mrb[0].mxu0 %v367
    %v737 = vpop.f32.mrb[0].mxu0
    %v738 = vadd.f32 0.0, %v737
    %v739 = vpop.f32.mrb[0].mxu0
    %740 = vmatprep.mubr.f32.mxu0 0.0
    %741 = vmatmul.mubr.f32.gmra.mrb[0].mxu0 %v370
    %v742 = vpop.f32.mrb[0].mxu0
    %v743 = vadd.f32 0.0, %v742
    %v744 = vpop.f32.mrb[0].mxu0
    %745 = vmatprep.mubr.f32.mxu0 0.0
    %746 = vmatmul.mubr.f32.gmra.mrb[0].mxu0 %v373
    %v747 = vpop.f32.mrb[0].mxu0
    %v748 = vadd.f32 0.0, %v747
    %v749 = vpop.f32.mrb[0].mxu0
    %750 = vmatprep.mubr.f32.mxu0 0.0
    %751 = vmatmul.mubr.f32.gmra.mrb[0].mxu0 %v376
    %v752 = vpop.f32.mrb[0].mxu0
    %v753 = vadd.f32 0.0, %v752
    %v754 = vpop.f32.mrb[0].mxu0
    %755 = vmatprep.mubr.f32.mxu0 0.0
    %756 = vmatmul.mubr.f32.gmra.mrb[0].mxu0 %v379
    %v757 = vpop.f32.mrb[0].mxu0
    %v758 = vadd.f32 0.0, %v757
    %v759 = vpop.f32.mrb[0].mxu0
    %760 = vmatprep.mubr.f32.mxu0 0.0
    %761 = vmatmul.mubr.f32.gmra.mrb[0].mxu0 %v382
    %v762 = vpop.f32.mrb[0].mxu0
    %v763 = vadd.f32 0.0, %v762
    %v764 = vpop.f32.mrb[0].mxu0
    %765 = vmatprep.mubr.f32.mxu0 0.0
    %766 = vmatmul.mubr.f32.gmra.mrb[0].mxu0 %v385
    %v767 = vpop.f32.mrb[0].mxu0
    %v768 = vadd.f32 0.0, %v767
    %v769 = vpop.f32.mrb[0].mxu0
    %770 = vmatprep.mubr.f32.mxu0 0.0
    %771 = vmatmul.mubr.f32.gmra.mrb[0].mxu0 %v388
    %v772 = vpop.f32.mrb[0].mxu0
    %v773 = vadd.f32 0.0, %v772
    %v774 = vpop.f32.mrb[0].mxu0
    %775 = vmatprep.mubr.f32.mxu0 0.0
    %776 = vmatmul.mubr.f32.gmra.mrb[0].mxu0 %v391
    %v777 = vpop.f32.mrb[0].mxu0
    %v778 = vadd.f32 0.0, %v777
    %v779 = vpop.f32.mrb[0].mxu0
    %780 = vmatprep.mubr.f32.mxu0 0.0
    %781 = vmatmul.mubr.f32.gmra.mrb[0].mxu0 %v394
    %v782 = vpop.f32.mrb[0].mxu0
    %v783 = vadd.f32 0.0, %v782
    %v784 = vpop.f32.mrb[0].mxu0
    %785 = vmatprep.mubr.f32.mxu0 0.0
    %786 = vmatmul.mubr.f32.gmra.mrb[0].mxu0 %v397
    %v787 = vpop.f32.mrb[0].mxu0
    %v788 = vadd.f32 0.0, %v787
    %v789 = vpop.f32.mrb[0].mxu0
    %790 = vmatprep.mubr.f32.mxu0 0.0
    %791 = vmatmul.mubr.f32.gmra.mrb[0].mxu0 %v400
    %v792 = vpop.f32.mrb[0].mxu0
    %v793 = vadd.f32 0.0, %v792
    %v794 = vpop.f32.mrb[0].mxu0
    %795 = vmatprep.mubr.f32.mxu0 0.0
    %796 = vmatmul.mubr.f32.gmra.mrb[0].mxu0 %v403
    %v797 = vpop.f32.mrb[0].mxu0
    %v798 = vadd.f32 0.0, %v797
    %v799 = vpop.f32.mrb[0].mxu0
    %800 = vmatprep.mubr.f32.mxu0 0.0
    %801 = vmatmul.mubr.f32.gmra.mrb[0].mxu0 %v406
    %v802 = vpop.f32.mrb[0].mxu0
    %v803 = vadd.f32 0.0, %v802
    %v804 = vpop.f32.mrb[0].mxu0
    %805 = vmatprep.mubr.f32.mxu0 0.0
    %806 = vmatmul.mubr.f32.gmra.mrb[0].mxu0 %v409
    %v807 = vpop.f32.mrb[0].mxu0
    %v808 = vadd.f32 0.0, %v807
    %v809 = vpop.f32.mrb[0].mxu0
    %810 = vmatprep.mubr.f32.mxu0 0.0
    %811 = vmatmul.mubr.f32.gmra.mrb[0].mxu0 %v412
    %v812 = vpop.f32.mrb[0].mxu0
    %v813 = vadd.f32 0.0, %v812
    %v814 = vpop.f32.mrb[0].mxu0
    %815 = vmatprep.mubr.f32.mxu0 0.0
    %816 = vmatmul.mubr.f32.gmra.mrb[0].mxu0 %v415
    %v817 = vpop.f32.mrb[0].mxu0
    %v818 = vadd.f32 0.0, %v817
    %v819 = vpop.f32.mrb[0].mxu0
    %820 = vmatprep.mubr.f32.mxu0 0.0
    %821 = vmatmul.mubr.f32.gmra.mrb[0].mxu0 %v418
    %v822 = vpop.f32.mrb[0].mxu0
    %v823 = vadd.f32 0.0, %v822
    %v824 = vpop.f32.mrb[0].mxu0
    %825 = vmatprep.mubr.f32.mxu0 0.0
    %826 = vmatmul.mubr.f32.gmra.mrb[0].mxu0 %v421
    %v827 = vpop.f32.mrb[0].mxu0
    %v828 = vadd.f32 0.0, %v827
    %v829 = vpop.f32.mrb[0].mxu0
    %830 = vmatprep.mubr.f32.mxu0 0.0
    %831 = vmatmul.mubr.f32.gmra.mrb[0].mxu0 %v424
    %v832 = vpop.f32.mrb[0].mxu0
    %v833 = vadd.f32 0.0, %v832
    %v834 = vpop.f32.mrb[0].mxu0
    %835 = vmatprep.mubr.f32.mxu0 0.0
    %836 = vmatmul.mubr.f32.gmra.mrb[0].mxu0 %v427
    %v837 = vpop.f32.mrb[0].mxu0
    %v838 = vadd.f32 0.0, %v837
    %v839 = vpop.f32.mrb[0].mxu0
    %840 = vmatprep.mubr.f32.mxu0 0.0
    %841 = vmatmul.mubr.f32.gmra.mrb[0].mxu0 %v430
    %v842 = vpop.f32.mrb[0].mxu0
    %v843 = vadd.f32 0.0, %v842
    %v844 = vpop.f32.mrb[0].mxu0
    %845 = vmatprep.mubr.f32.mxu0 0.0
    %846 = vmatmul.mubr.f32.gmra.mrb[0].mxu0 %v433
    %v847 = vpop.f32.mrb[0].mxu0
    %v848 = vadd.f32 0.0, %v847
    %v849 = vpop.f32.mrb[0].mxu0
    %850 = vmatprep.mubr.f32.mxu0 0.0
    %851 = vmatmul.mubr.f32.gmra.mrb[0].mxu0 %v436
    %v852 = vpop.f32.mrb[0].mxu0
    %v853 = vadd.f32 0.0, %v852
    %v854 = vpop.f32.mrb[0].mxu0
    %855 = vmatprep.mubr.f32.mxu0 0.0
    %856 = vmatmul.mubr.f32.gmra.mrb[0].mxu0 %v439
    %v857 = vpop.f32.mrb[0].mxu0
    %v858 = vadd.f32 0.0, %v857
    %v859 = vpop.f32.mrb[0].mxu0
    %860 = vmatprep.mubr.f32.mxu0 0.0
    %861 = vmatmul.mubr.f32.gmra.mrb[0].mxu0 %v442
    %v862 = vpop.f32.mrb[0].mxu0
    %v863 = vadd.f32 0.0, %v862
    %v864 = vpop.f32.mrb[0].mxu0
    %865 = vmatprep.mubr.f32.mxu0 0.0
    %866 = vmatmul.mubr.f32.gmra.mrb[0].mxu0 %v445
    %v867 = vpop.f32.mrb[0].mxu0
    %v868 = vadd.f32 0.0, %v867
    %v869 = vpop.f32.mrb[0].mxu0
    %870 = vmatprep.mubr.f32.mxu0 0.0
    %871 = vmatmul.mubr.f32.gmra.mrb[0].mxu0 %v448
    %v872 = vpop.f32.mrb[0].mxu0
    %v873 = vadd.f32 0.0, %v872
    %v874 = vpop.f32.mrb[0].mxu0
    %875 = vmatprep.mubr.f32.mxu0 0.0
    %876 = vmatmul.mubr.f32.gmra.mrb[0].mxu0 %v451
    %v877 = vpop.f32.mrb[0].mxu0
    %v878 = vadd.f32 0.0, %v877
    %v879 = vpop.f32.mrb[0].mxu0
    %880 = vmatprep.mubr.f32.mxu0 0.0
    %881 = vmatmul.mubr.f32.gmra.mrb[0].mxu0 %v454
    %v882 = vpop.f32.mrb[0].mxu0
    %v883 = vadd.f32 0.0, %v882
    %v884 = vpop.f32.mrb[0].mxu0
    %885 = vmatprep.mubr.f32.mxu0 0.0
    %886 = vmatmul.mubr.f32.gmra.mrb[0].mxu0 %v457
    %v887 = vpop.f32.mrb[0].mxu0
    %v888 = vadd.f32 0.0, %v887
    %v889 = vpop.f32.mrb[0].mxu0
    %890 = vmatprep.mubr.f32.mxu0 0.0
    %891 = vmatmul.mubr.f32.gmra.mrb[0].mxu0 %v460
    %v892 = vpop.f32.mrb[0].mxu0
    %v893 = vadd.f32 0.0, %v892
    %v894 = vpop.f32.mrb[0].mxu0
    %895 = vmatprep.mubr.f32.mxu0 0.0
    %896 = vmatmul.mubr.f32.gmra.mrb[0].mxu0 %v463
    %v897 = vpop.f32.mrb[0].mxu0
    %v898 = vadd.f32 0.0, %v897
    %v899 = vpop.f32.mrb[0].mxu0
    %900 = vmatprep.mubr.f32.mxu0 0.0
    %901 = vmatmul.mubr.f32.gmra.mrb[0].mxu0 %v466
    %v902 = vpop.f32.mrb[0].mxu0
    %v903 = vadd.f32 0.0, %v902
    %v904 = vpop.f32.mrb[0].mxu0
    %905 = vmatprep.mubr.f32.mxu0 0.0
    %906 = vmatmul.mubr.f32.gmra.mrb[0].mxu0 %v469
    %v907 = vpop.f32.mrb[0].mxu0
    %v908 = vadd.f32 0.0, %v907
    %v909 = vpop.f32.mrb[0].mxu0
    %910 = vmatprep.mubr.f32.mxu0 0.0
    %911 = vmatmul.mubr.f32.gmra.mrb[0].mxu0 %v472
    %v912 = vpop.f32.mrb[0].mxu0
    %v913 = vadd.f32 0.0, %v912
    %v914 = vpop.f32.mrb[0].mxu0
    %915 = vmatprep.mubr.f32.mxu0 0.0
    %916 = vmatmul.mubr.f32.gmra.mrb[0].mxu0 %v475
    %v917 = vpop.f32.mrb[0].mxu0
    %v918 = vadd.f32 0.0, %v917
    %v919 = vpop.f32.mrb[0].mxu0
    %920 = vmatprep.mubr.f32.mxu0 0.0
    %921 = vmatmul.mubr.f32.gmra.mrb[0].mxu0 %v478
    %v922 = vpop.f32.mrb[0].mxu0
    %v923 = vadd.f32 0.0, %v922
    %v924 = vpop.f32.mrb[0].mxu0
    %925 = vmatprep.mubr.f32.mxu0 0.0
    %926 = vmatmul.mubr.f32.gmra.mrb[0].mxu0 %v481
    %v927 = vpop.f32.mrb[0].mxu0
    %v928 = vadd.f32 0.0, %v927
    %v929 = vpop.f32.mrb[0].mxu0
    %930 = vmatprep.mubr.f32.mxu0 0.0
    %931 = vmatmul.mubr.f32.gmra.mrb[0].mxu0 %v484
    %v932 = vpop.f32.mrb[0].mxu0
    %v933 = vadd.f32 0.0, %v932
    %v934 = vpop.f32.mrb[0].mxu0
    %935 = vmatprep.mubr.f32.mxu0 0.0
    %936 = vmatmul.mubr.f32.gmra.mrb[0].mxu0 %v487
    %v937 = vpop.f32.mrb[0].mxu0
    %v938 = vadd.f32 0.0, %v937
    %v939 = vpop.f32.mrb[0].mxu0
    %940 = vmatprep.mubr.f32.mxu0 0.0
    %941 = vmatmul.mubr.f32.gmra.mrb[0].mxu0 %v490
    %v942 = vpop.f32.mrb[0].mxu0
    %v943 = vadd.f32 0.0, %v942
    %v944 = vpop.f32.mrb[0].mxu0
    %945 = vdwg.mxu0
    %v946 = vld [vmem:[%s17] sm:$0x1]
    %v948 = vlaneseq
    %v949 = vshrl.u32 %v948, 7
    %v950 = vsub.s32 0, %v949
    %v951 = vrot.slane %v946, %v950
    %v953 = vmul.f32 %v563, %v951
    %v954 = vmul.f32 %v568, %v951
    %v955 = vmul.f32 %v573, %v951
    %v956 = vmul.f32 %v578, %v951
    %v957 = vmul.f32 %v583, %v951
    %v958 = vmul.f32 %v588, %v951
    %v959 = vmul.f32 %v593, %v951
    %v960 = vmul.f32 %v598, %v951
    %v961 = vmul.f32 %v603, %v951
    %v962 = vmul.f32 %v608, %v951
    %v963 = vmul.f32 %v613, %v951
    %v964 = vmul.f32 %v618, %v951
    %v965 = vmul.f32 %v623, %v951
    %v966 = vmul.f32 %v628, %v951
    %v967 = vmul.f32 %v633, %v951
    %v968 = vmul.f32 %v638, %v951
    %v969 = vmul.f32 %v643, %v951
    %v970 = vmul.f32 %v648, %v951
    %v971 = vmul.f32 %v653, %v951
    %v972 = vmul.f32 %v658, %v951
    %v973 = vmul.f32 %v663, %v951
    %v974 = vmul.f32 %v668, %v951
    %v975 = vmul.f32 %v673, %v951
    %v976 = vmul.f32 %v678, %v951
    %v977 = vmul.f32 %v683, %v951
    %v978 = vmul.f32 %v688, %v951
    %v979 = vmul.f32 %v693, %v951
    %v980 = vmul.f32 %v698, %v951
    %v981 = vmul.f32 %v703, %v951
    %v982 = vmul.f32 %v708, %v951
    %v983 = vmul.f32 %v713, %v951
    %v984 = vmul.f32 %v718, %v951
    %v985 = vmul.f32 %v723, %v951
    %v986 = vmul.f32 %v728, %v951
    %v987 = vmul.f32 %v733, %v951
    %v988 = vmul.f32 %v738, %v951
    %v989 = vmul.f32 %v743, %v951
    %v990 = vmul.f32 %v748, %v951
    %v991 = vmul.f32 %v753, %v951
    %v992 = vmul.f32 %v758, %v951
    %v993 = vmul.f32 %v763, %v951
    %v994 = vmul.f32 %v768, %v951
    %v995 = vmul.f32 %v773, %v951
    %v996 = vmul.f32 %v778, %v951
    %v997 = vmul.f32 %v783, %v951
    %v998 = vmul.f32 %v788, %v951
    %v999 = vmul.f32 %v793, %v951
    %v1000 = vmul.f32 %v798, %v951
    %v1001 = vmul.f32 %v803, %v951
    %v1002 = vmul.f32 %v808, %v951
    %v1003 = vmul.f32 %v813, %v951
    %v1004 = vmul.f32 %v818, %v951
    %v1005 = vmul.f32 %v823, %v951
    %v1006 = vmul.f32 %v828, %v951
    %v1007 = vmul.f32 %v833, %v951
    %v1008 = vmul.f32 %v838, %v951
    %v1009 = vmul.f32 %v843, %v951
    %v1010 = vmul.f32 %v848, %v951
    %v1011 = vmul.f32 %v853, %v951
    %v1012 = vmul.f32 %v858, %v951
    %v1013 = vmul.f32 %v863, %v951
    %v1014 = vmul.f32 %v868, %v951
    %v1015 = vmul.f32 %v873, %v951
    %v1016 = vmul.f32 %v878, %v951
    %v1017 = vmul.f32 %v883, %v951
    %v1018 = vmul.f32 %v888, %v951
    %v1019 = vmul.f32 %v893, %v951
    %v1020 = vmul.f32 %v898, %v951
    %v1021 = vmul.f32 %v903, %v951
    %v1022 = vmul.f32 %v908, %v951
    %v1023 = vmul.f32 %v913, %v951
    %v1024 = vmul.f32 %v918, %v951
    %v1025 = vmul.f32 %v923, %v951
    %v1026 = vmul.f32 %v928, %v951
    %v1027 = vmul.f32 %v933, %v951
    %v1028 = vmul.f32 %v938, %v951
    %v1029 = vmul.f32 %v943, %v951
    %v1030 = vld [vmem:[%s19] sm:$0x1]
    %v1032 = vlaneseq
    %v1033 = vshrl.u32 %v1032, 7
    %v1034 = vsub.s32 0, %v1033
    %v1035 = vrot.slane %v1030, %v1034
    %v1037 = vadd.f32 %v953, %v1035
    %v1038 = vadd.f32 %v954, %v1035
    %v1039 = vadd.f32 %v955, %v1035
    %v1040 = vadd.f32 %v956, %v1035
    %v1041 = vadd.f32 %v957, %v1035
    %v1042 = vadd.f32 %v958, %v1035
    %v1043 = vadd.f32 %v959, %v1035
    %v1044 = vadd.f32 %v960, %v1035
    %v1045 = vadd.f32 %v961, %v1035
    %v1046 = vadd.f32 %v962, %v1035
    %v1047 = vadd.f32 %v963, %v1035
    %v1048 = vadd.f32 %v964, %v1035
    %v1049 = vadd.f32 %v965, %v1035
    %v1050 = vadd.f32 %v966, %v1035
    %v1051 = vadd.f32 %v967, %v1035
    %v1052 = vadd.f32 %v968, %v1035
    %v1053 = vadd.f32 %v969, %v1035
    %v1054 = vadd.f32 %v970, %v1035
    %v1055 = vadd.f32 %v971, %v1035
    %v1056 = vadd.f32 %v972, %v1035
    %v1057 = vadd.f32 %v973, %v1035
    %v1058 = vadd.f32 %v974, %v1035
    %v1059 = vadd.f32 %v975, %v1035
    %v1060 = vadd.f32 %v976, %v1035
    %v1061 = vadd.f32 %v977, %v1035
    %v1062 = vadd.f32 %v978, %v1035
    %v1063 = vadd.f32 %v979, %v1035
    %v1064 = vadd.f32 %v980, %v1035
    %v1065 = vadd.f32 %v981, %v1035
    %v1066 = vadd.f32 %v982, %v1035
    %v1067 = vadd.f32 %v983, %v1035
    %v1068 = vadd.f32 %v984, %v1035
    %v1069 = vadd.f32 %v985, %v1035
    %v1070 = vadd.f32 %v986, %v1035
    %v1071 = vadd.f32 %v987, %v1035
    %v1072 = vadd.f32 %v988, %v1035
    %v1073 = vadd.f32 %v989, %v1035
    %v1074 = vadd.f32 %v990, %v1035
    %v1075 = vadd.f32 %v991, %v1035
    %v1076 = vadd.f32 %v992, %v1035
    %v1077 = vadd.f32 %v993, %v1035
    %v1078 = vadd.f32 %v994, %v1035
    %v1079 = vadd.f32 %v995, %v1035
    %v1080 = vadd.f32 %v996, %v1035
    %v1081 = vadd.f32 %v997, %v1035
    %v1082 = vadd.f32 %v998, %v1035
    %v1083 = vadd.f32 %v999, %v1035
    %v1084 = vadd.f32 %v1000, %v1035
    %v1085 = vadd.f32 %v1001, %v1035
    %v1086 = vadd.f32 %v1002, %v1035
    %v1087 = vadd.f32 %v1003, %v1035
    %v1088 = vadd.f32 %v1004, %v1035
    %v1089 = vadd.f32 %v1005, %v1035
    %v1090 = vadd.f32 %v1006, %v1035
    %v1091 = vadd.f32 %v1007, %v1035
    %v1092 = vadd.f32 %v1008, %v1035
    %v1093 = vadd.f32 %v1009, %v1035
    %v1094 = vadd.f32 %v1010, %v1035
    %v1095 = vadd.f32 %v1011, %v1035
    %v1096 = vadd.f32 %v1012, %v1035
    %v1097 = vadd.f32 %v1013, %v1035
    %v1098 = vadd.f32 %v1014, %v1035
    %v1099 = vadd.f32 %v1015, %v1035
    %v1100 = vadd.f32 %v1016, %v1035
    %v1101 = vadd.f32 %v1017, %v1035
    %v1102 = vadd.f32 %v1018, %v1035
    %v1103 = vadd.f32 %v1019, %v1035
    %v1104 = vadd.f32 %v1020, %v1035
    %v1105 = vadd.f32 %v1021, %v1035
    %v1106 = vadd.f32 %v1022, %v1035
    %v1107 = vadd.f32 %v1023, %v1035
    %v1108 = vadd.f32 %v1024, %v1035
    %v1109 = vadd.f32 %v1025, %v1035
    %v1110 = vadd.f32 %v1026, %v1035
    %v1111 = vadd.f32 %v1027, %v1035
    %v1112 = vadd.f32 %v1028, %v1035
    %v1113 = vadd.f32 %v1029, %v1035
    %v1114 = vmax.f32 %v1037, 0.0
    %v1115 = vmax.f32 %v1038, 0.0
    %v1116 = vmax.f32 %v1039, 0.0
    %v1117 = vmax.f32 %v1040, 0.0
    %v1118 = vmax.f32 %v1041, 0.0
    %v1119 = vmax.f32 %v1042, 0.0
    %v1120 = vmax.f32 %v1043, 0.0
    %v1121 = vmax.f32 %v1044, 0.0
    %v1122 = vmax.f32 %v1045, 0.0
    %v1123 = vmax.f32 %v1046, 0.0
    %v1124 = vmax.f32 %v1047, 0.0
    %v1125 = vmax.f32 %v1048, 0.0
    %v1126 = vmax.f32 %v1049, 0.0
    %v1127 = vmax.f32 %v1050, 0.0
    %v1128 = vmax.f32 %v1051, 0.0
    %v1129 = vmax.f32 %v1052, 0.0
    %v1130 = vmax.f32 %v1053, 0.0
    %v1131 = vmax.f32 %v1054, 0.0
    %v1132 = vmax.f32 %v1055, 0.0
    %v1133 = vmax.f32 %v1056, 0.0
    %v1134 = vmax.f32 %v1057, 0.0
    %v1135 = vmax.f32 %v1058, 0.0
    %v1136 = vmax.f32 %v1059, 0.0
    %v1137 = vmax.f32 %v1060, 0.0
    %v1138 = vmax.f32 %v1061, 0.0
    %v1139 = vmax.f32 %v1062, 0.0
    %v1140 = vmax.f32 %v1063, 0.0
    %v1141 = vmax.f32 %v1064, 0.0
    %v1142 = vmax.f32 %v1065, 0.0
    %v1143 = vmax.f32 %v1066, 0.0
    %v1144 = vmax.f32 %v1067, 0.0
    %v1145 = vmax.f32 %v1068, 0.0
    %v1146 = vmax.f32 %v1069, 0.0
    %v1147 = vmax.f32 %v1070, 0.0
    %v1148 = vmax.f32 %v1071, 0.0
    %v1149 = vmax.f32 %v1072, 0.0
    %v1150 = vmax.f32 %v1073, 0.0
    %v1151 = vmax.f32 %v1074, 0.0
    %v1152 = vmax.f32 %v1075, 0.0
    %v1153 = vmax.f32 %v1076, 0.0
    %v1154 = vmax.f32 %v1077, 0.0
    %v1155 = vmax.f32 %v1078, 0.0
    %v1156 = vmax.f32 %v1079, 0.0
    %v1157 = vmax.f32 %v1080, 0.0
    %v1158 = vmax.f32 %v1081, 0.0
    %v1159 = vmax.f32 %v1082, 0.0
    %v1160 = vmax.f32 %v1083, 0.0
    %v1161 = vmax.f32 %v1084, 0.0
    %v1162 = vmax.f32 %v1085, 0.0
    %v1163 = vmax.f32 %v1086, 0.0
    %v1164 = vmax.f32 %v1087, 0.0
    %v1165 = vmax.f32 %v1088, 0.0
    %v1166 = vmax.f32 %v1089, 0.0
    %v1167 = vmax.f32 %v1090, 0.0
    %v1168 = vmax.f32 %v1091, 0.0
    %v1169 = vmax.f32 %v1092, 0.0
    %v1170 = vmax.f32 %v1093, 0.0
    %v1171 = vmax.f32 %v1094, 0.0
    %v1172 = vmax.f32 %v1095, 0.0
    %v1173 = vmax.f32 %v1096, 0.0
    %v1174 = vmax.f32 %v1097, 0.0
    %v1175 = vmax.f32 %v1098, 0.0
    %v1176 = vmax.f32 %v1099, 0.0
    %v1177 = vmax.f32 %v1100, 0.0
    %v1178 = vmax.f32 %v1101, 0.0
    %v1179 = vmax.f32 %v1102, 0.0
    %v1180 = vmax.f32 %v1103, 0.0
    %v1181 = vmax.f32 %v1104, 0.0
    %v1182 = vmax.f32 %v1105, 0.0
    %v1183 = vmax.f32 %v1106, 0.0
    %v1184 = vmax.f32 %v1107, 0.0
    %v1185 = vmax.f32 %v1108, 0.0
    %v1186 = vmax.f32 %v1109, 0.0
    %v1187 = vmax.f32 %v1110, 0.0
    %v1188 = vmax.f32 %v1111, 0.0
    %v1189 = vmax.f32 %v1112, 0.0
    %v1190 = vmax.f32 %v1113, 0.0
    %vm1191 = vcmask 261120
    %1192 = vst.msk [vmem:[#allocation2] sm:$0xff] %vm1191, %v1114
    %1193 = vst.msk [vmem:[#allocation2 + $0x8] sm:$0xff] %vm1191, %v1115
    %1194 = vst.msk [vmem:[#allocation2 + $0x10] sm:$0xff] %vm1191, %v1116
    %1195 = vst.msk [vmem:[#allocation2 + $0x18] sm:$0xff] %vm1191, %v1117
    %1196 = vst.msk [vmem:[#allocation2 + $0x20] sm:$0xff] %vm1191, %v1118
    %1197 = vst.msk [vmem:[#allocation2 + $0x28] sm:$0xff] %vm1191, %v1119
    %1198 = vst.msk [vmem:[#allocation2 + $0x30] sm:$0xff] %vm1191, %v1120
    %1199 = vst.msk [vmem:[#allocation2 + $0x38] sm:$0xff] %vm1191, %v1121
    %1200 = vst.msk [vmem:[#allocation2 + $0x40] sm:$0xff] %vm1191, %v1122
    %1201 = vst.msk [vmem:[#allocation2 + $0x48] sm:$0xff] %vm1191, %v1123
    %1202 = vst.msk [vmem:[#allocation2 + $0x50] sm:$0xff] %vm1191, %v1124
    %1203 = vst.msk [vmem:[#allocation2 + $0x58] sm:$0xff] %vm1191, %v1125
    %1204 = vst.msk [vmem:[#allocation2 + $0x60] sm:$0xff] %vm1191, %v1126
    %1205 = vst.msk [vmem:[#allocation2 + $0x68] sm:$0xff] %vm1191, %v1127
    %1206 = vst.msk [vmem:[#allocation2 + $0x70] sm:$0xff] %vm1191, %v1128
    %1207 = vst.msk [vmem:[#allocation2 + $0x78] sm:$0xff] %vm1191, %v1129
    %1208 = vst.msk [vmem:[#allocation2 + $0x80] sm:$0xff] %vm1191, %v1130
    %1209 = vst.msk [vmem:[#allocation2 + $0x88] sm:$0xff] %vm1191, %v1131
    %1210 = vst.msk [vmem:[#allocation2 + $0x90] sm:$0xff] %vm1191, %v1132
    %1211 = vst.msk [vmem:[#allocation2 + $0x98] sm:$0xff] %vm1191, %v1133
    %1212 = vst.msk [vmem:[#allocation2 + $0xa0] sm:$0xff] %vm1191, %v1134
    %1213 = vst.msk [vmem:[#allocation2 + $0xa8] sm:$0xff] %vm1191, %v1135
    %1214 = vst.msk [vmem:[#allocation2 + $0xb0] sm:$0xff] %vm1191, %v1136
    %1215 = vst.msk [vmem:[#allocation2 + $0xb8] sm:$0xff] %vm1191, %v1137
    %1216 = vst.msk [vmem:[#allocation2 + $0xc0] sm:$0xff] %vm1191, %v1138
    %1217 = vst.msk [vmem:[#allocation2 + $0xc8] sm:$0xff] %vm1191, %v1139
    %1218 = vst.msk [vmem:[#allocation2 + $0xd0] sm:$0xff] %vm1191, %v1140
    %1219 = vst.msk [vmem:[#allocation2 + $0xd8] sm:$0xff] %vm1191, %v1141
    %1220 = vst.msk [vmem:[#allocation2 + $0xe0] sm:$0xff] %vm1191, %v1142
    %1221 = vst.msk [vmem:[#allocation2 + $0xe8] sm:$0xff] %vm1191, %v1143
    %1222 = vst.msk [vmem:[#allocation2 + $0xf0] sm:$0xff] %vm1191, %v1144
    %1223 = vst.msk [vmem:[#allocation2 + $0xf8] sm:$0xff] %vm1191, %v1145
    %1224 = vst.msk [vmem:[#allocation2 + $0x100] sm:$0xff] %vm1191, %v1146
    %1225 = vst.msk [vmem:[#allocation2 + $0x108] sm:$0xff] %vm1191, %v1147
    %1226 = vst.msk [vmem:[#allocation2 + $0x110] sm:$0xff] %vm1191, %v1148
    %1227 = vst.msk [vmem:[#allocation2 + $0x118] sm:$0xff] %vm1191, %v1149
    %1228 = vst.msk [vmem:[#allocation2 + $0x120] sm:$0xff] %vm1191, %v1150
    %1229 = vst.msk [vmem:[#allocation2 + $0x128] sm:$0xff] %vm1191, %v1151
    %1230 = vst.msk [vmem:[#allocation2 + $0x130] sm:$0xff] %vm1191, %v1152
    %1231 = vst.msk [vmem:[#allocation2 + $0x138] sm:$0xff] %vm1191, %v1153
    %1232 = vst.msk [vmem:[#allocation2 + $0x140] sm:$0xff] %vm1191, %v1154
    %1233 = vst.msk [vmem:[#allocation2 + $0x148] sm:$0xff] %vm1191, %v1155
    %1234 = vst.msk [vmem:[#allocation2 + $0x150] sm:$0xff] %vm1191, %v1156
    %1235 = vst.msk [vmem:[#allocation2 + $0x158] sm:$0xff] %vm1191, %v1157
    %1236 = vst.msk [vmem:[#allocation2 + $0x160] sm:$0xff] %vm1191, %v1158
    %1237 = vst.msk [vmem:[#allocation2 + $0x168] sm:$0xff] %vm1191, %v1159
    %1238 = vst.msk [vmem:[#allocation2 + $0x170] sm:$0xff] %vm1191, %v1160
    %1239 = vst.msk [vmem:[#allocation2 + $0x178] sm:$0xff] %vm1191, %v1161
    %1240 = vst.msk [vmem:[#allocation2 + $0x180] sm:$0xff] %vm1191, %v1162
    %1241 = vst.msk [vmem:[#allocation2 + $0x188] sm:$0xff] %vm1191, %v1163
    %1242 = vst.msk [vmem:[#allocation2 + $0x190] sm:$0xff] %vm1191, %v1164
    %1243 = vst.msk [vmem:[#allocation2 + $0x198] sm:$0xff] %vm1191, %v1165
    %1244 = vst.msk [vmem:[#allocation2 + $0x1a0] sm:$0xff] %vm1191, %v1166
    %1245 = vst.msk [vmem:[#allocation2 + $0x1a8] sm:$0xff] %vm1191, %v1167
    %1246 = vst.msk [vmem:[#allocation2 + $0x1b0] sm:$0xff] %vm1191, %v1168
    %1247 = vst.msk [vmem:[#allocation2 + $0x1b8] sm:$0xff] %vm1191, %v1169
    %1248 = vst.msk [vmem:[#allocation2 + $0x1c0] sm:$0xff] %vm1191, %v1170
    %1249 = vst.msk [vmem:[#allocation2 + $0x1c8] sm:$0xff] %vm1191, %v1171
    %1250 = vst.msk [vmem:[#allocation2 + $0x1d0] sm:$0xff] %vm1191, %v1172
    %1251 = vst.msk [vmem:[#allocation2 + $0x1d8] sm:$0xff] %vm1191, %v1173
    %1252 = vst.msk [vmem:[#allocation2 + $0x1e0] sm:$0xff] %vm1191, %v1174
    %1253 = vst.msk [vmem:[#allocation2 + $0x1e8] sm:$0xff] %vm1191, %v1175
    %1254 = vst.msk [vmem:[#allocation2 + $0x1f0] sm:$0xff] %vm1191, %v1176
    %1255 = vst.msk [vmem:[#allocation2 + $0x1f8] sm:$0xff] %vm1191, %v1177
    %1256 = vst.msk [vmem:[#allocation2 + $0x200] sm:$0xff] %vm1191, %v1178
    %1257 = vst.msk [vmem:[#allocation2 + $0x208] sm:$0xff] %vm1191, %v1179
    %1258 = vst.msk [vmem:[#allocation2 + $0x210] sm:$0xff] %vm1191, %v1180
    %1259 = vst.msk [vmem:[#allocation2 + $0x218] sm:$0xff] %vm1191, %v1181
    %1260 = vst.msk [vmem:[#allocation2 + $0x220] sm:$0xff] %vm1191, %v1182
    %1261 = vst.msk [vmem:[#allocation2 + $0x228] sm:$0xff] %vm1191, %v1183
    %1262 = vst.msk [vmem:[#allocation2 + $0x230] sm:$0xff] %vm1191, %v1184
    %1263 = vst.msk [vmem:[#allocation2 + $0x238] sm:$0xff] %vm1191, %v1185
    %1264 = vst.msk [vmem:[#allocation2 + $0x240] sm:$0xff] %vm1191, %v1186
    %1265 = vst.msk [vmem:[#allocation2 + $0x248] sm:$0xff] %vm1191, %v1187
    %1266 = vst.msk [vmem:[#allocation2 + $0x250] sm:$0xff] %vm1191, %v1188
    %1267 = vst.msk [vmem:[#allocation2 + $0x258] sm:$0xff] %vm1191, %v1189
    %vm1268 = vcmask 257024
    %1269 = vst.msk [vmem:[#allocation2 + $0x260] sm:$0xf] %vm1268, %v1190
    %1270 = vst.msk [vmem:[#allocation3] sm:$0xff] %vm1191, 0.0
    %1271 = vst.msk [vmem:[#allocation3 + $0x8] sm:$0xff] %vm1191, 0.0
    %1272 = vst.msk [vmem:[#allocation3 + $0x10] sm:$0xff] %vm1191, 0.0
    %1273 = vst.msk [vmem:[#allocation3 + $0x18] sm:$0xff] %vm1191, 0.0
    %1274 = vst.msk [vmem:[#allocation3 + $0x20] sm:$0xff] %vm1191, 0.0
    %1275 = vst.msk [vmem:[#allocation3 + $0x28] sm:$0xff] %vm1191, 0.0
    %1276 = vst.msk [vmem:[#allocation3 + $0x30] sm:$0xff] %vm1191, 0.0
    %1277 = vst.msk [vmem:[#allocation3 + $0x38] sm:$0xff] %vm1191, 0.0
    %1278 = vst.msk [vmem:[#allocation3 + $0x40] sm:$0xff] %vm1191, 0.0
    %1279 = vst.msk [vmem:[#allocation3 + $0x48] sm:$0xff] %vm1191, 0.0
    %1280 = vst.msk [vmem:[#allocation3 + $0x50] sm:$0xff] %vm1191, 0.0
    %1281 = vst.msk [vmem:[#allocation3 + $0x58] sm:$0xff] %vm1191, 0.0
    %1282 = vst.msk [vmem:[#allocation3 + $0x60] sm:$0xff] %vm1191, 0.0
    %1283 = vst.msk [vmem:[#allocation3 + $0x68] sm:$0xff] %vm1191, 0.0
    %1284 = vst.msk [vmem:[#allocation3 + $0x70] sm:$0xff] %vm1191, 0.0
    %1285 = vst.msk [vmem:[#allocation3 + $0x78] sm:$0xff] %vm1191, 0.0
    %1286 = vst.msk [vmem:[#allocation3 + $0x80] sm:$0xff] %vm1191, 0.0
    %1287 = vst.msk [vmem:[#allocation3 + $0x88] sm:$0xff] %vm1191, 0.0
    %1288 = vst.msk [vmem:[#allocation3 + $0x90] sm:$0xff] %vm1191, 0.0
    %1289 = vst.msk [vmem:[#allocation3 + $0x98] sm:$0xff] %vm1191, 0.0
    %1290 = vst.msk [vmem:[#allocation3 + $0xa0] sm:$0xff] %vm1191, 0.0
    %1291 = vst.msk [vmem:[#allocation3 + $0xa8] sm:$0xff] %vm1191, 0.0
    %1292 = vst.msk [vmem:[#allocation3 + $0xb0] sm:$0xff] %vm1191, 0.0
    %1293 = vst.msk [vmem:[#allocation3 + $0xb8] sm:$0xff] %vm1191, 0.0
    %1294 = vst.msk [vmem:[#allocation3 + $0xc0] sm:$0xff] %vm1191, 0.0
    %vm1295 = vcmask 260096
    %1296 = vst.msk [vmem:[#allocation3 + $0xc8] sm:$0x7f] %vm1295, 0.0
    %s1297 = scalar_lea.vmem [#allocation2], 1
    %v1298 = vld [vmem:[%s1297] ss:$2 sm:$0xff]
    %s1299 = scalar_lea.vmem [#allocation2], 2
    %v1300 = vld [vmem:[%s1299] ss:$2 sm:$0xff]
    %s1301 = scalar_lea.vmem [#allocation2], 19
    %v1302 = vld [vmem:[%s1301] ss:$2 sm:$0xff]
    %s1303 = scalar_lea.vmem [#allocation2], 20
    %v1304 = vld [vmem:[%s1303] ss:$2 sm:$0xff]
    %v1305 = vmax.f32 %v1298, %v1300
    %v1306 = vmax.f32 %v1302, %v1304
    %v1307 = vmax.f32 %v1305, %v1306
    %1308 = vst.msk [vmem:[#allocation3 + $0x11] sm:$0xff] %vm1191, %v1307
    %s1309 = scalar_lea.vmem [#allocation2], 37
    %v1310 = vld [vmem:[%s1309] ss:$2 sm:$0xff]
    %s1311 = scalar_lea.vmem [#allocation2], 38
    %v1312 = vld [vmem:[%s1311] ss:$2 sm:$0xff]
    %s1313 = scalar_lea.vmem [#allocation2], 55
    %v1314 = vld [vmem:[%s1313] ss:$2 sm:$0xff]
    %s1315 = scalar_lea.vmem [#allocation2], 56
    %v1316 = vld [vmem:[%s1315] ss:$2 sm:$0xff]
    %v1317 = vmax.f32 %v1310, %v1312
    %v1318 = vmax.f32 %v1314, %v1316
    %v1319 = vmax.f32 %v1317, %v1318
    %1320 = vst.msk [vmem:[#allocation3 + $0x1b] sm:$0xff] %vm1191, %v1319
    %s1321 = scalar_lea.vmem [#allocation2], 73
    %v1322 = vld [vmem:[%s1321] ss:$2 sm:$0xff]
    %s1323 = scalar_lea.vmem [#allocation2], 74
    %v1324 = vld [vmem:[%s1323] ss:$2 sm:$0xff]
    %s1325 = scalar_lea.vmem [#allocation2], 91
    %v1326 = vld [vmem:[%s1325] ss:$2 sm:$0xff]
    %s1327 = scalar_lea.vmem [#allocation2], 92
    %v1328 = vld [vmem:[%s1327] ss:$2 sm:$0xff]
    %v1329 = vmax.f32 %v1322, %v1324
    %v1330 = vmax.f32 %v1326, %v1328
    %v1331 = vmax.f32 %v1329, %v1330
    %1332 = vst.msk [vmem:[#allocation3 + $0x25] sm:$0xff] %vm1191, %v1331
    %s1333 = scalar_lea.vmem [#allocation2], 109
    %v1334 = vld [vmem:[%s1333] ss:$2 sm:$0xff]
    %s1335 = scalar_lea.vmem [#allocation2], 110
    %v1336 = vld [vmem:[%s1335] ss:$2 sm:$0xff]
    %s1337 = scalar_lea.vmem [#allocation2], 127
    %v1338 = vld [vmem:[%s1337] ss:$2 sm:$0xff]
    %s1339 = scalar_lea.vmem [#allocation2], 128
    %v1340 = vld [vmem:[%s1339] ss:$2 sm:$0xff]
    %v1341 = vmax.f32 %v1334, %v1336
    %v1342 = vmax.f32 %v1338, %v1340
    %v1343 = vmax.f32 %v1341, %v1342
    %1344 = vst.msk [vmem:[#allocation3 + $0x2f] sm:$0xff] %vm1191, %v1343
    %s1345 = scalar_lea.vmem [#allocation2], 145
    %v1346 = vld [vmem:[%s1345] ss:$2 sm:$0xff]
    %s1347 = scalar_lea.vmem [#allocation2], 146
    %v1348 = vld [vmem:[%s1347] ss:$2 sm:$0xff]
    %s1349 = scalar_lea.vmem [#allocation2], 163
    %v1350 = vld [vmem:[%s1349] ss:$2 sm:$0xff]
    %s1351 = scalar_lea.vmem [#allocation2], 164
    %v1352 = vld [vmem:[%s1351] ss:$2 sm:$0xff]
    %v1353 = vmax.f32 %v1346, %v1348
    %v1354 = vmax.f32 %v1350, %v1352
    %v1355 = vmax.f32 %v1353, %v1354
    %1356 = vst.msk [vmem:[#allocation3 + $0x39] sm:$0xff] %vm1191, %v1355
    %s1357 = scalar_lea.vmem [#allocation2], 181
    %v1358 = vld [vmem:[%s1357] ss:$2 sm:$0xff]
    %s1359 = scalar_lea.vmem [#allocation2], 182
    %v1360 = vld [vmem:[%s1359] ss:$2 sm:$0xff]
    %s1361 = scalar_lea.vmem [#allocation2], 199
    %v1362 = vld [vmem:[%s1361] ss:$2 sm:$0xff]
    %s1363 = scalar_lea.vmem [#allocation2], 200
    %v1364 = vld [vmem:[%s1363] ss:$2 sm:$0xff]
    %v1365 = vmax.f32 %v1358, %v1360
    %v1366 = vmax.f32 %v1362, %v1364
    %v1367 = vmax.f32 %v1365, %v1366
    %1368 = vst.msk [vmem:[#allocation3 + $0x43] sm:$0xff] %vm1191, %v1367
    %s1369 = scalar_lea.vmem [#allocation2], 217
    %v1370 = vld [vmem:[%s1369] ss:$2 sm:$0xff]
    %s1371 = scalar_lea.vmem [#allocation2], 218
    %v1372 = vld [vmem:[%s1371] ss:$2 sm:$0xff]
    %s1373 = scalar_lea.vmem [#allocation2], 235
    %v1374 = vld [vmem:[%s1373] ss:$2 sm:$0xff]
    %s1375 = scalar_lea.vmem [#allocation2], 236
    %v1376 = vld [vmem:[%s1375] ss:$2 sm:$0xff]
    %v1377 = vmax.f32 %v1370, %v1372
    %v1378 = vmax.f32 %v1374, %v1376
    %v1379 = vmax.f32 %v1377, %v1378
    %1380 = vst.msk [vmem:[#allocation3 + $0x4d] sm:$0xff] %vm1191, %v1379
    %s1381 = scalar_lea.vmem [#allocation2], 253
    %v1382 = vld [vmem:[%s1381] ss:$2 sm:$0xff]
    %s1383 = scalar_lea.vmem [#allocation2], 254
    %v1384 = vld [vmem:[%s1383] ss:$2 sm:$0xff]
    %s1385 = scalar_lea.vmem [#allocation2], 271
    %v1386 = vld [vmem:[%s1385] ss:$2 sm:$0xff]
    %s1387 = scalar_lea.vmem [#allocation2], 272
    %v1388 = vld [vmem:[%s1387] ss:$2 sm:$0xff]
    %v1389 = vmax.f32 %v1382, %v1384
    %v1390 = vmax.f32 %v1386, %v1388
    %v1391 = vmax.f32 %v1389, %v1390
    %1392 = vst.msk [vmem:[#allocation3 + $0x57] sm:$0xff] %vm1191, %v1391
    %s1393 = scalar_lea.vmem [#allocation2], 325
    %v1394 = vld [vmem:[%s1393] ss:$2 sm:$0xff]
    %s1395 = scalar_lea.vmem [#allocation2], 326
    %v1396 = vld [vmem:[%s1395] ss:$2 sm:$0xff]
    %s1397 = scalar_lea.vmem [#allocation2], 343
    %v1398 = vld [vmem:[%s1397] ss:$2 sm:$0xff]
    %s1399 = scalar_lea.vmem [#allocation2], 344
    %v1400 = vld [vmem:[%s1399] ss:$2 sm:$0xff]
    %v1401 = vmax.f32 %v1394, %v1396
    %v1402 = vmax.f32 %v1398, %v1400
    %v1403 = vmax.f32 %v1401, %v1402
    %1404 = vst.msk [vmem:[#allocation3 + $0x75] sm:$0xff] %vm1191, %v1403
    %s1405 = scalar_lea.vmem [#allocation2], 361
    %v1406 = vld [vmem:[%s1405] ss:$2 sm:$0xff]
    %s1407 = scalar_lea.vmem [#allocation2], 362
    %v1408 = vld [vmem:[%s1407] ss:$2 sm:$0xff]
    %s1409 = scalar_lea.vmem [#allocation2], 379
    %v1410 = vld [vmem:[%s1409] ss:$2 sm:$0xff]
    %s1411 = scalar_lea.vmem [#allocation2], 380
    %v1412 = vld [vmem:[%s1411] ss:$2 sm:$0xff]
    %v1413 = vmax.f32 %v1406, %v1408
    %v1414 = vmax.f32 %v1410, %v1412
    %v1415 = vmax.f32 %v1413, %v1414
    %1416 = vst.msk [vmem:[#allocation3 + $0x7f] sm:$0xff] %vm1191, %v1415
    %s1417 = scalar_lea.vmem [#allocation2], 397
    %v1418 = vld [vmem:[%s1417] ss:$2 sm:$0xff]
    %s1419 = scalar_lea.vmem [#allocation2], 398
    %v1420 = vld [vmem:[%s1419] ss:$2 sm:$0xff]
    %s1421 = scalar_lea.vmem [#allocation2], 415
    %v1422 = vld [vmem:[%s1421] ss:$2 sm:$0xff]
    %s1423 = scalar_lea.vmem [#allocation2], 416
    %v1424 = vld [vmem:[%s1423] ss:$2 sm:$0xff]
    %v1425 = vmax.f32 %v1418, %v1420
    %v1426 = vmax.f32 %v1422, %v1424
    %v1427 = vmax.f32 %v1425, %v1426
    %1428 = vst.msk [vmem:[#allocation3 + $0x89] sm:$0xff] %vm1191, %v1427
    %s1429 = scalar_lea.vmem [#allocation2], 433
    %v1430 = vld [vmem:[%s1429] ss:$2 sm:$0xff]
    %s1431 = scalar_lea.vmem [#allocation2], 434
    %v1432 = vld [vmem:[%s1431] ss:$2 sm:$0xff]
    %s1433 = scalar_lea.vmem [#allocation2], 451
    %v1434 = vld [vmem:[%s1433] ss:$2 sm:$0xff]
    %s1435 = scalar_lea.vmem [#allocation2], 452
    %v1436 = vld [vmem:[%s1435] ss:$2 sm:$0xff]
    %v1437 = vmax.f32 %v1430, %v1432
    %v1438 = vmax.f32 %v1434, %v1436
    %v1439 = vmax.f32 %v1437, %v1438
    %1440 = vst.msk [vmem:[#allocation3 + $0x93] sm:$0xff] %vm1191, %v1439
    %s1441 = scalar_lea.vmem [#allocation2], 469
    %v1442 = vld [vmem:[%s1441] ss:$2 sm:$0xff]
    %s1443 = scalar_lea.vmem [#allocation2], 470
    %v1444 = vld [vmem:[%s1443] ss:$2 sm:$0xff]
    %s1445 = scalar_lea.vmem [#allocation2], 487
    %v1446 = vld [vmem:[%s1445] ss:$2 sm:$0xff]
    %s1447 = scalar_lea.vmem [#allocation2], 488
    %v1448 = vld [vmem:[%s1447] ss:$2 sm:$0xff]
    %v1449 = vmax.f32 %v1442, %v1444
    %v1450 = vmax.f32 %v1446, %v1448
    %v1451 = vmax.f32 %v1449, %v1450
    %1452 = vst.msk [vmem:[#allocation3 + $0x9d] sm:$0xff] %vm1191, %v1451
    %s1453 = scalar_lea.vmem [#allocation2], 505
    %v1454 = vld [vmem:[%s1453] ss:$2 sm:$0xff]
    %s1455 = scalar_lea.vmem [#allocation2], 506
    %v1456 = vld [vmem:[%s1455] ss:$2 sm:$0xff]
    %s1457 = scalar_lea.vmem [#allocation2], 523
    %v1458 = vld [vmem:[%s1457] ss:$2 sm:$0xff]
    %s1459 = scalar_lea.vmem [#allocation2], 524
    %v1460 = vld [vmem:[%s1459] ss:$2 sm:$0xff]
    %v1461 = vmax.f32 %v1454, %v1456
    %v1462 = vmax.f32 %v1458, %v1460
    %v1463 = vmax.f32 %v1461, %v1462
    %1464 = vst.msk [vmem:[#allocation3 + $0xa7] sm:$0xff] %vm1191, %v1463
    %s1465 = scalar_lea.vmem [#allocation2], 541
    %v1466 = vld [vmem:[%s1465] ss:$2 sm:$0xff]
    %s1467 = scalar_lea.vmem [#allocation2], 542
    %v1468 = vld [vmem:[%s1467] ss:$2 sm:$0xff]
    %s1469 = scalar_lea.vmem [#allocation2], 559
    %v1470 = vld [vmem:[%s1469] ss:$2 sm:$0xff]
    %s1471 = scalar_lea.vmem [#allocation2], 560
    %v1472 = vld [vmem:[%s1471] ss:$2 sm:$0xff]
    %v1473 = vmax.f32 %v1466, %v1468
    %v1474 = vmax.f32 %v1470, %v1472
    %v1475 = vmax.f32 %v1473, %v1474
    %1476 = vst.msk [vmem:[#allocation3 + $0xb1] sm:$0xff] %vm1191, %v1475
    %s1477 = scalar_lea.vmem [#allocation2], 577
    %v1478 = vld [vmem:[%s1477] ss:$2 sm:$0xff]
    %s1479 = scalar_lea.vmem [#allocation2], 578
    %v1480 = vld [vmem:[%s1479] ss:$2 sm:$0xff]
    %s1481 = scalar_lea.vmem [#allocation2], 595
    %v1482 = vld [vmem:[%s1481] ss:$2 sm:$0xff]
    %s1483 = scalar_lea.vmem [#allocation2], 596
    %v1484 = vld [vmem:[%s1483] ss:$2 sm:$0xff]
    %v1485 = vmax.f32 %v1478, %v1480
    %v1486 = vmax.f32 %v1482, %v1484
    %v1487 = vmax.f32 %v1485, %v1486
    %1488 = vst.msk [vmem:[#allocation3 + $0xbb] sm:$0xff] %vm1191, %v1487
    %v1489 = vld [vmem:[#allocation3 + $0x5] sm:$0xff]
    %v1490 = vld [vmem:[#allocation3 + $0xd] sm:$0xff]
    %v1491 = vld [vmem:[#allocation3 + $0x15] sm:$0xff]
    %v1492 = vld [vmem:[#allocation3 + $0x1d] sm:$0xff]
    %v1493 = vld [vmem:[#allocation3 + $0x25] sm:$0xff]
    %v1494 = vld [vmem:[#allocation3 + $0x2d] sm:$0xff]
    %v1495 = vld [vmem:[#allocation3 + $0x35] sm:$0xff]
    %v1496 = vld [vmem:[#allocation3 + $0x3d] sm:$0xff]
    %v1497 = vld [vmem:[#allocation3 + $0x45] sm:$0xff]
    %v1498 = vld [vmem:[#allocation3 + $0x4d] sm:$0xff]
    %v1499 = vld [vmem:[#allocation3 + $0x55] sm:$0xff]
    %v1500 = vld [vmem:[#allocation3 + $0x5d] sm:$0xff]
    %v1501 = vld [vmem:[#allocation3 + $0x65] sm:$0xff]
    %v1502 = vld [vmem:[#allocation3 + $0x6d] sm:$0xff]
    %v1503 = vld [vmem:[#allocation3 + $0x75] sm:$0xff]
    %v1504 = vld [vmem:[#allocation3 + $0x7d] sm:$0xff]
    %v1505 = vld [vmem:[#allocation3 + $0x85] sm:$0xff]
    %v1506 = vld [vmem:[#allocation3 + $0x8d] sm:$0xff]
    %v1507 = vld [vmem:[#allocation3 + $0x95] sm:$0xff]
    %v1508 = vld [vmem:[#allocation3 + $0x9d] sm:$0xff]
    %v1509 = vld [vmem:[#allocation3 + $0xa5] sm:$0xff]
    %v1510 = vld [vmem:[#allocation3 + $0xad] sm:$0xff]
    %v1511 = vld [vmem:[#allocation3 + $0xb5] sm:$0xf]
    %v1512 = vld [vmem:[#allocation3 + $0x6] sm:$0xff]
    %v1513 = vld [vmem:[#allocation3 + $0xe] sm:$0xff]
    %v1514 = vld [vmem:[#allocation3 + $0x16] sm:$0xff]
    %v1515 = vld [vmem:[#allocation3 + $0x1e] sm:$0xff]
    %v1516 = vld [vmem:[#allocation3 + $0x26] sm:$0xff]
    %v1517 = vld [vmem:[#allocation3 + $0x2e] sm:$0xff]
    %v1518 = vld [vmem:[#allocation3 + $0x36] sm:$0xff]
    %v1519 = vld [vmem:[#allocation3 + $0x3e] sm:$0xff]
    %v1520 = vld [vmem:[#allocation3 + $0x46] sm:$0xff]
    %v1521 = vld [vmem:[#allocation3 + $0x4e] sm:$0xff]
    %v1522 = vld [vmem:[#allocation3 + $0x56] sm:$0xff]
    %v1523 = vld [vmem:[#allocation3 + $0x5e] sm:$0xff]
    %v1524 = vld [vmem:[#allocation3 + $0x66] sm:$0xff]
    %v1525 = vld [vmem:[#allocation3 + $0x6e] sm:$0xff]
    %v1526 = vld [vmem:[#allocation3 + $0x76] sm:$0xff]
    %v1527 = vld [vmem:[#allocation3 + $0x7e] sm:$0xff]
    %v1528 = vld [vmem:[#allocation3 + $0x86] sm:$0xff]
    %v1529 = vld [vmem:[#allocation3 + $0x8e] sm:$0xff]
    %v1530 = vld [vmem:[#allocation3 + $0x96] sm:$0xff]
    %v1531 = vld [vmem:[#allocation3 + $0x9e] sm:$0xff]
    %v1532 = vld [vmem:[#allocation3 + $0xa6] sm:$0xff]
    %v1533 = vld [vmem:[#allocation3 + $0xae] sm:$0xff]
    %v1534 = vld [vmem:[#allocation3 + $0xb6] sm:$0xf]
    %v1535 = vld [vmem:[#allocation3 + $0x7] sm:$0xff]
    %v1536 = vld [vmem:[#allocation3 + $0xf] sm:$0xff]
    %v1537 = vld [vmem:[#allocation3 + $0x17] sm:$0xff]
    %v1538 = vld [vmem:[#allocation3 + $0x1f] sm:$0xff]
    %v1539 = vld [vmem:[#allocation3 + $0x27] sm:$0xff]
    %v1540 = vld [vmem:[#allocation3 + $0x2f] sm:$0xff]
    %v1541 = vld [vmem:[#allocation3 + $0x37] sm:$0xff]
    %v1542 = vld [vmem:[#allocation3 + $0x3f] sm:$0xff]
    %v1543 = vld [vmem:[#allocation3 + $0x47] sm:$0xff]
    %v1544 = vld [vmem:[#allocation3 + $0x4f] sm:$0xff]
    %v1545 = vld [vmem:[#allocation3 + $0x57] sm:$0xff]
    %v1546 = vld [vmem:[#allocation3 + $0x5f] sm:$0xff]
    %v1547 = vld [vmem:[#allocation3 + $0x67] sm:$0xff]
    %v1548 = vld [vmem:[#allocation3 + $0x6f] sm:$0xff]
    %v1549 = vld [vmem:[#allocation3 + $0x77] sm:$0xff]
    %v1550 = vld [vmem:[#allocation3 + $0x7f] sm:$0xff]
    %v1551 = vld [vmem:[#allocation3 + $0x87] sm:$0xff]
    %v1552 = vld [vmem:[#allocation3 + $0x8f] sm:$0xff]
    %v1553 = vld [vmem:[#allocation3 + $0x97] sm:$0xff]
    %v1554 = vld [vmem:[#allocation3 + $0x9f] sm:$0xff]
    %v1555 = vld [vmem:[#allocation3 + $0xa7] sm:$0xff]
    %v1556 = vld [vmem:[#allocation3 + $0xaf] sm:$0xff]
    %v1557 = vld [vmem:[#allocation3 + $0xb7] sm:$0xf]
    %v1558 = vld [vmem:[#allocation3 + $0xb7] sm:$0xff]
    %v1559 = vld [vmem:[#allocation3 + $0xbf] sm:$0xf]
    %v1560 = vld [vmem:[#allocation3 + $0x10] sm:$0xff]
    %v1561 = vld [vmem:[#allocation3 + $0x18] sm:$0xff]
    %v1562 = vld [vmem:[#allocation3 + $0x20] sm:$0xff]
    %v1563 = vld [vmem:[#allocation3 + $0x28] sm:$0xff]
    %v1564 = vld [vmem:[#allocation3 + $0x30] sm:$0xff]
    %v1565 = vld [vmem:[#allocation3 + $0x38] sm:$0xff]
    %v1566 = vld [vmem:[#allocation3 + $0x40] sm:$0xff]
    %v1567 = vld [vmem:[#allocation3 + $0x48] sm:$0xff]
    %v1568 = vld [vmem:[#allocation3 + $0x50] sm:$0xff]
    %v1569 = vld [vmem:[#allocation3 + $0x58] sm:$0xff]
    %v1570 = vld [vmem:[#allocation3 + $0x60] sm:$0xff]
    %v1571 = vld [vmem:[#allocation3 + $0x68] sm:$0xff]
    %v1572 = vld [vmem:[#allocation3 + $0x70] sm:$0xff]
    %v1573 = vld [vmem:[#allocation3 + $0x78] sm:$0xff]
    %v1574 = vld [vmem:[#allocation3 + $0x80] sm:$0xff]
    %v1575 = vld [vmem:[#allocation3 + $0x88] sm:$0xff]
    %v1576 = vld [vmem:[#allocation3 + $0x90] sm:$0xff]
    %v1577 = vld [vmem:[#allocation3 + $0x98] sm:$0xff]
    %v1578 = vld [vmem:[#allocation3 + $0xa0] sm:$0xff]
    %v1579 = vld [vmem:[#allocation3 + $0xa8] sm:$0xff]
    %v1580 = vld [vmem:[#allocation3 + $0xb0] sm:$0xff]
    %v1581 = vld [vmem:[#allocation3 + $0xb8] sm:$0xff]
    %v1582 = vld [vmem:[#allocation3 + $0xc0] sm:$0xf]
    %v1583 = vld [vmem:[#allocation3 + $0x11] sm:$0xff]
    %v1584 = vld [vmem:[#allocation3 + $0x19] sm:$0xff]
    %v1585 = vld [vmem:[#allocation3 + $0x21] sm:$0xff]
    %v1586 = vld [vmem:[#allocation3 + $0x29] sm:$0xff]
    %v1587 = vld [vmem:[#allocation3 + $0x31] sm:$0xff]
    %v1588 = vld [vmem:[#allocation3 + $0x39] sm:$0xff]
    %v1589 = vld [vmem:[#allocation3 + $0x41] sm:$0xff]
    %v1590 = vld [vmem:[#allocation3 + $0x49] sm:$0xff]
    %v1591 = vld [vmem:[#allocation3 + $0x51] sm:$0xff]
    %v1592 = vld [vmem:[#allocation3 + $0x59] sm:$0xff]
    %v1593 = vld [vmem:[#allocation3 + $0x61] sm:$0xff]
    %v1594 = vld [vmem:[#allocation3 + $0x69] sm:$0xff]
    %v1595 = vld [vmem:[#allocation3 + $0x71] sm:$0xff]
    %v1596 = vld [vmem:[#allocation3 + $0x79] sm:$0xff]
    %v1597 = vld [vmem:[#allocation3 + $0x81] sm:$0xff]
    %v1598 = vld [vmem:[#allocation3 + $0x89] sm:$0xff]
    %v1599 = vld [vmem:[#allocation3 + $0x91] sm:$0xff]
    %v1600 = vld [vmem:[#allocation3 + $0x99] sm:$0xff]
    %v1601 = vld [vmem:[#allocation3 + $0xa1] sm:$0xff]
    %v1602 = vld [vmem:[#allocation3 + $0xa9] sm:$0xff]
    %v1603 = vld [vmem:[#allocation3 + $0xb1] sm:$0xff]
    %v1604 = vld [vmem:[#allocation3 + $0xb9] sm:$0xff]
    %v1605 = vld [vmem:[#allocation3 + $0xc1] sm:$0xf]
    %v1606 = vld [vmem:[#allocation3 + $0xc1] sm:$0xff]
    %v1607 = vld [vmem:[#allocation3 + $0xc9] sm:$0xf]
    %v1608 = vld [vmem:[#allocation3 + $0x1a] sm:$0xff]
    %v1609 = vld [vmem:[#allocation3 + $0x22] sm:$0xff]
    %v1610 = vld [vmem:[#allocation3 + $0x2a] sm:$0xff]
    %v1611 = vld [vmem:[#allocation3 + $0x32] sm:$0xff]
    %v1612 = vld [vmem:[#allocation3 + $0x3a] sm:$0xff]
    %v1613 = vld [vmem:[#allocation3 + $0x42] sm:$0xff]
    %v1614 = vld [vmem:[#allocation3 + $0x4a] sm:$0xff]
    %v1615 = vld [vmem:[#allocation3 + $0x52] sm:$0xff]
    %v1616 = vld [vmem:[#allocation3 + $0x5a] sm:$0xff]
    %v1617 = vld [vmem:[#allocation3 + $0x62] sm:$0xff]
    %v1618 = vld [vmem:[#allocation3 + $0x6a] sm:$0xff]
    %v1619 = vld [vmem:[#allocation3 + $0x72] sm:$0xff]
    %v1620 = vld [vmem:[#allocation3 + $0x7a] sm:$0xff]
    %v1621 = vld [vmem:[#allocation3 + $0x82] sm:$0xff]
    %v1622 = vld [vmem:[#allocation3 + $0x8a] sm:$0xff]
    %v1623 = vld [vmem:[#allocation3 + $0x92] sm:$0xff]
    %v1624 = vld [vmem:[#allocation3 + $0x9a] sm:$0xff]
    %v1625 = vld [vmem:[#allocation3 + $0xa2] sm:$0xff]
    %v1626 = vld [vmem:[#allocation3 + $0xaa] sm:$0xff]
    %v1627 = vld [vmem:[#allocation3 + $0xb2] sm:$0xff]
    %v1628 = vld [vmem:[#allocation3 + $0xba] sm:$0xff]
    %v1629 = vld [vmem:[#allocation3 + $0xc2] sm:$0xff]
    %v1630 = vld [vmem:[#allocation3 + $0xca] sm:$0xf]
    %v1631 = vld [vmem:[#allocation3 + $0x1b] sm:$0xff]
    %v1632 = vld [vmem:[#allocation3 + $0x23] sm:$0xff]
    %v1633 = vld [vmem:[#allocation3 + $0x2b] sm:$0xff]
    %v1634 = vld [vmem:[#allocation3 + $0x33] sm:$0xff]
    %v1635 = vld [vmem:[#allocation3 + $0x3b] sm:$0xff]
    %v1636 = vld [vmem:[#allocation3 + $0x43] sm:$0xff]
    %v1637 = vld [vmem:[#allocation3 + $0x4b] sm:$0xff]
    %v1638 = vld [vmem:[#allocation3 + $0x53] sm:$0xff]
    %v1639 = vld [vmem:[#allocation3 + $0x5b] sm:$0xff]
    %v1640 = vld [vmem:[#allocation3 + $0x63] sm:$0xff]
    %v1641 = vld [vmem:[#allocation3 + $0x6b] sm:$0xff]
    %v1642 = vld [vmem:[#allocation3 + $0x73] sm:$0xff]
    %v1643 = vld [vmem:[#allocation3 + $0x7b] sm:$0xff]
    %v1644 = vld [vmem:[#allocation3 + $0x83] sm:$0xff]
    %v1645 = vld [vmem:[#allocation3 + $0x8b] sm:$0xff]
    %v1646 = vld [vmem:[#allocation3 + $0x93] sm:$0xff]
    %v1647 = vld [vmem:[#allocation3 + $0x9b] sm:$0xff]
    %v1648 = vld [vmem:[#allocation3 + $0xa3] sm:$0xff]
    %v1649 = vld [vmem:[#allocation3 + $0xab] sm:$0xff]
    %v1650 = vld [vmem:[#allocation3 + $0xb3] sm:$0xff]
    %v1651 = vld [vmem:[#allocation3 + $0xbb] sm:$0xff]
    %v1652 = vld [vmem:[#allocation3 + $0xc3] sm:$0xff]
    %v1653 = vld [vmem:[#allocation3 + $0xcb] sm:$0xf]
    %1677 = vrot.lane.b32.xlu0 %v1512, 32
    %v1678 = vpop.permute.xlu0 %1677
    %1679 = vrot.lane.b32.xlu0 %v1513, 32
    %v1680 = vpop.permute.xlu0 %1679
    %1681 = vrot.lane.b32.xlu0 %v1514, 32
    %v1682 = vpop.permute.xlu0 %1681
    %1683 = vrot.lane.b32.xlu0 %v1515, 32
    %v1684 = vpop.permute.xlu0 %1683
    %1685 = vrot.lane.b32.xlu0 %v1516, 32
    %v1686 = vpop.permute.xlu0 %1685
    %1687 = vrot.lane.b32.xlu0 %v1517, 32
    %v1688 = vpop.permute.xlu0 %1687
    %1689 = vrot.lane.b32.xlu0 %v1518, 32
    %v1690 = vpop.permute.xlu0 %1689
    %1691 = vrot.lane.b32.xlu0 %v1519, 32
    %v1692 = vpop.permute.xlu0 %1691
    %1693 = vrot.lane.b32.xlu0 %v1520, 32
    %v1694 = vpop.permute.xlu0 %1693
    %1695 = vrot.lane.b32.xlu0 %v1521, 32
    %v1696 = vpop.permute.xlu0 %1695
    %1697 = vrot.lane.b32.xlu0 %v1522, 32
    %v1698 = vpop.permute.xlu0 %1697
    %1699 = vrot.lane.b32.xlu0 %v1523, 32
    %v1700 = vpop.permute.xlu0 %1699
    %1701 = vrot.lane.b32.xlu0 %v1524, 32
    %v1702 = vpop.permute.xlu0 %1701
    %1703 = vrot.lane.b32.xlu0 %v1525, 32
    %v1704 = vpop.permute.xlu0 %1703
    %1705 = vrot.lane.b32.xlu0 %v1526, 32
    %v1706 = vpop.permute.xlu0 %1705
    %1707 = vrot.lane.b32.xlu0 %v1527, 32
    %v1708 = vpop.permute.xlu0 %1707
    %1709 = vrot.lane.b32.xlu0 %v1528, 32
    %v1710 = vpop.permute.xlu0 %1709
    %1711 = vrot.lane.b32.xlu0 %v1529, 32
    %v1712 = vpop.permute.xlu0 %1711
    %1713 = vrot.lane.b32.xlu0 %v1530, 32
    %v1714 = vpop.permute.xlu0 %1713
    %1715 = vrot.lane.b32.xlu0 %v1531, 32
    %v1716 = vpop.permute.xlu0 %1715
    %1717 = vrot.lane.b32.xlu0 %v1532, 32
    %v1718 = vpop.permute.xlu0 %1717
    %1719 = vrot.lane.b32.xlu0 %v1533, 32
    %v1720 = vpop.permute.xlu0 %1719
    %1721 = vrot.lane.b32.xlu0 %v1534, 32
    %v1722 = vpop.permute.xlu0 %1721
    %1769 = vrot.lane.b32.xlu0 %v1535, 64
    %v1770 = vpop.permute.xlu0 %1769
    %1771 = vrot.lane.b32.xlu0 %v1536, 64
    %v1772 = vpop.permute.xlu0 %1771
    %1773 = vrot.lane.b32.xlu0 %v1537, 64
    %v1774 = vpop.permute.xlu0 %1773
    %1775 = vrot.lane.b32.xlu0 %v1538, 64
    %v1776 = vpop.permute.xlu0 %1775
    %1777 = vrot.lane.b32.xlu0 %v1539, 64
    %v1778 = vpop.permute.xlu0 %1777
    %1779 = vrot.lane.b32.xlu0 %v1540, 64
    %v1780 = vpop.permute.xlu0 %1779
    %1781 = vrot.lane.b32.xlu0 %v1541, 64
    %v1782 = vpop.permute.xlu0 %1781
    %1783 = vrot.lane.b32.xlu0 %v1542, 64
    %v1784 = vpop.permute.xlu0 %1783
    %1785 = vrot.lane.b32.xlu0 %v1543, 64
    %v1786 = vpop.permute.xlu0 %1785
    %1787 = vrot.lane.b32.xlu0 %v1544, 64
    %v1788 = vpop.permute.xlu0 %1787
    %1789 = vrot.lane.b32.xlu0 %v1545, 64
    %v1790 = vpop.permute.xlu0 %1789
    %1791 = vrot.lane.b32.xlu0 %v1546, 64
    %v1792 = vpop.permute.xlu0 %1791
    %1793 = vrot.lane.b32.xlu0 %v1547, 64
    %v1794 = vpop.permute.xlu0 %1793
    %1795 = vrot.lane.b32.xlu0 %v1548, 64
    %v1796 = vpop.permute.xlu0 %1795
    %1797 = vrot.lane.b32.xlu0 %v1549, 64
    %v1798 = vpop.permute.xlu0 %1797
    %1799 = vrot.lane.b32.xlu0 %v1550, 64
    %v1800 = vpop.permute.xlu0 %1799
    %1801 = vrot.lane.b32.xlu0 %v1551, 64
    %v1802 = vpop.permute.xlu0 %1801
    %1803 = vrot.lane.b32.xlu0 %v1552, 64
    %v1804 = vpop.permute.xlu0 %1803
    %1805 = vrot.lane.b32.xlu0 %v1553, 64
    %v1806 = vpop.permute.xlu0 %1805
    %1807 = vrot.lane.b32.xlu0 %v1554, 64
    %v1808 = vpop.permute.xlu0 %1807
    %1809 = vrot.lane.b32.xlu0 %v1555, 64
    %v1810 = vpop.permute.xlu0 %1809
    %1811 = vrot.lane.b32.xlu0 %v1556, 64
    %v1812 = vpop.permute.xlu0 %1811
    %1813 = vrot.lane.b32.xlu0 %v1557, 64
    %v1814 = vpop.permute.xlu0 %1813
    %1840 = vrot.lane.b32.xlu0 %v1536, 96
    %v1841 = vpop.permute.xlu0 %1840
    %1842 = vrot.lane.b32.xlu0 %v1537, 96
    %v1843 = vpop.permute.xlu0 %1842
    %1844 = vrot.lane.b32.xlu0 %v1538, 96
    %v1845 = vpop.permute.xlu0 %1844
    %1846 = vrot.lane.b32.xlu0 %v1539, 96
    %v1847 = vpop.permute.xlu0 %1846
    %1848 = vrot.lane.b32.xlu0 %v1540, 96
    %v1849 = vpop.permute.xlu0 %1848
    %1850 = vrot.lane.b32.xlu0 %v1541, 96
    %v1851 = vpop.permute.xlu0 %1850
    %1852 = vrot.lane.b32.xlu0 %v1542, 96
    %v1853 = vpop.permute.xlu0 %1852
    %1854 = vrot.lane.b32.xlu0 %v1543, 96
    %v1855 = vpop.permute.xlu0 %1854
    %1856 = vrot.lane.b32.xlu0 %v1544, 96
    %v1857 = vpop.permute.xlu0 %1856
    %1858 = vrot.lane.b32.xlu0 %v1545, 96
    %v1859 = vpop.permute.xlu0 %1858
    %1860 = vrot.lane.b32.xlu0 %v1546, 96
    %v1861 = vpop.permute.xlu0 %1860
    %1862 = vrot.lane.b32.xlu0 %v1547, 96
    %v1863 = vpop.permute.xlu0 %1862
    %1864 = vrot.lane.b32.xlu0 %v1548, 96
    %v1865 = vpop.permute.xlu0 %1864
    %1866 = vrot.lane.b32.xlu0 %v1549, 96
    %v1867 = vpop.permute.xlu0 %1866
    %1868 = vrot.lane.b32.xlu0 %v1550, 96
    %v1869 = vpop.permute.xlu0 %1868
    %1870 = vrot.lane.b32.xlu0 %v1551, 96
    %v1871 = vpop.permute.xlu0 %1870
    %1872 = vrot.lane.b32.xlu0 %v1552, 96
    %v1873 = vpop.permute.xlu0 %1872
    %1874 = vrot.lane.b32.xlu0 %v1553, 96
    %v1875 = vpop.permute.xlu0 %1874
    %1876 = vrot.lane.b32.xlu0 %v1554, 96
    %v1877 = vpop.permute.xlu0 %1876
    %1878 = vrot.lane.b32.xlu0 %v1555, 96
    %v1879 = vpop.permute.xlu0 %1878
    %1880 = vrot.lane.b32.xlu0 %v1556, 96
    %v1881 = vpop.permute.xlu0 %1880
    %1882 = vrot.lane.b32.xlu0 %v1558, 96
    %v1883 = vpop.permute.xlu0 %1882
    %1884 = vrot.lane.b32.xlu0 %v1559, 96
    %v1885 = vpop.permute.xlu0 %1884
    %1932 = vrot.lane.b32.xlu0 %v1583, 32
    %v1933 = vpop.permute.xlu0 %1932
    %1934 = vrot.lane.b32.xlu0 %v1584, 32
    %v1935 = vpop.permute.xlu0 %1934
    %1936 = vrot.lane.b32.xlu0 %v1585, 32
    %v1937 = vpop.permute.xlu0 %1936
    %1938 = vrot.lane.b32.xlu0 %v1586, 32
    %v1939 = vpop.permute.xlu0 %1938
    %1940 = vrot.lane.b32.xlu0 %v1587, 32
    %v1941 = vpop.permute.xlu0 %1940
    %1942 = vrot.lane.b32.xlu0 %v1588, 32
    %v1943 = vpop.permute.xlu0 %1942
    %1944 = vrot.lane.b32.xlu0 %v1589, 32
    %v1945 = vpop.permute.xlu0 %1944
    %1946 = vrot.lane.b32.xlu0 %v1590, 32
    %v1947 = vpop.permute.xlu0 %1946
    %1948 = vrot.lane.b32.xlu0 %v1591, 32
    %v1949 = vpop.permute.xlu0 %1948
    %1950 = vrot.lane.b32.xlu0 %v1592, 32
    %v1951 = vpop.permute.xlu0 %1950
    %1952 = vrot.lane.b32.xlu0 %v1593, 32
    %v1953 = vpop.permute.xlu0 %1952
    %1954 = vrot.lane.b32.xlu0 %v1594, 32
    %v1955 = vpop.permute.xlu0 %1954
    %1956 = vrot.lane.b32.xlu0 %v1595, 32
    %v1957 = vpop.permute.xlu0 %1956
    %1958 = vrot.lane.b32.xlu0 %v1596, 32
    %v1959 = vpop.permute.xlu0 %1958
    %1960 = vrot.lane.b32.xlu0 %v1597, 32
    %v1961 = vpop.permute.xlu0 %1960
    %1962 = vrot.lane.b32.xlu0 %v1598, 32
    %v1963 = vpop.permute.xlu0 %1962
    %1964 = vrot.lane.b32.xlu0 %v1599, 32
    %v1965 = vpop.permute.xlu0 %1964
    %1966 = vrot.lane.b32.xlu0 %v1600, 32
    %v1967 = vpop.permute.xlu0 %1966
    %1968 = vrot.lane.b32.xlu0 %v1601, 32
    %v1969 = vpop.permute.xlu0 %1968
    %1970 = vrot.lane.b32.xlu0 %v1602, 32
    %v1971 = vpop.permute.xlu0 %1970
    %1972 = vrot.lane.b32.xlu0 %v1603, 32
    %v1973 = vpop.permute.xlu0 %1972
    %1974 = vrot.lane.b32.xlu0 %v1604, 32
    %v1975 = vpop.permute.xlu0 %1974
    %1976 = vrot.lane.b32.xlu0 %v1605, 32
    %v1977 = vpop.permute.xlu0 %1976
    %2003 = vrot.lane.b32.xlu0 %v1584, 64
    %v2004 = vpop.permute.xlu0 %2003
    %2005 = vrot.lane.b32.xlu0 %v1585, 64
    %v2006 = vpop.permute.xlu0 %2005
    %2007 = vrot.lane.b32.xlu0 %v1586, 64
    %v2008 = vpop.permute.xlu0 %2007
    %2009 = vrot.lane.b32.xlu0 %v1587, 64
    %v2010 = vpop.permute.xlu0 %2009
    %2011 = vrot.lane.b32.xlu0 %v1588, 64
    %v2012 = vpop.permute.xlu0 %2011
    %2013 = vrot.lane.b32.xlu0 %v1589, 64
    %v2014 = vpop.permute.xlu0 %2013
    %2015 = vrot.lane.b32.xlu0 %v1590, 64
    %v2016 = vpop.permute.xlu0 %2015
    %2017 = vrot.lane.b32.xlu0 %v1591, 64
    %v2018 = vpop.permute.xlu0 %2017
    %2019 = vrot.lane.b32.xlu0 %v1592, 64
    %v2020 = vpop.permute.xlu0 %2019
    %2021 = vrot.lane.b32.xlu0 %v1593, 64
    %v2022 = vpop.permute.xlu0 %2021
    %2023 = vrot.lane.b32.xlu0 %v1594, 64
    %v2024 = vpop.permute.xlu0 %2023
    %2025 = vrot.lane.b32.xlu0 %v1595, 64
    %v2026 = vpop.permute.xlu0 %2025
    %2027 = vrot.lane.b32.xlu0 %v1596, 64
    %v2028 = vpop.permute.xlu0 %2027
    %2029 = vrot.lane.b32.xlu0 %v1597, 64
    %v2030 = vpop.permute.xlu0 %2029
    %2031 = vrot.lane.b32.xlu0 %v1598, 64
    %v2032 = vpop.permute.xlu0 %2031
    %2033 = vrot.lane.b32.xlu0 %v1599, 64
    %v2034 = vpop.permute.xlu0 %2033
    %2035 = vrot.lane.b32.xlu0 %v1600, 64
    %v2036 = vpop.permute.xlu0 %2035
    %2037 = vrot.lane.b32.xlu0 %v1601, 64
    %v2038 = vpop.permute.xlu0 %2037
    %2039 = vrot.lane.b32.xlu0 %v1602, 64
    %v2040 = vpop.permute.xlu0 %2039
    %2041 = vrot.lane.b32.xlu0 %v1603, 64
    %v2042 = vpop.permute.xlu0 %2041
    %2043 = vrot.lane.b32.xlu0 %v1604, 64
    %v2044 = vpop.permute.xlu0 %2043
    %2045 = vrot.lane.b32.xlu0 %v1606, 64
    %v2046 = vpop.permute.xlu0 %2045
    %2047 = vrot.lane.b32.xlu0 %v1607, 64
    %v2048 = vpop.permute.xlu0 %2047
    %2095 = vrot.lane.b32.xlu0 %v1608, 96
    %v2096 = vpop.permute.xlu0 %2095
    %2097 = vrot.lane.b32.xlu0 %v1609, 96
    %v2098 = vpop.permute.xlu0 %2097
    %2099 = vrot.lane.b32.xlu0 %v1610, 96
    %v2100 = vpop.permute.xlu0 %2099
    %2101 = vrot.lane.b32.xlu0 %v1611, 96
    %v2102 = vpop.permute.xlu0 %2101
    %2103 = vrot.lane.b32.xlu0 %v1612, 96
    %v2104 = vpop.permute.xlu0 %2103
    %2105 = vrot.lane.b32.xlu0 %v1613, 96
    %v2106 = vpop.permute.xlu0 %2105
    %2107 = vrot.lane.b32.xlu0 %v1614, 96
    %v2108 = vpop.permute.xlu0 %2107
    %2109 = vrot.lane.b32.xlu0 %v1615, 96
    %v2110 = vpop.permute.xlu0 %2109
    %2111 = vrot.lane.b32.xlu0 %v1616, 96
    %v2112 = vpop.permute.xlu0 %2111
    %2113 = vrot.lane.b32.xlu0 %v1617, 96
    %v2114 = vpop.permute.xlu0 %2113
    %2115 = vrot.lane.b32.xlu0 %v1618, 96
    %v2116 = vpop.permute.xlu0 %2115
    %2117 = vrot.lane.b32.xlu0 %v1619, 96
    %v2118 = vpop.permute.xlu0 %2117
    %2119 = vrot.lane.b32.xlu0 %v1620, 96
    %v2120 = vpop.permute.xlu0 %2119
    %2121 = vrot.lane.b32.xlu0 %v1621, 96
    %v2122 = vpop.permute.xlu0 %2121
    %2123 = vrot.lane.b32.xlu0 %v1622, 96
    %v2124 = vpop.permute.xlu0 %2123
    %2125 = vrot.lane.b32.xlu0 %v1623, 96
    %v2126 = vpop.permute.xlu0 %2125
    %2127 = vrot.lane.b32.xlu0 %v1624, 96
    %v2128 = vpop.permute.xlu0 %2127
    %2129 = vrot.lane.b32.xlu0 %v1625, 96
    %v2130 = vpop.permute.xlu0 %2129
    %2131 = vrot.lane.b32.xlu0 %v1626, 96
    %v2132 = vpop.permute.xlu0 %2131
    %2133 = vrot.lane.b32.xlu0 %v1627, 96
    %v2134 = vpop.permute.xlu0 %2133
    %2135 = vrot.lane.b32.xlu0 %v1628, 96
    %v2136 = vpop.permute.xlu0 %2135
    %2137 = vrot.lane.b32.xlu0 %v1629, 96
    %v2138 = vpop.permute.xlu0 %2137
    %2139 = vrot.lane.b32.xlu0 %v1630, 96
    %v2140 = vpop.permute.xlu0 %2139
    %v2164 = vsel %vm1191, %v1489, %v1678
    %v2165 = vsel %vm1191, %v1490, %v1680
    %v2166 = vsel %vm1191, %v1491, %v1682
    %v2167 = vsel %vm1191, %v1492, %v1684
    %v2168 = vsel %vm1191, %v1493, %v1686
    %v2169 = vsel %vm1191, %v1494, %v1688
    %v2170 = vsel %vm1191, %v1495, %v1690
    %v2171 = vsel %vm1191, %v1496, %v1692
    %v2172 = vsel %vm1191, %v1497, %v1694
    %v2173 = vsel %vm1191, %v1498, %v1696
    %v2174 = vsel %vm1191, %v1499, %v1698
    %v2175 = vsel %vm1191, %v1500, %v1700
    %v2176 = vsel %vm1191, %v1501, %v1702
    %v2177 = vsel %vm1191, %v1502, %v1704
    %v2178 = vsel %vm1191, %v1503, %v1706
    %v2179 = vsel %vm1191, %v1504, %v1708
    %v2180 = vsel %vm1191, %v1505, %v1710
    %v2181 = vsel %vm1191, %v1506, %v1712
    %v2182 = vsel %vm1191, %v1507, %v1714
    %v2183 = vsel %vm1191, %v1508, %v1716
    %v2184 = vsel %vm1191, %v1509, %v1718
    %v2185 = vsel %vm1191, %v1510, %v1720
    %v2186 = vsel %vm1191, %v1511, %v1722
    %vm2187 = vcmask 523264
    %v2188 = vsel %vm2187, %v2164, %v1770
    %v2189 = vsel %vm2187, %v2165, %v1772
    %v2190 = vsel %vm2187, %v2166, %v1774
    %v2191 = vsel %vm2187, %v2167, %v1776
    %v2192 = vsel %vm2187, %v2168, %v1778
    %v2193 = vsel %vm2187, %v2169, %v1780
    %v2194 = vsel %vm2187, %v2170, %v1782
    %v2195 = vsel %vm2187, %v2171, %v1784
    %v2196 = vsel %vm2187, %v2172, %v1786
    %v2197 = vsel %vm2187, %v2173, %v1788
    %v2198 = vsel %vm2187, %v2174, %v1790
    %v2199 = vsel %vm2187, %v2175, %v1792
    %v2200 = vsel %vm2187, %v2176, %v1794
    %v2201 = vsel %vm2187, %v2177, %v1796
    %v2202 = vsel %vm2187, %v2178, %v1798
    %v2203 = vsel %vm2187, %v2179, %v1800
    %v2204 = vsel %vm2187, %v2180, %v1802
    %v2205 = vsel %vm2187, %v2181, %v1804
    %v2206 = vsel %vm2187, %v2182, %v1806
    %v2207 = vsel %vm2187, %v2183, %v1808
    %v2208 = vsel %vm2187, %v2184, %v1810
    %v2209 = vsel %vm2187, %v2185, %v1812
    %v2210 = vsel %vm2187, %v2186, %v1814
    %vm2211 = vcmask 785408
    %v2212 = vsel %vm2211, %v2188, %v1841
    %v2213 = vsel %vm2211, %v2189, %v1843
    %v2214 = vsel %vm2211, %v2190, %v1845
    %v2215 = vsel %vm2211, %v2191, %v1847
    %v2216 = vsel %vm2211, %v2192, %v1849
    %v2217 = vsel %vm2211, %v2193, %v1851
    %v2218 = vsel %vm2211, %v2194, %v1853
    %v2219 = vsel %vm2211, %v2195, %v1855
    %v2220 = vsel %vm2211, %v2196, %v1857
    %v2221 = vsel %vm2211, %v2197, %v1859
    %v2222 = vsel %vm2211, %v2198, %v1861
    %v2223 = vsel %vm2211, %v2199, %v1863
    %v2224 = vsel %vm2211, %v2200, %v1865
    %v2225 = vsel %vm2211, %v2201, %v1867
    %v2226 = vsel %vm2211, %v2202, %v1869
    %v2227 = vsel %vm2211, %v2203, %v1871
    %v2228 = vsel %vm2211, %v2204, %v1873
    %v2229 = vsel %vm2211, %v2205, %v1875
    %v2230 = vsel %vm2211, %v2206, %v1877
    %v2231 = vsel %vm2211, %v2207, %v1879
    %v2232 = vsel %vm2211, %v2208, %v1881
    %v2233 = vsel %vm2211, %v2209, %v1883
    %v2234 = vsel %vm2211, %v2210, %v1885
    %v2235 = vsel %vm1191, %v1560, %v1933
    %v2236 = vsel %vm1191, %v1561, %v1935
    %v2237 = vsel %vm1191, %v1562, %v1937
    %v2238 = vsel %vm1191, %v1563, %v1939
    %v2239 = vsel %vm1191, %v1564, %v1941
    %v2240 = vsel %vm1191, %v1565, %v1943
    %v2241 = vsel %vm1191, %v1566, %v1945
    %v2242 = vsel %vm1191, %v1567, %v1947
    %v2243 = vsel %vm1191, %v1568, %v1949
    %v2244 = vsel %vm1191, %v1569, %v1951
    %v2245 = vsel %vm1191, %v1570, %v1953
    %v2246 = vsel %vm1191, %v1571, %v1955
    %v2247 = vsel %vm1191, %v1572, %v1957
    %v2248 = vsel %vm1191, %v1573, %v1959
    %v2249 = vsel %vm1191, %v1574, %v1961
    %v2250 = vsel %vm1191, %v1575, %v1963
    %v2251 = vsel %vm1191, %v1576, %v1965
    %v2252 = vsel %vm1191, %v1577, %v1967
    %v2253 = vsel %vm1191, %v1578, %v1969
    %v2254 = vsel %vm1191, %v1579, %v1971
    %v2255 = vsel %vm1191, %v1580, %v1973
    %v2256 = vsel %vm1191, %v1581, %v1975
    %v2257 = vsel %vm1191, %v1582, %v1977
    %v2258 = vsel %vm2187, %v2235, %v2004
    %v2259 = vsel %vm2187, %v2236, %v2006
    %v2260 = vsel %vm2187, %v2237, %v2008
    %v2261 = vsel %vm2187, %v2238, %v2010
    %v2262 = vsel %vm2187, %v2239, %v2012
    %v2263 = vsel %vm2187, %v2240, %v2014
    %v2264 = vsel %vm2187, %v2241, %v2016
    %v2265 = vsel %vm2187, %v2242, %v2018
    %v2266 = vsel %vm2187, %v2243, %v2020
    %v2267 = vsel %vm2187, %v2244, %v2022
    %v2268 = vsel %vm2187, %v2245, %v2024
    %v2269 = vsel %vm2187, %v2246, %v2026
    %v2270 = vsel %vm2187, %v2247, %v2028
    %v2271 = vsel %vm2187, %v2248, %v2030
    %v2272 = vsel %vm2187, %v2249, %v2032
    %v2273 = vsel %vm2187, %v2250, %v2034
    %v2274 = vsel %vm2187, %v2251, %v2036
    %v2275 = vsel %vm2187, %v2252, %v2038
    %v2276 = vsel %vm2187, %v2253, %v2040
    %v2277 = vsel %vm2187, %v2254, %v2042
    %v2278 = vsel %vm2187, %v2255, %v2044
    %v2279 = vsel %vm2187, %v2256, %v2046
    %v2280 = vsel %vm2187, %v2257, %v2048
    %v2281 = vsel %vm2211, %v2258, %v2096
    %v2282 = vsel %vm2211, %v2259, %v2098
    %v2283 = vsel %vm2211, %v2260, %v2100
    %v2284 = vsel %vm2211, %v2261, %v2102
    %v2285 = vsel %vm2211, %v2262, %v2104
    %v2286 = vsel %vm2211, %v2263, %v2106
    %v2287 = vsel %vm2211, %v2264, %v2108
    %v2288 = vsel %vm2211, %v2265, %v2110
    %v2289 = vsel %vm2211, %v2266, %v2112
    %v2290 = vsel %vm2211, %v2267, %v2114
    %v2291 = vsel %vm2211, %v2268, %v2116
    %v2292 = vsel %vm2211, %v2269, %v2118
    %v2293 = vsel %vm2211, %v2270, %v2120
    %v2294 = vsel %vm2211, %v2271, %v2122
    %v2295 = vsel %vm2211, %v2272, %v2124
    %v2296 = vsel %vm2211, %v2273, %v2126
    %v2297 = vsel %vm2211, %v2274, %v2128
    %v2298 = vsel %vm2211, %v2275, %v2130
    %v2299 = vsel %vm2211, %v2276, %v2132
    %v2300 = vsel %vm2211, %v2277, %v2134
    %v2301 = vsel %vm2211, %v2278, %v2136
    %v2302 = vsel %vm2211, %v2279, %v2138
    %v2303 = vsel %vm2211, %v2280, %v2140
    %v2304 = vld [vmem:[%s21] sm:$0xff]
    %v2305 = vld [vmem:[%s21 + $0x8] sm:$0xff]
    %v2306 = vld [vmem:[%s21 + $0x10] sm:$0xff]
    %v2307 = vld [vmem:[%s21 + $0x18] sm:$0xff]
    %v2308 = vld [vmem:[%s21 + $0x20] sm:$0xff]
    %v2309 = vld [vmem:[%s21 + $0x28] sm:$0xff]
    %v2310 = vld [vmem:[%s21 + $0x30] sm:$0xff]
    %v2311 = vld [vmem:[%s21 + $0x38] sm:$0xff]
    %v2312 = vld [vmem:[%s21 + $0x40] sm:$0xff]
    %v2313 = vld [vmem:[%s21 + $0x48] sm:$0xff]
    %v2314 = vld [vmem:[%s21 + $0x50] sm:$0xff]
    %v2315 = vld [vmem:[%s21 + $0x58] sm:$0xff]
    %v2316 = vld [vmem:[%s21 + $0x60] sm:$0xff]
    %v2317 = vld [vmem:[%s21 + $0x68] sm:$0xff]
    %v2318 = vld [vmem:[%s21 + $0x70] sm:$0xff]
    %v2319 = vld [vmem:[%s21 + $0x78] sm:$0xff]
    %v2320 = vld [vmem:[%s21 + $0x80] sm:$0xff]
    %v2321 = vld [vmem:[%s21 + $0x88] sm:$0xff]
    %v2322 = vld [vmem:[%s21 + $0x90] sm:$0xff]
    %v2323 = vld [vmem:[%s21 + $0x98] sm:$0xff]
    %v2324 = vld [vmem:[%s21 + $0xa0] sm:$0xff]
    %v2325 = vld [vmem:[%s21 + $0xa8] sm:$0xff]
    %v2326 = vld [vmem:[%s21 + $0xb0] sm:$0xff]
    %v2327 = vld [vmem:[%s21 + $0xb8] sm:$0xff]
    %v2328 = vld [vmem:[%s21 + $0xc0] sm:$0xff]
    %v2329 = vld [vmem:[%s21 + $0xc8] sm:$0xff]
    %v2330 = vld [vmem:[%s21 + $0xd0] sm:$0xff]
    %v2331 = vld [vmem:[%s21 + $0xd8] sm:$0xff]
    %v2332 = vld [vmem:[%s21 + $0xe0] sm:$0xff]
    %v2333 = vld [vmem:[%s21 + $0xe8] sm:$0xff]
    %v2334 = vld [vmem:[%s21 + $0xf0] sm:$0xff]
    %v2335 = vld [vmem:[%s21 + $0xf8] sm:$0xff]
    %v2336 = vld [vmem:[%s21 + $0x100] sm:$0xff]
    %v2337 = vld [vmem:[%s21 + $0x108] sm:$0xff]
    %v2338 = vld [vmem:[%s21 + $0x110] sm:$0xff]
    %v2339 = vld [vmem:[%s21 + $0x118] sm:$0xff]
    %v2341 = vsel %vm1191, %v1631, 0
    %v2344 = vsel %vm1191, %v1632, 0
    %v2347 = vsel %vm1191, %v1633, 0
    %v2350 = vsel %vm1191, %v1634, 0
    %v2353 = vsel %vm1191, %v1635, 0
    %v2356 = vsel %vm1191, %v1636, 0
    %v2359 = vsel %vm1191, %v1637, 0
    %v2362 = vsel %vm1191, %v1638, 0
    %v2365 = vsel %vm1191, %v1639, 0
    %v2368 = vsel %vm1191, %v1640, 0
    %v2371 = vsel %vm1191, %v1641, 0
    %v2374 = vsel %vm1191, %v1642, 0
    %v2377 = vsel %vm1191, %v1643, 0
    %v2380 = vsel %vm1191, %v1644, 0
    %v2383 = vsel %vm1191, %v1645, 0
    %v2386 = vsel %vm1191, %v1646, 0
    %v2389 = vsel %vm1191, %v1647, 0
    %v2392 = vsel %vm1191, %v1648, 0
    %v2395 = vsel %vm1191, %v1649, 0
    %v2398 = vsel %vm1191, %v1650, 0
    %v2401 = vsel %vm1191, %v1651, 0
    %v2404 = vsel %vm1191, %v1652, 0
    %v2407 = vsel %vm1191, %v1653, 0
    %2409 = vmatprep.subr.mxu0 0.0
    %2410 = vmatpush1.msra.mxu0 %v2304
    %2411 = vmatprep.subr.mxu0 0.0
    %2412 = vmatpush1.msra.mxu0 %v2305
    %2413 = vmatprep.subr.mxu0 0.0
    %2414 = vmatpush1.msra.mxu0 %v2306
    %2415 = vmatprep.subr.mxu0 0.0
    %2416 = vmatpush1.msra.mxu0 %v2307
    %2417 = vmatprep.subr.mxu0 0.0
    %2418 = vmatpush1.msra.mxu0 %v2308
    %2419 = vmatprep.subr.mxu0 0.0
    %2420 = vmatpush1.msra.mxu0 %v2309
    %2421 = vmatprep.subr.mxu0 0.0
    %2422 = vmatpush1.msra.mxu0 %v2310
    %2423 = vmatprep.subr.mxu0 0.0
    %2424 = vmatpush1.msra.mxu0 %v2311
    %2425 = vmatprep.subr.mxu0 0.0
    %2426 = vmatpush1.msra.mxu0 %v2312
    %2427 = vmatprep.subr.mxu0 0.0
    %2428 = vmatpush1.msra.mxu0 %v2313
    %2429 = vmatprep.subr.mxu0 0.0
    %2430 = vmatpush1.msra.mxu0 %v2314
    %2431 = vmatprep.subr.mxu0 0.0
    %2432 = vmatpush1.msra.mxu0 %v2315
    %2433 = vmatprep.subr.mxu0 0.0
    %2434 = vmatpush1.msra.mxu0 %v2316
    %2435 = vmatprep.subr.mxu0 0.0
    %2436 = vmatpush1.msra.mxu0 %v2317
    %2437 = vmatprep.subr.mxu0 0.0
    %2438 = vmatpush1.msra.mxu0 %v2318
    %2439 = vmatprep.subr.mxu0 0.0
    %2440 = vmatpush1.msra.mxu0 %v2319
    %2441 = vmatprep.subr.mxu0 0.0
    %2442 = vmatpush1.msra.mxu0 %v2320
    %2443 = vmatprep.subr.mxu0 0.0
    %2444 = vmatpush1.msra.mxu0 %v2321
    %2445 = vmatprep.subr.mxu0 0.0
    %2446 = vmatpush1.msra.mxu0 %v2322
    %2447 = vmatprep.subr.mxu0 0.0
    %2448 = vmatpush1.msra.mxu0 %v2323
    %2449 = vmatprep.subr.mxu0 0.0
    %2450 = vmatpush1.msra.mxu0 %v2324
    %2451 = vmatprep.subr.mxu0 0.0
    %2452 = vmatpush1.msra.mxu0 %v2325
    %2453 = vmatprep.subr.mxu0 0.0
    %2454 = vmatpush1.msra.mxu0 %v2326
    %2455 = vmatprep.subr.mxu0 0.0
    %2456 = vmatpush1.msra.mxu0 %v2327
    %2457 = vmatprep.subr.mxu0 0.0
    %2458 = vmatpush1.msra.mxu0 %v2328
    %2459 = vmatprep.subr.mxu0 0.0
    %2460 = vmatpush1.msra.mxu0 %v2329
    %2461 = vmatprep.subr.mxu0 0.0
    %2462 = vmatpush1.msra.mxu0 %v2330
    %2463 = vmatprep.subr.mxu0 0.0
    %2464 = vmatpush1.msra.mxu0 %v2331
    %2465 = vmatprep.subr.mxu0 0.0
    %2466 = vmatpush1.msra.mxu0 %v2332
    %2467 = vmatprep.subr.mxu0 0.0
    %2468 = vmatpush1.msra.mxu0 %v2333
    %2469 = vmatprep.subr.mxu0 0.0
    %2470 = vmatpush1.msra.mxu0 %v2334
    %2471 = vmatprep.subr.mxu0 0.0
    %2472 = vmatpush1.msra.mxu0 %v2335
    %2473 = vmatprep.mubr.f32.mxu0 %v2281
    %2474 = vmatmul.mubr.f32.gmra.mrb[0].mxu0 %v2212
    %v2475 = vpop.f32.mrb[0].mxu0
    %v2476 = vadd.f32 0.0, %v2475
    %v2477 = vpop.f32.mrb[0].mxu0
    %2478 = vmatprep.mubr.f32.mxu0 %v2282
    %2479 = vmatmul.mubr.f32.gmra.mrb[0].mxu0 %v2213
    %v2480 = vpop.f32.mrb[0].mxu0
    %v2481 = vadd.f32 0.0, %v2480
    %v2482 = vpop.f32.mrb[0].mxu0
    %2483 = vmatprep.mubr.f32.mxu0 %v2283
    %2484 = vmatmul.mubr.f32.gmra.mrb[0].mxu0 %v2214
    %v2485 = vpop.f32.mrb[0].mxu0
    %v2486 = vadd.f32 0.0, %v2485
    %v2487 = vpop.f32.mrb[0].mxu0
    %2488 = vmatprep.mubr.f32.mxu0 %v2284
    %2489 = vmatmul.mubr.f32.gmra.mrb[0].mxu0 %v2215
    %v2490 = vpop.f32.mrb[0].mxu0
    %v2491 = vadd.f32 0.0, %v2490
    %v2492 = vpop.f32.mrb[0].mxu0
    %2493 = vmatprep.mubr.f32.mxu0 %v2285
    %2494 = vmatmul.mubr.f32.gmra.mrb[0].mxu0 %v2216
    %v2495 = vpop.f32.mrb[0].mxu0
    %v2496 = vadd.f32 0.0, %v2495
    %v2497 = vpop.f32.mrb[0].mxu0
    %2498 = vmatprep.mubr.f32.mxu0 %v2286
    %2499 = vmatmul.mubr.f32.gmra.mrb[0].mxu0 %v2217
    %v2500 = vpop.f32.mrb[0].mxu0
    %v2501 = vadd.f32 0.0, %v2500
    %v2502 = vpop.f32.mrb[0].mxu0
    %2503 = vmatprep.mubr.f32.mxu0 %v2287
    %2504 = vmatmul.mubr.f32.gmra.mrb[0].mxu0 %v2218
    %v2505 = vpop.f32.mrb[0].mxu0
    %v2506 = vadd.f32 0.0, %v2505
    %v2507 = vpop.f32.mrb[0].mxu0
    %2508 = vmatprep.mubr.f32.mxu0 %v2288
    %2509 = vmatmul.mubr.f32.gmra.mrb[0].mxu0 %v2219
    %v2510 = vpop.f32.mrb[0].mxu0
    %v2511 = vadd.f32 0.0, %v2510
    %v2512 = vpop.f32.mrb[0].mxu0
    %2513 = vmatprep.mubr.f32.mxu0 %v2289
    %2514 = vmatmul.mubr.f32.gmra.mrb[0].mxu0 %v2220
    %v2515 = vpop.f32.mrb[0].mxu0
    %v2516 = vadd.f32 0.0, %v2515
    %v2517 = vpop.f32.mrb[0].mxu0
    %2518 = vmatprep.mubr.f32.mxu0 %v2290
    %2519 = vmatmul.mubr.f32.gmra.mrb[0].mxu0 %v2221
    %v2520 = vpop.f32.mrb[0].mxu0
    %v2521 = vadd.f32 0.0, %v2520
    %v2522 = vpop.f32.mrb[0].mxu0
    %2523 = vmatprep.mubr.f32.mxu0 %v2291
    %2524 = vmatmul.mubr.f32.gmra.mrb[0].mxu0 %v2222
    %v2525 = vpop.f32.mrb[0].mxu0
    %v2526 = vadd.f32 0.0, %v2525
    %v2527 = vpop.f32.mrb[0].mxu0
    %2528 = vmatprep.mubr.f32.mxu0 %v2292
    %2529 = vmatmul.mubr.f32.gmra.mrb[0].mxu0 %v2223
    %v2530 = vpop.f32.mrb[0].mxu0
    %v2531 = vadd.f32 0.0, %v2530
    %v2532 = vpop.f32.mrb[0].mxu0
    %2533 = vmatprep.mubr.f32.mxu0 %v2293
    %2534 = vmatmul.mubr.f32.gmra.mrb[0].mxu0 %v2224
    %v2535 = vpop.f32.mrb[0].mxu0
    %v2536 = vadd.f32 0.0, %v2535
    %v2537 = vpop.f32.mrb[0].mxu0
    %2538 = vmatprep.mubr.f32.mxu0 %v2294
    %2539 = vmatmul.mubr.f32.gmra.mrb[0].mxu0 %v2225
    %v2540 = vpop.f32.mrb[0].mxu0
    %v2541 = vadd.f32 0.0, %v2540
    %v2542 = vpop.f32.mrb[0].mxu0
    %2543 = vmatprep.mubr.f32.mxu0 %v2295
    %2544 = vmatmul.mubr.f32.gmra.mrb[0].mxu0 %v2226
    %v2545 = vpop.f32.mrb[0].mxu0
    %v2546 = vadd.f32 0.0, %v2545
    %v2547 = vpop.f32.mrb[0].mxu0
    %2548 = vmatprep.mubr.f32.mxu0 %v2296
    %2549 = vmatmul.mubr.f32.gmra.mrb[0].mxu0 %v2227
    %v2550 = vpop.f32.mrb[0].mxu0
    %v2551 = vadd.f32 0.0, %v2550
    %v2552 = vpop.f32.mrb[0].mxu0
    %2553 = vmatprep.mubr.f32.mxu0 %v2297
    %2554 = vmatmul.mubr.f32.gmra.mrb[0].mxu0 %v2228
    %v2555 = vpop.f32.mrb[0].mxu0
    %v2556 = vadd.f32 0.0, %v2555
    %v2557 = vpop.f32.mrb[0].mxu0
    %2558 = vmatprep.mubr.f32.mxu0 %v2298
    %2559 = vmatmul.mubr.f32.gmra.mrb[0].mxu0 %v2229
    %v2560 = vpop.f32.mrb[0].mxu0
    %v2561 = vadd.f32 0.0, %v2560
    %v2562 = vpop.f32.mrb[0].mxu0
    %2563 = vmatprep.mubr.f32.mxu0 %v2299
    %2564 = vmatmul.mubr.f32.gmra.mrb[0].mxu0 %v2230
    %v2565 = vpop.f32.mrb[0].mxu0
    %v2566 = vadd.f32 0.0, %v2565
    %v2567 = vpop.f32.mrb[0].mxu0
    %2568 = vmatprep.mubr.f32.mxu0 %v2300
    %2569 = vmatmul.mubr.f32.gmra.mrb[0].mxu0 %v2231
    %v2570 = vpop.f32.mrb[0].mxu0
    %v2571 = vadd.f32 0.0, %v2570
    %v2572 = vpop.f32.mrb[0].mxu0
    %2573 = vmatprep.mubr.f32.mxu0 %v2301
    %2574 = vmatmul.mubr.f32.gmra.mrb[0].mxu0 %v2232
    %v2575 = vpop.f32.mrb[0].mxu0
    %v2576 = vadd.f32 0.0, %v2575
    %v2577 = vpop.f32.mrb[0].mxu0
    %2578 = vmatprep.mubr.f32.mxu0 %v2302
    %2579 = vmatmul.mubr.f32.gmra.mrb[0].mxu0 %v2233
    %v2580 = vpop.f32.mrb[0].mxu0
    %v2581 = vadd.f32 0.0, %v2580
    %v2582 = vpop.f32.mrb[0].mxu0
    %2583 = vmatprep.mubr.f32.mxu0 %v2303
    %2584 = vmatmul.mubr.f32.gmra.mrb[0].mxu0 %v2234
    %v2585 = vpop.f32.mrb[0].mxu0
    %v2586 = vadd.f32 0.0, %v2585
    %v2587 = vpop.f32.mrb[0].mxu0
    %2588 = vdwg.mxu0
    %2589 = vmatprep.subr.mxu0 0.0
    %2590 = vmatpush1.msra.mxu0 %v2336
    %2591 = vmatprep.subr.mxu0 0.0
    %2592 = vmatpush1.msra.mxu0 %v2337
    %2593 = vmatprep.subr.mxu0 0.0
    %2594 = vmatpush1.msra.mxu0 %v2338
    %2595 = vmatprep.subr.mxu0 0.0
    %2596 = vmatpush1.msra.mxu0 %v2339
    %2597 = vmatprep.subr.mxu0 0.0
    %2598 = vmatpush1.msra.mxu0 0.0
    %2599 = vmatprep.subr.mxu0 0.0
    %2600 = vmatpush1.msra.mxu0 0.0
    %2601 = vmatprep.subr.mxu0 0.0
    %2602 = vmatpush1.msra.mxu0 0.0
    %2603 = vmatprep.subr.mxu0 0.0
    %2604 = vmatpush1.msra.mxu0 0.0
    %2605 = vmatprep.subr.mxu0 0.0
    %2606 = vmatpush1.msra.mxu0 0.0
    %2607 = vmatprep.subr.mxu0 0.0
    %2608 = vmatpush1.msra.mxu0 0.0
    %2609 = vmatprep.subr.mxu0 0.0
    %2610 = vmatpush1.msra.mxu0 0.0
    %2611 = vmatprep.subr.mxu0 0.0
    %2612 = vmatpush1.msra.mxu0 0.0
    %2613 = vmatprep.subr.mxu0 0.0
    %2614 = vmatpush1.msra.mxu0 0.0
    %2615 = vmatprep.subr.mxu0 0.0
    %2616 = vmatpush1.msra.mxu0 0.0
    %2617 = vmatprep.subr.mxu0 0.0
    %2618 = vmatpush1.msra.mxu0 0.0
    %2619 = vmatprep.subr.mxu0 0.0
    %2620 = vmatpush1.msra.mxu0 0.0
    %2621 = vmatprep.subr.mxu0 0.0
    %2622 = vmatpush1.msra.mxu0 0.0
    %2623 = vmatprep.subr.mxu0 0.0
    %2624 = vmatpush1.msra.mxu0 0.0
    %2625 = vmatprep.subr.mxu0 0.0
    %2626 = vmatpush1.msra.mxu0 0.0
    %2627 = vmatprep.subr.mxu0 0.0
    %2628 = vmatpush1.msra.mxu0 0.0
    %2629 = vmatprep.subr.mxu0 0.0
    %2630 = vmatpush1.msra.mxu0 0.0
    %2631 = vmatprep.subr.mxu0 0.0
    %2632 = vmatpush1.msra.mxu0 0.0
    %2633 = vmatprep.subr.mxu0 0.0
    %2634 = vmatpush1.msra.mxu0 0.0
    %2635 = vmatprep.subr.mxu0 0.0
    %2636 = vmatpush1.msra.mxu0 0.0
    %2637 = vmatprep.subr.mxu0 0.0
    %2638 = vmatpush1.msra.mxu0 0.0
    %2639 = vmatprep.subr.mxu0 0.0
    %2640 = vmatpush1.msra.mxu0 0.0
    %2641 = vmatprep.subr.mxu0 0.0
    %2642 = vmatpush1.msra.mxu0 0.0
    %2643 = vmatprep.subr.mxu0 0.0
    %2644 = vmatpush1.msra.mxu0 0.0
    %2645 = vmatprep.subr.mxu0 0.0
    %2646 = vmatpush1.msra.mxu0 0.0
    %2647 = vmatprep.subr.mxu0 0.0
    %2648 = vmatpush1.msra.mxu0 0.0
    %2649 = vmatprep.subr.mxu0 0.0
    %2650 = vmatpush1.msra.mxu0 0.0
    %2651 = vmatprep.subr.mxu0 0.0
    %2652 = vmatpush1.msra.mxu0 0.0
    %2653 = vmatprep.mubr.f32.mxu0 0.0
    %2654 = vmatmul.mubr.f32.gmra.mrb[0].mxu0 %v2341
    %v2655 = vpop.f32.mrb[0].mxu0
    %v2656 = vadd.f32 %v2476, %v2655
    %v2657 = vpop.f32.mrb[0].mxu0
    %2658 = vmatprep.mubr.f32.mxu0 0.0
    %2659 = vmatmul.mubr.f32.gmra.mrb[0].mxu0 %v2344
    %v2660 = vpop.f32.mrb[0].mxu0
    %v2661 = vadd.f32 %v2481, %v2660
    %v2662 = vpop.f32.mrb[0].mxu0
    %2663 = vmatprep.mubr.f32.mxu0 0.0
    %2664 = vmatmul.mubr.f32.gmra.mrb[0].mxu0 %v2347
    %v2665 = vpop.f32.mrb[0].mxu0
    %v2666 = vadd.f32 %v2486, %v2665
    %v2667 = vpop.f32.mrb[0].mxu0
    %2668 = vmatprep.mubr.f32.mxu0 0.0
    %2669 = vmatmul.mubr.f32.gmra.mrb[0].mxu0 %v2350
    %v2670 = vpop.f32.mrb[0].mxu0
    %v2671 = vadd.f32 %v2491, %v2670
    %v2672 = vpop.f32.mrb[0].mxu0
    %2673 = vmatprep.mubr.f32.mxu0 0.0
    %2674 = vmatmul.mubr.f32.gmra.mrb[0].mxu0 %v2353
    %v2675 = vpop.f32.mrb[0].mxu0
    %v2676 = vadd.f32 %v2496, %v2675
    %v2677 = vpop.f32.mrb[0].mxu0
    %2678 = vmatprep.mubr.f32.mxu0 0.0
    %2679 = vmatmul.mubr.f32.gmra.mrb[0].mxu0 %v2356
    %v2680 = vpop.f32.mrb[0].mxu0
    %v2681 = vadd.f32 %v2501, %v2680
    %v2682 = vpop.f32.mrb[0].mxu0
    %2683 = vmatprep.mubr.f32.mxu0 0.0
    %2684 = vmatmul.mubr.f32.gmra.mrb[0].mxu0 %v2359
    %v2685 = vpop.f32.mrb[0].mxu0
    %v2686 = vadd.f32 %v2506, %v2685
    %v2687 = vpop.f32.mrb[0].mxu0
    %2688 = vmatprep.mubr.f32.mxu0 0.0
    %2689 = vmatmul.mubr.f32.gmra.mrb[0].mxu0 %v2362
    %v2690 = vpop.f32.mrb[0].mxu0
    %v2691 = vadd.f32 %v2511, %v2690
    %v2692 = vpop.f32.mrb[0].mxu0
    %2693 = vmatprep.mubr.f32.mxu0 0.0
    %2694 = vmatmul.mubr.f32.gmra.mrb[0].mxu0 %v2365
    %v2695 = vpop.f32.mrb[0].mxu0
    %v2696 = vadd.f32 %v2516, %v2695
    %v2697 = vpop.f32.mrb[0].mxu0
    %2698 = vmatprep.mubr.f32.mxu0 0.0
    %2699 = vmatmul.mubr.f32.gmra.mrb[0].mxu0 %v2368
    %v2700 = vpop.f32.mrb[0].mxu0
    %v2701 = vadd.f32 %v2521, %v2700
    %v2702 = vpop.f32.mrb[0].mxu0
    %2703 = vmatprep.mubr.f32.mxu0 0.0
    %2704 = vmatmul.mubr.f32.gmra.mrb[0].mxu0 %v2371
    %v2705 = vpop.f32.mrb[0].mxu0
    %v2706 = vadd.f32 %v2526, %v2705
    %v2707 = vpop.f32.mrb[0].mxu0
    %2708 = vmatprep.mubr.f32.mxu0 0.0
    %2709 = vmatmul.mubr.f32.gmra.mrb[0].mxu0 %v2374
    %v2710 = vpop.f32.mrb[0].mxu0
    %v2711 = vadd.f32 %v2531, %v2710
    %v2712 = vpop.f32.mrb[0].mxu0
    %2713 = vmatprep.mubr.f32.mxu0 0.0
    %2714 = vmatmul.mubr.f32.gmra.mrb[0].mxu0 %v2377
    %v2715 = vpop.f32.mrb[0].mxu0
    %v2716 = vadd.f32 %v2536, %v2715
    %v2717 = vpop.f32.mrb[0].mxu0
    %2718 = vmatprep.mubr.f32.mxu0 0.0
    %2719 = vmatmul.mubr.f32.gmra.mrb[0].mxu0 %v2380
    %v2720 = vpop.f32.mrb[0].mxu0
    %v2721 = vadd.f32 %v2541, %v2720
    %v2722 = vpop.f32.mrb[0].mxu0
    %2723 = vmatprep.mubr.f32.mxu0 0.0
    %2724 = vmatmul.mubr.f32.gmra.mrb[0].mxu0 %v2383
    %v2725 = vpop.f32.mrb[0].mxu0
    %v2726 = vadd.f32 %v2546, %v2725
    %v2727 = vpop.f32.mrb[0].mxu0
    %2728 = vmatprep.mubr.f32.mxu0 0.0
    %2729 = vmatmul.mubr.f32.gmra.mrb[0].mxu0 %v2386
    %v2730 = vpop.f32.mrb[0].mxu0
    %v2731 = vadd.f32 %v2551, %v2730
    %v2732 = vpop.f32.mrb[0].mxu0
    %2733 = vmatprep.mubr.f32.mxu0 0.0
    %2734 = vmatmul.mubr.f32.gmra.mrb[0].mxu0 %v2389
    %v2735 = vpop.f32.mrb[0].mxu0
    %v2736 = vadd.f32 %v2556, %v2735
    %v2737 = vpop.f32.mrb[0].mxu0
    %2738 = vmatprep.mubr.f32.mxu0 0.0
    %2739 = vmatmul.mubr.f32.gmra.mrb[0].mxu0 %v2392
    %v2740 = vpop.f32.mrb[0].mxu0
    %v2741 = vadd.f32 %v2561, %v2740
    %v2742 = vpop.f32.mrb[0].mxu0
    %2743 = vmatprep.mubr.f32.mxu0 0.0
    %2744 = vmatmul.mubr.f32.gmra.mrb[0].mxu0 %v2395
    %v2745 = vpop.f32.mrb[0].mxu0
    %v2746 = vadd.f32 %v2566, %v2745
    %v2747 = vpop.f32.mrb[0].mxu0
    %2748 = vmatprep.mubr.f32.mxu0 0.0
    %2749 = vmatmul.mubr.f32.gmra.mrb[0].mxu0 %v2398
    %v2750 = vpop.f32.mrb[0].mxu0
    %v2751 = vadd.f32 %v2571, %v2750
    %v2752 = vpop.f32.mrb[0].mxu0
    %2753 = vmatprep.mubr.f32.mxu0 0.0
    %2754 = vmatmul.mubr.f32.gmra.mrb[0].mxu0 %v2401
    %v2755 = vpop.f32.mrb[0].mxu0
    %v2756 = vadd.f32 %v2576, %v2755
    %v2757 = vpop.f32.mrb[0].mxu0
    %2758 = vmatprep.mubr.f32.mxu0 0.0
    %2759 = vmatmul.mubr.f32.gmra.mrb[0].mxu0 %v2404
    %v2760 = vpop.f32.mrb[0].mxu0
    %v2761 = vadd.f32 %v2581, %v2760
    %v2762 = vpop.f32.mrb[0].mxu0
    %2763 = vmatprep.mubr.f32.mxu0 0.0
    %2764 = vmatmul.mubr.f32.gmra.mrb[0].mxu0 %v2407
    %v2765 = vpop.f32.mrb[0].mxu0
    %v2766 = vadd.f32 %v2586, %v2765
    %v2767 = vpop.f32.mrb[0].mxu0
    %2768 = vdwg.mxu0
    %v2769 = vld [vmem:[%s23] sm:$0x1]
    %v2771 = vlaneseq
    %v2772 = vshrl.u32 %v2771, 7
    %v2773 = vsub.s32 0, %v2772
    %v2774 = vrot.slane %v2769, %v2773
    %v2776 = vmul.f32 %v2656, %v2774
    %v2777 = vmul.f32 %v2661, %v2774
    %v2778 = vmul.f32 %v2666, %v2774
    %v2779 = vmul.f32 %v2671, %v2774
    %v2780 = vmul.f32 %v2676, %v2774
    %v2781 = vmul.f32 %v2681, %v2774
    %v2782 = vmul.f32 %v2686, %v2774
    %v2783 = vmul.f32 %v2691, %v2774
    %v2784 = vmul.f32 %v2696, %v2774
    %v2785 = vmul.f32 %v2701, %v2774
    %v2786 = vmul.f32 %v2706, %v2774
    %v2787 = vmul.f32 %v2711, %v2774
    %v2788 = vmul.f32 %v2716, %v2774
    %v2789 = vmul.f32 %v2721, %v2774
    %v2790 = vmul.f32 %v2726, %v2774
    %v2791 = vmul.f32 %v2731, %v2774
    %v2792 = vmul.f32 %v2736, %v2774
    %v2793 = vmul.f32 %v2741, %v2774
    %v2794 = vmul.f32 %v2746, %v2774
    %v2795 = vmul.f32 %v2751, %v2774
    %v2796 = vmul.f32 %v2756, %v2774
    %v2797 = vmul.f32 %v2761, %v2774
    %v2798 = vmul.f32 %v2766, %v2774
    %v2799 = vld [vmem:[%s25] sm:$0x1]
    %v2801 = vlaneseq
    %v2802 = vshrl.u32 %v2801, 7
    %v2803 = vsub.s32 0, %v2802
    %v2804 = vrot.slane %v2799, %v2803
    %v2806 = vadd.f32 %v2776, %v2804
    %v2807 = vadd.f32 %v2777, %v2804
    %v2808 = vadd.f32 %v2778, %v2804
    %v2809 = vadd.f32 %v2779, %v2804
    %v2810 = vadd.f32 %v2780, %v2804
    %v2811 = vadd.f32 %v2781, %v2804
    %v2812 = vadd.f32 %v2782, %v2804
    %v2813 = vadd.f32 %v2783, %v2804
    %v2814 = vadd.f32 %v2784, %v2804
    %v2815 = vadd.f32 %v2785, %v2804
    %v2816 = vadd.f32 %v2786, %v2804
    %v2817 = vadd.f32 %v2787, %v2804
    %v2818 = vadd.f32 %v2788, %v2804
    %v2819 = vadd.f32 %v2789, %v2804
    %v2820 = vadd.f32 %v2790, %v2804
    %v2821 = vadd.f32 %v2791, %v2804
    %v2822 = vadd.f32 %v2792, %v2804
    %v2823 = vadd.f32 %v2793, %v2804
    %v2824 = vadd.f32 %v2794, %v2804
    %v2825 = vadd.f32 %v2795, %v2804
    %v2826 = vadd.f32 %v2796, %v2804
    %v2827 = vadd.f32 %v2797, %v2804
    %v2828 = vadd.f32 %v2798, %v2804
    %v2829 = vmax.f32 %v2806, 0.0
    %v2830 = vmax.f32 %v2807, 0.0
    %v2831 = vmax.f32 %v2808, 0.0
    %v2832 = vmax.f32 %v2809, 0.0
    %v2833 = vmax.f32 %v2810, 0.0
    %v2834 = vmax.f32 %v2811, 0.0
    %v2835 = vmax.f32 %v2812, 0.0
    %v2836 = vmax.f32 %v2813, 0.0
    %v2837 = vmax.f32 %v2814, 0.0
    %v2838 = vmax.f32 %v2815, 0.0
    %v2839 = vmax.f32 %v2816, 0.0
    %v2840 = vmax.f32 %v2817, 0.0
    %v2841 = vmax.f32 %v2818, 0.0
    %v2842 = vmax.f32 %v2819, 0.0
    %v2843 = vmax.f32 %v2820, 0.0
    %v2844 = vmax.f32 %v2821, 0.0
    %v2845 = vmax.f32 %v2822, 0.0
    %v2846 = vmax.f32 %v2823, 0.0
    %v2847 = vmax.f32 %v2824, 0.0
    %v2848 = vmax.f32 %v2825, 0.0
    %v2849 = vmax.f32 %v2826, 0.0
    %v2850 = vmax.f32 %v2827, 0.0
    %v2851 = vmax.f32 %v2828, 0.0
    %vm2852 = vcmask 130048
    %2853 = vst.msk [vmem:[#allocation4] sm:$0xff] %vm2852, %v2829
    %2854 = vst.msk [vmem:[#allocation4 + $0x8] sm:$0xff] %vm2852, %v2830
    %2855 = vst.msk [vmem:[#allocation4 + $0x10] sm:$0xff] %vm2852, %v2831
    %2856 = vst.msk [vmem:[#allocation4 + $0x18] sm:$0xff] %vm2852, %v2832
    %2857 = vst.msk [vmem:[#allocation4 + $0x20] sm:$0xff] %vm2852, %v2833
    %2858 = vst.msk [vmem:[#allocation4 + $0x28] sm:$0xff] %vm2852, %v2834
    %2859 = vst.msk [vmem:[#allocation4 + $0x30] sm:$0xff] %vm2852, %v2835
    %2860 = vst.msk [vmem:[#allocation4 + $0x38] sm:$0xff] %vm2852, %v2836
    %2861 = vst.msk [vmem:[#allocation4 + $0x40] sm:$0xff] %vm2852, %v2837
    %2862 = vst.msk [vmem:[#allocation4 + $0x48] sm:$0xff] %vm2852, %v2838
    %2863 = vst.msk [vmem:[#allocation4 + $0x50] sm:$0xff] %vm2852, %v2839
    %2864 = vst.msk [vmem:[#allocation4 + $0x58] sm:$0xff] %vm2852, %v2840
    %2865 = vst.msk [vmem:[#allocation4 + $0x60] sm:$0xff] %vm2852, %v2841
    %2866 = vst.msk [vmem:[#allocation4 + $0x68] sm:$0xff] %vm2852, %v2842
    %2867 = vst.msk [vmem:[#allocation4 + $0x70] sm:$0xff] %vm2852, %v2843
    %2868 = vst.msk [vmem:[#allocation4 + $0x78] sm:$0xff] %vm2852, %v2844
    %2869 = vst.msk [vmem:[#allocation4 + $0x80] sm:$0xff] %vm2852, %v2845
    %2870 = vst.msk [vmem:[#allocation4 + $0x88] sm:$0xff] %vm2852, %v2846
    %2871 = vst.msk [vmem:[#allocation4 + $0x90] sm:$0xff] %vm2852, %v2847
    %2872 = vst.msk [vmem:[#allocation4 + $0x98] sm:$0xff] %vm2852, %v2848
    %2873 = vst.msk [vmem:[#allocation4 + $0xa0] sm:$0xff] %vm2852, %v2849
    %2874 = vst.msk [vmem:[#allocation4 + $0xa8] sm:$0xff] %vm2852, %v2850
    %vm2875 = vcmask 125952
    %2876 = vst.msk [vmem:[#allocation4 + $0xb0] sm:$0xf] %vm2875, %v2851
    %2877 = vst.msk [vmem:[#allocation5] sm:$0xff] %vm2852, 0.0
    %2878 = vst.msk [vmem:[#allocation5 + $0x8] sm:$0xff] %vm2852, 0.0
    %2879 = vst.msk [vmem:[#allocation5 + $0x10] sm:$0xff] %vm2852, 0.0
    %2880 = vst.msk [vmem:[#allocation5 + $0x18] sm:$0xff] %vm2852, 0.0
    %2881 = vst.msk [vmem:[#allocation5 + $0x20] sm:$0xff] %vm2852, 0.0
    %2882 = vst.msk [vmem:[#allocation5 + $0x28] sm:$0xff] %vm2852, 0.0
    %2883 = vst.msk [vmem:[#allocation5 + $0x30] sm:$0xff] %vm2852, 0.0
    %2884 = vst.msk [vmem:[#allocation5 + $0x38] sm:$0xff] %vm2852, 0.0
    %2885 = vst.msk [vmem:[#allocation5 + $0x40] sm:$0xff] %vm2852, 0.0
    %vm2886 = vcmask 124928
    %2887 = vst.msk [vmem:[#allocation5 + $0x48] sm:$0x7] %vm2886, 0.0
    %s2888 = scalar_lea.vmem [#allocation4], 1
    %v2889 = vld [vmem:[%s2888] ss:$2 sm:$0xf]
    %s2890 = scalar_lea.vmem [#allocation4], 2
    %v2891 = vld [vmem:[%s2890] ss:$2 sm:$0xf]
    %s2892 = scalar_lea.vmem [#allocation4], 11
    %v2893 = vld [vmem:[%s2892] ss:$2 sm:$0xf]
    %s2894 = scalar_lea.vmem [#allocation4], 12
    %v2895 = vld [vmem:[%s2894] ss:$2 sm:$0xf]
    %v2896 = vmax.f32 %v2889, %v2891
    %v2897 = vmax.f32 %v2893, %v2895
    %v2898 = vmax.f32 %v2896, %v2897
    %2899 = vst.msk [vmem:[#allocation5 + $0x9] sm:$0xf] %vm2875, %v2898
    %s2900 = scalar_lea.vmem [#allocation4], 21
    %v2901 = vld [vmem:[%s2900] ss:$2 sm:$0xf]
    %s2902 = scalar_lea.vmem [#allocation4], 22
    %v2903 = vld [vmem:[%s2902] ss:$2 sm:$0xf]
    %s2904 = scalar_lea.vmem [#allocation4], 31
    %v2905 = vld [vmem:[%s2904] ss:$2 sm:$0xf]
    %s2906 = scalar_lea.vmem [#allocation4], 32
    %v2907 = vld [vmem:[%s2906] ss:$2 sm:$0xf]
    %v2908 = vmax.f32 %v2901, %v2903
    %v2909 = vmax.f32 %v2905, %v2907
    %v2910 = vmax.f32 %v2908, %v2909
    %2911 = vst.msk [vmem:[#allocation5 + $0xf] sm:$0xf] %vm2875, %v2910
    %s2912 = scalar_lea.vmem [#allocation4], 41
    %v2913 = vld [vmem:[%s2912] ss:$2 sm:$0xf]
    %s2914 = scalar_lea.vmem [#allocation4], 42
    %v2915 = vld [vmem:[%s2914] ss:$2 sm:$0xf]
    %s2916 = scalar_lea.vmem [#allocation4], 51
    %v2917 = vld [vmem:[%s2916] ss:$2 sm:$0xf]
    %s2918 = scalar_lea.vmem [#allocation4], 52
    %v2919 = vld [vmem:[%s2918] ss:$2 sm:$0xf]
    %v2920 = vmax.f32 %v2913, %v2915
    %v2921 = vmax.f32 %v2917, %v2919
    %v2922 = vmax.f32 %v2920, %v2921
    %2923 = vst.msk [vmem:[#allocation5 + $0x15] sm:$0xf] %vm2875, %v2922
    %s2924 = scalar_lea.vmem [#allocation4], 61
    %v2925 = vld [vmem:[%s2924] ss:$2 sm:$0xf]
    %s2926 = scalar_lea.vmem [#allocation4], 62
    %v2927 = vld [vmem:[%s2926] ss:$2 sm:$0xf]
    %s2928 = scalar_lea.vmem [#allocation4], 71
    %v2929 = vld [vmem:[%s2928] ss:$2 sm:$0xf]
    %s2930 = scalar_lea.vmem [#allocation4], 72
    %v2931 = vld [vmem:[%s2930] ss:$2 sm:$0xf]
    %v2932 = vmax.f32 %v2925, %v2927
    %v2933 = vmax.f32 %v2929, %v2931
    %v2934 = vmax.f32 %v2932, %v2933
    %2935 = vst.msk [vmem:[#allocation5 + $0x1b] sm:$0xf] %vm2875, %v2934
    %s2936 = scalar_lea.vmem [#allocation4], 101
    %v2937 = vld [vmem:[%s2936] ss:$2 sm:$0xf]
    %s2938 = scalar_lea.vmem [#allocation4], 102
    %v2939 = vld [vmem:[%s2938] ss:$2 sm:$0xf]
    %s2940 = scalar_lea.vmem [#allocation4], 111
    %v2941 = vld [vmem:[%s2940] ss:$2 sm:$0xf]
    %s2942 = scalar_lea.vmem [#allocation4], 112
    %v2943 = vld [vmem:[%s2942] ss:$2 sm:$0xf]
    %v2944 = vmax.f32 %v2937, %v2939
    %v2945 = vmax.f32 %v2941, %v2943
    %v2946 = vmax.f32 %v2944, %v2945
    %2947 = vst.msk [vmem:[#allocation5 + $0x2d] sm:$0xf] %vm2875, %v2946
    %s2948 = scalar_lea.vmem [#allocation4], 121
    %v2949 = vld [vmem:[%s2948] ss:$2 sm:$0xf]
    %s2950 = scalar_lea.vmem [#allocation4], 122
    %v2951 = vld [vmem:[%s2950] ss:$2 sm:$0xf]
    %s2952 = scalar_lea.vmem [#allocation4], 131
    %v2953 = vld [vmem:[%s2952] ss:$2 sm:$0xf]
    %s2954 = scalar_lea.vmem [#allocation4], 132
    %v2955 = vld [vmem:[%s2954] ss:$2 sm:$0xf]
    %v2956 = vmax.f32 %v2949, %v2951
    %v2957 = vmax.f32 %v2953, %v2955
    %v2958 = vmax.f32 %v2956, %v2957
    %2959 = vst.msk [vmem:[#allocation5 + $0x33] sm:$0xf] %vm2875, %v2958
    %s2960 = scalar_lea.vmem [#allocation4], 141
    %v2961 = vld [vmem:[%s2960] ss:$2 sm:$0xf]
    %s2962 = scalar_lea.vmem [#allocation4], 142
    %v2963 = vld [vmem:[%s2962] ss:$2 sm:$0xf]
    %s2964 = scalar_lea.vmem [#allocation4], 151
    %v2965 = vld [vmem:[%s2964] ss:$2 sm:$0xf]
    %s2966 = scalar_lea.vmem [#allocation4], 152
    %v2967 = vld [vmem:[%s2966] ss:$2 sm:$0xf]
    %v2968 = vmax.f32 %v2961, %v2963
    %v2969 = vmax.f32 %v2965, %v2967
    %v2970 = vmax.f32 %v2968, %v2969
    %2971 = vst.msk [vmem:[#allocation5 + $0x39] sm:$0xf] %vm2875, %v2970
    %s2972 = scalar_lea.vmem [#allocation4], 161
    %v2973 = vld [vmem:[%s2972] ss:$2 sm:$0xf]
    %s2974 = scalar_lea.vmem [#allocation4], 162
    %v2975 = vld [vmem:[%s2974] ss:$2 sm:$0xf]
    %s2976 = scalar_lea.vmem [#allocation4], 171
    %v2977 = vld [vmem:[%s2976] ss:$2 sm:$0xf]
    %s2978 = scalar_lea.vmem [#allocation4], 172
    %v2979 = vld [vmem:[%s2978] ss:$2 sm:$0xf]
    %v2980 = vmax.f32 %v2973, %v2975
    %v2981 = vmax.f32 %v2977, %v2979
    %v2982 = vmax.f32 %v2980, %v2981
    %2983 = vst.msk [vmem:[#allocation5 + $0x3f] sm:$0xf] %vm2875, %v2982
    %v2984 = vld [vmem:[#allocation5 + $0x8] sm:$0xff]
    %v2985 = vld [vmem:[#allocation5 + $0x10] sm:$0xff]
    %v2986 = vld [vmem:[#allocation5 + $0x18] sm:$0xff]
    %v2987 = vld [vmem:[#allocation5 + $0x20] sm:$0xff]
    %v2988 = vld [vmem:[#allocation5 + $0x28] sm:$0xff]
    %v2989 = vld [vmem:[#allocation5 + $0x30] sm:$0xff]
    %v2990 = vld [vmem:[#allocation5 + $0x38] sm:$0xff]
    %v2991 = vld [vmem:[#allocation5 + $0x40] sm:$0xf]
    %v2992 = vld [vmem:[%s27] sm:$0xff]
    %v2993 = vld [vmem:[%s27 + $0x8] sm:$0xff]
    %v2995 = vsel %vm2852, %v2984, 0
    %v2998 = vsel %vm2852, %v2985, 0
    %v3001 = vsel %vm2852, %v2986, 0
    %v3004 = vsel %vm2852, %v2987, 0
    %v3007 = vsel %vm2852, %v2988, 0
    %v3010 = vsel %vm2852, %v2989, 0
    %v3013 = vsel %vm2852, %v2990, 0
    %v3016 = vsel %vm2852, %v2991, 0
    %3018 = vmatprep.subr.mxu0 0.0
    %3019 = vmatpush1.msra.mxu0 %v2992
    %3020 = vmatprep.subr.mxu0 0.0
    %3021 = vmatpush1.msra.mxu0 %v2993
    %3022 = vmatprep.subr.mxu0 0.0
    %3023 = vmatpush1.msra.mxu0 0.0
    %3024 = vmatprep.subr.mxu0 0.0
    %3025 = vmatpush1.msra.mxu0 0.0
    %3026 = vmatprep.subr.mxu0 0.0
    %3027 = vmatpush1.msra.mxu0 0.0
    %3028 = vmatprep.subr.mxu0 0.0
    %3029 = vmatpush1.msra.mxu0 0.0
    %3030 = vmatprep.subr.mxu0 0.0
    %3031 = vmatpush1.msra.mxu0 0.0
    %3032 = vmatprep.subr.mxu0 0.0
    %3033 = vmatpush1.msra.mxu0 0.0
    %3034 = vmatprep.subr.mxu0 0.0
    %3035 = vmatpush1.msra.mxu0 0.0
    %3036 = vmatprep.subr.mxu0 0.0
    %3037 = vmatpush1.msra.mxu0 0.0
    %3038 = vmatprep.subr.mxu0 0.0
    %3039 = vmatpush1.msra.mxu0 0.0
    %3040 = vmatprep.subr.mxu0 0.0
    %3041 = vmatpush1.msra.mxu0 0.0
    %3042 = vmatprep.subr.mxu0 0.0
    %3043 = vmatpush1.msra.mxu0 0.0
    %3044 = vmatprep.subr.mxu0 0.0
    %3045 = vmatpush1.msra.mxu0 0.0
    %3046 = vmatprep.subr.mxu0 0.0
    %3047 = vmatpush1.msra.mxu0 0.0
    %3048 = vmatprep.subr.mxu0 0.0
    %3049 = vmatpush1.msra.mxu0 0.0
    %3050 = vmatprep.subr.mxu0 0.0
    %3051 = vmatpush1.msra.mxu0 0.0
    %3052 = vmatprep.subr.mxu0 0.0
    %3053 = vmatpush1.msra.mxu0 0.0
    %3054 = vmatprep.subr.mxu0 0.0
    %3055 = vmatpush1.msra.mxu0 0.0
    %3056 = vmatprep.subr.mxu0 0.0
    %3057 = vmatpush1.msra.mxu0 0.0
    %3058 = vmatprep.subr.mxu0 0.0
    %3059 = vmatpush1.msra.mxu0 0.0
    %3060 = vmatprep.subr.mxu0 0.0
    %3061 = vmatpush1.msra.mxu0 0.0
    %3062 = vmatprep.subr.mxu0 0.0
    %3063 = vmatpush1.msra.mxu0 0.0
    %3064 = vmatprep.subr.mxu0 0.0
    %3065 = vmatpush1.msra.mxu0 0.0
    %3066 = vmatprep.subr.mxu0 0.0
    %3067 = vmatpush1.msra.mxu0 0.0
    %3068 = vmatprep.subr.mxu0 0.0
    %3069 = vmatpush1.msra.mxu0 0.0
    %3070 = vmatprep.subr.mxu0 0.0
    %3071 = vmatpush1.msra.mxu0 0.0
    %3072 = vmatprep.subr.mxu0 0.0
    %3073 = vmatpush1.msra.mxu0 0.0
    %3074 = vmatprep.subr.mxu0 0.0
    %3075 = vmatpush1.msra.mxu0 0.0
    %3076 = vmatprep.subr.mxu0 0.0
    %3077 = vmatpush1.msra.mxu0 0.0
    %3078 = vmatprep.subr.mxu0 0.0
    %3079 = vmatpush1.msra.mxu0 0.0
    %3080 = vmatprep.subr.mxu0 0.0
    %3081 = vmatpush1.msra.mxu0 0.0
    %3082 = vmatprep.mubr.f32.mxu0 0.0
    %3083 = vmatmul.mubr.f32.gmra.mrb[0].mxu0 %v2995
    %v3084 = vpop.f32.mrb[0].mxu0
    %v3085 = vadd.f32 0.0, %v3084
    %v3086 = vpop.f32.mrb[0].mxu0
    %3087 = vmatprep.mubr.f32.mxu0 0.0
    %3088 = vmatmul.mubr.f32.gmra.mrb[0].mxu0 %v2998
    %v3089 = vpop.f32.mrb[0].mxu0
    %v3090 = vadd.f32 0.0, %v3089
    %v3091 = vpop.f32.mrb[0].mxu0
    %3092 = vmatprep.mubr.f32.mxu0 0.0
    %3093 = vmatmul.mubr.f32.gmra.mrb[0].mxu0 %v3001
    %v3094 = vpop.f32.mrb[0].mxu0
    %v3095 = vadd.f32 0.0, %v3094
    %v3096 = vpop.f32.mrb[0].mxu0
    %3097 = vmatprep.mubr.f32.mxu0 0.0
    %3098 = vmatmul.mubr.f32.gmra.mrb[0].mxu0 %v3004
    %v3099 = vpop.f32.mrb[0].mxu0
    %v3100 = vadd.f32 0.0, %v3099
    %v3101 = vpop.f32.mrb[0].mxu0
    %3102 = vmatprep.mubr.f32.mxu0 0.0
    %3103 = vmatmul.mubr.f32.gmra.mrb[0].mxu0 %v3007
    %v3104 = vpop.f32.mrb[0].mxu0
    %v3105 = vadd.f32 0.0, %v3104
    %v3106 = vpop.f32.mrb[0].mxu0
    %3107 = vmatprep.mubr.f32.mxu0 0.0
    %3108 = vmatmul.mubr.f32.gmra.mrb[0].mxu0 %v3010
    %v3109 = vpop.f32.mrb[0].mxu0
    %v3110 = vadd.f32 0.0, %v3109
    %v3111 = vpop.f32.mrb[0].mxu0
    %3112 = vmatprep.mubr.f32.mxu0 0.0
    %3113 = vmatmul.mubr.f32.gmra.mrb[0].mxu0 %v3013
    %v3114 = vpop.f32.mrb[0].mxu0
    %v3115 = vadd.f32 0.0, %v3114
    %v3116 = vpop.f32.mrb[0].mxu0
    %3117 = vmatprep.mubr.f32.mxu0 0.0
    %3118 = vmatmul.mubr.f32.gmra.mrb[0].mxu0 %v3016
    %v3119 = vpop.f32.mrb[0].mxu0
    %v3120 = vadd.f32 0.0, %v3119
    %v3121 = vpop.f32.mrb[0].mxu0
    %3122 = vdwg.mxu0
    %v3123 = vld [vmem:[%s29] sm:$0x1]
    %v3125 = vlaneseq
    %v3126 = vshrl.u32 %v3125, 7
    %v3127 = vsub.s32 0, %v3126
    %v3128 = vrot.slane %v3123, %v3127
    %v3130 = vmul.f32 %v3085, %v3128
    %v3131 = vmul.f32 %v3090, %v3128
    %v3132 = vmul.f32 %v3095, %v3128
    %v3133 = vmul.f32 %v3100, %v3128
    %v3134 = vmul.f32 %v3105, %v3128
    %v3135 = vmul.f32 %v3110, %v3128
    %v3136 = vmul.f32 %v3115, %v3128
    %v3137 = vmul.f32 %v3120, %v3128
    %v3138 = vld [vmem:[%s31] sm:$0x1]
    %v3140 = vlaneseq
    %v3141 = vshrl.u32 %v3140, 7
    %v3142 = vsub.s32 0, %v3141
    %v3143 = vrot.slane %v3138, %v3142
    %v3145 = vadd.f32 %v3130, %v3143
    %v3146 = vadd.f32 %v3131, %v3143
    %v3147 = vadd.f32 %v3132, %v3143
    %v3148 = vadd.f32 %v3133, %v3143
    %v3149 = vadd.f32 %v3134, %v3143
    %v3150 = vadd.f32 %v3135, %v3143
    %v3151 = vadd.f32 %v3136, %v3143
    %v3152 = vadd.f32 %v3137, %v3143
    %v3153 = vmax.f32 %v3145, 0.0
    %v3154 = vmax.f32 %v3146, 0.0
    %v3155 = vmax.f32 %v3147, 0.0
    %v3156 = vmax.f32 %v3148, 0.0
    %v3157 = vmax.f32 %v3149, 0.0
    %v3158 = vmax.f32 %v3150, 0.0
    %v3159 = vmax.f32 %v3151, 0.0
    %v3160 = vmax.f32 %v3152, 0.0
    %3161 = vst.msk [vmem:[#allocation6] sm:$0xff] %vm2852, 0.0
    %v3162 = vld [vmem:[%s3] sm:$0xff]
    %v3163 = vld [vmem:[%s3 + $0x8] sm:$0xff]
    %v3164 = vld [vmem:[%s3 + $0x10] sm:$0xff]
    %v3165 = vld [vmem:[%s3 + $0x18] sm:$0xff]
    %v3166 = vld [vmem:[%s3 + $0x20] sm:$0xff]
    %v3167 = vld [vmem:[%s3 + $0x28] sm:$0xff]
    %v3168 = vld [vmem:[%s3 + $0x30] sm:$0xff]
    %v3169 = vld [vmem:[%s3 + $0x38] sm:$0xf]
    %vm3170 = vcmp.gt.f32.partialorder %v3162, 0.5
    %vm3171 = vcmp.gt.f32.partialorder %v3163, 0.5
    %vm3172 = vcmp.gt.f32.partialorder %v3164, 0.5
    %vm3173 = vcmp.gt.f32.partialorder %v3165, 0.5
    %vm3174 = vcmp.gt.f32.partialorder %v3166, 0.5
    %vm3175 = vcmp.gt.f32.partialorder %v3167, 0.5
    %vm3176 = vcmp.gt.f32.partialorder %v3168, 0.5
    %vm3177 = vcmp.gt.f32.partialorder %v3169, 0.5
    %v3178 = vsel %vm3170, 1, 0
    %v3179 = vsel %vm3171, 1, 0
    %v3180 = vsel %vm3172, 1, 0
    %v3181 = vsel %vm3173, 1, 0
    %v3182 = vsel %vm3174, 1, 0
    %v3183 = vsel %vm3175, 1, 0
    %v3184 = vsel %vm3176, 1, 0
    %v3185 = vsel %vm3177, 1, 0
    %3186 = vset.pattern.permute.xlu0 0
    %3187 = vperm.xlu0 %3186, %v3178
    %v3188 = vpop.permute.xlu0 %3187
    %3189 = vset.pattern.permute.xlu0 0
    %3190 = vperm.xlu0 %3189, %v3179
    %v3191 = vpop.permute.xlu0 %3190
    %3192 = vset.pattern.permute.xlu0 0
    %3193 = vperm.xlu0 %3192, %v3180
    %v3194 = vpop.permute.xlu0 %3193
    %3195 = vset.pattern.permute.xlu0 0
    %3196 = vperm.xlu0 %3195, %v3181
    %v3197 = vpop.permute.xlu0 %3196
    %3198 = vset.pattern.permute.xlu0 0
    %3199 = vperm.xlu0 %3198, %v3182
    %v3200 = vpop.permute.xlu0 %3199
    %3201 = vset.pattern.permute.xlu0 0
    %3202 = vperm.xlu0 %3201, %v3183
    %v3203 = vpop.permute.xlu0 %3202
    %3204 = vset.pattern.permute.xlu0 0
    %3205 = vperm.xlu0 %3204, %v3184
    %v3206 = vpop.permute.xlu0 %3205
    %3207 = vset.pattern.permute.xlu0 0
    %3208 = vperm.xlu0 %3207, %v3185
    %v3209 = vpop.permute.xlu0 %3208
    %vm3210 = vcmp.eq.s32.totalorder %v3188, 1
    %vm3211 = vcmp.eq.s32.totalorder %v3191, 1
    %vm3212 = vcmp.eq.s32.totalorder %v3194, 1
    %vm3213 = vcmp.eq.s32.totalorder %v3197, 1
    %vm3214 = vcmp.eq.s32.totalorder %v3200, 1
    %vm3215 = vcmp.eq.s32.totalorder %v3203, 1
    %vm3216 = vcmp.eq.s32.totalorder %v3206, 1
    %vm3217 = vcmp.eq.s32.totalorder %v3209, 1
    %v3218 = vsel %vm3210, %v3153, 0.0
    %v3219 = vsel %vm3211, %v3154, 0.0
    %v3220 = vsel %vm3212, %v3155, 0.0
    %v3221 = vsel %vm3213, %v3156, 0.0
    %v3222 = vsel %vm3214, %v3157, 0.0
    %v3223 = vsel %vm3215, %v3158, 0.0
    %v3224 = vsel %vm3216, %v3159, 0.0
    %v3225 = vsel %vm3217, %v3160, 0.0
    %3226 = vst.msk [vmem:[#allocation6 + $0x8] sm:$0xff] %vm2852, %v3218
    %3227 = vst.msk [vmem:[#allocation6 + $0x10] sm:$0xff] %vm2852, %v3219
    %3228 = vst.msk [vmem:[#allocation6 + $0x18] sm:$0xff] %vm2852, %v3220
    %3229 = vst.msk [vmem:[#allocation6 + $0x20] sm:$0xff] %vm2852, %v3221
    %3230 = vst.msk [vmem:[#allocation6 + $0x28] sm:$0xff] %vm2852, %v3222
    %3231 = vst.msk [vmem:[#allocation6 + $0x30] sm:$0xff] %vm2852, %v3223
    %3232 = vst.msk [vmem:[#allocation6 + $0x38] sm:$0xff] %vm2852, %v3224
    %3233 = vst.msk [vmem:[#allocation6 + $0x40] sm:$0xf] %vm2875, %v3225
    %vm3234 = vcmask 129024
    %3235 = vst.msk [vmem:[#allocation6 + $0x44] sm:$0x7f] %vm3234, 0.0
    %v3236 = vld [vmem:[#allocation6 + $0x1] sm:$0xff]
    %v3237 = vld [vmem:[#allocation6 + $0x9] sm:$0xff]
    %v3238 = vld [vmem:[#allocation6 + $0x11] sm:$0xff]
    %v3239 = vld [vmem:[#allocation6 + $0x19] sm:$0xff]
    %v3240 = vld [vmem:[#allocation6 + $0x21] sm:$0xff]
    %v3241 = vld [vmem:[#allocation6 + $0x29] sm:$0xff]
    %v3242 = vld [vmem:[#allocation6 + $0x31] sm:$0xff]
    %v3243 = vld [vmem:[#allocation6 + $0x39] sm:$0xf]
    %v3244 = vld [vmem:[#allocation6 + $0x2] sm:$0xff]
    %v3245 = vld [vmem:[#allocation6 + $0xa] sm:$0xff]
    %v3246 = vld [vmem:[#allocation6 + $0x12] sm:$0xff]
    %v3247 = vld [vmem:[#allocation6 + $0x1a] sm:$0xff]
    %v3248 = vld [vmem:[#allocation6 + $0x22] sm:$0xff]
    %v3249 = vld [vmem:[#allocation6 + $0x2a] sm:$0xff]
    %v3250 = vld [vmem:[#allocation6 + $0x32] sm:$0xff]
    %v3251 = vld [vmem:[#allocation6 + $0x3a] sm:$0xf]
    %v3252 = vld [vmem:[#allocation6 + $0x3] sm:$0xff]
    %v3253 = vld [vmem:[#allocation6 + $0xb] sm:$0xff]
    %v3254 = vld [vmem:[#allocation6 + $0x13] sm:$0xff]
    %v3255 = vld [vmem:[#allocation6 + $0x1b] sm:$0xff]
    %v3256 = vld [vmem:[#allocation6 + $0x23] sm:$0xff]
    %v3257 = vld [vmem:[#allocation6 + $0x2b] sm:$0xff]
    %v3258 = vld [vmem:[#allocation6 + $0x33] sm:$0xff]
    %v3259 = vld [vmem:[#allocation6 + $0x3b] sm:$0xf]
    %v3260 = vld [vmem:[#allocation6 + $0x7] sm:$0xff]
    %v3261 = vld [vmem:[#allocation6 + $0xf] sm:$0xff]
    %v3262 = vld [vmem:[#allocation6 + $0x17] sm:$0xff]
    %v3263 = vld [vmem:[#allocation6 + $0x1f] sm:$0xff]
    %v3264 = vld [vmem:[#allocation6 + $0x27] sm:$0xff]
    %v3265 = vld [vmem:[#allocation6 + $0x2f] sm:$0xff]
    %v3266 = vld [vmem:[#allocation6 + $0x37] sm:$0xff]
    %v3267 = vld [vmem:[#allocation6 + $0x3f] sm:$0xf]
    %v3268 = vld [vmem:[#allocation6 + $0x8] sm:$0xff]
    %v3269 = vld [vmem:[#allocation6 + $0x10] sm:$0xff]
    %v3270 = vld [vmem:[#allocation6 + $0x18] sm:$0xff]
    %v3271 = vld [vmem:[#allocation6 + $0x20] sm:$0xff]
    %v3272 = vld [vmem:[#allocation6 + $0x28] sm:$0xff]
    %v3273 = vld [vmem:[#allocation6 + $0x30] sm:$0xff]
    %v3274 = vld [vmem:[#allocation6 + $0x38] sm:$0xff]
    %v3275 = vld [vmem:[#allocation6 + $0x40] sm:$0xf]
    %v3276 = vld [vmem:[#allocation6 + $0x39] sm:$0xff]
    %v3277 = vld [vmem:[#allocation6 + $0x41] sm:$0xf]
    %v3278 = vld [vmem:[#allocation6 + $0xd] sm:$0xff]
    %v3279 = vld [vmem:[#allocation6 + $0x15] sm:$0xff]
    %v3280 = vld [vmem:[#allocation6 + $0x1d] sm:$0xff]
    %v3281 = vld [vmem:[#allocation6 + $0x25] sm:$0xff]
    %v3282 = vld [vmem:[#allocation6 + $0x2d] sm:$0xff]
    %v3283 = vld [vmem:[#allocation6 + $0x35] sm:$0xff]
    %v3284 = vld [vmem:[#allocation6 + $0x3d] sm:$0xff]
    %v3285 = vld [vmem:[#allocation6 + $0x45] sm:$0xf]
    %v3286 = vld [vmem:[#allocation6 + $0xe] sm:$0xff]
    %v3287 = vld [vmem:[#allocation6 + $0x16] sm:$0xff]
    %v3288 = vld [vmem:[#allocation6 + $0x1e] sm:$0xff]
    %v3289 = vld [vmem:[#allocation6 + $0x26] sm:$0xff]
    %v3290 = vld [vmem:[#allocation6 + $0x2e] sm:$0xff]
    %v3291 = vld [vmem:[#allocation6 + $0x36] sm:$0xff]
    %v3292 = vld [vmem:[#allocation6 + $0x3e] sm:$0xff]
    %v3293 = vld [vmem:[#allocation6 + $0x46] sm:$0xf]
    %v3294 = vld [vmem:[#allocation6 + $0x3f] sm:$0xff]
    %v3295 = vld [vmem:[#allocation6 + $0x47] sm:$0xf]
    %3304 = vrot.lane.b32.xlu0 %v3244, 16
    %v3305 = vpop.permute.xlu0 %3304
    %3306 = vrot.lane.b32.xlu0 %v3245, 16
    %v3307 = vpop.permute.xlu0 %3306
    %3308 = vrot.lane.b32.xlu0 %v3246, 16
    %v3309 = vpop.permute.xlu0 %3308
    %3310 = vrot.lane.b32.xlu0 %v3247, 16
    %v3311 = vpop.permute.xlu0 %3310
    %3312 = vrot.lane.b32.xlu0 %v3248, 16
    %v3313 = vpop.permute.xlu0 %3312
    %3314 = vrot.lane.b32.xlu0 %v3249, 16
    %v3315 = vpop.permute.xlu0 %3314
    %3316 = vrot.lane.b32.xlu0 %v3250, 16
    %v3317 = vpop.permute.xlu0 %3316
    %3318 = vrot.lane.b32.xlu0 %v3251, 16
    %v3319 = vpop.permute.xlu0 %3318
    %3336 = vrot.lane.b32.xlu0 %v3252, 32
    %v3337 = vpop.permute.xlu0 %3336
    %3338 = vrot.lane.b32.xlu0 %v3253, 32
    %v3339 = vpop.permute.xlu0 %3338
    %3340 = vrot.lane.b32.xlu0 %v3254, 32
    %v3341 = vpop.permute.xlu0 %3340
    %3342 = vrot.lane.b32.xlu0 %v3255, 32
    %v3343 = vpop.permute.xlu0 %3342
    %3344 = vrot.lane.b32.xlu0 %v3256, 32
    %v3345 = vpop.permute.xlu0 %3344
    %3346 = vrot.lane.b32.xlu0 %v3257, 32
    %v3347 = vpop.permute.xlu0 %3346
    %3348 = vrot.lane.b32.xlu0 %v3258, 32
    %v3349 = vpop.permute.xlu0 %3348
    %3350 = vrot.lane.b32.xlu0 %v3259, 32
    %v3351 = vpop.permute.xlu0 %3350
    %3368 = vrot.lane.b32.xlu0 %v3260, 48
    %v3369 = vpop.permute.xlu0 %3368
    %3370 = vrot.lane.b32.xlu0 %v3261, 48
    %v3371 = vpop.permute.xlu0 %3370
    %3372 = vrot.lane.b32.xlu0 %v3262, 48
    %v3373 = vpop.permute.xlu0 %3372
    %3374 = vrot.lane.b32.xlu0 %v3263, 48
    %v3375 = vpop.permute.xlu0 %3374
    %3376 = vrot.lane.b32.xlu0 %v3264, 48
    %v3377 = vpop.permute.xlu0 %3376
    %3378 = vrot.lane.b32.xlu0 %v3265, 48
    %v3379 = vpop.permute.xlu0 %3378
    %3380 = vrot.lane.b32.xlu0 %v3266, 48
    %v3381 = vpop.permute.xlu0 %3380
    %3382 = vrot.lane.b32.xlu0 %v3267, 48
    %v3383 = vpop.permute.xlu0 %3382
    %3400 = vrot.lane.b32.xlu0 %v3268, 64
    %v3401 = vpop.permute.xlu0 %3400
    %3402 = vrot.lane.b32.xlu0 %v3269, 64
    %v3403 = vpop.permute.xlu0 %3402
    %3404 = vrot.lane.b32.xlu0 %v3270, 64
    %v3405 = vpop.permute.xlu0 %3404
    %3406 = vrot.lane.b32.xlu0 %v3271, 64
    %v3407 = vpop.permute.xlu0 %3406
    %3408 = vrot.lane.b32.xlu0 %v3272, 64
    %v3409 = vpop.permute.xlu0 %3408
    %3410 = vrot.lane.b32.xlu0 %v3273, 64
    %v3411 = vpop.permute.xlu0 %3410
    %3412 = vrot.lane.b32.xlu0 %v3274, 64
    %v3413 = vpop.permute.xlu0 %3412
    %3414 = vrot.lane.b32.xlu0 %v3275, 64
    %v3415 = vpop.permute.xlu0 %3414
    %3432 = vrot.lane.b32.xlu0 %v3237, 80
    %v3433 = vpop.permute.xlu0 %3432
    %3434 = vrot.lane.b32.xlu0 %v3238, 80
    %v3435 = vpop.permute.xlu0 %3434
    %3436 = vrot.lane.b32.xlu0 %v3239, 80
    %v3437 = vpop.permute.xlu0 %3436
    %3438 = vrot.lane.b32.xlu0 %v3240, 80
    %v3439 = vpop.permute.xlu0 %3438
    %3440 = vrot.lane.b32.xlu0 %v3241, 80
    %v3441 = vpop.permute.xlu0 %3440
    %3442 = vrot.lane.b32.xlu0 %v3242, 80
    %v3443 = vpop.permute.xlu0 %3442
    %3444 = vrot.lane.b32.xlu0 %v3276, 80
    %v3445 = vpop.permute.xlu0 %3444
    %3446 = vrot.lane.b32.xlu0 %v3277, 80
    %v3447 = vpop.permute.xlu0 %3446
    %3464 = vrot.lane.b32.xlu0 %v3278, 96
    %v3465 = vpop.permute.xlu0 %3464
    %3466 = vrot.lane.b32.xlu0 %v3279, 96
    %v3467 = vpop.permute.xlu0 %3466
    %3468 = vrot.lane.b32.xlu0 %v3280, 96
    %v3469 = vpop.permute.xlu0 %3468
    %3470 = vrot.lane.b32.xlu0 %v3281, 96
    %v3471 = vpop.permute.xlu0 %3470
    %3472 = vrot.lane.b32.xlu0 %v3282, 96
    %v3473 = vpop.permute.xlu0 %3472
    %3474 = vrot.lane.b32.xlu0 %v3283, 96
    %v3475 = vpop.permute.xlu0 %3474
    %3476 = vrot.lane.b32.xlu0 %v3284, 96
    %v3477 = vpop.permute.xlu0 %3476
    %3478 = vrot.lane.b32.xlu0 %v3285, 96
    %v3479 = vpop.permute.xlu0 %3478
    %3496 = vrot.lane.b32.xlu0 %v3286, 112
    %v3497 = vpop.permute.xlu0 %3496
    %3498 = vrot.lane.b32.xlu0 %v3287, 112
    %v3499 = vpop.permute.xlu0 %3498
    %3500 = vrot.lane.b32.xlu0 %v3288, 112
    %v3501 = vpop.permute.xlu0 %3500
    %3502 = vrot.lane.b32.xlu0 %v3289, 112
    %v3503 = vpop.permute.xlu0 %3502
    %3504 = vrot.lane.b32.xlu0 %v3290, 112
    %v3505 = vpop.permute.xlu0 %3504
    %3506 = vrot.lane.b32.xlu0 %v3291, 112
    %v3507 = vpop.permute.xlu0 %3506
    %3508 = vrot.lane.b32.xlu0 %v3292, 112
    %v3509 = vpop.permute.xlu0 %3508
    %3510 = vrot.lane.b32.xlu0 %v3293, 112
    %v3511 = vpop.permute.xlu0 %3510
    %v3520 = vsel %vm2852, %v3236, %v3305
    %v3521 = vsel %vm2852, %v3237, %v3307
    %v3522 = vsel %vm2852, %v3238, %v3309
    %v3523 = vsel %vm2852, %v3239, %v3311
    %v3524 = vsel %vm2852, %v3240, %v3313
    %v3525 = vsel %vm2852, %v3241, %v3315
    %v3526 = vsel %vm2852, %v3242, %v3317
    %v3527 = vsel %vm2852, %v3243, %v3319
    %v3528 = vsel %vm1191, %v3520, %v3337
    %v3529 = vsel %vm1191, %v3521, %v3339
    %v3530 = vsel %vm1191, %v3522, %v3341
    %v3531 = vsel %vm1191, %v3523, %v3343
    %v3532 = vsel %vm1191, %v3524, %v3345
    %v3533 = vsel %vm1191, %v3525, %v3347
    %v3534 = vsel %vm1191, %v3526, %v3349
    %v3535 = vsel %vm1191, %v3527, %v3351
    %vm3536 = vcmask 392192
    %v3537 = vsel %vm3536, %v3528, %v3369
    %v3538 = vsel %vm3536, %v3529, %v3371
    %v3539 = vsel %vm3536, %v3530, %v3373
    %v3540 = vsel %vm3536, %v3531, %v3375
    %v3541 = vsel %vm3536, %v3532, %v3377
    %v3542 = vsel %vm3536, %v3533, %v3379
    %v3543 = vsel %vm3536, %v3534, %v3381
    %v3544 = vsel %vm3536, %v3535, %v3383
    %v3545 = vsel %vm2187, %v3537, %v3401
    %v3546 = vsel %vm2187, %v3538, %v3403
    %v3547 = vsel %vm2187, %v3539, %v3405
    %v3548 = vsel %vm2187, %v3540, %v3407
    %v3549 = vsel %vm2187, %v3541, %v3409
    %v3550 = vsel %vm2187, %v3542, %v3411
    %v3551 = vsel %vm2187, %v3543, %v3413
    %v3552 = vsel %vm2187, %v3544, %v3415
    %vm3553 = vcmask 654336
    %v3554 = vsel %vm3553, %v3545, %v3433
    %v3555 = vsel %vm3553, %v3546, %v3435
    %v3556 = vsel %vm3553, %v3547, %v3437
    %v3557 = vsel %vm3553, %v3548, %v3439
    %v3558 = vsel %vm3553, %v3549, %v3441
    %v3559 = vsel %vm3553, %v3550, %v3443
    %v3560 = vsel %vm3553, %v3551, %v3445
    %v3561 = vsel %vm3553, %v3552, %v3447
    %v3562 = vsel %vm2211, %v3554, %v3465
    %v3563 = vsel %vm2211, %v3555, %v3467
    %v3564 = vsel %vm2211, %v3556, %v3469
    %v3565 = vsel %vm2211, %v3557, %v3471
    %v3566 = vsel %vm2211, %v3558, %v3473
    %v3567 = vsel %vm2211, %v3559, %v3475
    %v3568 = vsel %vm2211, %v3560, %v3477
    %v3569 = vsel %vm2211, %v3561, %v3479
    %vm3570 = vcmask 916480
    %v3571 = vsel %vm3570, %v3562, %v3497
    %v3572 = vsel %vm3570, %v3563, %v3499
    %v3573 = vsel %vm3570, %v3564, %v3501
    %v3574 = vsel %vm3570, %v3565, %v3503
    %v3575 = vsel %vm3570, %v3566, %v3505
    %v3576 = vsel %vm3570, %v3567, %v3507
    %v3577 = vsel %vm3570, %v3568, %v3509
    %v3578 = vsel %vm3570, %v3569, %v3511
    %v3579 = vld [vmem:[%s33] sm:$0xff]
    %v3580 = vld [vmem:[%s33 + $0x8] sm:$0xff]
    %v3581 = vld [vmem:[%s33 + $0x10] sm:$0xff]
    %v3582 = vld [vmem:[%s33 + $0x18] sm:$0xff]
    %v3583 = vld [vmem:[%s33 + $0x20] sm:$0xff]
    %v3584 = vld [vmem:[%s33 + $0x28] sm:$0xff]
    %v3585 = vld [vmem:[%s33 + $0x30] sm:$0xff]
    %v3586 = vld [vmem:[%s33 + $0x38] sm:$0xff]
    %v3587 = vld [vmem:[%s33 + $0x40] sm:$0xff]
    %v3588 = vld [vmem:[%s33 + $0x48] sm:$0xff]
    %v3589 = vld [vmem:[%s33 + $0x50] sm:$0xff]
    %v3590 = vld [vmem:[%s33 + $0x58] sm:$0xff]
    %v3591 = vld [vmem:[%s33 + $0x60] sm:$0xff]
    %v3592 = vld [vmem:[%s33 + $0x68] sm:$0xff]
    %v3593 = vld [vmem:[%s33 + $0x70] sm:$0xff]
    %v3594 = vld [vmem:[%s33 + $0x78] sm:$0xff]
    %v3595 = vld [vmem:[%s33 + $0x80] sm:$0xff]
    %v3596 = vld [vmem:[%s33 + $0x88] sm:$0xff]
    %v3597 = vsel %vm2852, %v3261, 0
    %v3599 = vsel %vm2852, %v3262, 0
    %v3601 = vsel %vm2852, %v3263, 0
    %v3603 = vsel %vm2852, %v3264, 0
    %v3605 = vsel %vm2852, %v3265, 0
    %v3607 = vsel %vm2852, %v3266, 0
    %v3610 = vsel %vm2852, %v3294, 0
    %v3613 = vsel %vm2852, %v3295, 0
    %3615 = vmatprep.subr.mxu0 0.0
    %3616 = vmatpush1.msra.mxu0 %v3579
    %3617 = vmatprep.subr.mxu0 0.0
    %3618 = vmatpush1.msra.mxu0 %v3580
    %3619 = vmatprep.subr.mxu0 0.0
    %3620 = vmatpush1.msra.mxu0 %v3581
    %3621 = vmatprep.subr.mxu0 0.0
    %3622 = vmatpush1.msra.mxu0 %v3582
    %3623 = vmatprep.subr.mxu0 0.0
    %3624 = vmatpush1.msra.mxu0 %v3583
    %3625 = vmatprep.subr.mxu0 0.0
    %3626 = vmatpush1.msra.mxu0 %v3584
    %3627 = vmatprep.subr.mxu0 0.0
    %3628 = vmatpush1.msra.mxu0 %v3585
    %3629 = vmatprep.subr.mxu0 0.0
    %3630 = vmatpush1.msra.mxu0 %v3586
    %3631 = vmatprep.subr.mxu0 0.0
    %3632 = vmatpush1.msra.mxu0 %v3587
    %3633 = vmatprep.subr.mxu0 0.0
    %3634 = vmatpush1.msra.mxu0 %v3588
    %3635 = vmatprep.subr.mxu0 0.0
    %3636 = vmatpush1.msra.mxu0 %v3589
    %3637 = vmatprep.subr.mxu0 0.0
    %3638 = vmatpush1.msra.mxu0 %v3590
    %3639 = vmatprep.subr.mxu0 0.0
    %3640 = vmatpush1.msra.mxu0 %v3591
    %3641 = vmatprep.subr.mxu0 0.0
    %3642 = vmatpush1.msra.mxu0 %v3592
    %3643 = vmatprep.subr.mxu0 0.0
    %3644 = vmatpush1.msra.mxu0 %v3593
    %3645 = vmatprep.subr.mxu0 0.0
    %3646 = vmatpush1.msra.mxu0 %v3594
    %3647 = vmatprep.subr.mxu0 0.0
    %3648 = vmatpush1.msra.mxu0 %v3595
    %3649 = vmatprep.subr.mxu0 0.0
    %3650 = vmatpush1.msra.mxu0 %v3596
    %3651 = vmatprep.subr.mxu0 0.0
    %3652 = vmatpush1.msra.mxu0 0.0
    %3653 = vmatprep.subr.mxu0 0.0
    %3654 = vmatpush1.msra.mxu0 0.0
    %3655 = vmatprep.subr.mxu0 0.0
    %3656 = vmatpush1.msra.mxu0 0.0
    %3657 = vmatprep.subr.mxu0 0.0
    %3658 = vmatpush1.msra.mxu0 0.0
    %3659 = vmatprep.subr.mxu0 0.0
    %3660 = vmatpush1.msra.mxu0 0.0
    %3661 = vmatprep.subr.mxu0 0.0
    %3662 = vmatpush1.msra.mxu0 0.0
    %3663 = vmatprep.subr.mxu0 0.0
    %3664 = vmatpush1.msra.mxu0 0.0
    %3665 = vmatprep.subr.mxu0 0.0
    %3666 = vmatpush1.msra.mxu0 0.0
    %3667 = vmatprep.subr.mxu0 0.0
    %3668 = vmatpush1.msra.mxu0 0.0
    %3669 = vmatprep.subr.mxu0 0.0
    %3670 = vmatpush1.msra.mxu0 0.0
    %3671 = vmatprep.subr.mxu0 0.0
    %3672 = vmatpush1.msra.mxu0 0.0
    %3673 = vmatprep.subr.mxu0 0.0
    %3674 = vmatpush1.msra.mxu0 0.0
    %3675 = vmatprep.subr.mxu0 0.0
    %3676 = vmatpush1.msra.mxu0 0.0
    %3677 = vmatprep.subr.mxu0 0.0
    %3678 = vmatpush1.msra.mxu0 0.0
    %3679 = vmatprep.mubr.f32.mxu0 %v3597
    %3680 = vmatmul.mubr.f32.gmra.mrb[0].mxu0 %v3571
    %v3681 = vpop.f32.mrb[0].mxu0
    %v3682 = vadd.f32 0.0, %v3681
    %v3683 = vpop.f32.mrb[0].mxu0
    %3684 = vmatprep.mubr.f32.mxu0 %v3599
    %3685 = vmatmul.mubr.f32.gmra.mrb[0].mxu0 %v3572
    %v3686 = vpop.f32.mrb[0].mxu0
    %v3687 = vadd.f32 0.0, %v3686
    %v3688 = vpop.f32.mrb[0].mxu0
    %3689 = vmatprep.mubr.f32.mxu0 %v3601
    %3690 = vmatmul.mubr.f32.gmra.mrb[0].mxu0 %v3573
    %v3691 = vpop.f32.mrb[0].mxu0
    %v3692 = vadd.f32 0.0, %v3691
    %v3693 = vpop.f32.mrb[0].mxu0
    %3694 = vmatprep.mubr.f32.mxu0 %v3603
    %3695 = vmatmul.mubr.f32.gmra.mrb[0].mxu0 %v3574
    %v3696 = vpop.f32.mrb[0].mxu0
    %v3697 = vadd.f32 0.0, %v3696
    %v3698 = vpop.f32.mrb[0].mxu0
    %3699 = vmatprep.mubr.f32.mxu0 %v3605
    %3700 = vmatmul.mubr.f32.gmra.mrb[0].mxu0 %v3575
    %v3701 = vpop.f32.mrb[0].mxu0
    %v3702 = vadd.f32 0.0, %v3701
    %v3703 = vpop.f32.mrb[0].mxu0
    %3704 = vmatprep.mubr.f32.mxu0 %v3607
    %3705 = vmatmul.mubr.f32.gmra.mrb[0].mxu0 %v3576
    %v3706 = vpop.f32.mrb[0].mxu0
    %v3707 = vadd.f32 0.0, %v3706
    %v3708 = vpop.f32.mrb[0].mxu0
    %3709 = vmatprep.mubr.f32.mxu0 %v3610
    %3710 = vmatmul.mubr.f32.gmra.mrb[0].mxu0 %v3577
    %v3711 = vpop.f32.mrb[0].mxu0
    %v3712 = vadd.f32 0.0, %v3711
    %v3713 = vpop.f32.mrb[0].mxu0
    %3714 = vmatprep.mubr.f32.mxu0 %v3613
    %3715 = vmatmul.mubr.f32.gmra.mrb[0].mxu0 %v3578
    %v3716 = vpop.f32.mrb[0].mxu0
    %v3717 = vadd.f32 0.0, %v3716
    %v3718 = vpop.f32.mrb[0].mxu0
    %3719 = vdwg.mxu0
    %v3720 = vld [vmem:[%s35] sm:$0x1]
    %v3722 = vlaneseq
    %v3723 = vshrl.u32 %v3722, 7
    %v3724 = vsub.s32 0, %v3723
    %v3725 = vrot.slane %v3720, %v3724
    %v3727 = vmul.f32 %v3682, %v3725
    %v3728 = vmul.f32 %v3687, %v3725
    %v3729 = vmul.f32 %v3692, %v3725
    %v3730 = vmul.f32 %v3697, %v3725
    %v3731 = vmul.f32 %v3702, %v3725
    %v3732 = vmul.f32 %v3707, %v3725
    %v3733 = vmul.f32 %v3712, %v3725
    %v3734 = vmul.f32 %v3717, %v3725
    %v3735 = vld [vmem:[%s37] sm:$0x1]
    %v3737 = vlaneseq
    %v3738 = vshrl.u32 %v3737, 7
    %v3739 = vsub.s32 0, %v3738
    %v3740 = vrot.slane %v3735, %v3739
    %v3742 = vadd.f32 %v3727, %v3740
    %v3743 = vadd.f32 %v3728, %v3740
    %v3744 = vadd.f32 %v3729, %v3740
    %v3745 = vadd.f32 %v3730, %v3740
    %v3746 = vadd.f32 %v3731, %v3740
    %v3747 = vadd.f32 %v3732, %v3740
    %v3748 = vadd.f32 %v3733, %v3740
    %v3749 = vadd.f32 %v3734, %v3740
    %v3750 = vmax.f32 %v3742, 0.0
    %v3751 = vmax.f32 %v3743, 0.0
    %v3752 = vmax.f32 %v3744, 0.0
    %v3753 = vmax.f32 %v3745, 0.0
    %v3754 = vmax.f32 %v3746, 0.0
    %v3755 = vmax.f32 %v3747, 0.0
    %v3756 = vmax.f32 %v3748, 0.0
    %v3757 = vmax.f32 %v3749, 0.0
    %v3758 = vld [vmem:[%s39] sm:$0xff]
    %v3759 = vld [vmem:[%s39 + $0x8] sm:$0xff]
    %v3760 = vld [vmem:[%s39 + $0x10] sm:$0xff]
    %v3761 = vld [vmem:[%s39 + $0x18] sm:$0xff]
    %v3763 = vsel %vm1191, %v3750, 0
    %v3766 = vsel %vm1191, %v3751, 0
    %v3769 = vsel %vm1191, %v3752, 0
    %v3772 = vsel %vm1191, %v3753, 0
    %v3775 = vsel %vm1191, %v3754, 0
    %v3778 = vsel %vm1191, %v3755, 0
    %v3781 = vsel %vm1191, %v3756, 0
    %v3784 = vsel %vm1191, %v3757, 0
    %3786 = vmatprep.subr.mxu0 0.0
    %3787 = vmatpush1.msra.mxu0 %v3758
    %3788 = vmatprep.subr.mxu0 0.0
    %3789 = vmatpush1.msra.mxu0 %v3759
    %3790 = vmatprep.subr.mxu0 0.0
    %3791 = vmatpush1.msra.mxu0 %v3760
    %3792 = vmatprep.subr.mxu0 0.0
    %3793 = vmatpush1.msra.mxu0 %v3761
    %3794 = vmatprep.subr.mxu0 0.0
    %3795 = vmatpush1.msra.mxu0 0.0
    %3796 = vmatprep.subr.mxu0 0.0
    %3797 = vmatpush1.msra.mxu0 0.0
    %3798 = vmatprep.subr.mxu0 0.0
    %3799 = vmatpush1.msra.mxu0 0.0
    %3800 = vmatprep.subr.mxu0 0.0
    %3801 = vmatpush1.msra.mxu0 0.0
    %3802 = vmatprep.subr.mxu0 0.0
    %3803 = vmatpush1.msra.mxu0 0.0
    %3804 = vmatprep.subr.mxu0 0.0
    %3805 = vmatpush1.msra.mxu0 0.0
    %3806 = vmatprep.subr.mxu0 0.0
    %3807 = vmatpush1.msra.mxu0 0.0
    %3808 = vmatprep.subr.mxu0 0.0
    %3809 = vmatpush1.msra.mxu0 0.0
    %3810 = vmatprep.subr.mxu0 0.0
    %3811 = vmatpush1.msra.mxu0 0.0
    %3812 = vmatprep.subr.mxu0 0.0
    %3813 = vmatpush1.msra.mxu0 0.0
    %3814 = vmatprep.subr.mxu0 0.0
    %3815 = vmatpush1.msra.mxu0 0.0
    %3816 = vmatprep.subr.mxu0 0.0
    %3817 = vmatpush1.msra.mxu0 0.0
    %3818 = vmatprep.subr.mxu0 0.0
    %3819 = vmatpush1.msra.mxu0 0.0
    %3820 = vmatprep.subr.mxu0 0.0
    %3821 = vmatpush1.msra.mxu0 0.0
    %3822 = vmatprep.subr.mxu0 0.0
    %3823 = vmatpush1.msra.mxu0 0.0
    %3824 = vmatprep.subr.mxu0 0.0
    %3825 = vmatpush1.msra.mxu0 0.0
    %3826 = vmatprep.subr.mxu0 0.0
    %3827 = vmatpush1.msra.mxu0 0.0
    %3828 = vmatprep.subr.mxu0 0.0
    %3829 = vmatpush1.msra.mxu0 0.0
    %3830 = vmatprep.subr.mxu0 0.0
    %3831 = vmatpush1.msra.mxu0 0.0
    %3832 = vmatprep.subr.mxu0 0.0
    %3833 = vmatpush1.msra.mxu0 0.0
    %3834 = vmatprep.subr.mxu0 0.0
    %3835 = vmatpush1.msra.mxu0 0.0
    %3836 = vmatprep.subr.mxu0 0.0
    %3837 = vmatpush1.msra.mxu0 0.0
    %3838 = vmatprep.subr.mxu0 0.0
    %3839 = vmatpush1.msra.mxu0 0.0
    %3840 = vmatprep.subr.mxu0 0.0
    %3841 = vmatpush1.msra.mxu0 0.0
    %3842 = vmatprep.subr.mxu0 0.0
    %3843 = vmatpush1.msra.mxu0 0.0
    %3844 = vmatprep.subr.mxu0 0.0
    %3845 = vmatpush1.msra.mxu0 0.0
    %3846 = vmatprep.subr.mxu0 0.0
    %3847 = vmatpush1.msra.mxu0 0.0
    %3848 = vmatprep.subr.mxu0 0.0
    %3849 = vmatpush1.msra.mxu0 0.0
    %3850 = vmatprep.mubr.f32.mxu0 0.0
    %3851 = vmatmul.mubr.f32.gmra.mrb[0].mxu0 %v3763
    %v3852 = vpop.f32.mrb[0].mxu0
    %v3853 = vadd.f32 0.0, %v3852
    %v3854 = vpop.f32.mrb[0].mxu0
    %3855 = vmatprep.mubr.f32.mxu0 0.0
    %3856 = vmatmul.mubr.f32.gmra.mrb[0].mxu0 %v3766
    %v3857 = vpop.f32.mrb[0].mxu0
    %v3858 = vadd.f32 0.0, %v3857
    %v3859 = vpop.f32.mrb[0].mxu0
    %3860 = vmatprep.mubr.f32.mxu0 0.0
    %3861 = vmatmul.mubr.f32.gmra.mrb[0].mxu0 %v3769
    %v3862 = vpop.f32.mrb[0].mxu0
    %v3863 = vadd.f32 0.0, %v3862
    %v3864 = vpop.f32.mrb[0].mxu0
    %3865 = vmatprep.mubr.f32.mxu0 0.0
    %3866 = vmatmul.mubr.f32.gmra.mrb[0].mxu0 %v3772
    %v3867 = vpop.f32.mrb[0].mxu0
    %v3868 = vadd.f32 0.0, %v3867
    %v3869 = vpop.f32.mrb[0].mxu0
    %3870 = vmatprep.mubr.f32.mxu0 0.0
    %3871 = vmatmul.mubr.f32.gmra.mrb[0].mxu0 %v3775
    %v3872 = vpop.f32.mrb[0].mxu0
    %v3873 = vadd.f32 0.0, %v3872
    %v3874 = vpop.f32.mrb[0].mxu0
    %3875 = vmatprep.mubr.f32.mxu0 0.0
    %3876 = vmatmul.mubr.f32.gmra.mrb[0].mxu0 %v3778
    %v3877 = vpop.f32.mrb[0].mxu0
    %v3878 = vadd.f32 0.0, %v3877
    %v3879 = vpop.f32.mrb[0].mxu0
    %3880 = vmatprep.mubr.f32.mxu0 0.0
    %3881 = vmatmul.mubr.f32.gmra.mrb[0].mxu0 %v3781
    %v3882 = vpop.f32.mrb[0].mxu0
    %v3883 = vadd.f32 0.0, %v3882
    %v3884 = vpop.f32.mrb[0].mxu0
    %3885 = vmatprep.mubr.f32.mxu0 0.0
    %3886 = vmatmul.mubr.f32.gmra.mrb[0].mxu0 %v3784
    %v3887 = vpop.f32.mrb[0].mxu0
    %v3888 = vadd.f32 0.0, %v3887
    %v3889 = vpop.f32.mrb[0].mxu0
    %3890 = vdwg.mxu0
    %v3891 = vld [vmem:[%s41] sm:$0x1]
    %v3893 = vlaneseq
    %v3894 = vshrl.u32 %v3893, 7
    %v3895 = vsub.s32 0, %v3894
    %v3896 = vrot.slane %v3891, %v3895
    %v3898 = vmul.f32 %v3853, %v3896
    %v3899 = vmul.f32 %v3858, %v3896
    %v3900 = vmul.f32 %v3863, %v3896
    %v3901 = vmul.f32 %v3868, %v3896
    %v3902 = vmul.f32 %v3873, %v3896
    %v3903 = vmul.f32 %v3878, %v3896
    %v3904 = vmul.f32 %v3883, %v3896
    %v3905 = vmul.f32 %v3888, %v3896
    %v3906 = vld [vmem:[%s43] sm:$0x1]
    %v3908 = vlaneseq
    %v3909 = vshrl.u32 %v3908, 7
    %v3910 = vsub.s32 0, %v3909
    %v3911 = vrot.slane %v3906, %v3910
    %v3913 = vadd.f32 %v3898, %v3911
    %v3914 = vadd.f32 %v3899, %v3911
    %v3915 = vadd.f32 %v3900, %v3911
    %v3916 = vadd.f32 %v3901, %v3911
    %v3917 = vadd.f32 %v3902, %v3911
    %v3918 = vadd.f32 %v3903, %v3911
    %v3919 = vadd.f32 %v3904, %v3911
    %v3920 = vadd.f32 %v3905, %v3911
    %v3921 = vmax.f32 %v3913, 0.0
    %v3922 = vmax.f32 %v3914, 0.0
    %v3923 = vmax.f32 %v3915, 0.0
    %v3924 = vmax.f32 %v3916, 0.0
    %v3925 = vmax.f32 %v3917, 0.0
    %v3926 = vmax.f32 %v3918, 0.0
    %v3927 = vmax.f32 %v3919, 0.0
    %v3928 = vmax.f32 %v3920, 0.0
    %3929 = vst.msk [vmem:[#allocation7] sm:$0xff] %vm1191, 0.0
    %v3930 = vld [vmem:[%s3] sm:$0xff]
    %v3931 = vld [vmem:[%s3 + $0x8] sm:$0xff]
    %v3932 = vld [vmem:[%s3 + $0x10] sm:$0xff]
    %v3933 = vld [vmem:[%s3 + $0x18] sm:$0xff]
    %v3934 = vld [vmem:[%s3 + $0x20] sm:$0xff]
    %v3935 = vld [vmem:[%s3 + $0x28] sm:$0xff]
    %v3936 = vld [vmem:[%s3 + $0x30] sm:$0xff]
    %v3937 = vld [vmem:[%s3 + $0x38] sm:$0xf]
    %vm3938 = vcmp.gt.f32.partialorder %v3930, 0.5
    %vm3939 = vcmp.gt.f32.partialorder %v3931, 0.5
    %vm3940 = vcmp.gt.f32.partialorder %v3932, 0.5
    %vm3941 = vcmp.gt.f32.partialorder %v3933, 0.5
    %vm3942 = vcmp.gt.f32.partialorder %v3934, 0.5
    %vm3943 = vcmp.gt.f32.partialorder %v3935, 0.5
    %vm3944 = vcmp.gt.f32.partialorder %v3936, 0.5
    %vm3945 = vcmp.gt.f32.partialorder %v3937, 0.5
    %v3946 = vsel %vm3938, 1, 0
    %v3947 = vsel %vm3939, 1, 0
    %v3948 = vsel %vm3940, 1, 0
    %v3949 = vsel %vm3941, 1, 0
    %v3950 = vsel %vm3942, 1, 0
    %v3951 = vsel %vm3943, 1, 0
    %v3952 = vsel %vm3944, 1, 0
    %v3953 = vsel %vm3945, 1, 0
    %3954 = vset.pattern.permute.xlu0 0
    %3955 = vperm.xlu0 %3954, %v3946
    %v3956 = vpop.permute.xlu0 %3955
    %3957 = vset.pattern.permute.xlu0 0
    %3958 = vperm.xlu0 %3957, %v3947
    %v3959 = vpop.permute.xlu0 %3958
    %3960 = vset.pattern.permute.xlu0 0
    %3961 = vperm.xlu0 %3960, %v3948
    %v3962 = vpop.permute.xlu0 %3961
    %3963 = vset.pattern.permute.xlu0 0
    %3964 = vperm.xlu0 %3963, %v3949
    %v3965 = vpop.permute.xlu0 %3964
    %3966 = vset.pattern.permute.xlu0 0
    %3967 = vperm.xlu0 %3966, %v3950
    %v3968 = vpop.permute.xlu0 %3967
    %3969 = vset.pattern.permute.xlu0 0
    %3970 = vperm.xlu0 %3969, %v3951
    %v3971 = vpop.permute.xlu0 %3970
    %3972 = vset.pattern.permute.xlu0 0
    %3973 = vperm.xlu0 %3972, %v3952
    %v3974 = vpop.permute.xlu0 %3973
    %3975 = vset.pattern.permute.xlu0 0
    %3976 = vperm.xlu0 %3975, %v3953
    %v3977 = vpop.permute.xlu0 %3976
    %vm3978 = vcmp.eq.s32.totalorder %v3956, 1
    %vm3979 = vcmp.eq.s32.totalorder %v3959, 1
    %vm3980 = vcmp.eq.s32.totalorder %v3962, 1
    %vm3981 = vcmp.eq.s32.totalorder %v3965, 1
    %vm3982 = vcmp.eq.s32.totalorder %v3968, 1
    %vm3983 = vcmp.eq.s32.totalorder %v3971, 1
    %vm3984 = vcmp.eq.s32.totalorder %v3974, 1
    %vm3985 = vcmp.eq.s32.totalorder %v3977, 1
    %v3986 = vsel %vm3978, %v3921, 0.0
    %v3987 = vsel %vm3979, %v3922, 0.0
    %v3988 = vsel %vm3980, %v3923, 0.0
    %v3989 = vsel %vm3981, %v3924, 0.0
    %v3990 = vsel %vm3982, %v3925, 0.0
    %v3991 = vsel %vm3983, %v3926, 0.0
    %v3992 = vsel %vm3984, %v3927, 0.0
    %v3993 = vsel %vm3985, %v3928, 0.0
    %3994 = vst.msk [vmem:[#allocation7 + $0x8] sm:$0xff] %vm1191, %v3986
    %3995 = vst.msk [vmem:[#allocation7 + $0x10] sm:$0xff] %vm1191, %v3987
    %3996 = vst.msk [vmem:[#allocation7 + $0x18] sm:$0xff] %vm1191, %v3988
    %3997 = vst.msk [vmem:[#allocation7 + $0x20] sm:$0xff] %vm1191, %v3989
    %3998 = vst.msk [vmem:[#allocation7 + $0x28] sm:$0xff] %vm1191, %v3990
    %3999 = vst.msk [vmem:[#allocation7 + $0x30] sm:$0xff] %vm1191, %v3991
    %4000 = vst.msk [vmem:[#allocation7 + $0x38] sm:$0xff] %vm1191, %v3992
    %4001 = vst.msk [vmem:[#allocation7 + $0x40] sm:$0xf] %vm1268, %v3993
    %4002 = vst.msk [vmem:[#allocation7 + $0x44] sm:$0x7f] %vm1295, 0.0
    %v4003 = vld [vmem:[#allocation7 + $0x1] sm:$0xff]
    %v4004 = vld [vmem:[#allocation7 + $0x9] sm:$0xff]
    %v4005 = vld [vmem:[#allocation7 + $0x11] sm:$0xff]
    %v4006 = vld [vmem:[#allocation7 + $0x19] sm:$0xff]
    %v4007 = vld [vmem:[#allocation7 + $0x21] sm:$0xff]
    %v4008 = vld [vmem:[#allocation7 + $0x29] sm:$0xff]
    %v4009 = vld [vmem:[#allocation7 + $0x31] sm:$0xff]
    %v4010 = vld [vmem:[#allocation7 + $0x39] sm:$0xf]
    %v4011 = vld [vmem:[#allocation7 + $0x2] sm:$0xff]
    %v4012 = vld [vmem:[#allocation7 + $0xa] sm:$0xff]
    %v4013 = vld [vmem:[#allocation7 + $0x12] sm:$0xff]
    %v4014 = vld [vmem:[#allocation7 + $0x1a] sm:$0xff]
    %v4015 = vld [vmem:[#allocation7 + $0x22] sm:$0xff]
    %v4016 = vld [vmem:[#allocation7 + $0x2a] sm:$0xff]
    %v4017 = vld [vmem:[#allocation7 + $0x32] sm:$0xff]
    %v4018 = vld [vmem:[#allocation7 + $0x3a] sm:$0xf]
    %v4019 = vld [vmem:[#allocation7 + $0x3] sm:$0xff]
    %v4020 = vld [vmem:[#allocation7 + $0xb] sm:$0xff]
    %v4021 = vld [vmem:[#allocation7 + $0x13] sm:$0xff]
    %v4022 = vld [vmem:[#allocation7 + $0x1b] sm:$0xff]
    %v4023 = vld [vmem:[#allocation7 + $0x23] sm:$0xff]
    %v4024 = vld [vmem:[#allocation7 + $0x2b] sm:$0xff]
    %v4025 = vld [vmem:[#allocation7 + $0x33] sm:$0xff]
    %v4026 = vld [vmem:[#allocation7 + $0x3b] sm:$0xf]
    %v4027 = vld [vmem:[#allocation7 + $0x7] sm:$0xff]
    %v4028 = vld [vmem:[#allocation7 + $0xf] sm:$0xff]
    %v4029 = vld [vmem:[#allocation7 + $0x17] sm:$0xff]
    %v4030 = vld [vmem:[#allocation7 + $0x1f] sm:$0xff]
    %v4031 = vld [vmem:[#allocation7 + $0x27] sm:$0xff]
    %v4032 = vld [vmem:[#allocation7 + $0x2f] sm:$0xff]
    %v4033 = vld [vmem:[#allocation7 + $0x37] sm:$0xff]
    %v4034 = vld [vmem:[#allocation7 + $0x3f] sm:$0xf]
    %v4035 = vld [vmem:[#allocation7 + $0x8] sm:$0xff]
    %v4036 = vld [vmem:[#allocation7 + $0x10] sm:$0xff]
    %v4037 = vld [vmem:[#allocation7 + $0x18] sm:$0xff]
    %v4038 = vld [vmem:[#allocation7 + $0x20] sm:$0xff]
    %v4039 = vld [vmem:[#allocation7 + $0x28] sm:$0xff]
    %v4040 = vld [vmem:[#allocation7 + $0x30] sm:$0xff]
    %v4041 = vld [vmem:[#allocation7 + $0x38] sm:$0xff]
    %v4042 = vld [vmem:[#allocation7 + $0x40] sm:$0xf]
    %v4043 = vld [vmem:[#allocation7 + $0x39] sm:$0xff]
    %v4044 = vld [vmem:[#allocation7 + $0x41] sm:$0xf]
    %v4045 = vld [vmem:[#allocation7 + $0xd] sm:$0xff]
    %v4046 = vld [vmem:[#allocation7 + $0x15] sm:$0xff]
    %v4047 = vld [vmem:[#allocation7 + $0x1d] sm:$0xff]
    %v4048 = vld [vmem:[#allocation7 + $0x25] sm:$0xff]
    %v4049 = vld [vmem:[#allocation7 + $0x2d] sm:$0xff]
    %v4050 = vld [vmem:[#allocation7 + $0x35] sm:$0xff]
    %v4051 = vld [vmem:[#allocation7 + $0x3d] sm:$0xff]
    %v4052 = vld [vmem:[#allocation7 + $0x45] sm:$0xf]
    %v4053 = vld [vmem:[#allocation7 + $0xe] sm:$0xff]
    %v4054 = vld [vmem:[#allocation7 + $0x16] sm:$0xff]
    %v4055 = vld [vmem:[#allocation7 + $0x1e] sm:$0xff]
    %v4056 = vld [vmem:[#allocation7 + $0x26] sm:$0xff]
    %v4057 = vld [vmem:[#allocation7 + $0x2e] sm:$0xff]
    %v4058 = vld [vmem:[#allocation7 + $0x36] sm:$0xff]
    %v4059 = vld [vmem:[#allocation7 + $0x3e] sm:$0xff]
    %v4060 = vld [vmem:[#allocation7 + $0x46] sm:$0xf]
    %v4061 = vld [vmem:[#allocation7 + $0x3f] sm:$0xff]
    %v4062 = vld [vmem:[#allocation7 + $0x47] sm:$0xf]
    %4071 = vrot.lane.b32.xlu0 %v4011, 32
    %v4072 = vpop.permute.xlu0 %4071
    %4073 = vrot.lane.b32.xlu0 %v4012, 32
    %v4074 = vpop.permute.xlu0 %4073
    %4075 = vrot.lane.b32.xlu0 %v4013, 32
    %v4076 = vpop.permute.xlu0 %4075
    %4077 = vrot.lane.b32.xlu0 %v4014, 32
    %v4078 = vpop.permute.xlu0 %4077
    %4079 = vrot.lane.b32.xlu0 %v4015, 32
    %v4080 = vpop.permute.xlu0 %4079
    %4081 = vrot.lane.b32.xlu0 %v4016, 32
    %v4082 = vpop.permute.xlu0 %4081
    %4083 = vrot.lane.b32.xlu0 %v4017, 32
    %v4084 = vpop.permute.xlu0 %4083
    %4085 = vrot.lane.b32.xlu0 %v4018, 32
    %v4086 = vpop.permute.xlu0 %4085
    %4103 = vrot.lane.b32.xlu0 %v4019, 64
    %v4104 = vpop.permute.xlu0 %4103
    %4105 = vrot.lane.b32.xlu0 %v4020, 64
    %v4106 = vpop.permute.xlu0 %4105
    %4107 = vrot.lane.b32.xlu0 %v4021, 64
    %v4108 = vpop.permute.xlu0 %4107
    %4109 = vrot.lane.b32.xlu0 %v4022, 64
    %v4110 = vpop.permute.xlu0 %4109
    %4111 = vrot.lane.b32.xlu0 %v4023, 64
    %v4112 = vpop.permute.xlu0 %4111
    %4113 = vrot.lane.b32.xlu0 %v4024, 64
    %v4114 = vpop.permute.xlu0 %4113
    %4115 = vrot.lane.b32.xlu0 %v4025, 64
    %v4116 = vpop.permute.xlu0 %4115
    %4117 = vrot.lane.b32.xlu0 %v4026, 64
    %v4118 = vpop.permute.xlu0 %4117
    %4135 = vrot.lane.b32.xlu0 %v4027, 96
    %v4136 = vpop.permute.xlu0 %4135
    %4137 = vrot.lane.b32.xlu0 %v4028, 96
    %v4138 = vpop.permute.xlu0 %4137
    %4139 = vrot.lane.b32.xlu0 %v4029, 96
    %v4140 = vpop.permute.xlu0 %4139
    %4141 = vrot.lane.b32.xlu0 %v4030, 96
    %v4142 = vpop.permute.xlu0 %4141
    %4143 = vrot.lane.b32.xlu0 %v4031, 96
    %v4144 = vpop.permute.xlu0 %4143
    %4145 = vrot.lane.b32.xlu0 %v4032, 96
    %v4146 = vpop.permute.xlu0 %4145
    %4147 = vrot.lane.b32.xlu0 %v4033, 96
    %v4148 = vpop.permute.xlu0 %4147
    %4149 = vrot.lane.b32.xlu0 %v4034, 96
    %v4150 = vpop.permute.xlu0 %4149
    %4167 = vrot.lane.b32.xlu0 %v4004, 32
    %v4168 = vpop.permute.xlu0 %4167
    %4169 = vrot.lane.b32.xlu0 %v4005, 32
    %v4170 = vpop.permute.xlu0 %4169
    %4171 = vrot.lane.b32.xlu0 %v4006, 32
    %v4172 = vpop.permute.xlu0 %4171
    %4173 = vrot.lane.b32.xlu0 %v4007, 32
    %v4174 = vpop.permute.xlu0 %4173
    %4175 = vrot.lane.b32.xlu0 %v4008, 32
    %v4176 = vpop.permute.xlu0 %4175
    %4177 = vrot.lane.b32.xlu0 %v4009, 32
    %v4178 = vpop.permute.xlu0 %4177
    %4179 = vrot.lane.b32.xlu0 %v4043, 32
    %v4180 = vpop.permute.xlu0 %4179
    %4181 = vrot.lane.b32.xlu0 %v4044, 32
    %v4182 = vpop.permute.xlu0 %4181
    %4199 = vrot.lane.b32.xlu0 %v4045, 64
    %v4200 = vpop.permute.xlu0 %4199
    %4201 = vrot.lane.b32.xlu0 %v4046, 64
    %v4202 = vpop.permute.xlu0 %4201
    %4203 = vrot.lane.b32.xlu0 %v4047, 64
    %v4204 = vpop.permute.xlu0 %4203
    %4205 = vrot.lane.b32.xlu0 %v4048, 64
    %v4206 = vpop.permute.xlu0 %4205
    %4207 = vrot.lane.b32.xlu0 %v4049, 64
    %v4208 = vpop.permute.xlu0 %4207
    %4209 = vrot.lane.b32.xlu0 %v4050, 64
    %v4210 = vpop.permute.xlu0 %4209
    %4211 = vrot.lane.b32.xlu0 %v4051, 64
    %v4212 = vpop.permute.xlu0 %4211
    %4213 = vrot.lane.b32.xlu0 %v4052, 64
    %v4214 = vpop.permute.xlu0 %4213
    %4231 = vrot.lane.b32.xlu0 %v4053, 96
    %v4232 = vpop.permute.xlu0 %4231
    %4233 = vrot.lane.b32.xlu0 %v4054, 96
    %v4234 = vpop.permute.xlu0 %4233
    %4235 = vrot.lane.b32.xlu0 %v4055, 96
    %v4236 = vpop.permute.xlu0 %4235
    %4237 = vrot.lane.b32.xlu0 %v4056, 96
    %v4238 = vpop.permute.xlu0 %4237
    %4239 = vrot.lane.b32.xlu0 %v4057, 96
    %v4240 = vpop.permute.xlu0 %4239
    %4241 = vrot.lane.b32.xlu0 %v4058, 96
    %v4242 = vpop.permute.xlu0 %4241
    %4243 = vrot.lane.b32.xlu0 %v4059, 96
    %v4244 = vpop.permute.xlu0 %4243
    %4245 = vrot.lane.b32.xlu0 %v4060, 96
    %v4246 = vpop.permute.xlu0 %4245
    %v4255 = vsel %vm1191, %v4003, %v4072
    %v4256 = vsel %vm1191, %v4004, %v4074
    %v4257 = vsel %vm1191, %v4005, %v4076
    %v4258 = vsel %vm1191, %v4006, %v4078
    %v4259 = vsel %vm1191, %v4007, %v4080
    %v4260 = vsel %vm1191, %v4008, %v4082
    %v4261 = vsel %vm1191, %v4009, %v4084
    %v4262 = vsel %vm1191, %v4010, %v4086
    %v4263 = vsel %vm2187, %v4255, %v4104
    %v4264 = vsel %vm2187, %v4256, %v4106
    %v4265 = vsel %vm2187, %v4257, %v4108
    %v4266 = vsel %vm2187, %v4258, %v4110
    %v4267 = vsel %vm2187, %v4259, %v4112
    %v4268 = vsel %vm2187, %v4260, %v4114
    %v4269 = vsel %vm2187, %v4261, %v4116
    %v4270 = vsel %vm2187, %v4262, %v4118
    %v4271 = vsel %vm2211, %v4263, %v4136
    %v4272 = vsel %vm2211, %v4264, %v4138
    %v4273 = vsel %vm2211, %v4265, %v4140
    %v4274 = vsel %vm2211, %v4266, %v4142
    %v4275 = vsel %vm2211, %v4267, %v4144
    %v4276 = vsel %vm2211, %v4268, %v4146
    %v4277 = vsel %vm2211, %v4269, %v4148
    %v4278 = vsel %vm2211, %v4270, %v4150
    %v4279 = vsel %vm1191, %v4035, %v4168
    %v4280 = vsel %vm1191, %v4036, %v4170
    %v4281 = vsel %vm1191, %v4037, %v4172
    %v4282 = vsel %vm1191, %v4038, %v4174
    %v4283 = vsel %vm1191, %v4039, %v4176
    %v4284 = vsel %vm1191, %v4040, %v4178
    %v4285 = vsel %vm1191, %v4041, %v4180
    %v4286 = vsel %vm1191, %v4042, %v4182
    %v4287 = vsel %vm2187, %v4279, %v4200
    %v4288 = vsel %vm2187, %v4280, %v4202
    %v4289 = vsel %vm2187, %v4281, %v4204
    %v4290 = vsel %vm2187, %v4282, %v4206
    %v4291 = vsel %vm2187, %v4283, %v4208
    %v4292 = vsel %vm2187, %v4284, %v4210
    %v4293 = vsel %vm2187, %v4285, %v4212
    %v4294 = vsel %vm2187, %v4286, %v4214
    %v4295 = vsel %vm2211, %v4287, %v4232
    %v4296 = vsel %vm2211, %v4288, %v4234
    %v4297 = vsel %vm2211, %v4289, %v4236
    %v4298 = vsel %vm2211, %v4290, %v4238
    %v4299 = vsel %vm2211, %v4291, %v4240
    %v4300 = vsel %vm2211, %v4292, %v4242
    %v4301 = vsel %vm2211, %v4293, %v4244
    %v4302 = vsel %vm2211, %v4294, %v4246
    %v4303 = vld [vmem:[%s45] sm:$0xff]
    %v4304 = vld [vmem:[%s45 + $0x8] sm:$0xff]
    %v4305 = vld [vmem:[%s45 + $0x10] sm:$0xff]
    %v4306 = vld [vmem:[%s45 + $0x18] sm:$0xff]
    %v4307 = vld [vmem:[%s45 + $0x20] sm:$0xff]
    %v4308 = vld [vmem:[%s45 + $0x28] sm:$0xff]
    %v4309 = vld [vmem:[%s45 + $0x30] sm:$0xff]
    %v4310 = vld [vmem:[%s45 + $0x38] sm:$0xff]
    %v4311 = vld [vmem:[%s45 + $0x40] sm:$0xff]
    %v4312 = vld [vmem:[%s45 + $0x48] sm:$0xff]
    %v4313 = vld [vmem:[%s45 + $0x50] sm:$0xff]
    %v4314 = vld [vmem:[%s45 + $0x58] sm:$0xff]
    %v4315 = vld [vmem:[%s45 + $0x60] sm:$0xff]
    %v4316 = vld [vmem:[%s45 + $0x68] sm:$0xff]
    %v4317 = vld [vmem:[%s45 + $0x70] sm:$0xff]
    %v4318 = vld [vmem:[%s45 + $0x78] sm:$0xff]
    %v4319 = vld [vmem:[%s45 + $0x80] sm:$0xff]
    %v4320 = vld [vmem:[%s45 + $0x88] sm:$0xff]
    %v4321 = vld [vmem:[%s45 + $0x90] sm:$0xff]
    %v4322 = vld [vmem:[%s45 + $0x98] sm:$0xff]
    %v4323 = vld [vmem:[%s45 + $0xa0] sm:$0xff]
    %v4324 = vld [vmem:[%s45 + $0xa8] sm:$0xff]
    %v4325 = vld [vmem:[%s45 + $0xb0] sm:$0xff]
    %v4326 = vld [vmem:[%s45 + $0xb8] sm:$0xff]
    %v4327 = vld [vmem:[%s45 + $0xc0] sm:$0xff]
    %v4328 = vld [vmem:[%s45 + $0xc8] sm:$0xff]
    %v4329 = vld [vmem:[%s45 + $0xd0] sm:$0xff]
    %v4330 = vld [vmem:[%s45 + $0xd8] sm:$0xff]
    %v4331 = vld [vmem:[%s45 + $0xe0] sm:$0xff]
    %v4332 = vld [vmem:[%s45 + $0xe8] sm:$0xff]
    %v4333 = vld [vmem:[%s45 + $0xf0] sm:$0xff]
    %v4334 = vld [vmem:[%s45 + $0xf8] sm:$0xff]
    %v4335 = vld [vmem:[%s45 + $0x100] sm:$0xff]
    %v4336 = vld [vmem:[%s45 + $0x108] sm:$0xff]
    %v4337 = vld [vmem:[%s45 + $0x110] sm:$0xff]
    %v4338 = vld [vmem:[%s45 + $0x118] sm:$0xff]
    %v4339 = vsel %vm1191, %v4028, 0
    %v4341 = vsel %vm1191, %v4029, 0
    %v4343 = vsel %vm1191, %v4030, 0
    %v4345 = vsel %vm1191, %v4031, 0
    %v4347 = vsel %vm1191, %v4032, 0
    %v4349 = vsel %vm1191, %v4033, 0
    %v4352 = vsel %vm1191, %v4061, 0
    %v4355 = vsel %vm1191, %v4062, 0
    %4357 = vmatprep.subr.mxu0 0.0
    %4358 = vmatpush1.msra.mxu0 %v4303
    %4359 = vmatprep.subr.mxu0 0.0
    %4360 = vmatpush1.msra.mxu0 %v4304
    %4361 = vmatprep.subr.mxu0 0.0
    %4362 = vmatpush1.msra.mxu0 %v4305
    %4363 = vmatprep.subr.mxu0 0.0
    %4364 = vmatpush1.msra.mxu0 %v4306
    %4365 = vmatprep.subr.mxu0 0.0
    %4366 = vmatpush1.msra.mxu0 %v4307
    %4367 = vmatprep.subr.mxu0 0.0
    %4368 = vmatpush1.msra.mxu0 %v4308
    %4369 = vmatprep.subr.mxu0 0.0
    %4370 = vmatpush1.msra.mxu0 %v4309
    %4371 = vmatprep.subr.mxu0 0.0
    %4372 = vmatpush1.msra.mxu0 %v4310
    %4373 = vmatprep.subr.mxu0 0.0
    %4374 = vmatpush1.msra.mxu0 %v4311
    %4375 = vmatprep.subr.mxu0 0.0
    %4376 = vmatpush1.msra.mxu0 %v4312
    %4377 = vmatprep.subr.mxu0 0.0
    %4378 = vmatpush1.msra.mxu0 %v4313
    %4379 = vmatprep.subr.mxu0 0.0
    %4380 = vmatpush1.msra.mxu0 %v4314
    %4381 = vmatprep.subr.mxu0 0.0
    %4382 = vmatpush1.msra.mxu0 %v4315
    %4383 = vmatprep.subr.mxu0 0.0
    %4384 = vmatpush1.msra.mxu0 %v4316
    %4385 = vmatprep.subr.mxu0 0.0
    %4386 = vmatpush1.msra.mxu0 %v4317
    %4387 = vmatprep.subr.mxu0 0.0
    %4388 = vmatpush1.msra.mxu0 %v4318
    %4389 = vmatprep.subr.mxu0 0.0
    %4390 = vmatpush1.msra.mxu0 %v4319
    %4391 = vmatprep.subr.mxu0 0.0
    %4392 = vmatpush1.msra.mxu0 %v4320
    %4393 = vmatprep.subr.mxu0 0.0
    %4394 = vmatpush1.msra.mxu0 %v4321
    %4395 = vmatprep.subr.mxu0 0.0
    %4396 = vmatpush1.msra.mxu0 %v4322
    %4397 = vmatprep.subr.mxu0 0.0
    %4398 = vmatpush1.msra.mxu0 %v4323
    %4399 = vmatprep.subr.mxu0 0.0
    %4400 = vmatpush1.msra.mxu0 %v4324
    %4401 = vmatprep.subr.mxu0 0.0
    %4402 = vmatpush1.msra.mxu0 %v4325
    %4403 = vmatprep.subr.mxu0 0.0
    %4404 = vmatpush1.msra.mxu0 %v4326
    %4405 = vmatprep.subr.mxu0 0.0
    %4406 = vmatpush1.msra.mxu0 %v4327
    %4407 = vmatprep.subr.mxu0 0.0
    %4408 = vmatpush1.msra.mxu0 %v4328
    %4409 = vmatprep.subr.mxu0 0.0
    %4410 = vmatpush1.msra.mxu0 %v4329
    %4411 = vmatprep.subr.mxu0 0.0
    %4412 = vmatpush1.msra.mxu0 %v4330
    %4413 = vmatprep.subr.mxu0 0.0
    %4414 = vmatpush1.msra.mxu0 %v4331
    %4415 = vmatprep.subr.mxu0 0.0
    %4416 = vmatpush1.msra.mxu0 %v4332
    %4417 = vmatprep.subr.mxu0 0.0
    %4418 = vmatpush1.msra.mxu0 %v4333
    %4419 = vmatprep.subr.mxu0 0.0
    %4420 = vmatpush1.msra.mxu0 %v4334
    %4421 = vmatprep.mubr.f32.mxu0 %v4295
    %4422 = vmatmul.mubr.f32.gmra.mrb[0].mxu0 %v4271
    %v4423 = vpop.f32.mrb[0].mxu0
    %v4424 = vadd.f32 0.0, %v4423
    %v4425 = vpop.f32.mrb[0].mxu0
    %4426 = vmatprep.mubr.f32.mxu0 %v4296
    %4427 = vmatmul.mubr.f32.gmra.mrb[0].mxu0 %v4272
    %v4428 = vpop.f32.mrb[0].mxu0
    %v4429 = vadd.f32 0.0, %v4428
    %v4430 = vpop.f32.mrb[0].mxu0
    %4431 = vmatprep.mubr.f32.mxu0 %v4297
    %4432 = vmatmul.mubr.f32.gmra.mrb[0].mxu0 %v4273
    %v4433 = vpop.f32.mrb[0].mxu0
    %v4434 = vadd.f32 0.0, %v4433
    %v4435 = vpop.f32.mrb[0].mxu0
    %4436 = vmatprep.mubr.f32.mxu0 %v4298
    %4437 = vmatmul.mubr.f32.gmra.mrb[0].mxu0 %v4274
    %v4438 = vpop.f32.mrb[0].mxu0
    %v4439 = vadd.f32 0.0, %v4438
    %v4440 = vpop.f32.mrb[0].mxu0
    %4441 = vmatprep.mubr.f32.mxu0 %v4299
    %4442 = vmatmul.mubr.f32.gmra.mrb[0].mxu0 %v4275
    %v4443 = vpop.f32.mrb[0].mxu0
    %v4444 = vadd.f32 0.0, %v4443
    %v4445 = vpop.f32.mrb[0].mxu0
    %4446 = vmatprep.mubr.f32.mxu0 %v4300
    %4447 = vmatmul.mubr.f32.gmra.mrb[0].mxu0 %v4276
    %v4448 = vpop.f32.mrb[0].mxu0
    %v4449 = vadd.f32 0.0, %v4448
    %v4450 = vpop.f32.mrb[0].mxu0
    %4451 = vmatprep.mubr.f32.mxu0 %v4301
    %4452 = vmatmul.mubr.f32.gmra.mrb[0].mxu0 %v4277
    %v4453 = vpop.f32.mrb[0].mxu0
    %v4454 = vadd.f32 0.0, %v4453
    %v4455 = vpop.f32.mrb[0].mxu0
    %4456 = vmatprep.mubr.f32.mxu0 %v4302
    %4457 = vmatmul.mubr.f32.gmra.mrb[0].mxu0 %v4278
    %v4458 = vpop.f32.mrb[0].mxu0
    %v4459 = vadd.f32 0.0, %v4458
    %v4460 = vpop.f32.mrb[0].mxu0
    %4461 = vdwg.mxu0
    %4462 = vmatprep.subr.mxu0 0.0
    %4463 = vmatpush1.msra.mxu0 %v4335
    %4464 = vmatprep.subr.mxu0 0.0
    %4465 = vmatpush1.msra.mxu0 %v4336
    %4466 = vmatprep.subr.mxu0 0.0
    %4467 = vmatpush1.msra.mxu0 %v4337
    %4468 = vmatprep.subr.mxu0 0.0
    %4469 = vmatpush1.msra.mxu0 %v4338
    %4470 = vmatprep.subr.mxu0 0.0
    %4471 = vmatpush1.msra.mxu0 0.0
    %4472 = vmatprep.subr.mxu0 0.0
    %4473 = vmatpush1.msra.mxu0 0.0
    %4474 = vmatprep.subr.mxu0 0.0
    %4475 = vmatpush1.msra.mxu0 0.0
    %4476 = vmatprep.subr.mxu0 0.0
    %4477 = vmatpush1.msra.mxu0 0.0
    %4478 = vmatprep.subr.mxu0 0.0
    %4479 = vmatpush1.msra.mxu0 0.0
    %4480 = vmatprep.subr.mxu0 0.0
    %4481 = vmatpush1.msra.mxu0 0.0
    %4482 = vmatprep.subr.mxu0 0.0
    %4483 = vmatpush1.msra.mxu0 0.0
    %4484 = vmatprep.subr.mxu0 0.0
    %4485 = vmatpush1.msra.mxu0 0.0
    %4486 = vmatprep.subr.mxu0 0.0
    %4487 = vmatpush1.msra.mxu0 0.0
    %4488 = vmatprep.subr.mxu0 0.0
    %4489 = vmatpush1.msra.mxu0 0.0
    %4490 = vmatprep.subr.mxu0 0.0
    %4491 = vmatpush1.msra.mxu0 0.0
    %4492 = vmatprep.subr.mxu0 0.0
    %4493 = vmatpush1.msra.mxu0 0.0
    %4494 = vmatprep.subr.mxu0 0.0
    %4495 = vmatpush1.msra.mxu0 0.0
    %4496 = vmatprep.subr.mxu0 0.0
    %4497 = vmatpush1.msra.mxu0 0.0
    %4498 = vmatprep.subr.mxu0 0.0
    %4499 = vmatpush1.msra.mxu0 0.0
    %4500 = vmatprep.subr.mxu0 0.0
    %4501 = vmatpush1.msra.mxu0 0.0
    %4502 = vmatprep.subr.mxu0 0.0
    %4503 = vmatpush1.msra.mxu0 0.0
    %4504 = vmatprep.subr.mxu0 0.0
    %4505 = vmatpush1.msra.mxu0 0.0
    %4506 = vmatprep.subr.mxu0 0.0
    %4507 = vmatpush1.msra.mxu0 0.0
    %4508 = vmatprep.subr.mxu0 0.0
    %4509 = vmatpush1.msra.mxu0 0.0
    %4510 = vmatprep.subr.mxu0 0.0
    %4511 = vmatpush1.msra.mxu0 0.0
    %4512 = vmatprep.subr.mxu0 0.0
    %4513 = vmatpush1.msra.mxu0 0.0
    %4514 = vmatprep.subr.mxu0 0.0
    %4515 = vmatpush1.msra.mxu0 0.0
    %4516 = vmatprep.subr.mxu0 0.0
    %4517 = vmatpush1.msra.mxu0 0.0
    %4518 = vmatprep.subr.mxu0 0.0
    %4519 = vmatpush1.msra.mxu0 0.0
    %4520 = vmatprep.subr.mxu0 0.0
    %4521 = vmatpush1.msra.mxu0 0.0
    %4522 = vmatprep.subr.mxu0 0.0
    %4523 = vmatpush1.msra.mxu0 0.0
    %4524 = vmatprep.subr.mxu0 0.0
    %4525 = vmatpush1.msra.mxu0 0.0
    %4526 = vmatprep.mubr.f32.mxu0 0.0
    %4527 = vmatmul.mubr.f32.gmra.mrb[0].mxu0 %v4339
    %v4528 = vpop.f32.mrb[0].mxu0
    %v4529 = vadd.f32 %v4424, %v4528
    %v4530 = vpop.f32.mrb[0].mxu0
    %4531 = vmatprep.mubr.f32.mxu0 0.0
    %4532 = vmatmul.mubr.f32.gmra.mrb[0].mxu0 %v4341
    %v4533 = vpop.f32.mrb[0].mxu0
    %v4534 = vadd.f32 %v4429, %v4533
    %v4535 = vpop.f32.mrb[0].mxu0
    %4536 = vmatprep.mubr.f32.mxu0 0.0
    %4537 = vmatmul.mubr.f32.gmra.mrb[0].mxu0 %v4343
    %v4538 = vpop.f32.mrb[0].mxu0
    %v4539 = vadd.f32 %v4434, %v4538
    %v4540 = vpop.f32.mrb[0].mxu0
    %4541 = vmatprep.mubr.f32.mxu0 0.0
    %4542 = vmatmul.mubr.f32.gmra.mrb[0].mxu0 %v4345
    %v4543 = vpop.f32.mrb[0].mxu0
    %v4544 = vadd.f32 %v4439, %v4543
    %v4545 = vpop.f32.mrb[0].mxu0
    %4546 = vmatprep.mubr.f32.mxu0 0.0
    %4547 = vmatmul.mubr.f32.gmra.mrb[0].mxu0 %v4347
    %v4548 = vpop.f32.mrb[0].mxu0
    %v4549 = vadd.f32 %v4444, %v4548
    %v4550 = vpop.f32.mrb[0].mxu0
    %4551 = vmatprep.mubr.f32.mxu0 0.0
    %4552 = vmatmul.mubr.f32.gmra.mrb[0].mxu0 %v4349
    %v4553 = vpop.f32.mrb[0].mxu0
    %v4554 = vadd.f32 %v4449, %v4553
    %v4555 = vpop.f32.mrb[0].mxu0
    %4556 = vmatprep.mubr.f32.mxu0 0.0
    %4557 = vmatmul.mubr.f32.gmra.mrb[0].mxu0 %v4352
    %v4558 = vpop.f32.mrb[0].mxu0
    %v4559 = vadd.f32 %v4454, %v4558
    %v4560 = vpop.f32.mrb[0].mxu0
    %4561 = vmatprep.mubr.f32.mxu0 0.0
    %4562 = vmatmul.mubr.f32.gmra.mrb[0].mxu0 %v4355
    %v4563 = vpop.f32.mrb[0].mxu0
    %v4564 = vadd.f32 %v4459, %v4563
    %v4565 = vpop.f32.mrb[0].mxu0
    %4566 = vdwg.mxu0
    %v4567 = vld [vmem:[%s47] sm:$0x1]
    %v4569 = vlaneseq
    %v4570 = vshrl.u32 %v4569, 7
    %v4571 = vsub.s32 0, %v4570
    %v4572 = vrot.slane %v4567, %v4571
    %v4574 = vmul.f32 %v4529, %v4572
    %v4575 = vmul.f32 %v4534, %v4572
    %v4576 = vmul.f32 %v4539, %v4572
    %v4577 = vmul.f32 %v4544, %v4572
    %v4578 = vmul.f32 %v4549, %v4572
    %v4579 = vmul.f32 %v4554, %v4572
    %v4580 = vmul.f32 %v4559, %v4572
    %v4581 = vmul.f32 %v4564, %v4572
    %v4582 = vld [vmem:[%s49] sm:$0x1]
    %v4584 = vlaneseq
    %v4585 = vshrl.u32 %v4584, 7
    %v4586 = vsub.s32 0, %v4585
    %v4587 = vrot.slane %v4582, %v4586
    %v4589 = vadd.f32 %v4574, %v4587
    %v4590 = vadd.f32 %v4575, %v4587
    %v4591 = vadd.f32 %v4576, %v4587
    %v4592 = vadd.f32 %v4577, %v4587
    %v4593 = vadd.f32 %v4578, %v4587
    %v4594 = vadd.f32 %v4579, %v4587
    %v4595 = vadd.f32 %v4580, %v4587
    %v4596 = vadd.f32 %v4581, %v4587
    %v4597 = vmax.f32 %v4589, 0.0
    %v4598 = vmax.f32 %v4590, 0.0
    %v4599 = vmax.f32 %v4591, 0.0
    %v4600 = vmax.f32 %v4592, 0.0
    %v4601 = vmax.f32 %v4593, 0.0
    %v4602 = vmax.f32 %v4594, 0.0
    %v4603 = vmax.f32 %v4595, 0.0
    %v4604 = vmax.f32 %v4596, 0.0
    %4605 = vst.msk [vmem:[#allocation8] sm:$0xff] %vm2187, %v4597
    %4606 = vst.msk [vmem:[#allocation8 + $0x8] sm:$0xff] %vm2187, %v4598
    %4607 = vst.msk [vmem:[#allocation8 + $0x10] sm:$0xff] %vm2187, %v4599
    %4608 = vst.msk [vmem:[#allocation8 + $0x18] sm:$0xff] %vm2187, %v4600
    %4609 = vst.msk [vmem:[#allocation8 + $0x20] sm:$0xff] %vm2187, %v4601
    %4610 = vst.msk [vmem:[#allocation8 + $0x28] sm:$0xff] %vm2187, %v4602
    %4611 = vst.msk [vmem:[#allocation8 + $0x30] sm:$0xff] %vm2187, %v4603
    %vm4612 = vcmask 519168
    %4613 = vst.msk [vmem:[#allocation8 + $0x38] sm:$0xf] %vm4612, %v4604
    %4614 = vst.msk [vmem:[#allocation9] sm:$0xff] %vm2187, 0.0
    %4615 = vst.msk [vmem:[#allocation9 + $0x8] sm:$0xff] %vm2187, 0.0
    %4616 = vst.msk [vmem:[#allocation9 + $0x10] sm:$0xff] %vm2187, 0.0
    %4617 = vst.msk [vmem:[#allocation9 + $0x18] sm:$0xff] %vm2187, 0.0
    %vm4618 = vcmask 520192
    %4619 = vst.msk [vmem:[#allocation9 + $0x20] sm:$0x1f] %vm4618, 0.0
    %s4620 = scalar_lea.vmem [#allocation8], 1
    %v4621 = vld [vmem:[%s4620] ss:$2 sm:$0x3]
    %s4622 = scalar_lea.vmem [#allocation8], 2
    %v4623 = vld [vmem:[%s4622] ss:$2 sm:$0x3]
    %s4624 = scalar_lea.vmem [#allocation8], 7
    %v4625 = vld [vmem:[%s4624] ss:$2 sm:$0x3]
    %s4626 = scalar_lea.vmem [#allocation8], 8
    %v4627 = vld [vmem:[%s4626] ss:$2 sm:$0x3]
    %v4628 = vmax.f32 %v4621, %v4623
    %v4629 = vmax.f32 %v4625, %v4627
    %v4630 = vmax.f32 %v4628, %v4629
    %vm4631 = vcmask 517120
    %4632 = vst.msk [vmem:[#allocation9 + $0x9] sm:$0x3] %vm4631, %v4630
    %s4633 = scalar_lea.vmem [#allocation8], 13
    %v4634 = vld [vmem:[%s4633] ss:$2 sm:$0x3]
    %s4635 = scalar_lea.vmem [#allocation8], 14
    %v4636 = vld [vmem:[%s4635] ss:$2 sm:$0x3]
    %s4637 = scalar_lea.vmem [#allocation8], 19
    %v4638 = vld [vmem:[%s4637] ss:$2 sm:$0x3]
    %s4639 = scalar_lea.vmem [#allocation8], 20
    %v4640 = vld [vmem:[%s4639] ss:$2 sm:$0x3]
    %v4641 = vmax.f32 %v4634, %v4636
    %v4642 = vmax.f32 %v4638, %v4640
    %v4643 = vmax.f32 %v4641, %v4642
    %4644 = vst.msk [vmem:[#allocation9 + $0xd] sm:$0x3] %vm4631, %v4643
    %s4645 = scalar_lea.vmem [#allocation8], 37
    %v4646 = vld [vmem:[%s4645] ss:$2 sm:$0x3]
    %s4647 = scalar_lea.vmem [#allocation8], 38
    %v4648 = vld [vmem:[%s4647] ss:$2 sm:$0x3]
    %s4649 = scalar_lea.vmem [#allocation8], 43
    %v4650 = vld [vmem:[%s4649] ss:$2 sm:$0x3]
    %s4651 = scalar_lea.vmem [#allocation8], 44
    %v4652 = vld [vmem:[%s4651] ss:$2 sm:$0x3]
    %v4653 = vmax.f32 %v4646, %v4648
    %v4654 = vmax.f32 %v4650, %v4652
    %v4655 = vmax.f32 %v4653, %v4654
    %4656 = vst.msk [vmem:[#allocation9 + $0x19] sm:$0x3] %vm4631, %v4655
    %s4657 = scalar_lea.vmem [#allocation8], 49
    %v4658 = vld [vmem:[%s4657] ss:$2 sm:$0x3]
    %s4659 = scalar_lea.vmem [#allocation8], 50
    %v4660 = vld [vmem:[%s4659] ss:$2 sm:$0x3]
    %s4661 = scalar_lea.vmem [#allocation8], 55
    %v4662 = vld [vmem:[%s4661] ss:$2 sm:$0x3]
    %s4663 = scalar_lea.vmem [#allocation8], 56
    %v4664 = vld [vmem:[%s4663] ss:$2 sm:$0x3]
    %v4665 = vmax.f32 %v4658, %v4660
    %v4666 = vmax.f32 %v4662, %v4664
    %v4667 = vmax.f32 %v4665, %v4666
    %4668 = vst.msk [vmem:[#allocation9 + $0x1d] sm:$0x3] %vm4631, %v4667
    %v4669 = vld [vmem:[#allocation9 + $0x8] sm:$0xff]
    %v4670 = vld [vmem:[#allocation9 + $0x10] sm:$0xff]
    %v4671 = vld [vmem:[#allocation9 + $0x18] sm:$0xff]
    %v4672 = vld [vmem:[%s51] sm:$0xff]
    %v4673 = vld [vmem:[%s51 + $0x8] sm:$0xff]
    %v4674 = vld [vmem:[%s51 + $0x10] sm:$0xff]
    %v4675 = vld [vmem:[%s51 + $0x18] sm:$0xff]
    %v4676 = vld [vmem:[%s51 + $0x20] sm:$0xff]
    %v4677 = vld [vmem:[%s51 + $0x28] sm:$0xff]
    %v4678 = vld [vmem:[%s51 + $0x30] sm:$0xff]
    %v4679 = vld [vmem:[%s51 + $0x38] sm:$0xff]
    %v4681 = vsel %vm2187, %v4669, 0
    %v4684 = vsel %vm2187, %v4670, 0
    %v4687 = vsel %vm2187, %v4671, 0
    %4689 = vmatprep.subr.mxu0 0.0
    %4690 = vmatpush1.msra.mxu0 %v4672
    %4691 = vmatprep.subr.mxu0 0.0
    %4692 = vmatpush1.msra.mxu0 %v4673
    %4693 = vmatprep.subr.mxu0 0.0
    %4694 = vmatpush1.msra.mxu0 %v4674
    %4695 = vmatprep.subr.mxu0 0.0
    %4696 = vmatpush1.msra.mxu0 %v4675
    %4697 = vmatprep.subr.mxu0 0.0
    %4698 = vmatpush1.msra.mxu0 %v4676
    %4699 = vmatprep.subr.mxu0 0.0
    %4700 = vmatpush1.msra.mxu0 %v4677
    %4701 = vmatprep.subr.mxu0 0.0
    %4702 = vmatpush1.msra.mxu0 %v4678
    %4703 = vmatprep.subr.mxu0 0.0
    %4704 = vmatpush1.msra.mxu0 %v4679
    %4705 = vmatprep.subr.mxu0 0.0
    %4706 = vmatpush1.msra.mxu0 0.0
    %4707 = vmatprep.subr.mxu0 0.0
    %4708 = vmatpush1.msra.mxu0 0.0
    %4709 = vmatprep.subr.mxu0 0.0
    %4710 = vmatpush1.msra.mxu0 0.0
    %4711 = vmatprep.subr.mxu0 0.0
    %4712 = vmatpush1.msra.mxu0 0.0
    %4713 = vmatprep.subr.mxu0 0.0
    %4714 = vmatpush1.msra.mxu0 0.0
    %4715 = vmatprep.subr.mxu0 0.0
    %4716 = vmatpush1.msra.mxu0 0.0
    %4717 = vmatprep.subr.mxu0 0.0
    %4718 = vmatpush1.msra.mxu0 0.0
    %4719 = vmatprep.subr.mxu0 0.0
    %4720 = vmatpush1.msra.mxu0 0.0
    %4721 = vmatprep.subr.mxu0 0.0
    %4722 = vmatpush1.msra.mxu0 0.0
    %4723 = vmatprep.subr.mxu0 0.0
    %4724 = vmatpush1.msra.mxu0 0.0
    %4725 = vmatprep.subr.mxu0 0.0
    %4726 = vmatpush1.msra.mxu0 0.0
    %4727 = vmatprep.subr.mxu0 0.0
    %4728 = vmatpush1.msra.mxu0 0.0
    %4729 = vmatprep.subr.mxu0 0.0
    %4730 = vmatpush1.msra.mxu0 0.0
    %4731 = vmatprep.subr.mxu0 0.0
    %4732 = vmatpush1.msra.mxu0 0.0
    %4733 = vmatprep.subr.mxu0 0.0
    %4734 = vmatpush1.msra.mxu0 0.0
    %4735 = vmatprep.subr.mxu0 0.0
    %4736 = vmatpush1.msra.mxu0 0.0
    %4737 = vmatprep.subr.mxu0 0.0
    %4738 = vmatpush1.msra.mxu0 0.0
    %4739 = vmatprep.subr.mxu0 0.0
    %4740 = vmatpush1.msra.mxu0 0.0
    %4741 = vmatprep.subr.mxu0 0.0
    %4742 = vmatpush1.msra.mxu0 0.0
    %4743 = vmatprep.subr.mxu0 0.0
    %4744 = vmatpush1.msra.mxu0 0.0
    %4745 = vmatprep.subr.mxu0 0.0
    %4746 = vmatpush1.msra.mxu0 0.0
    %4747 = vmatprep.subr.mxu0 0.0
    %4748 = vmatpush1.msra.mxu0 0.0
    %4749 = vmatprep.subr.mxu0 0.0
    %4750 = vmatpush1.msra.mxu0 0.0
    %4751 = vmatprep.subr.mxu0 0.0
    %4752 = vmatpush1.msra.mxu0 0.0
    %4753 = vmatprep.mubr.f32.mxu0 0.0
    %4754 = vmatmul.mubr.f32.gmra.mrb[0].mxu0 %v4681
    %v4755 = vpop.f32.mrb[0].mxu0
    %v4756 = vadd.f32 0.0, %v4755
    %v4757 = vpop.f32.mrb[0].mxu0
    %4758 = vmatprep.mubr.f32.mxu0 0.0
    %4759 = vmatmul.mubr.f32.gmra.mrb[0].mxu0 %v4684
    %v4760 = vpop.f32.mrb[0].mxu0
    %v4761 = vadd.f32 0.0, %v4760
    %v4762 = vpop.f32.mrb[0].mxu0
    %4763 = vmatprep.mubr.f32.mxu0 0.0
    %4764 = vmatmul.mubr.f32.gmra.mrb[0].mxu0 %v4687
    %v4765 = vpop.f32.mrb[0].mxu0
    %v4766 = vadd.f32 0.0, %v4765
    %v4767 = vpop.f32.mrb[0].mxu0
    %4768 = vdwg.mxu0
    %v4769 = vld [vmem:[%s53] sm:$0x1]
    %v4771 = vlaneseq
    %v4772 = vshrl.u32 %v4771, 7
    %v4773 = vsub.s32 0, %v4772
    %v4774 = vrot.slane %v4769, %v4773
    %v4776 = vmul.f32 %v4756, %v4774
    %v4777 = vmul.f32 %v4761, %v4774
    %v4778 = vmul.f32 %v4766, %v4774
    %v4779 = vld [vmem:[%s55] sm:$0x1]
    %v4781 = vlaneseq
    %v4782 = vshrl.u32 %v4781, 7
    %v4783 = vsub.s32 0, %v4782
    %v4784 = vrot.slane %v4779, %v4783
    %v4786 = vadd.f32 %v4776, %v4784
    %v4787 = vadd.f32 %v4777, %v4784
    %v4788 = vadd.f32 %v4778, %v4784
    %v4789 = vmax.f32 %v4786, 0.0
    %v4790 = vmax.f32 %v4787, 0.0
    %v4791 = vmax.f32 %v4788, 0.0
    %4792 = vst.msk [vmem:[#allocation10] sm:$0xff] %vm1191, 0.0
    %v4793 = vld [vmem:[%s5] sm:$0xff]
    %v4794 = vld [vmem:[%s5 + $0x8] sm:$0xff]
    %v4795 = vld [vmem:[%s5 + $0x10] sm:$0xff]
    %vm4796 = vcmp.gt.f32.partialorder %v4793, 0.5
    %vm4797 = vcmp.gt.f32.partialorder %v4794, 0.5
    %vm4798 = vcmp.gt.f32.partialorder %v4795, 0.5
    %v4799 = vsel %vm4796, 1, 0
    %v4800 = vsel %vm4797, 1, 0
    %v4801 = vsel %vm4798, 1, 0
    %4802 = vset.pattern.permute.xlu0 0
    %4803 = vperm.xlu0 %4802, %v4799
    %v4804 = vpop.permute.xlu0 %4803
    %4805 = vset.pattern.permute.xlu0 0
    %4806 = vperm.xlu0 %4805, %v4800
    %v4807 = vpop.permute.xlu0 %4806
    %4808 = vset.pattern.permute.xlu0 0
    %4809 = vperm.xlu0 %4808, %v4801
    %v4810 = vpop.permute.xlu0 %4809
    %vm4811 = vcmp.eq.s32.totalorder %v4804, 1
    %vm4812 = vcmp.eq.s32.totalorder %v4807, 1
    %vm4813 = vcmp.eq.s32.totalorder %v4810, 1
    %v4814 = vsel %vm4811, %v4789, 0.0
    %v4815 = vsel %vm4812, %v4790, 0.0
    %v4816 = vsel %vm4813, %v4791, 0.0
    %4817 = vst.msk [vmem:[#allocation10 + $0x8] sm:$0xff] %vm1191, %v4814
    %4818 = vst.msk [vmem:[#allocation10 + $0x10] sm:$0xff] %vm1191, %v4815
    %4819 = vst.msk [vmem:[#allocation10 + $0x18] sm:$0xff] %vm1191, %v4816
    %vm4820 = vcmask 258048
    %4821 = vst.msk [vmem:[#allocation10 + $0x20] sm:$0x1f] %vm4820, 0.0
    %v4822 = vld [vmem:[#allocation10 + $0x3] sm:$0xff]
    %v4823 = vld [vmem:[#allocation10 + $0xb] sm:$0xff]
    %v4824 = vld [vmem:[#allocation10 + $0x13] sm:$0xff]
    %v4825 = vld [vmem:[#allocation10 + $0x4] sm:$0xff]
    %v4826 = vld [vmem:[#allocation10 + $0xc] sm:$0xff]
    %v4827 = vld [vmem:[#allocation10 + $0x14] sm:$0xff]
    %v4828 = vld [vmem:[#allocation10 + $0x5] sm:$0xff]
    %v4829 = vld [vmem:[#allocation10 + $0xd] sm:$0xff]
    %v4830 = vld [vmem:[#allocation10 + $0x15] sm:$0xff]
    %v4831 = vld [vmem:[#allocation10 + $0x7] sm:$0xff]
    %v4832 = vld [vmem:[#allocation10 + $0xf] sm:$0xff]
    %v4833 = vld [vmem:[#allocation10 + $0x17] sm:$0xff]
    %v4834 = vld [vmem:[#allocation10 + $0x8] sm:$0xff]
    %v4835 = vld [vmem:[#allocation10 + $0x10] sm:$0xff]
    %v4836 = vld [vmem:[#allocation10 + $0x18] sm:$0xff]
    %v4837 = vld [vmem:[#allocation10 + $0x9] sm:$0xff]
    %v4838 = vld [vmem:[#allocation10 + $0x11] sm:$0xff]
    %v4839 = vld [vmem:[#allocation10 + $0x19] sm:$0xff]
    %v4840 = vld [vmem:[#allocation10 + $0x1b] sm:$0xff]
    %v4841 = vld [vmem:[#allocation10 + $0x1c] sm:$0xff]
    %v4842 = vld [vmem:[#allocation10 + $0x1d] sm:$0xff]
    %4846 = vrot.lane.b32.xlu0 %v4825, 32
    %v4847 = vpop.permute.xlu0 %4846
    %4848 = vrot.lane.b32.xlu0 %v4826, 32
    %v4849 = vpop.permute.xlu0 %4848
    %4850 = vrot.lane.b32.xlu0 %v4827, 32
    %v4851 = vpop.permute.xlu0 %4850
    %4858 = vrot.lane.b32.xlu0 %v4828, 64
    %v4859 = vpop.permute.xlu0 %4858
    %4860 = vrot.lane.b32.xlu0 %v4829, 64
    %v4861 = vpop.permute.xlu0 %4860
    %4862 = vrot.lane.b32.xlu0 %v4830, 64
    %v4863 = vpop.permute.xlu0 %4862
    %4870 = vrot.lane.b32.xlu0 %v4831, 96
    %v4871 = vpop.permute.xlu0 %4870
    %4872 = vrot.lane.b32.xlu0 %v4832, 96
    %v4873 = vpop.permute.xlu0 %4872
    %4874 = vrot.lane.b32.xlu0 %v4833, 96
    %v4875 = vpop.permute.xlu0 %4874
    %4882 = vrot.lane.b32.xlu0 %v4837, 32
    %v4883 = vpop.permute.xlu0 %4882
    %4884 = vrot.lane.b32.xlu0 %v4838, 32
    %v4885 = vpop.permute.xlu0 %4884
    %4886 = vrot.lane.b32.xlu0 %v4839, 32
    %v4887 = vpop.permute.xlu0 %4886
    %4894 = vrot.lane.b32.xlu0 %v4823, 64
    %v4895 = vpop.permute.xlu0 %4894
    %4896 = vrot.lane.b32.xlu0 %v4824, 64
    %v4897 = vpop.permute.xlu0 %4896
    %4898 = vrot.lane.b32.xlu0 %v4840, 64
    %v4899 = vpop.permute.xlu0 %4898
    %4904 = vrot.lane.b32.xlu0 %v4826, 96
    %v4905 = vpop.permute.xlu0 %4904
    %4906 = vrot.lane.b32.xlu0 %v4827, 96
    %v4907 = vpop.permute.xlu0 %4906
    %4908 = vrot.lane.b32.xlu0 %v4841, 96
    %v4909 = vpop.permute.xlu0 %4908
    %v4913 = vsel %vm1191, %v4822, %v4847
    %v4914 = vsel %vm1191, %v4823, %v4849
    %v4915 = vsel %vm1191, %v4824, %v4851
    %v4916 = vsel %vm2187, %v4913, %v4859
    %v4917 = vsel %vm2187, %v4914, %v4861
    %v4918 = vsel %vm2187, %v4915, %v4863
    %v4919 = vsel %vm2211, %v4916, %v4871
    %v4920 = vsel %vm2211, %v4917, %v4873
    %v4921 = vsel %vm2211, %v4918, %v4875
    %v4922 = vsel %vm1191, %v4834, %v4883
    %v4923 = vsel %vm1191, %v4835, %v4885
    %v4924 = vsel %vm1191, %v4836, %v4887
    %v4925 = vsel %vm2187, %v4922, %v4895
    %v4926 = vsel %vm2187, %v4923, %v4897
    %v4927 = vsel %vm2187, %v4924, %v4899
    %v4928 = vsel %vm2211, %v4925, %v4905
    %v4929 = vsel %vm2211, %v4926, %v4907
    %v4930 = vsel %vm2211, %v4927, %v4909
    %v4931 = vld [vmem:[%s57] sm:$0xff]
    %v4932 = vld [vmem:[%s57 + $0x8] sm:$0xff]
    %v4933 = vld [vmem:[%s57 + $0x10] sm:$0xff]
    %v4934 = vld [vmem:[%s57 + $0x18] sm:$0xff]
    %v4935 = vld [vmem:[%s57 + $0x20] sm:$0xff]
    %v4936 = vld [vmem:[%s57 + $0x28] sm:$0xff]
    %v4937 = vld [vmem:[%s57 + $0x30] sm:$0xff]
    %v4938 = vld [vmem:[%s57 + $0x38] sm:$0xff]
    %v4939 = vld [vmem:[%s57 + $0x40] sm:$0xff]
    %v4940 = vld [vmem:[%s57 + $0x48] sm:$0xff]
    %v4941 = vld [vmem:[%s57 + $0x50] sm:$0xff]
    %v4942 = vld [vmem:[%s57 + $0x58] sm:$0xff]
    %v4943 = vld [vmem:[%s57 + $0x60] sm:$0xff]
    %v4944 = vld [vmem:[%s57 + $0x68] sm:$0xff]
    %v4945 = vld [vmem:[%s57 + $0x70] sm:$0xff]
    %v4946 = vld [vmem:[%s57 + $0x78] sm:$0xff]
    %v4947 = vld [vmem:[%s57 + $0x80] sm:$0xff]
    %v4948 = vld [vmem:[%s57 + $0x88] sm:$0xff]
    %v4949 = vld [vmem:[%s57 + $0x90] sm:$0xff]
    %v4950 = vld [vmem:[%s57 + $0x98] sm:$0xff]
    %v4951 = vld [vmem:[%s57 + $0xa0] sm:$0xff]
    %v4952 = vld [vmem:[%s57 + $0xa8] sm:$0xff]
    %v4953 = vld [vmem:[%s57 + $0xb0] sm:$0xff]
    %v4954 = vld [vmem:[%s57 + $0xb8] sm:$0xff]
    %v4955 = vld [vmem:[%s57 + $0xc0] sm:$0xff]
    %v4956 = vld [vmem:[%s57 + $0xc8] sm:$0xff]
    %v4957 = vld [vmem:[%s57 + $0xd0] sm:$0xff]
    %v4958 = vld [vmem:[%s57 + $0xd8] sm:$0xff]
    %v4959 = vld [vmem:[%s57 + $0xe0] sm:$0xff]
    %v4960 = vld [vmem:[%s57 + $0xe8] sm:$0xff]
    %v4961 = vld [vmem:[%s57 + $0xf0] sm:$0xff]
    %v4962 = vld [vmem:[%s57 + $0xf8] sm:$0xff]
    %v4963 = vld [vmem:[%s57 + $0x100] sm:$0xff]
    %v4964 = vld [vmem:[%s57 + $0x108] sm:$0xff]
    %v4965 = vld [vmem:[%s57 + $0x110] sm:$0xff]
    %v4966 = vld [vmem:[%s57 + $0x118] sm:$0xff]
    %v4967 = vsel %vm1191, %v4829, 0
    %v4969 = vsel %vm1191, %v4830, 0
    %v4972 = vsel %vm1191, %v4842, 0
    %4974 = vmatprep.subr.mxu0 0.0
    %4975 = vmatpush1.msra.mxu0 %v4931
    %4976 = vmatprep.subr.mxu0 0.0
    %4977 = vmatpush1.msra.mxu0 %v4932
    %4978 = vmatprep.subr.mxu0 0.0
    %4979 = vmatpush1.msra.mxu0 %v4933
    %4980 = vmatprep.subr.mxu0 0.0
    %4981 = vmatpush1.msra.mxu0 %v4934
    %4982 = vmatprep.subr.mxu0 0.0
    %4983 = vmatpush1.msra.mxu0 %v4935
    %4984 = vmatprep.subr.mxu0 0.0
    %4985 = vmatpush1.msra.mxu0 %v4936
    %4986 = vmatprep.subr.mxu0 0.0
    %4987 = vmatpush1.msra.mxu0 %v4937
    %4988 = vmatprep.subr.mxu0 0.0
    %4989 = vmatpush1.msra.mxu0 %v4938
    %4990 = vmatprep.subr.mxu0 0.0
    %4991 = vmatpush1.msra.mxu0 %v4939
    %4992 = vmatprep.subr.mxu0 0.0
    %4993 = vmatpush1.msra.mxu0 %v4940
    %4994 = vmatprep.subr.mxu0 0.0
    %4995 = vmatpush1.msra.mxu0 %v4941
    %4996 = vmatprep.subr.mxu0 0.0
    %4997 = vmatpush1.msra.mxu0 %v4942
    %4998 = vmatprep.subr.mxu0 0.0
    %4999 = vmatpush1.msra.mxu0 %v4943
    %5000 = vmatprep.subr.mxu0 0.0
    %5001 = vmatpush1.msra.mxu0 %v4944
    %5002 = vmatprep.subr.mxu0 0.0
    %5003 = vmatpush1.msra.mxu0 %v4945
    %5004 = vmatprep.subr.mxu0 0.0
    %5005 = vmatpush1.msra.mxu0 %v4946
    %5006 = vmatprep.subr.mxu0 0.0
    %5007 = vmatpush1.msra.mxu0 %v4947
    %5008 = vmatprep.subr.mxu0 0.0
    %5009 = vmatpush1.msra.mxu0 %v4948
    %5010 = vmatprep.subr.mxu0 0.0
    %5011 = vmatpush1.msra.mxu0 %v4949
    %5012 = vmatprep.subr.mxu0 0.0
    %5013 = vmatpush1.msra.mxu0 %v4950
    %5014 = vmatprep.subr.mxu0 0.0
    %5015 = vmatpush1.msra.mxu0 %v4951
    %5016 = vmatprep.subr.mxu0 0.0
    %5017 = vmatpush1.msra.mxu0 %v4952
    %5018 = vmatprep.subr.mxu0 0.0
    %5019 = vmatpush1.msra.mxu0 %v4953
    %5020 = vmatprep.subr.mxu0 0.0
    %5021 = vmatpush1.msra.mxu0 %v4954
    %5022 = vmatprep.subr.mxu0 0.0
    %5023 = vmatpush1.msra.mxu0 %v4955
    %5024 = vmatprep.subr.mxu0 0.0
    %5025 = vmatpush1.msra.mxu0 %v4956
    %5026 = vmatprep.subr.mxu0 0.0
    %5027 = vmatpush1.msra.mxu0 %v4957
    %5028 = vmatprep.subr.mxu0 0.0
    %5029 = vmatpush1.msra.mxu0 %v4958
    %5030 = vmatprep.subr.mxu0 0.0
    %5031 = vmatpush1.msra.mxu0 %v4959
    %5032 = vmatprep.subr.mxu0 0.0
    %5033 = vmatpush1.msra.mxu0 %v4960
    %5034 = vmatprep.subr.mxu0 0.0
    %5035 = vmatpush1.msra.mxu0 %v4961
    %5036 = vmatprep.subr.mxu0 0.0
    %5037 = vmatpush1.msra.mxu0 %v4962
    %5038 = vmatprep.mubr.f32.mxu0 %v4928
    %5039 = vmatmul.mubr.f32.gmra.mrb[0].mxu0 %v4919
    %v5040 = vpop.f32.mrb[0].mxu0
    %v5041 = vadd.f32 0.0, %v5040
    %v5042 = vpop.f32.mrb[0].mxu0
    %5043 = vmatprep.mubr.f32.mxu0 %v4929
    %5044 = vmatmul.mubr.f32.gmra.mrb[0].mxu0 %v4920
    %v5045 = vpop.f32.mrb[0].mxu0
    %v5046 = vadd.f32 0.0, %v5045
    %v5047 = vpop.f32.mrb[0].mxu0
    %5048 = vmatprep.mubr.f32.mxu0 %v4930
    %5049 = vmatmul.mubr.f32.gmra.mrb[0].mxu0 %v4921
    %v5050 = vpop.f32.mrb[0].mxu0
    %v5051 = vadd.f32 0.0, %v5050
    %v5052 = vpop.f32.mrb[0].mxu0
    %5053 = vdwg.mxu0
    %5054 = vmatprep.subr.mxu0 0.0
    %5055 = vmatpush1.msra.mxu0 %v4963
    %5056 = vmatprep.subr.mxu0 0.0
    %5057 = vmatpush1.msra.mxu0 %v4964
    %5058 = vmatprep.subr.mxu0 0.0
    %5059 = vmatpush1.msra.mxu0 %v4965
    %5060 = vmatprep.subr.mxu0 0.0
    %5061 = vmatpush1.msra.mxu0 %v4966
    %5062 = vmatprep.subr.mxu0 0.0
    %5063 = vmatpush1.msra.mxu0 0.0
    %5064 = vmatprep.subr.mxu0 0.0
    %5065 = vmatpush1.msra.mxu0 0.0
    %5066 = vmatprep.subr.mxu0 0.0
    %5067 = vmatpush1.msra.mxu0 0.0
    %5068 = vmatprep.subr.mxu0 0.0
    %5069 = vmatpush1.msra.mxu0 0.0
    %5070 = vmatprep.subr.mxu0 0.0
    %5071 = vmatpush1.msra.mxu0 0.0
    %5072 = vmatprep.subr.mxu0 0.0
    %5073 = vmatpush1.msra.mxu0 0.0
    %5074 = vmatprep.subr.mxu0 0.0
    %5075 = vmatpush1.msra.mxu0 0.0
    %5076 = vmatprep.subr.mxu0 0.0
    %5077 = vmatpush1.msra.mxu0 0.0
    %5078 = vmatprep.subr.mxu0 0.0
    %5079 = vmatpush1.msra.mxu0 0.0
    %5080 = vmatprep.subr.mxu0 0.0
    %5081 = vmatpush1.msra.mxu0 0.0
    %5082 = vmatprep.subr.mxu0 0.0
    %5083 = vmatpush1.msra.mxu0 0.0
    %5084 = vmatprep.subr.mxu0 0.0
    %5085 = vmatpush1.msra.mxu0 0.0
    %5086 = vmatprep.subr.mxu0 0.0
    %5087 = vmatpush1.msra.mxu0 0.0
    %5088 = vmatprep.subr.mxu0 0.0
    %5089 = vmatpush1.msra.mxu0 0.0
    %5090 = vmatprep.subr.mxu0 0.0
    %5091 = vmatpush1.msra.mxu0 0.0
    %5092 = vmatprep.subr.mxu0 0.0
    %5093 = vmatpush1.msra.mxu0 0.0
    %5094 = vmatprep.subr.mxu0 0.0
    %5095 = vmatpush1.msra.mxu0 0.0
    %5096 = vmatprep.subr.mxu0 0.0
    %5097 = vmatpush1.msra.mxu0 0.0
    %5098 = vmatprep.subr.mxu0 0.0
    %5099 = vmatpush1.msra.mxu0 0.0
    %5100 = vmatprep.subr.mxu0 0.0
    %5101 = vmatpush1.msra.mxu0 0.0
    %5102 = vmatprep.subr.mxu0 0.0
    %5103 = vmatpush1.msra.mxu0 0.0
    %5104 = vmatprep.subr.mxu0 0.0
    %5105 = vmatpush1.msra.mxu0 0.0
    %5106 = vmatprep.subr.mxu0 0.0
    %5107 = vmatpush1.msra.mxu0 0.0
    %5108 = vmatprep.subr.mxu0 0.0
    %5109 = vmatpush1.msra.mxu0 0.0
    %5110 = vmatprep.subr.mxu0 0.0
    %5111 = vmatpush1.msra.mxu0 0.0
    %5112 = vmatprep.subr.mxu0 0.0
    %5113 = vmatpush1.msra.mxu0 0.0
    %5114 = vmatprep.subr.mxu0 0.0
    %5115 = vmatpush1.msra.mxu0 0.0
    %5116 = vmatprep.subr.mxu0 0.0
    %5117 = vmatpush1.msra.mxu0 0.0
    %5118 = vmatprep.mubr.f32.mxu0 0.0
    %5119 = vmatmul.mubr.f32.gmra.mrb[0].mxu0 %v4967
    %v5120 = vpop.f32.mrb[0].mxu0
    %v5121 = vadd.f32 %v5041, %v5120
    %v5122 = vpop.f32.mrb[0].mxu0
    %5123 = vmatprep.mubr.f32.mxu0 0.0
    %5124 = vmatmul.mubr.f32.gmra.mrb[0].mxu0 %v4969
    %v5125 = vpop.f32.mrb[0].mxu0
    %v5126 = vadd.f32 %v5046, %v5125
    %v5127 = vpop.f32.mrb[0].mxu0
    %5128 = vmatprep.mubr.f32.mxu0 0.0
    %5129 = vmatmul.mubr.f32.gmra.mrb[0].mxu0 %v4972
    %v5130 = vpop.f32.mrb[0].mxu0
    %v5131 = vadd.f32 %v5051, %v5130
    %v5132 = vpop.f32.mrb[0].mxu0
    %5133 = vdwg.mxu0
    %v5134 = vld [vmem:[%s59] sm:$0x1]
    %v5136 = vlaneseq
    %v5137 = vshrl.u32 %v5136, 7
    %v5138 = vsub.s32 0, %v5137
    %v5139 = vrot.slane %v5134, %v5138
    %v5141 = vmul.f32 %v5121, %v5139
    %v5142 = vmul.f32 %v5126, %v5139
    %v5143 = vmul.f32 %v5131, %v5139
    %v5144 = vld [vmem:[%s61] sm:$0x1]
    %v5146 = vlaneseq
    %v5147 = vshrl.u32 %v5146, 7
    %v5148 = vsub.s32 0, %v5147
    %v5149 = vrot.slane %v5144, %v5148
    %v5151 = vadd.f32 %v5141, %v5149
    %v5152 = vadd.f32 %v5142, %v5149
    %v5153 = vadd.f32 %v5143, %v5149
    %v5154 = vmax.f32 %v5151, 0.0
    %v5155 = vmax.f32 %v5152, 0.0
    %v5156 = vmax.f32 %v5153, 0.0
    %v5157 = vld [vmem:[%s63] sm:$0xff]
    %v5158 = vld [vmem:[%s63 + $0x8] sm:$0xff]
    %v5159 = vld [vmem:[%s63 + $0x10] sm:$0xff]
    %v5160 = vld [vmem:[%s63 + $0x18] sm:$0xff]
    %v5161 = vld [vmem:[%s63 + $0x20] sm:$0xff]
    %v5162 = vld [vmem:[%s63 + $0x28] sm:$0xff]
    %v5163 = vld [vmem:[%s63 + $0x30] sm:$0xff]
    %v5164 = vld [vmem:[%s63 + $0x38] sm:$0xff]
    %v5166 = vsel %vm2187, %v5154, 0
    %v5169 = vsel %vm2187, %v5155, 0
    %v5172 = vsel %vm2187, %v5156, 0
    %5174 = vmatprep.subr.mxu0 0.0
    %5175 = vmatpush1.msra.mxu0 %v5157
    %5176 = vmatprep.subr.mxu0 0.0
    %5177 = vmatpush1.msra.mxu0 %v5158
    %5178 = vmatprep.subr.mxu0 0.0
    %5179 = vmatpush1.msra.mxu0 %v5159
    %5180 = vmatprep.subr.mxu0 0.0
    %5181 = vmatpush1.msra.mxu0 %v5160
    %5182 = vmatprep.subr.mxu0 0.0
    %5183 = vmatpush1.msra.mxu0 %v5161
    %5184 = vmatprep.subr.mxu0 0.0
    %5185 = vmatpush1.msra.mxu0 %v5162
    %5186 = vmatprep.subr.mxu0 0.0
    %5187 = vmatpush1.msra.mxu0 %v5163
    %5188 = vmatprep.subr.mxu0 0.0
    %5189 = vmatpush1.msra.mxu0 %v5164
    %5190 = vmatprep.subr.mxu0 0.0
    %5191 = vmatpush1.msra.mxu0 0.0
    %5192 = vmatprep.subr.mxu0 0.0
    %5193 = vmatpush1.msra.mxu0 0.0
    %5194 = vmatprep.subr.mxu0 0.0
    %5195 = vmatpush1.msra.mxu0 0.0
    %5196 = vmatprep.subr.mxu0 0.0
    %5197 = vmatpush1.msra.mxu0 0.0
    %5198 = vmatprep.subr.mxu0 0.0
    %5199 = vmatpush1.msra.mxu0 0.0
    %5200 = vmatprep.subr.mxu0 0.0
    %5201 = vmatpush1.msra.mxu0 0.0
    %5202 = vmatprep.subr.mxu0 0.0
    %5203 = vmatpush1.msra.mxu0 0.0
    %5204 = vmatprep.subr.mxu0 0.0
    %5205 = vmatpush1.msra.mxu0 0.0
    %5206 = vmatprep.subr.mxu0 0.0
    %5207 = vmatpush1.msra.mxu0 0.0
    %5208 = vmatprep.subr.mxu0 0.0
    %5209 = vmatpush1.msra.mxu0 0.0
    %5210 = vmatprep.subr.mxu0 0.0
    %5211 = vmatpush1.msra.mxu0 0.0
    %5212 = vmatprep.subr.mxu0 0.0
    %5213 = vmatpush1.msra.mxu0 0.0
    %5214 = vmatprep.subr.mxu0 0.0
    %5215 = vmatpush1.msra.mxu0 0.0
    %5216 = vmatprep.subr.mxu0 0.0
    %5217 = vmatpush1.msra.mxu0 0.0
    %5218 = vmatprep.subr.mxu0 0.0
    %5219 = vmatpush1.msra.mxu0 0.0
    %5220 = vmatprep.subr.mxu0 0.0
    %5221 = vmatpush1.msra.mxu0 0.0
    %5222 = vmatprep.subr.mxu0 0.0
    %5223 = vmatpush1.msra.mxu0 0.0
    %5224 = vmatprep.subr.mxu0 0.0
    %5225 = vmatpush1.msra.mxu0 0.0
    %5226 = vmatprep.subr.mxu0 0.0
    %5227 = vmatpush1.msra.mxu0 0.0
    %5228 = vmatprep.subr.mxu0 0.0
    %5229 = vmatpush1.msra.mxu0 0.0
    %5230 = vmatprep.subr.mxu0 0.0
    %5231 = vmatpush1.msra.mxu0 0.0
    %5232 = vmatprep.subr.mxu0 0.0
    %5233 = vmatpush1.msra.mxu0 0.0
    %5234 = vmatprep.subr.mxu0 0.0
    %5235 = vmatpush1.msra.mxu0 0.0
    %5236 = vmatprep.subr.mxu0 0.0
    %5237 = vmatpush1.msra.mxu0 0.0
    %5238 = vmatprep.mubr.f32.mxu0 0.0
    %5239 = vmatmul.mubr.f32.gmra.mrb[0].mxu0 %v5166
    %v5240 = vpop.f32.mrb[0].mxu0
    %v5241 = vadd.f32 0.0, %v5240
    %v5242 = vpop.f32.mrb[0].mxu0
    %5243 = vmatprep.mubr.f32.mxu0 0.0
    %5244 = vmatmul.mubr.f32.gmra.mrb[0].mxu0 %v5169
    %v5245 = vpop.f32.mrb[0].mxu0
    %v5246 = vadd.f32 0.0, %v5245
    %v5247 = vpop.f32.mrb[0].mxu0
    %5248 = vmatprep.mubr.f32.mxu0 0.0
    %5249 = vmatmul.mubr.f32.gmra.mrb[0].mxu0 %v5172
    %v5250 = vpop.f32.mrb[0].mxu0
    %v5251 = vadd.f32 0.0, %v5250
    %v5252 = vpop.f32.mrb[0].mxu0
    %5253 = vdwg.mxu0
    %v5254 = vld [vmem:[%s65] sm:$0x1]
    %v5256 = vlaneseq
    %v5257 = vshrl.u32 %v5256, 7
    %v5258 = vsub.s32 0, %v5257
    %v5259 = vrot.slane %v5254, %v5258
    %v5261 = vmul.f32 %v5241, %v5259
    %v5262 = vmul.f32 %v5246, %v5259
    %v5263 = vmul.f32 %v5251, %v5259
    %v5264 = vld [vmem:[%s67] sm:$0x1]
    %v5266 = vlaneseq
    %v5267 = vshrl.u32 %v5266, 7
    %v5268 = vsub.s32 0, %v5267
    %v5269 = vrot.slane %v5264, %v5268
    %v5271 = vadd.f32 %v5261, %v5269
    %v5272 = vadd.f32 %v5262, %v5269
    %v5273 = vadd.f32 %v5263, %v5269
    %v5274 = vmax.f32 %v5271, 0.0
    %v5275 = vmax.f32 %v5272, 0.0
    %v5276 = vmax.f32 %v5273, 0.0
    %5277 = vst.msk [vmem:[#allocation11] sm:$0xff] %vm1191, 0.0
    %v5278 = vld [vmem:[%s5] sm:$0xff]
    %v5279 = vld [vmem:[%s5 + $0x8] sm:$0xff]
    %v5280 = vld [vmem:[%s5 + $0x10] sm:$0xff]
    %vm5281 = vcmp.gt.f32.partialorder %v5278, 0.5
    %vm5282 = vcmp.gt.f32.partialorder %v5279, 0.5
    %vm5283 = vcmp.gt.f32.partialorder %v5280, 0.5
    %v5284 = vsel %vm5281, 1, 0
    %v5285 = vsel %vm5282, 1, 0
    %v5286 = vsel %vm5283, 1, 0
    %5287 = vset.pattern.permute.xlu0 0
    %5288 = vperm.xlu0 %5287, %v5284
    %v5289 = vpop.permute.xlu0 %5288
    %5290 = vset.pattern.permute.xlu0 0
    %5291 = vperm.xlu0 %5290, %v5285
    %v5292 = vpop.permute.xlu0 %5291
    %5293 = vset.pattern.permute.xlu0 0
    %5294 = vperm.xlu0 %5293, %v5286
    %v5295 = vpop.permute.xlu0 %5294
    %vm5296 = vcmp.eq.s32.totalorder %v5289, 1
    %vm5297 = vcmp.eq.s32.totalorder %v5292, 1
    %vm5298 = vcmp.eq.s32.totalorder %v5295, 1
    %v5299 = vsel %vm5296, %v5274, 0.0
    %v5300 = vsel %vm5297, %v5275, 0.0
    %v5301 = vsel %vm5298, %v5276, 0.0
    %5302 = vst.msk [vmem:[#allocation11 + $0x8] sm:$0xff] %vm1191, %v5299
    %5303 = vst.msk [vmem:[#allocation11 + $0x10] sm:$0xff] %vm1191, %v5300
    %5304 = vst.msk [vmem:[#allocation11 + $0x18] sm:$0xff] %vm1191, %v5301
    %5305 = vst.msk [vmem:[#allocation11 + $0x20] sm:$0x1f] %vm4820, 0.0
    %v5306 = vld [vmem:[#allocation11 + $0x3] sm:$0xff]
    %v5307 = vld [vmem:[#allocation11 + $0xb] sm:$0xff]
    %v5308 = vld [vmem:[#allocation11 + $0x13] sm:$0xff]
    %v5309 = vld [vmem:[#allocation11 + $0x4] sm:$0xff]
    %v5310 = vld [vmem:[#allocation11 + $0xc] sm:$0xff]
    %v5311 = vld [vmem:[#allocation11 + $0x14] sm:$0xff]
    %v5312 = vld [vmem:[#allocation11 + $0x5] sm:$0xff]
    %v5313 = vld [vmem:[#allocation11 + $0xd] sm:$0xff]
    %v5314 = vld [vmem:[#allocation11 + $0x15] sm:$0xff]
    %v5315 = vld [vmem:[#allocation11 + $0x7] sm:$0xff]
    %v5316 = vld [vmem:[#allocation11 + $0xf] sm:$0xff]
    %v5317 = vld [vmem:[#allocation11 + $0x17] sm:$0xff]
    %v5318 = vld [vmem:[#allocation11 + $0x8] sm:$0xff]
    %v5319 = vld [vmem:[#allocation11 + $0x10] sm:$0xff]
    %v5320 = vld [vmem:[#allocation11 + $0x18] sm:$0xff]
    %v5321 = vld [vmem:[#allocation11 + $0x9] sm:$0xff]
    %v5322 = vld [vmem:[#allocation11 + $0x11] sm:$0xff]
    %v5323 = vld [vmem:[#allocation11 + $0x19] sm:$0xff]
    %v5324 = vld [vmem:[#allocation11 + $0x1b] sm:$0xff]
    %v5325 = vld [vmem:[#allocation11 + $0x1c] sm:$0xff]
    %v5326 = vld [vmem:[#allocation11 + $0x1d] sm:$0xff]
    %5330 = vrot.lane.b32.xlu0 %v5309, 32
    %v5331 = vpop.permute.xlu0 %5330
    %5332 = vrot.lane.b32.xlu0 %v5310, 32
    %v5333 = vpop.permute.xlu0 %5332
    %5334 = vrot.lane.b32.xlu0 %v5311, 32
    %v5335 = vpop.permute.xlu0 %5334
    %5342 = vrot.lane.b32.xlu0 %v5312, 64
    %v5343 = vpop.permute.xlu0 %5342
    %5344 = vrot.lane.b32.xlu0 %v5313, 64
    %v5345 = vpop.permute.xlu0 %5344
    %5346 = vrot.lane.b32.xlu0 %v5314, 64
    %v5347 = vpop.permute.xlu0 %5346
    %5354 = vrot.lane.b32.xlu0 %v5315, 96
    %v5355 = vpop.permute.xlu0 %5354
    %5356 = vrot.lane.b32.xlu0 %v5316, 96
    %v5357 = vpop.permute.xlu0 %5356
    %5358 = vrot.lane.b32.xlu0 %v5317, 96
    %v5359 = vpop.permute.xlu0 %5358
    %5366 = vrot.lane.b32.xlu0 %v5321, 32
    %v5367 = vpop.permute.xlu0 %5366
    %5368 = vrot.lane.b32.xlu0 %v5322, 32
    %v5369 = vpop.permute.xlu0 %5368
    %5370 = vrot.lane.b32.xlu0 %v5323, 32
    %v5371 = vpop.permute.xlu0 %5370
    %5378 = vrot.lane.b32.xlu0 %v5307, 64
    %v5379 = vpop.permute.xlu0 %5378
    %5380 = vrot.lane.b32.xlu0 %v5308, 64
    %v5381 = vpop.permute.xlu0 %5380
    %5382 = vrot.lane.b32.xlu0 %v5324, 64
    %v5383 = vpop.permute.xlu0 %5382
    %5388 = vrot.lane.b32.xlu0 %v5310, 96
    %v5389 = vpop.permute.xlu0 %5388
    %5390 = vrot.lane.b32.xlu0 %v5311, 96
    %v5391 = vpop.permute.xlu0 %5390
    %5392 = vrot.lane.b32.xlu0 %v5325, 96
    %v5393 = vpop.permute.xlu0 %5392
    %v5397 = vsel %vm1191, %v5306, %v5331
    %v5398 = vsel %vm1191, %v5307, %v5333
    %v5399 = vsel %vm1191, %v5308, %v5335
    %v5400 = vsel %vm2187, %v5397, %v5343
    %v5401 = vsel %vm2187, %v5398, %v5345
    %v5402 = vsel %vm2187, %v5399, %v5347
    %v5403 = vsel %vm2211, %v5400, %v5355
    %v5404 = vsel %vm2211, %v5401, %v5357
    %v5405 = vsel %vm2211, %v5402, %v5359
    %v5406 = vsel %vm1191, %v5318, %v5367
    %v5407 = vsel %vm1191, %v5319, %v5369
    %v5408 = vsel %vm1191, %v5320, %v5371
    %v5409 = vsel %vm2187, %v5406, %v5379
    %v5410 = vsel %vm2187, %v5407, %v5381
    %v5411 = vsel %vm2187, %v5408, %v5383
    %v5412 = vsel %vm2211, %v5409, %v5389
    %v5413 = vsel %vm2211, %v5410, %v5391
    %v5414 = vsel %vm2211, %v5411, %v5393
    %v5415 = vld [vmem:[%s69] sm:$0xff]
    %v5416 = vld [vmem:[%s69 + $0x8] sm:$0xff]
    %v5417 = vld [vmem:[%s69 + $0x10] sm:$0xff]
    %v5418 = vld [vmem:[%s69 + $0x18] sm:$0xff]
    %v5419 = vld [vmem:[%s69 + $0x20] sm:$0xff]
    %v5420 = vld [vmem:[%s69 + $0x28] sm:$0xff]
    %v5421 = vld [vmem:[%s69 + $0x30] sm:$0xff]
    %v5422 = vld [vmem:[%s69 + $0x38] sm:$0xff]
    %v5423 = vld [vmem:[%s69 + $0x40] sm:$0xff]
    %v5424 = vld [vmem:[%s69 + $0x48] sm:$0xff]
    %v5425 = vld [vmem:[%s69 + $0x50] sm:$0xff]
    %v5426 = vld [vmem:[%s69 + $0x58] sm:$0xff]
    %v5427 = vld [vmem:[%s69 + $0x60] sm:$0xff]
    %v5428 = vld [vmem:[%s69 + $0x68] sm:$0xff]
    %v5429 = vld [vmem:[%s69 + $0x70] sm:$0xff]
    %v5430 = vld [vmem:[%s69 + $0x78] sm:$0xff]
    %v5431 = vld [vmem:[%s69 + $0x80] sm:$0xff]
    %v5432 = vld [vmem:[%s69 + $0x88] sm:$0xff]
    %v5433 = vld [vmem:[%s69 + $0x90] sm:$0xff]
    %v5434 = vld [vmem:[%s69 + $0x98] sm:$0xff]
    %v5435 = vld [vmem:[%s69 + $0xa0] sm:$0xff]
    %v5436 = vld [vmem:[%s69 + $0xa8] sm:$0xff]
    %v5437 = vld [vmem:[%s69 + $0xb0] sm:$0xff]
    %v5438 = vld [vmem:[%s69 + $0xb8] sm:$0xff]
    %v5439 = vld [vmem:[%s69 + $0xc0] sm:$0xff]
    %v5440 = vld [vmem:[%s69 + $0xc8] sm:$0xff]
    %v5441 = vld [vmem:[%s69 + $0xd0] sm:$0xff]
    %v5442 = vld [vmem:[%s69 + $0xd8] sm:$0xff]
    %v5443 = vld [vmem:[%s69 + $0xe0] sm:$0xff]
    %v5444 = vld [vmem:[%s69 + $0xe8] sm:$0xff]
    %v5445 = vld [vmem:[%s69 + $0xf0] sm:$0xff]
    %v5446 = vld [vmem:[%s69 + $0xf8] sm:$0xff]
    %v5447 = vld [vmem:[%s69 + $0x100] sm:$0xff]
    %v5448 = vld [vmem:[%s69 + $0x108] sm:$0xff]
    %v5449 = vld [vmem:[%s69 + $0x110] sm:$0xff]
    %v5450 = vld [vmem:[%s69 + $0x118] sm:$0xff]
    %v5451 = vsel %vm1191, %v5313, 0
    %v5453 = vsel %vm1191, %v5314, 0
    %v5456 = vsel %vm1191, %v5326, 0
    %5458 = vmatprep.subr.mxu0 0.0
    %5459 = vmatpush1.msra.mxu0 %v5415
    %5460 = vmatprep.subr.mxu0 0.0
    %5461 = vmatpush1.msra.mxu0 %v5416
    %5462 = vmatprep.subr.mxu0 0.0
    %5463 = vmatpush1.msra.mxu0 %v5417
    %5464 = vmatprep.subr.mxu0 0.0
    %5465 = vmatpush1.msra.mxu0 %v5418
    %5466 = vmatprep.subr.mxu0 0.0
    %5467 = vmatpush1.msra.mxu0 %v5419
    %5468 = vmatprep.subr.mxu0 0.0
    %5469 = vmatpush1.msra.mxu0 %v5420
    %5470 = vmatprep.subr.mxu0 0.0
    %5471 = vmatpush1.msra.mxu0 %v5421
    %5472 = vmatprep.subr.mxu0 0.0
    %5473 = vmatpush1.msra.mxu0 %v5422
    %5474 = vmatprep.subr.mxu0 0.0
    %5475 = vmatpush1.msra.mxu0 %v5423
    %5476 = vmatprep.subr.mxu0 0.0
    %5477 = vmatpush1.msra.mxu0 %v5424
    %5478 = vmatprep.subr.mxu0 0.0
    %5479 = vmatpush1.msra.mxu0 %v5425
    %5480 = vmatprep.subr.mxu0 0.0
    %5481 = vmatpush1.msra.mxu0 %v5426
    %5482 = vmatprep.subr.mxu0 0.0
    %5483 = vmatpush1.msra.mxu0 %v5427
    %5484 = vmatprep.subr.mxu0 0.0
    %5485 = vmatpush1.msra.mxu0 %v5428
    %5486 = vmatprep.subr.mxu0 0.0
    %5487 = vmatpush1.msra.mxu0 %v5429
    %5488 = vmatprep.subr.mxu0 0.0
    %5489 = vmatpush1.msra.mxu0 %v5430
    %5490 = vmatprep.subr.mxu0 0.0
    %5491 = vmatpush1.msra.mxu0 %v5431
    %5492 = vmatprep.subr.mxu0 0.0
    %5493 = vmatpush1.msra.mxu0 %v5432
    %5494 = vmatprep.subr.mxu0 0.0
    %5495 = vmatpush1.msra.mxu0 %v5433
    %5496 = vmatprep.subr.mxu0 0.0
    %5497 = vmatpush1.msra.mxu0 %v5434
    %5498 = vmatprep.subr.mxu0 0.0
    %5499 = vmatpush1.msra.mxu0 %v5435
    %5500 = vmatprep.subr.mxu0 0.0
    %5501 = vmatpush1.msra.mxu0 %v5436
    %5502 = vmatprep.subr.mxu0 0.0
    %5503 = vmatpush1.msra.mxu0 %v5437
    %5504 = vmatprep.subr.mxu0 0.0
    %5505 = vmatpush1.msra.mxu0 %v5438
    %5506 = vmatprep.subr.mxu0 0.0
    %5507 = vmatpush1.msra.mxu0 %v5439
    %5508 = vmatprep.subr.mxu0 0.0
    %5509 = vmatpush1.msra.mxu0 %v5440
    %5510 = vmatprep.subr.mxu0 0.0
    %5511 = vmatpush1.msra.mxu0 %v5441
    %5512 = vmatprep.subr.mxu0 0.0
    %5513 = vmatpush1.msra.mxu0 %v5442
    %5514 = vmatprep.subr.mxu0 0.0
    %5515 = vmatpush1.msra.mxu0 %v5443
    %5516 = vmatprep.subr.mxu0 0.0
    %5517 = vmatpush1.msra.mxu0 %v5444
    %5518 = vmatprep.subr.mxu0 0.0
    %5519 = vmatpush1.msra.mxu0 %v5445
    %5520 = vmatprep.subr.mxu0 0.0
    %5521 = vmatpush1.msra.mxu0 %v5446
    %5522 = vmatprep.mubr.f32.mxu0 %v5412
    %5523 = vmatmul.mubr.f32.gmra.mrb[0].mxu0 %v5403
    %v5524 = vpop.f32.mrb[0].mxu0
    %v5525 = vadd.f32 0.0, %v5524
    %v5526 = vpop.f32.mrb[0].mxu0
    %5527 = vmatprep.mubr.f32.mxu0 %v5413
    %5528 = vmatmul.mubr.f32.gmra.mrb[0].mxu0 %v5404
    %v5529 = vpop.f32.mrb[0].mxu0
    %v5530 = vadd.f32 0.0, %v5529
    %v5531 = vpop.f32.mrb[0].mxu0
    %5532 = vmatprep.mubr.f32.mxu0 %v5414
    %5533 = vmatmul.mubr.f32.gmra.mrb[0].mxu0 %v5405
    %v5534 = vpop.f32.mrb[0].mxu0
    %v5535 = vadd.f32 0.0, %v5534
    %v5536 = vpop.f32.mrb[0].mxu0
    %5537 = vdwg.mxu0
    %5538 = vmatprep.subr.mxu0 0.0
    %5539 = vmatpush1.msra.mxu0 %v5447
    %5540 = vmatprep.subr.mxu0 0.0
    %5541 = vmatpush1.msra.mxu0 %v5448
    %5542 = vmatprep.subr.mxu0 0.0
    %5543 = vmatpush1.msra.mxu0 %v5449
    %5544 = vmatprep.subr.mxu0 0.0
    %5545 = vmatpush1.msra.mxu0 %v5450
    %5546 = vmatprep.subr.mxu0 0.0
    %5547 = vmatpush1.msra.mxu0 0.0
    %5548 = vmatprep.subr.mxu0 0.0
    %5549 = vmatpush1.msra.mxu0 0.0
    %5550 = vmatprep.subr.mxu0 0.0
    %5551 = vmatpush1.msra.mxu0 0.0
    %5552 = vmatprep.subr.mxu0 0.0
    %5553 = vmatpush1.msra.mxu0 0.0
    %5554 = vmatprep.subr.mxu0 0.0
    %5555 = vmatpush1.msra.mxu0 0.0
    %5556 = vmatprep.subr.mxu0 0.0
    %5557 = vmatpush1.msra.mxu0 0.0
    %5558 = vmatprep.subr.mxu0 0.0
    %5559 = vmatpush1.msra.mxu0 0.0
    %5560 = vmatprep.subr.mxu0 0.0
    %5561 = vmatpush1.msra.mxu0 0.0
    %5562 = vmatprep.subr.mxu0 0.0
    %5563 = vmatpush1.msra.mxu0 0.0
    %5564 = vmatprep.subr.mxu0 0.0
    %5565 = vmatpush1.msra.mxu0 0.0
    %5566 = vmatprep.subr.mxu0 0.0
    %5567 = vmatpush1.msra.mxu0 0.0
    %5568 = vmatprep.subr.mxu0 0.0
    %5569 = vmatpush1.msra.mxu0 0.0
    %5570 = vmatprep.subr.mxu0 0.0
    %5571 = vmatpush1.msra.mxu0 0.0
    %5572 = vmatprep.subr.mxu0 0.0
    %5573 = vmatpush1.msra.mxu0 0.0
    %5574 = vmatprep.subr.mxu0 0.0
    %5575 = vmatpush1.msra.mxu0 0.0
    %5576 = vmatprep.subr.mxu0 0.0
    %5577 = vmatpush1.msra.mxu0 0.0
    %5578 = vmatprep.subr.mxu0 0.0
    %5579 = vmatpush1.msra.mxu0 0.0
    %5580 = vmatprep.subr.mxu0 0.0
    %5581 = vmatpush1.msra.mxu0 0.0
    %5582 = vmatprep.subr.mxu0 0.0
    %5583 = vmatpush1.msra.mxu0 0.0
    %5584 = vmatprep.subr.mxu0 0.0
    %5585 = vmatpush1.msra.mxu0 0.0
    %5586 = vmatprep.subr.mxu0 0.0
    %5587 = vmatpush1.msra.mxu0 0.0
    %5588 = vmatprep.subr.mxu0 0.0
    %5589 = vmatpush1.msra.mxu0 0.0
    %5590 = vmatprep.subr.mxu0 0.0
    %5591 = vmatpush1.msra.mxu0 0.0
    %5592 = vmatprep.subr.mxu0 0.0
    %5593 = vmatpush1.msra.mxu0 0.0
    %5594 = vmatprep.subr.mxu0 0.0
    %5595 = vmatpush1.msra.mxu0 0.0
    %5596 = vmatprep.subr.mxu0 0.0
    %5597 = vmatpush1.msra.mxu0 0.0
    %5598 = vmatprep.subr.mxu0 0.0
    %5599 = vmatpush1.msra.mxu0 0.0
    %5600 = vmatprep.subr.mxu0 0.0
    %5601 = vmatpush1.msra.mxu0 0.0
    %5602 = vmatprep.mubr.f32.mxu0 0.0
    %5603 = vmatmul.mubr.f32.gmra.mrb[0].mxu0 %v5451
    %v5604 = vpop.f32.mrb[0].mxu0
    %v5605 = vadd.f32 %v5525, %v5604
    %v5606 = vpop.f32.mrb[0].mxu0
    %5607 = vmatprep.mubr.f32.mxu0 0.0
    %5608 = vmatmul.mubr.f32.gmra.mrb[0].mxu0 %v5453
    %v5609 = vpop.f32.mrb[0].mxu0
    %v5610 = vadd.f32 %v5530, %v5609
    %v5611 = vpop.f32.mrb[0].mxu0
    %5612 = vmatprep.mubr.f32.mxu0 0.0
    %5613 = vmatmul.mubr.f32.gmra.mrb[0].mxu0 %v5456
    %v5614 = vpop.f32.mrb[0].mxu0
    %v5615 = vadd.f32 %v5535, %v5614
    %v5616 = vpop.f32.mrb[0].mxu0
    %5617 = vdwg.mxu0
    %v5618 = vld [vmem:[%s71] sm:$0x1]
    %v5620 = vlaneseq
    %v5621 = vshrl.u32 %v5620, 7
    %v5622 = vsub.s32 0, %v5621
    %v5623 = vrot.slane %v5618, %v5622
    %v5625 = vmul.f32 %v5605, %v5623
    %v5626 = vmul.f32 %v5610, %v5623
    %v5627 = vmul.f32 %v5615, %v5623
    %v5628 = vld [vmem:[%s73] sm:$0x1]
    %v5630 = vlaneseq
    %v5631 = vshrl.u32 %v5630, 7
    %v5632 = vsub.s32 0, %v5631
    %v5633 = vrot.slane %v5628, %v5632
    %v5635 = vadd.f32 %v5625, %v5633
    %v5636 = vadd.f32 %v5626, %v5633
    %v5637 = vadd.f32 %v5627, %v5633
    %v5638 = vmax.f32 %v5635, 0.0
    %v5639 = vmax.f32 %v5636, 0.0
    %v5640 = vmax.f32 %v5637, 0.0
    %v5641 = vld [vmem:[%s75] sm:$0xff]
    %v5642 = vld [vmem:[%s75 + $0x8] sm:$0xff]
    %v5643 = vld [vmem:[%s75 + $0x10] sm:$0xff]
    %v5644 = vld [vmem:[%s75 + $0x18] sm:$0xff]
    %v5645 = vld [vmem:[%s75 + $0x20] sm:$0xff]
    %v5646 = vld [vmem:[%s75 + $0x28] sm:$0xff]
    %v5647 = vld [vmem:[%s75 + $0x30] sm:$0xff]
    %v5648 = vld [vmem:[%s75 + $0x38] sm:$0xff]
    %v5650 = vsel %vm2187, %v5638, 0
    %v5653 = vsel %vm2187, %v5639, 0
    %v5656 = vsel %vm2187, %v5640, 0
    %5658 = vmatprep.subr.mxu0 0.0
    %5659 = vmatpush1.msra.mxu0 %v5641
    %5660 = vmatprep.subr.mxu0 0.0
    %5661 = vmatpush1.msra.mxu0 %v5642
    %5662 = vmatprep.subr.mxu0 0.0
    %5663 = vmatpush1.msra.mxu0 %v5643
    %5664 = vmatprep.subr.mxu0 0.0
    %5665 = vmatpush1.msra.mxu0 %v5644
    %5666 = vmatprep.subr.mxu0 0.0
    %5667 = vmatpush1.msra.mxu0 %v5645
    %5668 = vmatprep.subr.mxu0 0.0
    %5669 = vmatpush1.msra.mxu0 %v5646
    %5670 = vmatprep.subr.mxu0 0.0
    %5671 = vmatpush1.msra.mxu0 %v5647
    %5672 = vmatprep.subr.mxu0 0.0
    %5673 = vmatpush1.msra.mxu0 %v5648
    %5674 = vmatprep.subr.mxu0 0.0
    %5675 = vmatpush1.msra.mxu0 0.0
    %5676 = vmatprep.subr.mxu0 0.0
    %5677 = vmatpush1.msra.mxu0 0.0
    %5678 = vmatprep.subr.mxu0 0.0
    %5679 = vmatpush1.msra.mxu0 0.0
    %5680 = vmatprep.subr.mxu0 0.0
    %5681 = vmatpush1.msra.mxu0 0.0
    %5682 = vmatprep.subr.mxu0 0.0
    %5683 = vmatpush1.msra.mxu0 0.0
    %5684 = vmatprep.subr.mxu0 0.0
    %5685 = vmatpush1.msra.mxu0 0.0
    %5686 = vmatprep.subr.mxu0 0.0
    %5687 = vmatpush1.msra.mxu0 0.0
    %5688 = vmatprep.subr.mxu0 0.0
    %5689 = vmatpush1.msra.mxu0 0.0
    %5690 = vmatprep.subr.mxu0 0.0
    %5691 = vmatpush1.msra.mxu0 0.0
    %5692 = vmatprep.subr.mxu0 0.0
    %5693 = vmatpush1.msra.mxu0 0.0
    %5694 = vmatprep.subr.mxu0 0.0
    %5695 = vmatpush1.msra.mxu0 0.0
    %5696 = vmatprep.subr.mxu0 0.0
    %5697 = vmatpush1.msra.mxu0 0.0
    %5698 = vmatprep.subr.mxu0 0.0
    %5699 = vmatpush1.msra.mxu0 0.0
    %5700 = vmatprep.subr.mxu0 0.0
    %5701 = vmatpush1.msra.mxu0 0.0
    %5702 = vmatprep.subr.mxu0 0.0
    %5703 = vmatpush1.msra.mxu0 0.0
    %5704 = vmatprep.subr.mxu0 0.0
    %5705 = vmatpush1.msra.mxu0 0.0
    %5706 = vmatprep.subr.mxu0 0.0
    %5707 = vmatpush1.msra.mxu0 0.0
    %5708 = vmatprep.subr.mxu0 0.0
    %5709 = vmatpush1.msra.mxu0 0.0
    %5710 = vmatprep.subr.mxu0 0.0
    %5711 = vmatpush1.msra.mxu0 0.0
    %5712 = vmatprep.subr.mxu0 0.0
    %5713 = vmatpush1.msra.mxu0 0.0
    %5714 = vmatprep.subr.mxu0 0.0
    %5715 = vmatpush1.msra.mxu0 0.0
    %5716 = vmatprep.subr.mxu0 0.0
    %5717 = vmatpush1.msra.mxu0 0.0
    %5718 = vmatprep.subr.mxu0 0.0
    %5719 = vmatpush1.msra.mxu0 0.0
    %5720 = vmatprep.subr.mxu0 0.0
    %5721 = vmatpush1.msra.mxu0 0.0
    %5722 = vmatprep.mubr.f32.mxu0 0.0
    %5723 = vmatmul.mubr.f32.gmra.mrb[0].mxu0 %v5650
    %v5724 = vpop.f32.mrb[0].mxu0
    %v5725 = vadd.f32 0.0, %v5724
    %v5726 = vpop.f32.mrb[0].mxu0
    %5727 = vmatprep.mubr.f32.mxu0 0.0
    %5728 = vmatmul.mubr.f32.gmra.mrb[0].mxu0 %v5653
    %v5729 = vpop.f32.mrb[0].mxu0
    %v5730 = vadd.f32 0.0, %v5729
    %v5731 = vpop.f32.mrb[0].mxu0
    %5732 = vmatprep.mubr.f32.mxu0 0.0
    %5733 = vmatmul.mubr.f32.gmra.mrb[0].mxu0 %v5656
    %v5734 = vpop.f32.mrb[0].mxu0
    %v5735 = vadd.f32 0.0, %v5734
    %v5736 = vpop.f32.mrb[0].mxu0
    %5737 = vdwg.mxu0
    %v5738 = vld [vmem:[%s77] sm:$0x1]
    %v5740 = vlaneseq
    %v5741 = vshrl.u32 %v5740, 7
    %v5742 = vsub.s32 0, %v5741
    %v5743 = vrot.slane %v5738, %v5742
    %v5745 = vmul.f32 %v5725, %v5743
    %v5746 = vmul.f32 %v5730, %v5743
    %v5747 = vmul.f32 %v5735, %v5743
    %v5748 = vld [vmem:[%s79] sm:$0x1]
    %v5750 = vlaneseq
    %v5751 = vshrl.u32 %v5750, 7
    %v5752 = vsub.s32 0, %v5751
    %v5753 = vrot.slane %v5748, %v5752
    %v5755 = vadd.f32 %v5745, %v5753
    %v5756 = vadd.f32 %v5746, %v5753
    %v5757 = vadd.f32 %v5747, %v5753
    %v5758 = vmax.f32 %v5755, 0.0
    %v5759 = vmax.f32 %v5756, 0.0
    %v5760 = vmax.f32 %v5757, 0.0
    %5761 = vst.msk [vmem:[#allocation12] sm:$0xff] %vm1191, 0.0
    %v5762 = vld [vmem:[%s5] sm:$0xff]
    %v5763 = vld [vmem:[%s5 + $0x8] sm:$0xff]
    %v5764 = vld [vmem:[%s5 + $0x10] sm:$0xff]
    %vm5765 = vcmp.gt.f32.partialorder %v5762, 0.5
    %vm5766 = vcmp.gt.f32.partialorder %v5763, 0.5
    %vm5767 = vcmp.gt.f32.partialorder %v5764, 0.5
    %v5768 = vsel %vm5765, 1, 0
    %v5769 = vsel %vm5766, 1, 0
    %v5770 = vsel %vm5767, 1, 0
    %5771 = vset.pattern.permute.xlu0 0
    %5772 = vperm.xlu0 %5771, %v5768
    %v5773 = vpop.permute.xlu0 %5772
    %5774 = vset.pattern.permute.xlu0 0
    %5775 = vperm.xlu0 %5774, %v5769
    %v5776 = vpop.permute.xlu0 %5775
    %5777 = vset.pattern.permute.xlu0 0
    %5778 = vperm.xlu0 %5777, %v5770
    %v5779 = vpop.permute.xlu0 %5778
    %vm5780 = vcmp.eq.s32.totalorder %v5773, 1
    %vm5781 = vcmp.eq.s32.totalorder %v5776, 1
    %vm5782 = vcmp.eq.s32.totalorder %v5779, 1
    %v5783 = vsel %vm5780, %v5758, 0.0
    %v5784 = vsel %vm5781, %v5759, 0.0
    %v5785 = vsel %vm5782, %v5760, 0.0
    %5786 = vst.msk [vmem:[#allocation12 + $0x8] sm:$0xff] %vm1191, %v5783
    %5787 = vst.msk [vmem:[#allocation12 + $0x10] sm:$0xff] %vm1191, %v5784
    %5788 = vst.msk [vmem:[#allocation12 + $0x18] sm:$0xff] %vm1191, %v5785
    %5789 = vst.msk [vmem:[#allocation12 + $0x20] sm:$0x1f] %vm4820, 0.0
    %v5790 = vld [vmem:[#allocation12 + $0x3] sm:$0xff]
    %v5791 = vld [vmem:[#allocation12 + $0xb] sm:$0xff]
    %v5792 = vld [vmem:[#allocation12 + $0x13] sm:$0xff]
    %v5793 = vld [vmem:[#allocation12 + $0x4] sm:$0xff]
    %v5794 = vld [vmem:[#allocation12 + $0xc] sm:$0xff]
    %v5795 = vld [vmem:[#allocation12 + $0x14] sm:$0xff]
    %v5796 = vld [vmem:[#allocation12 + $0x5] sm:$0xff]
    %v5797 = vld [vmem:[#allocation12 + $0xd] sm:$0xff]
    %v5798 = vld [vmem:[#allocation12 + $0x15] sm:$0xff]
    %v5799 = vld [vmem:[#allocation12 + $0x7] sm:$0xff]
    %v5800 = vld [vmem:[#allocation12 + $0xf] sm:$0xff]
    %v5801 = vld [vmem:[#allocation12 + $0x17] sm:$0xff]
    %v5802 = vld [vmem:[#allocation12 + $0x8] sm:$0xff]
    %v5803 = vld [vmem:[#allocation12 + $0x10] sm:$0xff]
    %v5804 = vld [vmem:[#allocation12 + $0x18] sm:$0xff]
    %v5805 = vld [vmem:[#allocation12 + $0x9] sm:$0xff]
    %v5806 = vld [vmem:[#allocation12 + $0x11] sm:$0xff]
    %v5807 = vld [vmem:[#allocation12 + $0x19] sm:$0xff]
    %v5808 = vld [vmem:[#allocation12 + $0x1b] sm:$0xff]
    %v5809 = vld [vmem:[#allocation12 + $0x1c] sm:$0xff]
    %v5810 = vld [vmem:[#allocation12 + $0x1d] sm:$0xff]
    %5814 = vrot.lane.b32.xlu0 %v5793, 32
    %v5815 = vpop.permute.xlu0 %5814
    %5816 = vrot.lane.b32.xlu0 %v5794, 32
    %v5817 = vpop.permute.xlu0 %5816
    %5818 = vrot.lane.b32.xlu0 %v5795, 32
    %v5819 = vpop.permute.xlu0 %5818
    %5826 = vrot.lane.b32.xlu0 %v5796, 64
    %v5827 = vpop.permute.xlu0 %5826
    %5828 = vrot.lane.b32.xlu0 %v5797, 64
    %v5829 = vpop.permute.xlu0 %5828
    %5830 = vrot.lane.b32.xlu0 %v5798, 64
    %v5831 = vpop.permute.xlu0 %5830
    %5838 = vrot.lane.b32.xlu0 %v5799, 96
    %v5839 = vpop.permute.xlu0 %5838
    %5840 = vrot.lane.b32.xlu0 %v5800, 96
    %v5841 = vpop.permute.xlu0 %5840
    %5842 = vrot.lane.b32.xlu0 %v5801, 96
    %v5843 = vpop.permute.xlu0 %5842
    %5850 = vrot.lane.b32.xlu0 %v5805, 32
    %v5851 = vpop.permute.xlu0 %5850
    %5852 = vrot.lane.b32.xlu0 %v5806, 32
    %v5853 = vpop.permute.xlu0 %5852
    %5854 = vrot.lane.b32.xlu0 %v5807, 32
    %v5855 = vpop.permute.xlu0 %5854
    %5862 = vrot.lane.b32.xlu0 %v5791, 64
    %v5863 = vpop.permute.xlu0 %5862
    %5864 = vrot.lane.b32.xlu0 %v5792, 64
    %v5865 = vpop.permute.xlu0 %5864
    %5866 = vrot.lane.b32.xlu0 %v5808, 64
    %v5867 = vpop.permute.xlu0 %5866
    %5872 = vrot.lane.b32.xlu0 %v5794, 96
    %v5873 = vpop.permute.xlu0 %5872
    %5874 = vrot.lane.b32.xlu0 %v5795, 96
    %v5875 = vpop.permute.xlu0 %5874
    %5876 = vrot.lane.b32.xlu0 %v5809, 96
    %v5877 = vpop.permute.xlu0 %5876
    %v5881 = vsel %vm1191, %v5790, %v5815
    %v5882 = vsel %vm1191, %v5791, %v5817
    %v5883 = vsel %vm1191, %v5792, %v5819
    %v5884 = vsel %vm2187, %v5881, %v5827
    %v5885 = vsel %vm2187, %v5882, %v5829
    %v5886 = vsel %vm2187, %v5883, %v5831
    %v5887 = vsel %vm2211, %v5884, %v5839
    %v5888 = vsel %vm2211, %v5885, %v5841
    %v5889 = vsel %vm2211, %v5886, %v5843
    %v5890 = vsel %vm1191, %v5802, %v5851
    %v5891 = vsel %vm1191, %v5803, %v5853
    %v5892 = vsel %vm1191, %v5804, %v5855
    %v5893 = vsel %vm2187, %v5890, %v5863
    %v5894 = vsel %vm2187, %v5891, %v5865
    %v5895 = vsel %vm2187, %v5892, %v5867
    %v5896 = vsel %vm2211, %v5893, %v5873
    %v5897 = vsel %vm2211, %v5894, %v5875
    %v5898 = vsel %vm2211, %v5895, %v5877
    %v5899 = vld [vmem:[%s81] sm:$0xff]
    %v5900 = vld [vmem:[%s81 + $0x8] sm:$0xff]
    %v5901 = vld [vmem:[%s81 + $0x10] sm:$0xff]
    %v5902 = vld [vmem:[%s81 + $0x18] sm:$0xff]
    %v5903 = vld [vmem:[%s81 + $0x20] sm:$0xff]
    %v5904 = vld [vmem:[%s81 + $0x28] sm:$0xff]
    %v5905 = vld [vmem:[%s81 + $0x30] sm:$0xff]
    %v5906 = vld [vmem:[%s81 + $0x38] sm:$0xff]
    %v5907 = vld [vmem:[%s81 + $0x40] sm:$0xff]
    %v5908 = vld [vmem:[%s81 + $0x48] sm:$0xff]
    %v5909 = vld [vmem:[%s81 + $0x50] sm:$0xff]
    %v5910 = vld [vmem:[%s81 + $0x58] sm:$0xff]
    %v5911 = vld [vmem:[%s81 + $0x60] sm:$0xff]
    %v5912 = vld [vmem:[%s81 + $0x68] sm:$0xff]
    %v5913 = vld [vmem:[%s81 + $0x70] sm:$0xff]
    %v5914 = vld [vmem:[%s81 + $0x78] sm:$0xff]
    %v5915 = vld [vmem:[%s81 + $0x80] sm:$0xff]
    %v5916 = vld [vmem:[%s81 + $0x88] sm:$0xff]
    %v5917 = vld [vmem:[%s81 + $0x90] sm:$0xff]
    %v5918 = vld [vmem:[%s81 + $0x98] sm:$0xff]
    %v5919 = vld [vmem:[%s81 + $0xa0] sm:$0xff]
    %v5920 = vld [vmem:[%s81 + $0xa8] sm:$0xff]
    %v5921 = vld [vmem:[%s81 + $0xb0] sm:$0xff]
    %v5922 = vld [vmem:[%s81 + $0xb8] sm:$0xff]
    %v5923 = vld [vmem:[%s81 + $0xc0] sm:$0xff]
    %v5924 = vld [vmem:[%s81 + $0xc8] sm:$0xff]
    %v5925 = vld [vmem:[%s81 + $0xd0] sm:$0xff]
    %v5926 = vld [vmem:[%s81 + $0xd8] sm:$0xff]
    %v5927 = vld [vmem:[%s81 + $0xe0] sm:$0xff]
    %v5928 = vld [vmem:[%s81 + $0xe8] sm:$0xff]
    %v5929 = vld [vmem:[%s81 + $0xf0] sm:$0xff]
    %v5930 = vld [vmem:[%s81 + $0xf8] sm:$0xff]
    %v5931 = vld [vmem:[%s81 + $0x100] sm:$0xff]
    %v5932 = vld [vmem:[%s81 + $0x108] sm:$0xff]
    %v5933 = vld [vmem:[%s81 + $0x110] sm:$0xff]
    %v5934 = vld [vmem:[%s81 + $0x118] sm:$0xff]
    %v5935 = vsel %vm1191, %v5797, 0
    %v5937 = vsel %vm1191, %v5798, 0
    %v5940 = vsel %vm1191, %v5810, 0
    %5942 = vmatprep.subr.mxu0 0.0
    %5943 = vmatpush1.msra.mxu0 %v5899
    %5944 = vmatprep.subr.mxu0 0.0
    %5945 = vmatpush1.msra.mxu0 %v5900
    %5946 = vmatprep.subr.mxu0 0.0
    %5947 = vmatpush1.msra.mxu0 %v5901
    %5948 = vmatprep.subr.mxu0 0.0
    %5949 = vmatpush1.msra.mxu0 %v5902
    %5950 = vmatprep.subr.mxu0 0.0
    %5951 = vmatpush1.msra.mxu0 %v5903
    %5952 = vmatprep.subr.mxu0 0.0
    %5953 = vmatpush1.msra.mxu0 %v5904
    %5954 = vmatprep.subr.mxu0 0.0
    %5955 = vmatpush1.msra.mxu0 %v5905
    %5956 = vmatprep.subr.mxu0 0.0
    %5957 = vmatpush1.msra.mxu0 %v5906
    %5958 = vmatprep.subr.mxu0 0.0
    %5959 = vmatpush1.msra.mxu0 %v5907
    %5960 = vmatprep.subr.mxu0 0.0
    %5961 = vmatpush1.msra.mxu0 %v5908
    %5962 = vmatprep.subr.mxu0 0.0
    %5963 = vmatpush1.msra.mxu0 %v5909
    %5964 = vmatprep.subr.mxu0 0.0
    %5965 = vmatpush1.msra.mxu0 %v5910
    %5966 = vmatprep.subr.mxu0 0.0
    %5967 = vmatpush1.msra.mxu0 %v5911
    %5968 = vmatprep.subr.mxu0 0.0
    %5969 = vmatpush1.msra.mxu0 %v5912
    %5970 = vmatprep.subr.mxu0 0.0
    %5971 = vmatpush1.msra.mxu0 %v5913
    %5972 = vmatprep.subr.mxu0 0.0
    %5973 = vmatpush1.msra.mxu0 %v5914
    %5974 = vmatprep.subr.mxu0 0.0
    %5975 = vmatpush1.msra.mxu0 %v5915
    %5976 = vmatprep.subr.mxu0 0.0
    %5977 = vmatpush1.msra.mxu0 %v5916
    %5978 = vmatprep.subr.mxu0 0.0
    %5979 = vmatpush1.msra.mxu0 %v5917
    %5980 = vmatprep.subr.mxu0 0.0
    %5981 = vmatpush1.msra.mxu0 %v5918
    %5982 = vmatprep.subr.mxu0 0.0
    %5983 = vmatpush1.msra.mxu0 %v5919
    %5984 = vmatprep.subr.mxu0 0.0
    %5985 = vmatpush1.msra.mxu0 %v5920
    %5986 = vmatprep.subr.mxu0 0.0
    %5987 = vmatpush1.msra.mxu0 %v5921
    %5988 = vmatprep.subr.mxu0 0.0
    %5989 = vmatpush1.msra.mxu0 %v5922
    %5990 = vmatprep.subr.mxu0 0.0
    %5991 = vmatpush1.msra.mxu0 %v5923
    %5992 = vmatprep.subr.mxu0 0.0
    %5993 = vmatpush1.msra.mxu0 %v5924
    %5994 = vmatprep.subr.mxu0 0.0
    %5995 = vmatpush1.msra.mxu0 %v5925
    %5996 = vmatprep.subr.mxu0 0.0
    %5997 = vmatpush1.msra.mxu0 %v5926
    %5998 = vmatprep.subr.mxu0 0.0
    %5999 = vmatpush1.msra.mxu0 %v5927
    %6000 = vmatprep.subr.mxu0 0.0
    %6001 = vmatpush1.msra.mxu0 %v5928
    %6002 = vmatprep.subr.mxu0 0.0
    %6003 = vmatpush1.msra.mxu0 %v5929
    %6004 = vmatprep.subr.mxu0 0.0
    %6005 = vmatpush1.msra.mxu0 %v5930
    %6006 = vmatprep.mubr.f32.mxu0 %v5896
    %6007 = vmatmul.mubr.f32.gmra.mrb[0].mxu0 %v5887
    %v6008 = vpop.f32.mrb[0].mxu0
    %v6009 = vadd.f32 0.0, %v6008
    %v6010 = vpop.f32.mrb[0].mxu0
    %6011 = vmatprep.mubr.f32.mxu0 %v5897
    %6012 = vmatmul.mubr.f32.gmra.mrb[0].mxu0 %v5888
    %v6013 = vpop.f32.mrb[0].mxu0
    %v6014 = vpop.f32.mrb[0].mxu0
    %6015 = vmatprep.mubr.f32.mxu0 %v5898
    %6016 = vmatmul.mubr.f32.gmra.mrb[0].mxu0 %v5889
    %v6017 = vpop.f32.mrb[0].mxu0
    %v6018 = vadd.f32 0.0, %v6017
    %v6019 = vpop.f32.mrb[0].mxu0
    %6020 = vdwg.mxu0
    %6021 = vmatprep.subr.mxu0 0.0
    %6022 = vmatpush1.msra.mxu0 %v5931
    %6023 = vmatprep.subr.mxu0 0.0
    %6024 = vmatpush1.msra.mxu0 %v5932
    %6025 = vmatprep.subr.mxu0 0.0
    %6026 = vmatpush1.msra.mxu0 %v5933
    %6027 = vmatprep.subr.mxu0 0.0
    %6028 = vmatpush1.msra.mxu0 %v5934
    %6029 = vmatprep.subr.mxu0 0.0
    %6030 = vmatpush1.msra.mxu0 0.0
    %6031 = vmatprep.subr.mxu0 0.0
    %6032 = vmatpush1.msra.mxu0 0.0
    %6033 = vmatprep.subr.mxu0 0.0
    %6034 = vmatpush1.msra.mxu0 0.0
    %6035 = vmatprep.subr.mxu0 0.0
    %6036 = vmatpush1.msra.mxu0 0.0
    %6037 = vmatprep.subr.mxu0 0.0
    %6038 = vmatpush1.msra.mxu0 0.0
    %6039 = vmatprep.subr.mxu0 0.0
    %6040 = vmatpush1.msra.mxu0 0.0
    %6041 = vmatprep.subr.mxu0 0.0
    %6042 = vmatpush1.msra.mxu0 0.0
    %6043 = vmatprep.subr.mxu0 0.0
    %6044 = vmatpush1.msra.mxu0 0.0
    %6045 = vmatprep.subr.mxu0 0.0
    %6046 = vmatpush1.msra.mxu0 0.0
    %6047 = vmatprep.subr.mxu0 0.0
    %6048 = vmatpush1.msra.mxu0 0.0
    %6049 = vmatprep.subr.mxu0 0.0
    %6050 = vmatpush1.msra.mxu0 0.0
    %6051 = vmatprep.subr.mxu0 0.0
    %6052 = vmatpush1.msra.mxu0 0.0
    %6053 = vmatprep.subr.mxu0 0.0
    %6054 = vmatpush1.msra.mxu0 0.0
    %6055 = vmatprep.subr.mxu0 0.0
    %6056 = vmatpush1.msra.mxu0 0.0
    %6057 = vmatprep.subr.mxu0 0.0
    %6058 = vmatpush1.msra.mxu0 0.0
    %6059 = vmatprep.subr.mxu0 0.0
    %6060 = vmatpush1.msra.mxu0 0.0
    %6061 = vmatprep.subr.mxu0 0.0
    %6062 = vmatpush1.msra.mxu0 0.0
    %6063 = vmatprep.subr.mxu0 0.0
    %6064 = vmatpush1.msra.mxu0 0.0
    %6065 = vmatprep.subr.mxu0 0.0
    %6066 = vmatpush1.msra.mxu0 0.0
    %6067 = vmatprep.subr.mxu0 0.0
    %6068 = vmatpush1.msra.mxu0 0.0
    %6069 = vmatprep.subr.mxu0 0.0
    %6070 = vmatpush1.msra.mxu0 0.0
    %6071 = vmatprep.subr.mxu0 0.0
    %6072 = vmatpush1.msra.mxu0 0.0
    %6073 = vmatprep.subr.mxu0 0.0
    %6074 = vmatpush1.msra.mxu0 0.0
    %6075 = vmatprep.subr.mxu0 0.0
    %6076 = vmatpush1.msra.mxu0 0.0
    %6077 = vmatprep.subr.mxu0 0.0
    %6078 = vmatpush1.msra.mxu0 0.0
    %6079 = vmatprep.subr.mxu0 0.0
    %6080 = vmatpush1.msra.mxu0 0.0
    %6081 = vmatprep.subr.mxu0 0.0
    %6082 = vmatpush1.msra.mxu0 0.0
    %6083 = vmatprep.subr.mxu0 0.0
    %6084 = vmatpush1.msra.mxu0 0.0
    %6085 = vmatprep.mubr.f32.mxu0 0.0
    %6086 = vmatmul.mubr.f32.gmra.mrb[0].mxu0 %v5935
    %v6087 = vpop.f32.mrb[0].mxu0
    %v6088 = vadd.f32 %v6009, %v6087
    %v6089 = vpop.f32.mrb[0].mxu0
    %6090 = vmatprep.mubr.f32.mxu0 0.0
    %6091 = vmatmul.mubr.f32.gmra.mrb[0].mxu0 %v5937
    %v6092 = vpop.f32.mrb[0].mxu0
    %v6093 = vpop.f32.mrb[0].mxu0
    %6094 = vmatprep.mubr.f32.mxu0 0.0
    %6095 = vmatmul.mubr.f32.gmra.mrb[0].mxu0 %v5940
    %v6096 = vpop.f32.mrb[0].mxu0
    %v6097 = vadd.f32 %v6018, %v6096
    %v6098 = vpop.f32.mrb[0].mxu0
    %6099 = vdwg.mxu0
    %v6100 = vld [vmem:[%s83] sm:$0x1]
    %v6102 = vlaneseq
    %v6103 = vshrl.u32 %v6102, 7
    %v6104 = vsub.s32 0, %v6103
    %v6105 = vrot.slane %v6100, %v6104
    %v6107 = vmul.f32 %v6088, %v6105
    %v6108 = vmul.f32 %v6097, %v6105
    %v6109 = vld [vmem:[%s85] sm:$0x1]
    %v6111 = vlaneseq
    %v6112 = vshrl.u32 %v6111, 7
    %v6113 = vsub.s32 0, %v6112
    %v6114 = vrot.slane %v6109, %v6113
    %v6116 = vadd.f32 %v6107, %v6114
    %v6117 = vadd.f32 %v6108, %v6114
    %v6118 = vmax.f32 %v6116, 0.0
    %v6119 = vmax.f32 %v6117, 0.0
    %v6120 = vld [vmem:[%s5] sm:$0xff]
    %v6121 = vld [vmem:[%s5 + $0x10] sm:$0xff]
    %vm6122 = vcmp.gt.f32.partialorder %v6120, 0.5
    %vm6123 = vcmp.gt.f32.partialorder %v6121, 0.5
    %v6124 = vsel %vm6122, 1, 0
    %v6125 = vsel %vm6123, 1, 0
    %6126 = vset.pattern.permute.xlu0 0
    %6127 = vperm.xlu0 %6126, %v6124
    %v6128 = vpop.permute.xlu0 %6127
    %6129 = vset.pattern.permute.xlu0 0
    %6130 = vperm.xlu0 %6129, %v6125
    %v6131 = vpop.permute.xlu0 %6130
    %vm6132 = vcmp.eq.s32.totalorder %v6128, 1
    %vm6133 = vcmp.eq.s32.totalorder %v6131, 1
    %v6134 = vsel %vm6132, %v6118, 0.0
    %v6135 = vsel %vm6133, %v6119, 0.0
    %v6136 = vsel %vm2187, %v6134, 0.0
    %v6137 = vrot.slane %v6136, 4
    %v6138 = vadd.f32 %v6136, %v6137
    %v6139 = vrot.slane %v6138, 2
    %v6140 = vadd.f32 %v6138, %v6139
    %v6141 = vrot.slane %v6140, 1
    %v6142 = vadd.f32 %v6140, %v6141
    %v6143 = vsel %vm2187, %v6135, 0.0
    %v6144 = vrot.slane %v6143, 4
    %v6145 = vadd.f32 %v6143, %v6144
    %v6146 = vrot.slane %v6145, 2
    %v6147 = vadd.f32 %v6145, %v6146
    %v6148 = vrot.slane %v6147, 1
    %v6149 = vadd.f32 %v6147, %v6148
    %vm6150 = vcmask 1040384
    %v6151 = vsel %vm6150, %v6142, %v6149
    %v6152 = vmul.f32 %v6151, 0.25
    %v6153 = vld [vmem:[%s7] sm:$0xff]
    %v6154 = vld [vmem:[%s7 + $0x8] sm:$0xff]
    %v6155 = vld [vmem:[%s7 + $0x10] sm:$0xff]
    %v6156 = vld [vmem:[%s7 + $0x18] sm:$0xff]
    %v6157 = vld [vmem:[%s7 + $0x20] sm:$0xff]
    %v6158 = vld [vmem:[%s7 + $0x28] sm:$0xff]
    %v6159 = vld [vmem:[%s7 + $0x30] sm:$0xff]
    %v6160 = vld [vmem:[%s7 + $0x38] sm:$0xff]
    %v6161 = vld [vmem:[%s9] sm:$0x1]
    %v6163 = vlaneseq
    %v6164 = vshrl.u32 %v6163, 7
    %v6165 = vsub.s32 0, %v6164
    %v6166 = vrot.slane %v6161, %v6165
    %v6169 = vsel %vm2187, %v6152, 0
    %6171 = vmatprep.subr.mxu0 0.0
    %6172 = vmatpush1.msra.mxu0 %v6153
    %6173 = vmatprep.subr.mxu0 0.0
    %6174 = vmatpush1.msra.mxu0 %v6154
    %6175 = vmatprep.subr.mxu0 0.0
    %6176 = vmatpush1.msra.mxu0 %v6155
    %6177 = vmatprep.subr.mxu0 0.0
    %6178 = vmatpush1.msra.mxu0 %v6156
    %6179 = vmatprep.subr.mxu0 0.0
    %6180 = vmatpush1.msra.mxu0 %v6157
    %6181 = vmatprep.subr.mxu0 0.0
    %6182 = vmatpush1.msra.mxu0 %v6158
    %6183 = vmatprep.subr.mxu0 0.0
    %6184 = vmatpush1.msra.mxu0 %v6159
    %6185 = vmatprep.subr.mxu0 0.0
    %6186 = vmatpush1.msra.mxu0 %v6160
    %6187 = vmatprep.subr.mxu0 0.0
    %6188 = vmatpush1.msra.mxu0 0.0
    %6189 = vmatprep.subr.mxu0 0.0
    %6190 = vmatpush1.msra.mxu0 0.0
    %6191 = vmatprep.subr.mxu0 0.0
    %6192 = vmatpush1.msra.mxu0 0.0
    %6193 = vmatprep.subr.mxu0 0.0
    %6194 = vmatpush1.msra.mxu0 0.0
    %6195 = vmatprep.subr.mxu0 0.0
    %6196 = vmatpush1.msra.mxu0 0.0
    %6197 = vmatprep.subr.mxu0 0.0
    %6198 = vmatpush1.msra.mxu0 0.0
    %6199 = vmatprep.subr.mxu0 0.0
    %6200 = vmatpush1.msra.mxu0 0.0
    %6201 = vmatprep.subr.mxu0 0.0
    %6202 = vmatpush1.msra.mxu0 0.0
    %6203 = vmatprep.subr.mxu0 0.0
    %6204 = vmatpush1.msra.mxu0 0.0
    %6205 = vmatprep.subr.mxu0 0.0
    %6206 = vmatpush1.msra.mxu0 0.0
    %6207 = vmatprep.subr.mxu0 0.0
    %6208 = vmatpush1.msra.mxu0 0.0
    %6209 = vmatprep.subr.mxu0 0.0
    %6210 = vmatpush1.msra.mxu0 0.0
    %6211 = vmatprep.subr.mxu0 0.0
    %6212 = vmatpush1.msra.mxu0 0.0
    %6213 = vmatprep.subr.mxu0 0.0
    %6214 = vmatpush1.msra.mxu0 0.0
    %6215 = vmatprep.subr.mxu0 0.0
    %6216 = vmatpush1.msra.mxu0 0.0
    %6217 = vmatprep.subr.mxu0 0.0
    %6218 = vmatpush1.msra.mxu0 0.0
    %6219 = vmatprep.subr.mxu0 0.0
    %6220 = vmatpush1.msra.mxu0 0.0
    %6221 = vmatprep.subr.mxu0 0.0
    %6222 = vmatpush1.msra.mxu0 0.0
    %6223 = vmatprep.subr.mxu0 0.0
    %6224 = vmatpush1.msra.mxu0 0.0
    %6225 = vmatprep.subr.mxu0 0.0
    %6226 = vmatpush1.msra.mxu0 0.0
    %6227 = vmatprep.subr.mxu0 0.0
    %6228 = vmatpush1.msra.mxu0 0.0
    %6229 = vmatprep.subr.mxu0 0.0
    %6230 = vmatpush1.msra.mxu0 0.0
    %6231 = vmatprep.subr.mxu0 0.0
    %6232 = vmatpush1.msra.mxu0 0.0
    %6233 = vmatprep.subr.mxu0 0.0
    %6234 = vmatpush1.msra.mxu0 0.0
    %6235 = vmatprep.mubr.f32.mxu0 0.0
    %6236 = vmatmul.mubr.f32.gmra.mrb[0].mxu0 %v6169
    %v6237 = vpop.f32.mrb[0].mxu0
    %v6238 = vadd.f32 %v6166, %v6237
    %v6239 = vpop.f32.mrb[0].mxu0
    %6240 = vdwg.mxu0
    %v6241 = vmax.f32 %v6238, 0.0
    %v6242 = vld [vmem:[%s11] sm:$0xff]
    %v6243 = vld [vmem:[%s11 + $0x8] sm:$0xff]
    %v6244 = vld [vmem:[%s13] sm:$0x1]
    %v6246 = vlaneseq
    %v6247 = vshrl.u32 %v6246, 7
    %v6248 = vsub.s32 0, %v6247
    %v6249 = vrot.slane %v6244, %v6248
    %v6252 = vsel %vm2852, %v6241, 0
    %6254 = vmatprep.subr.mxu0 0.0
    %6255 = vmatpush1.msra.mxu0 %v6242
    %6256 = vmatprep.subr.mxu0 0.0
    %6257 = vmatpush1.msra.mxu0 %v6243
    %6258 = vmatprep.subr.mxu0 0.0
    %6259 = vmatpush1.msra.mxu0 0.0
    %6260 = vmatprep.subr.mxu0 0.0
    %6261 = vmatpush1.msra.mxu0 0.0
    %6262 = vmatprep.subr.mxu0 0.0
    %6263 = vmatpush1.msra.mxu0 0.0
    %6264 = vmatprep.subr.mxu0 0.0
    %6265 = vmatpush1.msra.mxu0 0.0
    %6266 = vmatprep.subr.mxu0 0.0
    %6267 = vmatpush1.msra.mxu0 0.0
    %6268 = vmatprep.subr.mxu0 0.0
    %6269 = vmatpush1.msra.mxu0 0.0
    %6270 = vmatprep.subr.mxu0 0.0
    %6271 = vmatpush1.msra.mxu0 0.0
    %6272 = vmatprep.subr.mxu0 0.0
    %6273 = vmatpush1.msra.mxu0 0.0
    %6274 = vmatprep.subr.mxu0 0.0
    %6275 = vmatpush1.msra.mxu0 0.0
    %6276 = vmatprep.subr.mxu0 0.0
    %6277 = vmatpush1.msra.mxu0 0.0
    %6278 = vmatprep.subr.mxu0 0.0
    %6279 = vmatpush1.msra.mxu0 0.0
    %6280 = vmatprep.subr.mxu0 0.0
    %6281 = vmatpush1.msra.mxu0 0.0
    %6282 = vmatprep.subr.mxu0 0.0
    %6283 = vmatpush1.msra.mxu0 0.0
    %6284 = vmatprep.subr.mxu0 0.0
    %6285 = vmatpush1.msra.mxu0 0.0
    %6286 = vmatprep.subr.mxu0 0.0
    %6287 = vmatpush1.msra.mxu0 0.0
    %6288 = vmatprep.subr.mxu0 0.0
    %6289 = vmatpush1.msra.mxu0 0.0
    %6290 = vmatprep.subr.mxu0 0.0
    %6291 = vmatpush1.msra.mxu0 0.0
    %6292 = vmatprep.subr.mxu0 0.0
    %6293 = vmatpush1.msra.mxu0 0.0
    %6294 = vmatprep.subr.mxu0 0.0
    %6295 = vmatpush1.msra.mxu0 0.0
    %6296 = vmatprep.subr.mxu0 0.0
    %6297 = vmatpush1.msra.mxu0 0.0
    %6298 = vmatprep.subr.mxu0 0.0
    %6299 = vmatpush1.msra.mxu0 0.0
    %6300 = vmatprep.subr.mxu0 0.0
    %6301 = vmatpush1.msra.mxu0 0.0
    %6302 = vmatprep.subr.mxu0 0.0
    %6303 = vmatpush1.msra.mxu0 0.0
    %6304 = vmatprep.subr.mxu0 0.0
    %6305 = vmatpush1.msra.mxu0 0.0
    %6306 = vmatprep.subr.mxu0 0.0
    %6307 = vmatpush1.msra.mxu0 0.0
    %6308 = vmatprep.subr.mxu0 0.0
    %6309 = vmatpush1.msra.mxu0 0.0
    %6310 = vmatprep.subr.mxu0 0.0
    %6311 = vmatpush1.msra.mxu0 0.0
    %6312 = vmatprep.subr.mxu0 0.0
    %6313 = vmatpush1.msra.mxu0 0.0
    %6314 = vmatprep.subr.mxu0 0.0
    %6315 = vmatpush1.msra.mxu0 0.0
    %6316 = vmatprep.subr.mxu0 0.0
    %6317 = vmatpush1.msra.mxu0 0.0
    %6318 = vmatprep.mubr.f32.mxu0 0.0
    %6319 = vmatmul.mubr.f32.gmra.mrb[0].mxu0 %v6252
    %v6320 = vpop.f32.mrb[0].mxu0
    %v6321 = vadd.f32 %v6249, %v6320
    %v6322 = vpop.f32.mrb[0].mxu0
    %6323 = vdwg.mxu0
    %vm6324 = vcmask 9216
    %6325 = vst.msk [vmem:[#allocation13] sm:$0x3] %vm6324, %v6321
    // Predicated region
    $region174: #{bed_forward.1} parent=1 // pred_check
      _
    $region175: #{bed_forward.1} parent=1 // pred_check_branch
      %6327 = sbr.rel (0) target = $region177
    $region176: #{bed_forward.1} parent=1 // pred_region
      %s6329 = ssub.s32 32, 32
      %6330 = vsyncadd [#allocation14], %s6329
      %s6332 = sshll.u32 [#allocation13], 4
      %s6333 = int_to_ptr.vmem [resolvable:$true] %s6332
      %6335 = dma.vmem_to_hbm [thread:$0]  %s6333, 32, %s87, [#allocation14]
    $region177: #{bed_forward.1} parent=1 // pred_fallthru
      _
    // Predicated region
    $region178: #{bed_forward.1} parent=1 // pred_check
      _
    $region179: #{bed_forward.1} parent=1 // pred_check_branch
      %6337 = sbr.rel (0) target = $region181
    $region180: #{bed_forward.1} parent=1 // pred_region
      %6338 = dma.done [#allocation14], 32
    $region181: #{bed_forward.1} parent=1 // pred_fallthru
      _
    %6339 = vsyncpa [#allocation14], 1

</llo_original>
